<compile_context>
chip_gen: v6e
topology: v6e:2x2x1
jax: 0.10.0
libtpu: 0.0.40
codegen_flags: <defaults>
</compile_context>

<pallas_src>
import functools
import numpy as np
import jax
import jax.numpy as jnp
from jax import lax
from jax.experimental import pallas as pl
from jax.experimental.pallas import tpu as pltpu

F32 = jnp.float32
LANE = 128
SUB = 8


def _round_up(x, m):
    return ((x + m - 1) // m) * m


def _pad_to(x, shape):
    x = x.astype(F32)
    out = jnp.zeros(shape, F32)
    return out.at[tuple(slice(0, s) for s in x.shape)].set(x)


def _mm(a, b):
    return jnp.dot(a, b, preferred_element_type=F32)


# ------------------------------ fused kernel ------------------------------- #

def fused_msggnn_kernel(
        gin, gout, scat_msg, scat_node, ff, bvec, tgt,
        w1a, w1b, w1f, mb1, w2, mb2, w3, mb3,
        wih, whh, bih, bhh,
        ow1s, ow1b, ob1, ow2, ob2, ow3, ob3,
        out_ref,
        state_sc, ffp_sc,
        *, num_prop, num_node, hp, vp, out_valid):
    # one-time setup: zero message state, hoist loop-invariant ff @ W1_ff + b1
    state_sc[...] = jnp.zeros(state_sc.shape, F32)
    ffp_sc[...] = _mm(ff[...], w1f[...]) + mb1[...]

    # num_prop propagation steps; state stays resident in VMEM scratch
    def step(_, carry):
        st = state_sc[...]                                   # [EP, HP]
        s_in = _mm(gin[...], st)                             # state[edge_in]   [MP, HP]
        s_out = _mm(gout[...], st)                           # state[edge_out]  [MP, HP]
        h = jnp.maximum(_mm(s_in, w1a[...]) + _mm(s_out, w1b[...]) + ffp_sc[...], 0.0)
        h = jnp.maximum(_mm(h, w2[...]) + mb2[...], 0.0)
        msg = _mm(h, w3[...]) + mb3[...]                     # [MP, HP]
        agg = _mm(scat_msg[...], msg)                        # scatter-add @ edge_out [EP, HP]
        # GRUCell(input=agg, hidden=st), gates packed as r|z|n along lanes
        gx = _mm(agg, wih[...]) + bih[...]                   # [EP, 3*HP]
        gh = _mm(st, whh[...]) + bhh[...]
        r = jax.nn.sigmoid(gx[:, :hp] + gh[:, :hp])
        z = jax.nn.sigmoid(gx[:, hp:2 * hp] + gh[:, hp:2 * hp])
        n = jnp.tanh(gx[:, 2 * hp:] + r * gh[:, 2 * hp:])
        state_sc[...] = (1.0 - z) * n + z * st
        return carry

    lax.fori_loop(0, num_prop, step, 0, unroll=True)

    # output head: scatter message states to their destination node, MLP, log_softmax
    st = state_sc[...]
    nagg = _mm(scat_node[...], st)                           # [VP, HP]
    h = jnp.maximum(_mm(nagg, ow1s[...]) + bvec[...] * ow1b[...] + ob1[...], 0.0)
    h = jnp.maximum(_mm(h, ow2[...]) + ob2[...], 0.0)
    logits = _mm(h, ow3[...]) + ob3[...]                     # [VP, OUTP]
    col = lax.broadcasted_iota(jnp.int32, logits.shape, 1)
    logits = jnp.where(col < out_valid, logits, -1e30)       # mask padded lanes
    m = jnp.max(logits, axis=1, keepdims=True)
    lse = jnp.log(jnp.sum(jnp.exp(logits - m), axis=1, keepdims=True)) + m
    y = logits - lse                                         # log_softmax over valid cols

    # KLDivLoss(reduction='batchmean'); zero-target terms contribute 0 (torch xlogy)
    t = tgt[...]
    tlogt = jnp.where(t > 0.0, t * jnp.log(jnp.maximum(t, 1e-30)), 0.0)
    loss = jnp.sum(tlogt - t * y) * (1.0 / num_node)

    # single lane-dense output slab: rows [0, VP) = padded y, rows [VP, VP+8) = loss
    out_ref[:vp, :] = y
    out_ref[vp:, :] = jnp.full((out_ref.shape[0] - vp, y.shape[1]), loss, F32)


# ----------------------------- parameter init ------------------------------ #

def _xavier(key, fan_in, fan_out):
    bound = float(np.sqrt(6.0 / (fan_in + fan_out)))
    return jax.random.uniform(key, (fan_in, fan_out), F32, -bound, bound)


def init_params(key, H):
    ks = jax.random.split(key, 20)
    p = {}
    # msg_func: Linear(2H+16,64) ReLU Linear(64,64) ReLU Linear(64,H), zero biases
    p['msg_w1'] = _xavier(ks[0], 2 * H + 16, 64)
    p['msg_b1'] = jnp.zeros((1, 64), F32)
    p['msg_w2'] = _xavier(ks[1], 64, 64)
    p['msg_b2'] = jnp.zeros((1, 64), F32)
    p['msg_w3'] = _xavier(ks[2], 64, H)
    p['msg_b3'] = jnp.zeros((1, H), F32)
    # GRUCell(H, H): uniform(-1/sqrt(H), 1/sqrt(H)), stored input-major [H, H]
    k = 1.0 / float(np.sqrt(H))
    for i, name in enumerate(['wir', 'wiz', 'win', 'whr', 'whz', 'whn']):
        p['gru_' + name] = jax.random.uniform(ks[3 + i], (H, H), F32, -k, k)
    for i, name in enumerate(['bir', 'biz', 'bin', 'bhr', 'bhz', 'bhn']):
        p['gru_' + name] = jax.random.uniform(ks[9 + i], (1, H), F32, -k, k)
    # output_func: Linear(H+2,64) ReLU Linear(64,64) ReLU Linear(64,2), zero biases
    p['out_w1'] = _xavier(ks[15], H + 2, 64)
    p['out_b1'] = jnp.zeros((1, 64), F32)
    p['out_w2'] = _xavier(ks[16], 64, 64)
    p['out_b2'] = jnp.zeros((1, 64), F32)
    p['out_w3'] = _xavier(ks[17], 64, 2)
    p['out_b3'] = jnp.zeros((1, 2), F32)
    return p


# -------------------------------- wrapper ----------------------------------- #

def gnn_forward(params, J_msg, b, msg_node, idx_msg_edge, target, *, num_prop, hidden_dim):
    V = int(b.shape[0])
    E = int(msg_node.shape[1])          # number of messages (state rows)
    M = int(idx_msg_edge.shape[1])      # number of message->message edges
    H = hidden_dim

    HP = _round_up(H, LANE)             # hidden state, lane-padded (128)
    DH = _round_up(64, LANE)            # MLP hidden, lane-padded (128)
    OUTP = _round_up(2, LANE)           # logits, lane-padded (128)
    EP = _round_up(E, LANE)             # message axis (lane dim of gathers)
    MP = _round_up(M, LANE)             # message-edge axis (lane dim of scatter)
    VP = _round_up(V, SUB)              # node axis (rows only)
    G3 = 3 * HP

    b = b.astype(F32)
    J = J_msg.astype(F32)
    mn = msg_node.T                     # [E, 2]  (src node, dst node) per message
    ie = idx_msg_edge.T                 # [M, 2]  (edge_in, edge_out) message indices
    edge_in, edge_out = ie[:, 0], ie[:, 1]

    # glue: static per-message features f(e) and per-message-edge block [M, 16]
    b_src, b_dst = b[mn[:, 0]], b[mn[:, 1]]
    f = jnp.concatenate([b_src, -b_src, b_dst, -b_dst, J, -J, -J, J], axis=1)   # [E, 8]
    ff = _pad_to(jnp.concatenate([f[edge_in], f[edge_out]], axis=1), (MP, 16))

    # glue: dense one-hot gather / scatter operators (zero-padded)
    gin = _pad_to(jax.nn.one_hot(edge_in, EP, dtype=F32), (MP, EP))
    gout = _pad_to(jax.nn.one_hot(edge_out, EP, dtype=F32), (MP, EP))
    scat_msg = gout.T                                        # [EP, MP]  'add' aggregation
    scat_node = _pad_to(jax.nn.one_hot(mn[:, 1], VP, dtype=F32).T, (VP, EP))
    bvec = _pad_to(b, (VP, 1))
    tgt = _pad_to(target, (VP, OUTP))

    # pack / zero-pad weights so every lane dim is 128
    W1 = params['msg_w1']               # rows: state_in | ff_in(8) | state_out | ff_out(8)
    w1a = _pad_to(W1[:H], (HP, DH))
    w1b = _pad_to(W1[H + 8:2 * H + 8], (HP, DH))
    w1f = _pad_to(jnp.concatenate([W1[H:H + 8], W1[2 * H + 8:2 * H + 16]], 0), (16, DH))
    mb1 = _pad_to(params['msg_b1'], (1, DH))
    w2 = _pad_to(params['msg_w2'], (DH, DH))
    mb2 = _pad_to(params['msg_b2'], (1, DH))
    w3 = _pad_to(params['msg_w3'], (DH, HP))
    mb3 = _pad_to(params['msg_b3'], (1, HP))

    wih = jnp.zeros((HP, G3), F32)
    whh = jnp.zeros((HP, G3), F32)
    bih = jnp.zeros((1, G3), F32)
    bhh = jnp.zeros((1, G3), F32)
    for g, gate in enumerate(['r', 'z', 'n']):
        wih = wih.at[:H, g * HP:g * HP + H].set(params['gru_wi' + gate])
        whh = whh.at[:H, g * HP:g * HP + H].set(params['gru_wh' + gate])
        bih = bih.at[:, g * HP:g * HP + H].set(params['gru_bi' + gate])
        bhh = bhh.at[:, g * HP:g * HP + H].set(params['gru_bh' + gate])

    Wo1 = params['out_w1']
    ow1s = _pad_to(Wo1[:H], (HP, DH))
    ow1b = _pad_to(Wo1[H:H + 1] - Wo1[H + 1:H + 2], (1, DH))   # rows for b and -b folded
    ob1 = _pad_to(params['out_b1'], (1, DH))
    ow2 = _pad_to(params['out_w2'], (DH, DH))
    ob2 = _pad_to(params['out_b2'], (1, DH))
    ow3 = _pad_to(params['out_w3'], (DH, OUTP))
    ob3 = _pad_to(params['out_b3'], (1, OUTP))

    args = [gin, gout, scat_msg, scat_node, ff, bvec, tgt,
            w1a, w1b, w1f, mb1, w2, mb2, w3, mb3,
            wih, whh, bih, bhh,
            ow1s, ow1b, ob1, ow2, ob2, ow3, ob3]

    # advisory cost estimate for the XLA scheduler
    def mmf(m, k, n):
        return 2 * m * k * n
    step_flops = (2 * mmf(MP, EP, HP) + 2 * mmf(MP, HP, DH) + mmf(MP, DH, DH)
                  + mmf(MP, DH, HP) + mmf(EP, MP, HP) + 2 * mmf(EP, HP, G3)
                  + 12 * EP * HP)
    head_flops = (mmf(VP, EP, HP) + mmf(VP, HP, DH) + mmf(VP, DH, DH)
                  + mmf(VP, DH, OUTP) + 8 * VP * OUTP)
    flops = int(num_prop * step_flops + head_flops + mmf(MP, 16, DH))
    transcendentals = int(num_prop * 3 * EP * HP + VP * OUTP)
    bytes_accessed = int(sum(int(np.prod(a.shape)) * 4 for a in args)
                         + (VP + SUB) * OUTP * 4)

    out = pl.pallas_call(
        functools.partial(fused_msggnn_kernel, num_prop=num_prop, num_node=V,
                          hp=HP, vp=VP, out_valid=2),
        out_shape=jax.ShapeDtypeStruct((VP + SUB, OUTP), F32),
        in_specs=[pl.BlockSpec(memory_space=pltpu.MemorySpace.VMEM)] * len(args),
        out_specs=pl.BlockSpec(memory_space=pltpu.MemorySpace.VMEM),
        scratch_shapes=[pltpu.VMEM((EP, HP), F32),    # resident message state
                        pltpu.VMEM((MP, DH), F32)],   # hoisted ff @ W1_ff + b1
        cost_estimate=pl.CostEstimate(flops=flops, transcendentals=transcendentals,
                                      bytes_accessed=bytes_accessed),
    )(*args)

    y = out[:V, :2]
    loss = out[VP, 0]
    return y, loss


# --------------------------- pure-JAX reference ----------------------------- #

def gnn_forward_ref(params, J_msg, b, msg_node, idx_msg_edge, target, *, num_prop, hidden_dim):
    V, H = int(b.shape[0]), hidden_dim
    E = int(msg_node.shape[1])
    b = b.astype(F32)
    J = J_msg.astype(F32)
    mn = msg_node.T
    ie = idx_msg_edge.T
    ein, eout = ie[:, 0], ie[:, 1]
    b_src, b_dst = b[mn[:, 0]], b[mn[:, 1]]
    f = jnp.concatenate([b_src, -b_src, b_dst, -b_dst, J, -J, -J, J], axis=1)
    ff_in, ff_out = f[ein], f[eout]
    state = jnp.zeros((E, H), F32)
    for _ in range(num_prop):
        x = jnp.concatenate([state[ein], ff_in, state[eout], ff_out], axis=1)
        h = jax.nn.relu(x @ params['msg_w1'] + params['msg_b1'])
        h = jax.nn.relu(h @ params['msg_w2'] + params['msg_b2'])
        msg = h @ params['msg_w3'] + params['msg_b3']
        agg = jax.ops.segment_sum(msg, eout, num_segments=E)
        r = jax.nn.sigmoid(agg @ params['gru_wir'] + params['gru_bir'] +
                           state @ params['gru_whr'] + params['gru_bhr'])
        z = jax.nn.sigmoid(agg @ params['gru_wiz'] + params['gru_biz'] +
                           state @ params['gru_whz'] + params['gru_bhz'])
        n = jnp.tanh(agg @ params['gru_win'] + params['gru_bin'] +
                     r * (state @ params['gru_whn'] + params['gru_bhn']))
        state = (1.0 - z) * n + z * state
    node_agg = jax.ops.segment_sum(state, mn[:, 1], num_segments=V)
    xcat = jnp.concatenate([node_agg, b, -b], axis=1)
    h = jax.nn.relu(xcat @ params['out_w1'] + params['out_b1'])
    h = jax.nn.relu(h @ params['out_w2'] + params['out_b2'])
    logits = h @ params['out_w3'] + params['out_b3']
    y = jax.nn.log_softmax(logits, axis=1)
    t = target.astype(F32)
    tlogt = jnp.where(t > 0.0, t * jnp.log(jnp.maximum(t, 1e-30)), 0.0)
    loss = jnp.sum(tlogt - t * y) / V
    return y, loss


# ---------------------------------- main ------------------------------------ #

if __name__ == "__main__":
    V, E, M, H, NUM_PROP = 8, 16, 32, 32, 3
    key = jax.random.PRNGKey(0)
    kp, kb, kj, km, ke, kt = jax.random.split(key, 6)

    params = init_params(kp, H)
    b = jax.random.normal(kb, (V, 1), F32)                  # node field        |V| x 1
    J_msg = jax.random.normal(kj, (E, 1), F32)              # per-msg coupling  |E| x 1
    msg_node = jax.random.randint(km, (2, E), 0, V)         # (src,dst) node    2 x |E|
    idx_msg_edge = jax.random.randint(ke, (2, M), 0, E)     # msg->msg edges    2 x |M|
    target = jax.nn.softmax(jax.random.normal(kt, (V, 2), F32), axis=1)

    y, loss = gnn_forward(params, J_msg, b, msg_node, idx_msg_edge, target,
                          num_prop=NUM_PROP, hidden_dim=H)
    jax.block_until_ready((y, loss))

    y_ref, loss_ref = gnn_forward_ref(params, J_msg, b, msg_node, idx_msg_edge, target,
                                      num_prop=NUM_PROP, hidden_dim=H)
    np.testing.assert_allclose(np.asarray(y), np.asarray(y_ref), rtol=2e-2, atol=2e-2)
    np.testing.assert_allclose(float(loss), float(loss_ref), rtol=2e-2, atol=2e-2)

    print("KERNEL_OK")
</pallas_src>

<mosaic_0001>
module attributes {stable_mosaic.version = 11 : i64} {
  func.func @fused_msggnn_kernel(%arg0: memref<128x128xf32, #tpu.memory_space<vmem>>, %arg1: memref<128x128xf32, #tpu.memory_space<vmem>>, %arg2: memref<128x128xf32, #tpu.memory_space<vmem>>, %arg3: memref<8x128xf32, #tpu.memory_space<vmem>>, %arg4: memref<128x16xf32, #tpu.memory_space<vmem>>, %arg5: memref<8x1xf32, #tpu.memory_space<vmem>>, %arg6: memref<8x128xf32, #tpu.memory_space<vmem>>, %arg7: memref<128x128xf32, #tpu.memory_space<vmem>>, %arg8: memref<128x128xf32, #tpu.memory_space<vmem>>, %arg9: memref<16x128xf32, #tpu.memory_space<vmem>>, %arg10: memref<1x128xf32, #tpu.memory_space<vmem>>, %arg11: memref<128x128xf32, #tpu.memory_space<vmem>>, %arg12: memref<1x128xf32, #tpu.memory_space<vmem>>, %arg13: memref<128x128xf32, #tpu.memory_space<vmem>>, %arg14: memref<1x128xf32, #tpu.memory_space<vmem>>, %arg15: memref<128x384xf32, #tpu.memory_space<vmem>>, %arg16: memref<128x384xf32, #tpu.memory_space<vmem>>, %arg17: memref<1x384xf32, #tpu.memory_space<vmem>>, %arg18: memref<1x384xf32, #tpu.memory_space<vmem>>, %arg19: memref<128x128xf32, #tpu.memory_space<vmem>>, %arg20: memref<1x128xf32, #tpu.memory_space<vmem>>, %arg21: memref<1x128xf32, #tpu.memory_space<vmem>>, %arg22: memref<128x128xf32, #tpu.memory_space<vmem>>, %arg23: memref<1x128xf32, #tpu.memory_space<vmem>>, %arg24: memref<128x128xf32, #tpu.memory_space<vmem>>, %arg25: memref<1x128xf32, #tpu.memory_space<vmem>>, %arg26: memref<16x128xf32, #tpu.memory_space<vmem>>, %arg27: memref<128x128xf32, #tpu.memory_space<vmem>>, %arg28: memref<128x128xf32, #tpu.memory_space<vmem>>) attributes {dimension_semantics = [], scalar_prefetch = 0 : i64, scratch_operands = 2 : i64, tpu.core_type = #tpu.core_type<tc>} {
    %cst = arith.constant 0.000000e+00 : f32
    %0 = vector.broadcast %cst : f32 to vector<128x128xf32>
    %c0 = arith.constant 0 : index
    %c0_0 = arith.constant 0 : index
    %1 = vector.load %arg27[%c0, %c0_0] : memref<128x128xf32, #tpu.memory_space<vmem>>, vector<128x128xf32>
    tpu.vector_store %arg27[%c0, %c0_0], %0 {strides = array<i32>} : memref<128x128xf32, #tpu.memory_space<vmem>>, vector<128x128xf32>,
    %c0_1 = arith.constant 0 : index
    %c0_2 = arith.constant 0 : index
    %2 = vector.load %arg4[%c0_1, %c0_2] : memref<128x16xf32, #tpu.memory_space<vmem>>, vector<128x16xf32>
    %c0_3 = arith.constant 0 : index
    %c0_4 = arith.constant 0 : index
    %3 = vector.load %arg9[%c0_3, %c0_4] : memref<16x128xf32, #tpu.memory_space<vmem>>, vector<16x128xf32>
    %cst_5 = arith.constant dense<0.000000e+00> : vector<128x128xf32>
    %4 = tpu.matmul %2, %3, %cst_5 {dimension_numbers = #tpu.dot_dimension_numbers<[1], [0], [0], [1], [0, 0, 1, 1], [], []>} : vector<128x16xf32>, vector<16x128xf32>, vector<128x128xf32> -> vector<128x128xf32>
    %c0_6 = arith.constant 0 : index
    %c0_7 = arith.constant 0 : index
    %5 = vector.load %arg10[%c0_6, %c0_7] : memref<1x128xf32, #tpu.memory_space<vmem>>, vector<1x128xf32>
    %6 = vector.broadcast %5 : vector<1x128xf32> to vector<128x128xf32>
    %7 = arith.addf %4, %6 : vector<128x128xf32>
    %c0_8 = arith.constant 0 : index
    %c0_9 = arith.constant 0 : index
    %8 = vector.load %arg28[%c0_8, %c0_9] : memref<128x128xf32, #tpu.memory_space<vmem>>, vector<128x128xf32>
    tpu.vector_store %arg28[%c0_8, %c0_9], %7 {strides = array<i32>} : memref<128x128xf32, #tpu.memory_space<vmem>>, vector<128x128xf32>,
    %c0_i32 = arith.constant 0 : i32
    %c0_10 = arith.constant 0 : index
    %c0_11 = arith.constant 0 : index
    %9 = vector.load %arg27[%c0_10, %c0_11] : memref<128x128xf32, #tpu.memory_space<vmem>>, vector<128x128xf32>
    %c0_12 = arith.constant 0 : index
    %c0_13 = arith.constant 0 : index
    %10 = vector.load %arg0[%c0_12, %c0_13] : memref<128x128xf32, #tpu.memory_space<vmem>>, vector<128x128xf32>
    %cst_14 = arith.constant dense<0.000000e+00> : vector<128x128xf32>
    %11 = tpu.matmul %10, %9, %cst_14 {dimension_numbers = #tpu.dot_dimension_numbers<[1], [0], [0], [1], [0, 0, 1, 1], [], []>} : vector<128x128xf32>, vector<128x128xf32>, vector<128x128xf32> -> vector<128x128xf32>
    %c0_15 = arith.constant 0 : index
    %c0_16 = arith.constant 0 : index
    %12 = vector.load %arg1[%c0_15, %c0_16] : memref<128x128xf32, #tpu.memory_space<vmem>>, vector<128x128xf32>
    %cst_17 = arith.constant dense<0.000000e+00> : vector<128x128xf32>
    %13 = tpu.matmul %12, %9, %cst_17 {dimension_numbers = #tpu.dot_dimension_numbers<[1], [0], [0], [1], [0, 0, 1, 1], [], []>} : vector<128x128xf32>, vector<128x128xf32>, vector<128x128xf32> -> vector<128x128xf32>
    %c0_18 = arith.constant 0 : index
    %c0_19 = arith.constant 0 : index
    %14 = vector.load %arg7[%c0_18, %c0_19] : memref<128x128xf32, #tpu.memory_space<vmem>>, vector<128x128xf32>
    %cst_20 = arith.constant dense<0.000000e+00> : vector<128x128xf32>
    %15 = tpu.matmul %11, %14, %cst_20 {dimension_numbers = #tpu.dot_dimension_numbers<[1], [0], [0], [1], [0, 0, 1, 1], [], []>} : vector<128x128xf32>, vector<128x128xf32>, vector<128x128xf32> -> vector<128x128xf32>
    %c0_21 = arith.constant 0 : index
    %c0_22 = arith.constant 0 : index
    %16 = vector.load %arg8[%c0_21, %c0_22] : memref<128x128xf32, #tpu.memory_space<vmem>>, vector<128x128xf32>
    %cst_23 = arith.constant dense<0.000000e+00> : vector<128x128xf32>
    %17 = tpu.matmul %13, %16, %cst_23 {dimension_numbers = #tpu.dot_dimension_numbers<[1], [0], [0], [1], [0, 0, 1, 1], [], []>} : vector<128x128xf32>, vector<128x128xf32>, vector<128x128xf32> -> vector<128x128xf32>
    %18 = arith.addf %15, %17 : vector<128x128xf32>
    %c0_24 = arith.constant 0 : index
    %c0_25 = arith.constant 0 : index
    %19 = vector.load %arg28[%c0_24, %c0_25] : memref<128x128xf32, #tpu.memory_space<vmem>>, vector<128x128xf32>
    %20 = arith.addf %18, %19 : vector<128x128xf32>
    %cst_26 = arith.constant 0.000000e+00 : f32
    %21 = vector.broadcast %cst_26 : f32 to vector<128x128xf32>
    %22 = arith.maximumf %20, %21 : vector<128x128xf32>
    %c0_27 = arith.constant 0 : index
    %c0_28 = arith.constant 0 : index
    %23 = vector.load %arg11[%c0_27, %c0_28] : memref<128x128xf32, #tpu.memory_space<vmem>>, vector<128x128xf32>
    %cst_29 = arith.constant dense<0.000000e+00> : vector<128x128xf32>
    %24 = tpu.matmul %22, %23, %cst_29 {dimension_numbers = #tpu.dot_dimension_numbers<[1], [0], [0], [1], [0, 0, 1, 1], [], []>} : vector<128x128xf32>, vector<128x128xf32>, vector<128x128xf32> -> vector<128x128xf32>
    %c0_30 = arith.constant 0 : index
    %c0_31 = arith.constant 0 : index
    %25 = vector.load %arg12[%c0_30, %c0_31] : memref<1x128xf32, #tpu.memory_space<vmem>>, vector<1x128xf32>
    %26 = vector.broadcast %25 : vector<1x128xf32> to vector<128x128xf32>
    %27 = arith.addf %24, %26 : vector<128x128xf32>
    %cst_32 = arith.constant 0.000000e+00 : f32
    %28 = vector.broadcast %cst_32 : f32 to vector<128x128xf32>
    %29 = arith.maximumf %27, %28 : vector<128x128xf32>
    %c0_33 = arith.constant 0 : index
    %c0_34 = arith.constant 0 : index
    %30 = vector.load %arg13[%c0_33, %c0_34] : memref<128x128xf32, #tpu.memory_space<vmem>>, vector<128x128xf32>
    %cst_35 = arith.constant dense<0.000000e+00> : vector<128x128xf32>
    %31 = tpu.matmul %29, %30, %cst_35 {dimension_numbers = #tpu.dot_dimension_numbers<[1], [0], [0], [1], [0, 0, 1, 1], [], []>} : vector<128x128xf32>, vector<128x128xf32>, vector<128x128xf32> -> vector<128x128xf32>
    %c0_36 = arith.constant 0 : index
    %c0_37 = arith.constant 0 : index
    %32 = vector.load %arg14[%c0_36, %c0_37] : memref<1x128xf32, #tpu.memory_space<vmem>>, vector<1x128xf32>
    %33 = vector.broadcast %32 : vector<1x128xf32> to vector<128x128xf32>
    %34 = arith.addf %31, %33 : vector<128x128xf32>
    %c0_38 = arith.constant 0 : index
    %c0_39 = arith.constant 0 : index
    %35 = vector.load %arg2[%c0_38, %c0_39] : memref<128x128xf32, #tpu.memory_space<vmem>>, vector<128x128xf32>
    %cst_40 = arith.constant dense<0.000000e+00> : vector<128x128xf32>
    %36 = tpu.matmul %35, %34, %cst_40 {dimension_numbers = #tpu.dot_dimension_numbers<[1], [0], [0], [1], [0, 0, 1, 1], [], []>} : vector<128x128xf32>, vector<128x128xf32>, vector<128x128xf32> -> vector<128x128xf32>
    %c0_41 = arith.constant 0 : index
    %c0_42 = arith.constant 0 : index
    %37 = vector.load %arg15[%c0_41, %c0_42] : memref<128x384xf32, #tpu.memory_space<vmem>>, vector<128x384xf32>
    %cst_43 = arith.constant dense<0.000000e+00> : vector<128x384xf32>
    %38 = tpu.matmul %36, %37, %cst_43 {dimension_numbers = #tpu.dot_dimension_numbers<[1], [0], [0], [1], [0, 0, 1, 1], [], []>} : vector<128x128xf32>, vector<128x384xf32>, vector<128x384xf32> -> vector<128x384xf32>
    %c0_44 = arith.constant 0 : index
    %c0_45 = arith.constant 0 : index
    %39 = vector.load %arg17[%c0_44, %c0_45] : memref<1x384xf32, #tpu.memory_space<vmem>>, vector<1x384xf32>
    %40 = vector.broadcast %39 : vector<1x384xf32> to vector<128x384xf32>
    %41 = arith.addf %38, %40 : vector<128x384xf32>
    %c0_46 = arith.constant 0 : index
    %c0_47 = arith.constant 0 : index
    %42 = vector.load %arg16[%c0_46, %c0_47] : memref<128x384xf32, #tpu.memory_space<vmem>>, vector<128x384xf32>
    %cst_48 = arith.constant dense<0.000000e+00> : vector<128x384xf32>
    %43 = tpu.matmul %9, %42, %cst_48 {dimension_numbers = #tpu.dot_dimension_numbers<[1], [0], [0], [1], [0, 0, 1, 1], [], []>} : vector<128x128xf32>, vector<128x384xf32>, vector<128x384xf32> -> vector<128x384xf32>
    %c0_49 = arith.constant 0 : index
    %c0_50 = arith.constant 0 : index
    %44 = vector.load %arg18[%c0_49, %c0_50] : memref<1x384xf32, #tpu.memory_space<vmem>>, vector<1x384xf32>
    %45 = vector.broadcast %44 : vector<1x384xf32> to vector<128x384xf32>
    %46 = arith.addf %43, %45 : vector<128x384xf32>
    %47 = vector.extract_strided_slice %41 {offsets = [0, 0], sizes = [128, 128], strides = [1, 1]} : vector<128x384xf32> to vector<128x128xf32>
    %48 = vector.extract_strided_slice %46 {offsets = [0, 0], sizes = [128, 128], strides = [1, 1]} : vector<128x384xf32> to vector<128x128xf32>
    %49 = arith.addf %47, %48 : vector<128x128xf32>
    %50 = arith.negf %49 : vector<128x128xf32>
    %51 = math.exp %50 : vector<128x128xf32>
    %cst_51 = arith.constant 1.000000e+00 : f32
    %52 = vector.broadcast %cst_51 : f32 to vector<128x128xf32>
    %53 = arith.addf %52, %51 : vector<128x128xf32>
    %54 = arith.divf %52, %53 : vector<128x128xf32>
    %55 = vector.extract_strided_slice %41 {offsets = [0, 128], sizes = [128, 128], strides = [1, 1]} : vector<128x384xf32> to vector<128x128xf32>
    %56 = vector.extract_strided_slice %46 {offsets = [0, 128], sizes = [128, 128], strides = [1, 1]} : vector<128x384xf32> to vector<128x128xf32>
    %57 = arith.addf %55, %56 : vector<128x128xf32>
    %58 = arith.negf %57 : vector<128x128xf32>
    %59 = math.exp %58 : vector<128x128xf32>
    %cst_52 = arith.constant 1.000000e+00 : f32
    %60 = vector.broadcast %cst_52 : f32 to vector<128x128xf32>
    %61 = arith.addf %60, %59 : vector<128x128xf32>
    %62 = arith.divf %60, %61 : vector<128x128xf32>
    %63 = vector.extract_strided_slice %41 {offsets = [0, 256], sizes = [128, 128], strides = [1, 1]} : vector<128x384xf32> to vector<128x128xf32>
    %64 = vector.extract_strided_slice %46 {offsets = [0, 256], sizes = [128, 128], strides = [1, 1]} : vector<128x384xf32> to vector<128x128xf32>
    %65 = arith.mulf %54, %64 : vector<128x128xf32>
    %66 = arith.addf %63, %65 : vector<128x128xf32>
    %67 = math.tanh %66 : vector<128x128xf32>
    %cst_53 = arith.constant 1.000000e+00 : f32
    %68 = vector.broadcast %cst_53 : f32 to vector<128x128xf32>
    %69 = arith.subf %68, %62 : vector<128x128xf32>
    %70 = arith.mulf %69, %67 : vector<128x128xf32>
    %71 = arith.mulf %62, %9 : vector<128x128xf32>
    %72 = arith.addf %70, %71 : vector<128x128xf32>
    %c0_54 = arith.constant 0 : index
    %c0_55 = arith.constant 0 : index
    %73 = vector.load %arg27[%c0_54, %c0_55] : memref<128x128xf32, #tpu.memory_space<vmem>>, vector<128x128xf32>
    tpu.vector_store %arg27[%c0_54, %c0_55], %72 {strides = array<i32>} : memref<128x128xf32, #tpu.memory_space<vmem>>, vector<128x128xf32>,
    %c1_i32 = arith.constant 1 : i32
    %c0_56 = arith.constant 0 : index
    %c0_57 = arith.constant 0 : index
    %74 = vector.load %arg27[%c0_56, %c0_57] : memref<128x128xf32, #tpu.memory_space<vmem>>, vector<128x128xf32>
    %c0_58 = arith.constant 0 : index
    %c0_59 = arith.constant 0 : index
    %75 = vector.load %arg0[%c0_58, %c0_59] : memref<128x128xf32, #tpu.memory_space<vmem>>, vector<128x128xf32>
    %cst_60 = arith.constant dense<0.000000e+00> : vector<128x128xf32>
    %76 = tpu.matmul %75, %74, %cst_60 {dimension_numbers = #tpu.dot_dimension_numbers<[1], [0], [0], [1], [0, 0, 1, 1], [], []>} : vector<128x128xf32>, vector<128x128xf32>, vector<128x128xf32> -> vector<128x128xf32>
    %c0_61 = arith.constant 0 : index
    %c0_62 = arith.constant 0 : index
    %77 = vector.load %arg1[%c0_61, %c0_62] : memref<128x128xf32, #tpu.memory_space<vmem>>, vector<128x128xf32>
    %cst_63 = arith.constant dense<0.000000e+00> : vector<128x128xf32>
    %78 = tpu.matmul %77, %74, %cst_63 {dimension_numbers = #tpu.dot_dimension_numbers<[1], [0], [0], [1], [0, 0, 1, 1], [], []>} : vector<128x128xf32>, vector<128x128xf32>, vector<128x128xf32> -> vector<128x128xf32>
    %c0_64 = arith.constant 0 : index
    %c0_65 = arith.constant 0 : index
    %79 = vector.load %arg7[%c0_64, %c0_65] : memref<128x128xf32, #tpu.memory_space<vmem>>, vector<128x128xf32>
    %cst_66 = arith.constant dense<0.000000e+00> : vector<128x128xf32>
    %80 = tpu.matmul %76, %79, %cst_66 {dimension_numbers = #tpu.dot_dimension_numbers<[1], [0], [0], [1], [0, 0, 1, 1], [], []>} : vector<128x128xf32>, vector<128x128xf32>, vector<128x128xf32> -> vector<128x128xf32>
    %c0_67 = arith.constant 0 : index
    %c0_68 = arith.constant 0 : index
    %81 = vector.load %arg8[%c0_67, %c0_68] : memref<128x128xf32, #tpu.memory_space<vmem>>, vector<128x128xf32>
    %cst_69 = arith.constant dense<0.000000e+00> : vector<128x128xf32>
    %82 = tpu.matmul %78, %81, %cst_69 {dimension_numbers = #tpu.dot_dimension_numbers<[1], [0], [0], [1], [0, 0, 1, 1], [], []>} : vector<128x128xf32>, vector<128x128xf32>, vector<128x128xf32> -> vector<128x128xf32>
    %83 = arith.addf %80, %82 : vector<128x128xf32>
    %c0_70 = arith.constant 0 : index
    %c0_71 = arith.constant 0 : index
    %84 = vector.load %arg28[%c0_70, %c0_71] : memref<128x128xf32, #tpu.memory_space<vmem>>, vector<128x128xf32>
    %85 = arith.addf %83, %84 : vector<128x128xf32>
    %cst_72 = arith.constant 0.000000e+00 : f32
    %86 = vector.broadcast %cst_72 : f32 to vector<128x128xf32>
    %87 = arith.maximumf %85, %86 : vector<128x128xf32>
    %c0_73 = arith.constant 0 : index
    %c0_74 = arith.constant 0 : index
    %88 = vector.load %arg11[%c0_73, %c0_74] : memref<128x128xf32, #tpu.memory_space<vmem>>, vector<128x128xf32>
    %cst_75 = arith.constant dense<0.000000e+00> : vector<128x128xf32>
    %89 = tpu.matmul %87, %88, %cst_75 {dimension_numbers = #tpu.dot_dimension_numbers<[1], [0], [0], [1], [0, 0, 1, 1], [], []>} : vector<128x128xf32>, vector<128x128xf32>, vector<128x128xf32> -> vector<128x128xf32>
    %c0_76 = arith.constant 0 : index
    %c0_77 = arith.constant 0 : index
    %90 = vector.load %arg12[%c0_76, %c0_77] : memref<1x128xf32, #tpu.memory_space<vmem>>, vector<1x128xf32>
    %91 = vector.broadcast %90 : vector<1x128xf32> to vector<128x128xf32>
    %92 = arith.addf %89, %91 : vector<128x128xf32>
    %cst_78 = arith.constant 0.000000e+00 : f32
    %93 = vector.broadcast %cst_78 : f32 to vector<128x128xf32>
    %94 = arith.maximumf %92, %93 : vector<128x128xf32>
    %c0_79 = arith.constant 0 : index
    %c0_80 = arith.constant 0 : index
    %95 = vector.load %arg13[%c0_79, %c0_80] : memref<128x128xf32, #tpu.memory_space<vmem>>, vector<128x128xf32>
    %cst_81 = arith.constant dense<0.000000e+00> : vector<128x128xf32>
    %96 = tpu.matmul %94, %95, %cst_81 {dimension_numbers = #tpu.dot_dimension_numbers<[1], [0], [0], [1], [0, 0, 1, 1], [], []>} : vector<128x128xf32>, vector<128x128xf32>, vector<128x128xf32> -> vector<128x128xf32>
    %c0_82 = arith.constant 0 : index
    %c0_83 = arith.constant 0 : index
    %97 = vector.load %arg14[%c0_82, %c0_83] : memref<1x128xf32, #tpu.memory_space<vmem>>, vector<1x128xf32>
    %98 = vector.broadcast %97 : vector<1x128xf32> to vector<128x128xf32>
    %99 = arith.addf %96, %98 : vector<128x128xf32>
    %c0_84 = arith.constant 0 : index
    %c0_85 = arith.constant 0 : index
    %100 = vector.load %arg2[%c0_84, %c0_85] : memref<128x128xf32, #tpu.memory_space<vmem>>, vector<128x128xf32>
    %cst_86 = arith.constant dense<0.000000e+00> : vector<128x128xf32>
    %101 = tpu.matmul %100, %99, %cst_86 {dimension_numbers = #tpu.dot_dimension_numbers<[1], [0], [0], [1], [0, 0, 1, 1], [], []>} : vector<128x128xf32>, vector<128x128xf32>, vector<128x128xf32> -> vector<128x128xf32>
    %c0_87 = arith.constant 0 : index
    %c0_88 = arith.constant 0 : index
    %102 = vector.load %arg15[%c0_87, %c0_88] : memref<128x384xf32, #tpu.memory_space<vmem>>, vector<128x384xf32>
    %cst_89 = arith.constant dense<0.000000e+00> : vector<128x384xf32>
    %103 = tpu.matmul %101, %102, %cst_89 {dimension_numbers = #tpu.dot_dimension_numbers<[1], [0], [0], [1], [0, 0, 1, 1], [], []>} : vector<128x128xf32>, vector<128x384xf32>, vector<128x384xf32> -> vector<128x384xf32>
    %c0_90 = arith.constant 0 : index
    %c0_91 = arith.constant 0 : index
    %104 = vector.load %arg17[%c0_90, %c0_91] : memref<1x384xf32, #tpu.memory_space<vmem>>, vector<1x384xf32>
    %105 = vector.broadcast %104 : vector<1x384xf32> to vector<128x384xf32>
    %106 = arith.addf %103, %105 : vector<128x384xf32>
    %c0_92 = arith.constant 0 : index
    %c0_93 = arith.constant 0 : index
    %107 = vector.load %arg16[%c0_92, %c0_93] : memref<128x384xf32, #tpu.memory_space<vmem>>, vector<128x384xf32>
    %cst_94 = arith.constant dense<0.000000e+00> : vector<128x384xf32>
    %108 = tpu.matmul %74, %107, %cst_94 {dimension_numbers = #tpu.dot_dimension_numbers<[1], [0], [0], [1], [0, 0, 1, 1], [], []>} : vector<128x128xf32>, vector<128x384xf32>, vector<128x384xf32> -> vector<128x384xf32>
    %c0_95 = arith.constant 0 : index
    %c0_96 = arith.constant 0 : index
    %109 = vector.load %arg18[%c0_95, %c0_96] : memref<1x384xf32, #tpu.memory_space<vmem>>, vector<1x384xf32>
    %110 = vector.broadcast %109 : vector<1x384xf32> to vector<128x384xf32>
    %111 = arith.addf %108, %110 : vector<128x384xf32>
    %112 = vector.extract_strided_slice %106 {offsets = [0, 0], sizes = [128, 128], strides = [1, 1]} : vector<128x384xf32> to vector<128x128xf32>
    %113 = vector.extract_strided_slice %111 {offsets = [0, 0], sizes = [128, 128], strides = [1, 1]} : vector<128x384xf32> to vector<128x128xf32>
    %114 = arith.addf %112, %113 : vector<128x128xf32>
    %115 = arith.negf %114 : vector<128x128xf32>
    %116 = math.exp %115 : vector<128x128xf32>
    %cst_97 = arith.constant 1.000000e+00 : f32
    %117 = vector.broadcast %cst_97 : f32 to vector<128x128xf32>
    %118 = arith.addf %117, %116 : vector<128x128xf32>
    %119 = arith.divf %117, %118 : vector<128x128xf32>
    %120 = vector.extract_strided_slice %106 {offsets = [0, 128], sizes = [128, 128], strides = [1, 1]} : vector<128x384xf32> to vector<128x128xf32>
    %121 = vector.extract_strided_slice %111 {offsets = [0, 128], sizes = [128, 128], strides = [1, 1]} : vector<128x384xf32> to vector<128x128xf32>
    %122 = arith.addf %120, %121 : vector<128x128xf32>
    %123 = arith.negf %122 : vector<128x128xf32>
    %124 = math.exp %123 : vector<128x128xf32>
    %cst_98 = arith.constant 1.000000e+00 : f32
    %125 = vector.broadcast %cst_98 : f32 to vector<128x128xf32>
    %126 = arith.addf %125, %124 : vector<128x128xf32>
    %127 = arith.divf %125, %126 : vector<128x128xf32>
    %128 = vector.extract_strided_slice %106 {offsets = [0, 256], sizes = [128, 128], strides = [1, 1]} : vector<128x384xf32> to vector<128x128xf32>
    %129 = vector.extract_strided_slice %111 {offsets = [0, 256], sizes = [128, 128], strides = [1, 1]} : vector<128x384xf32> to vector<128x128xf32>
    %130 = arith.mulf %119, %129 : vector<128x128xf32>
    %131 = arith.addf %128, %130 : vector<128x128xf32>
    %132 = math.tanh %131 : vector<128x128xf32>
    %cst_99 = arith.constant 1.000000e+00 : f32
    %133 = vector.broadcast %cst_99 : f32 to vector<128x128xf32>
    %134 = arith.subf %133, %127 : vector<128x128xf32>
    %135 = arith.mulf %134, %132 : vector<128x128xf32>
    %136 = arith.mulf %127, %74 : vector<128x128xf32>
    %137 = arith.addf %135, %136 : vector<128x128xf32>
    %c0_100 = arith.constant 0 : index
    %c0_101 = arith.constant 0 : index
    %138 = vector.load %arg27[%c0_100, %c0_101] : memref<128x128xf32, #tpu.memory_space<vmem>>, vector<128x128xf32>
    tpu.vector_store %arg27[%c0_100, %c0_101], %137 {strides = array<i32>} : memref<128x128xf32, #tpu.memory_space<vmem>>, vector<128x128xf32>,
    %c2_i32 = arith.constant 2 : i32
    %c0_102 = arith.constant 0 : index
    %c0_103 = arith.constant 0 : index
    %139 = vector.load %arg27[%c0_102, %c0_103] : memref<128x128xf32, #tpu.memory_space<vmem>>, vector<128x128xf32>
    %c0_104 = arith.constant 0 : index
    %c0_105 = arith.constant 0 : index
    %140 = vector.load %arg0[%c0_104, %c0_105] : memref<128x128xf32, #tpu.memory_space<vmem>>, vector<128x128xf32>
    %cst_106 = arith.constant dense<0.000000e+00> : vector<128x128xf32>
    %141 = tpu.matmul %140, %139, %cst_106 {dimension_numbers = #tpu.dot_dimension_numbers<[1], [0], [0], [1], [0, 0, 1, 1], [], []>} : vector<128x128xf32>, vector<128x128xf32>, vector<128x128xf32> -> vector<128x128xf32>
    %c0_107 = arith.constant 0 : index
    %c0_108 = arith.constant 0 : index
    %142 = vector.load %arg1[%c0_107, %c0_108] : memref<128x128xf32, #tpu.memory_space<vmem>>, vector<128x128xf32>
    %cst_109 = arith.constant dense<0.000000e+00> : vector<128x128xf32>
    %143 = tpu.matmul %142, %139, %cst_109 {dimension_numbers = #tpu.dot_dimension_numbers<[1], [0], [0], [1], [0, 0, 1, 1], [], []>} : vector<128x128xf32>, vector<128x128xf32>, vector<128x128xf32> -> vector<128x128xf32>
    %c0_110 = arith.constant 0 : index
    %c0_111 = arith.constant 0 : index
    %144 = vector.load %arg7[%c0_110, %c0_111] : memref<128x128xf32, #tpu.memory_space<vmem>>, vector<128x128xf32>
    %cst_112 = arith.constant dense<0.000000e+00> : vector<128x128xf32>
    %145 = tpu.matmul %141, %144, %cst_112 {dimension_numbers = #tpu.dot_dimension_numbers<[1], [0], [0], [1], [0, 0, 1, 1], [], []>} : vector<128x128xf32>, vector<128x128xf32>, vector<128x128xf32> -> vector<128x128xf32>
    %c0_113 = arith.constant 0 : index
    %c0_114 = arith.constant 0 : index
    %146 = vector.load %arg8[%c0_113, %c0_114] : memref<128x128xf32, #tpu.memory_space<vmem>>, vector<128x128xf32>
    %cst_115 = arith.constant dense<0.000000e+00> : vector<128x128xf32>
    %147 = tpu.matmul %143, %146, %cst_115 {dimension_numbers = #tpu.dot_dimension_numbers<[1], [0], [0], [1], [0, 0, 1, 1], [], []>} : vector<128x128xf32>, vector<128x128xf32>, vector<128x128xf32> -> vector<128x128xf32>
    %148 = arith.addf %145, %147 : vector<128x128xf32>
    %c0_116 = arith.constant 0 : index
    %c0_117 = arith.constant 0 : index
    %149 = vector.load %arg28[%c0_116, %c0_117] : memref<128x128xf32, #tpu.memory_space<vmem>>, vector<128x128xf32>
    %150 = arith.addf %148, %149 : vector<128x128xf32>
    %cst_118 = arith.constant 0.000000e+00 : f32
    %151 = vector.broadcast %cst_118 : f32 to vector<128x128xf32>
    %152 = arith.maximumf %150, %151 : vector<128x128xf32>
    %c0_119 = arith.constant 0 : index
    %c0_120 = arith.constant 0 : index
    %153 = vector.load %arg11[%c0_119, %c0_120] : memref<128x128xf32, #tpu.memory_space<vmem>>, vector<128x128xf32>
    %cst_121 = arith.constant dense<0.000000e+00> : vector<128x128xf32>
    %154 = tpu.matmul %152, %153, %cst_121 {dimension_numbers = #tpu.dot_dimension_numbers<[1], [0], [0], [1], [0, 0, 1, 1], [], []>} : vector<128x128xf32>, vector<128x128xf32>, vector<128x128xf32> -> vector<128x128xf32>
    %c0_122 = arith.constant 0 : index
    %c0_123 = arith.constant 0 : index
    %155 = vector.load %arg12[%c0_122, %c0_123] : memref<1x128xf32, #tpu.memory_space<vmem>>, vector<1x128xf32>
    %156 = vector.broadcast %155 : vector<1x128xf32> to vector<128x128xf32>
    %157 = arith.addf %154, %156 : vector<128x128xf32>
    %cst_124 = arith.constant 0.000000e+00 : f32
    %158 = vector.broadcast %cst_124 : f32 to vector<128x128xf32>
    %159 = arith.maximumf %157, %158 : vector<128x128xf32>
    %c0_125 = arith.constant 0 : index
    %c0_126 = arith.constant 0 : index
    %160 = vector.load %arg13[%c0_125, %c0_126] : memref<128x128xf32, #tpu.memory_space<vmem>>, vector<128x128xf32>
    %cst_127 = arith.constant dense<0.000000e+00> : vector<128x128xf32>
    %161 = tpu.matmul %159, %160, %cst_127 {dimension_numbers = #tpu.dot_dimension_numbers<[1], [0], [0], [1], [0, 0, 1, 1], [], []>} : vector<128x128xf32>, vector<128x128xf32>, vector<128x128xf32> -> vector<128x128xf32>
    %c0_128 = arith.constant 0 : index
    %c0_129 = arith.constant 0 : index
    %162 = vector.load %arg14[%c0_128, %c0_129] : memref<1x128xf32, #tpu.memory_space<vmem>>, vector<1x128xf32>
    %163 = vector.broadcast %162 : vector<1x128xf32> to vector<128x128xf32>
    %164 = arith.addf %161, %163 : vector<128x128xf32>
    %c0_130 = arith.constant 0 : index
    %c0_131 = arith.constant 0 : index
    %165 = vector.load %arg2[%c0_130, %c0_131] : memref<128x128xf32, #tpu.memory_space<vmem>>, vector<128x128xf32>
    %cst_132 = arith.constant dense<0.000000e+00> : vector<128x128xf32>
    %166 = tpu.matmul %165, %164, %cst_132 {dimension_numbers = #tpu.dot_dimension_numbers<[1], [0], [0], [1], [0, 0, 1, 1], [], []>} : vector<128x128xf32>, vector<128x128xf32>, vector<128x128xf32> -> vector<128x128xf32>
    %c0_133 = arith.constant 0 : index
    %c0_134 = arith.constant 0 : index
    %167 = vector.load %arg15[%c0_133, %c0_134] : memref<128x384xf32, #tpu.memory_space<vmem>>, vector<128x384xf32>
    %cst_135 = arith.constant dense<0.000000e+00> : vector<128x384xf32>
    %168 = tpu.matmul %166, %167, %cst_135 {dimension_numbers = #tpu.dot_dimension_numbers<[1], [0], [0], [1], [0, 0, 1, 1], [], []>} : vector<128x128xf32>, vector<128x384xf32>, vector<128x384xf32> -> vector<128x384xf32>
    %c0_136 = arith.constant 0 : index
    %c0_137 = arith.constant 0 : index
    %169 = vector.load %arg17[%c0_136, %c0_137] : memref<1x384xf32, #tpu.memory_space<vmem>>, vector<1x384xf32>
    %170 = vector.broadcast %169 : vector<1x384xf32> to vector<128x384xf32>
    %171 = arith.addf %168, %170 : vector<128x384xf32>
    %c0_138 = arith.constant 0 : index
    %c0_139 = arith.constant 0 : index
    %172 = vector.load %arg16[%c0_138, %c0_139] : memref<128x384xf32, #tpu.memory_space<vmem>>, vector<128x384xf32>
    %cst_140 = arith.constant dense<0.000000e+00> : vector<128x384xf32>
    %173 = tpu.matmul %139, %172, %cst_140 {dimension_numbers = #tpu.dot_dimension_numbers<[1], [0], [0], [1], [0, 0, 1, 1], [], []>} : vector<128x128xf32>, vector<128x384xf32>, vector<128x384xf32> -> vector<128x384xf32>
    %c0_141 = arith.constant 0 : index
    %c0_142 = arith.constant 0 : index
    %174 = vector.load %arg18[%c0_141, %c0_142] : memref<1x384xf32, #tpu.memory_space<vmem>>, vector<1x384xf32>
    %175 = vector.broadcast %174 : vector<1x384xf32> to vector<128x384xf32>
    %176 = arith.addf %173, %175 : vector<128x384xf32>
    %177 = vector.extract_strided_slice %171 {offsets = [0, 0], sizes = [128, 128], strides = [1, 1]} : vector<128x384xf32> to vector<128x128xf32>
    %178 = vector.extract_strided_slice %176 {offsets = [0, 0], sizes = [128, 128], strides = [1, 1]} : vector<128x384xf32> to vector<128x128xf32>
    %179 = arith.addf %177, %178 : vector<128x128xf32>
    %180 = arith.negf %179 : vector<128x128xf32>
    %181 = math.exp %180 : vector<128x128xf32>
    %cst_143 = arith.constant 1.000000e+00 : f32
    %182 = vector.broadcast %cst_143 : f32 to vector<128x128xf32>
    %183 = arith.addf %182, %181 : vector<128x128xf32>
    %184 = arith.divf %182, %183 : vector<128x128xf32>
    %185 = vector.extract_strided_slice %171 {offsets = [0, 128], sizes = [128, 128], strides = [1, 1]} : vector<128x384xf32> to vector<128x128xf32>
    %186 = vector.extract_strided_slice %176 {offsets = [0, 128], sizes = [128, 128], strides = [1, 1]} : vector<128x384xf32> to vector<128x128xf32>
    %187 = arith.addf %185, %186 : vector<128x128xf32>
    %188 = arith.negf %187 : vector<128x128xf32>
    %189 = math.exp %188 : vector<128x128xf32>
    %cst_144 = arith.constant 1.000000e+00 : f32
    %190 = vector.broadcast %cst_144 : f32 to vector<128x128xf32>
    %191 = arith.addf %190, %189 : vector<128x128xf32>
    %192 = arith.divf %190, %191 : vector<128x128xf32>
    %193 = vector.extract_strided_slice %171 {offsets = [0, 256], sizes = [128, 128], strides = [1, 1]} : vector<128x384xf32> to vector<128x128xf32>
    %194 = vector.extract_strided_slice %176 {offsets = [0, 256], sizes = [128, 128], strides = [1, 1]} : vector<128x384xf32> to vector<128x128xf32>
    %195 = arith.mulf %184, %194 : vector<128x128xf32>
    %196 = arith.addf %193, %195 : vector<128x128xf32>
    %197 = math.tanh %196 : vector<128x128xf32>
    %cst_145 = arith.constant 1.000000e+00 : f32
    %198 = vector.broadcast %cst_145 : f32 to vector<128x128xf32>
    %199 = arith.subf %198, %192 : vector<128x128xf32>
    %200 = arith.mulf %199, %197 : vector<128x128xf32>
    %201 = arith.mulf %192, %139 : vector<128x128xf32>
    %202 = arith.addf %200, %201 : vector<128x128xf32>
    %c0_146 = arith.constant 0 : index
    %c0_147 = arith.constant 0 : index
    %203 = vector.load %arg27[%c0_146, %c0_147] : memref<128x128xf32, #tpu.memory_space<vmem>>, vector<128x128xf32>
    tpu.vector_store %arg27[%c0_146, %c0_147], %202 {strides = array<i32>} : memref<128x128xf32, #tpu.memory_space<vmem>>, vector<128x128xf32>,
    %c0_148 = arith.constant 0 : index
    %c0_149 = arith.constant 0 : index
    %204 = vector.load %arg27[%c0_148, %c0_149] : memref<128x128xf32, #tpu.memory_space<vmem>>, vector<128x128xf32>
    %c0_150 = arith.constant 0 : index
    %c0_151 = arith.constant 0 : index
    %205 = vector.load %arg3[%c0_150, %c0_151] : memref<8x128xf32, #tpu.memory_space<vmem>>, vector<8x128xf32>
    %cst_152 = arith.constant dense<0.000000e+00> : vector<8x128xf32>
    %206 = tpu.matmul %205, %204, %cst_152 {dimension_numbers = #tpu.dot_dimension_numbers<[1], [0], [0], [1], [0, 0, 1, 1], [], []>} : vector<8x128xf32>, vector<128x128xf32>, vector<8x128xf32> -> vector<8x128xf32>
    %c0_153 = arith.constant 0 : index
    %c0_154 = arith.constant 0 : index
    %207 = vector.load %arg19[%c0_153, %c0_154] : memref<128x128xf32, #tpu.memory_space<vmem>>, vector<128x128xf32>
    %cst_155 = arith.constant dense<0.000000e+00> : vector<8x128xf32>
    %208 = tpu.matmul %206, %207, %cst_155 {dimension_numbers = #tpu.dot_dimension_numbers<[1], [0], [0], [1], [0, 0, 1, 1], [], []>} : vector<8x128xf32>, vector<128x128xf32>, vector<8x128xf32> -> vector<8x128xf32>
    %c0_156 = arith.constant 0 : index
    %c0_157 = arith.constant 0 : index
    %209 = vector.load %arg5[%c0_156, %c0_157] : memref<8x1xf32, #tpu.memory_space<vmem>>, vector<8x1xf32>
    %c0_158 = arith.constant 0 : index
    %c0_159 = arith.constant 0 : index
    %210 = vector.load %arg20[%c0_158, %c0_159] : memref<1x128xf32, #tpu.memory_space<vmem>>, vector<1x128xf32>
    %211 = vector.broadcast %209 : vector<8x1xf32> to vector<8x128xf32>
    %212 = vector.broadcast %210 : vector<1x128xf32> to vector<8x128xf32>
    %213 = arith.mulf %211, %212 : vector<8x128xf32>
    %214 = arith.addf %208, %213 : vector<8x128xf32>
    %c0_160 = arith.constant 0 : index
    %c0_161 = arith.constant 0 : index
    %215 = vector.load %arg21[%c0_160, %c0_161] : memref<1x128xf32, #tpu.memory_space<vmem>>, vector<1x128xf32>
    %216 = vector.broadcast %215 : vector<1x128xf32> to vector<8x128xf32>
    %217 = arith.addf %214, %216 : vector<8x128xf32>
    %cst_162 = arith.constant 0.000000e+00 : f32
    %218 = vector.broadcast %cst_162 : f32 to vector<8x128xf32>
    %219 = arith.maximumf %217, %218 : vector<8x128xf32>
    %c0_163 = arith.constant 0 : index
    %c0_164 = arith.constant 0 : index
    %220 = vector.load %arg22[%c0_163, %c0_164] : memref<128x128xf32, #tpu.memory_space<vmem>>, vector<128x128xf32>
    %cst_165 = arith.constant dense<0.000000e+00> : vector<8x128xf32>
    %221 = tpu.matmul %219, %220, %cst_165 {dimension_numbers = #tpu.dot_dimension_numbers<[1], [0], [0], [1], [0, 0, 1, 1], [], []>} : vector<8x128xf32>, vector<128x128xf32>, vector<8x128xf32> -> vector<8x128xf32>
    %c0_166 = arith.constant 0 : index
    %c0_167 = arith.constant 0 : index
    %222 = vector.load %arg23[%c0_166, %c0_167] : memref<1x128xf32, #tpu.memory_space<vmem>>, vector<1x128xf32>
    %223 = vector.broadcast %222 : vector<1x128xf32> to vector<8x128xf32>
    %224 = arith.addf %221, %223 : vector<8x128xf32>
    %cst_168 = arith.constant 0.000000e+00 : f32
    %225 = vector.broadcast %cst_168 : f32 to vector<8x128xf32>
    %226 = arith.maximumf %224, %225 : vector<8x128xf32>
    %c0_169 = arith.constant 0 : index
    %c0_170 = arith.constant 0 : index
    %227 = vector.load %arg24[%c0_169, %c0_170] : memref<128x128xf32, #tpu.memory_space<vmem>>, vector<128x128xf32>
    %cst_171 = arith.constant dense<0.000000e+00> : vector<8x128xf32>
    %228 = tpu.matmul %226, %227, %cst_171 {dimension_numbers = #tpu.dot_dimension_numbers<[1], [0], [0], [1], [0, 0, 1, 1], [], []>} : vector<8x128xf32>, vector<128x128xf32>, vector<8x128xf32> -> vector<8x128xf32>
    %c0_172 = arith.constant 0 : index
    %c0_173 = arith.constant 0 : index
    %229 = vector.load %arg25[%c0_172, %c0_173] : memref<1x128xf32, #tpu.memory_space<vmem>>, vector<1x128xf32>
    %230 = vector.broadcast %229 : vector<1x128xf32> to vector<8x128xf32>
    %231 = arith.addf %228, %230 : vector<8x128xf32>
    %232 = tpu.iota {dimensions = array<i32: 1>} : vector<8x128xi32>
    %c2_i32_174 = arith.constant 2 : i32
    %233 = vector.broadcast %c2_i32_174 : i32 to vector<8x128xi32>
    %234 = arith.cmpi slt, %232, %233 : vector<8x128xi32>
    %cst_175 = arith.constant -1.000000e+30 : f32
    %235 = vector.broadcast %cst_175 : f32 to vector<8x128xf32>
    %236 = arith.select %234, %231, %235 : vector<8x128xi1>, vector<8x128xf32>
    %cst_176 = arith.constant dense<0xFF800000> : vector<8xf32>
    %237 = vector.multi_reduction <maximumf>, %236, %cst_176 [1] : vector<8x128xf32> to vector<8xf32>
    %238 = vector.shape_cast %237 : vector<8xf32> to vector<8x1xf32>
    %239 = vector.broadcast %238 : vector<8x1xf32> to vector<8x128xf32>
    %240 = arith.subf %236, %239 : vector<8x128xf32>
    %241 = math.exp %240 : vector<8x128xf32>
    %cst_177 = arith.constant dense<0.000000e+00> : vector<8xf32>
    %242 = vector.multi_reduction <add>, %241, %cst_177 [1] : vector<8x128xf32> to vector<8xf32>
    %243 = vector.shape_cast %242 : vector<8xf32> to vector<8x1xf32>
    %244 = math.log %243 : vector<8x1xf32>
    %245 = arith.addf %244, %238 : vector<8x1xf32>
    %246 = vector.broadcast %245 : vector<8x1xf32> to vector<8x128xf32>
    %247 = arith.subf %236, %246 : vector<8x128xf32>
    %c0_178 = arith.constant 0 : index
    %c0_179 = arith.constant 0 : index
    %248 = vector.load %arg6[%c0_178, %c0_179] : memref<8x128xf32, #tpu.memory_space<vmem>>, vector<8x128xf32>
    %cst_180 = arith.constant 0.000000e+00 : f32
    %249 = vector.broadcast %cst_180 : f32 to vector<8x128xf32>
    %250 = arith.cmpf ogt, %248, %249 : vector<8x128xf32>
    %cst_181 = arith.constant 1.000000e-30 : f32
    %251 = vector.broadcast %cst_181 : f32 to vector<8x128xf32>
    %252 = arith.maximumf %248, %251 : vector<8x128xf32>
    %253 = math.log %252 : vector<8x128xf32>
    %254 = arith.mulf %248, %253 : vector<8x128xf32>
    %cst_182 = arith.constant 0.000000e+00 : f32
    %255 = vector.broadcast %cst_182 : f32 to vector<8x128xf32>
    %256 = arith.select %250, %254, %255 : vector<8x128xi1>, vector<8x128xf32>
    %257 = arith.mulf %248, %247 : vector<8x128xf32>
    %258 = arith.subf %256, %257 : vector<8x128xf32>
    %259 = vector.shape_cast %258 : vector<8x128xf32> to vector<1x8x128xf32>
    %cst_183 = arith.constant dense<0.000000e+00> : vector<1xf32>
    %260 = vector.multi_reduction <add>, %259, %cst_183 [1, 2] : vector<1x8x128xf32> to vector<1xf32>
    %261 = vector.shape_cast %260 : vector<1xf32> to vector<1x1x1xf32>
    %262 = vector.extract %261[0, 0, 0] : f32 from vector<1x1x1xf32>
    %cst_184 = arith.constant 1.250000e-01 : f32
    %263 = arith.mulf %262, %cst_184 : f32
    %c0_185 = arith.constant 0 : index
    %c0_186 = arith.constant 0 : index
    %264 = vector.load %arg26[%c0_185, %c0_186] : memref<16x128xf32, #tpu.memory_space<vmem>>, vector<8x128xf32>
    tpu.vector_store %arg26[%c0_185, %c0_186], %247 {strides = array<i32>} : memref<16x128xf32, #tpu.memory_space<vmem>>, vector<8x128xf32>,
    %265 = vector.broadcast %263 : f32 to vector<8x128xf32>
    %c8 = arith.constant 8 : index
    %c0_187 = arith.constant 0 : index
    %266 = vector.load %arg26[%c8, %c0_187] : memref<16x128xf32, #tpu.memory_space<vmem>>, vector<8x128xf32>
    tpu.vector_store %arg26[%c8, %c0_187], %265 {strides = array<i32>} : memref<16x128xf32, #tpu.memory_space<vmem>>, vector<8x128xf32>,
    return
  }
}

</mosaic_0001>

<llo_original>
// kernel: tpu_custom_call.1
$region0: #{tpu_custom_call.1}
  #allocation0 [shape = 'u32[]', space=smem, size = 0x4, offset = 0x4, fixed_abs, tag = 'smem constant byte address 0x4 - core index']
  #allocation1 [shape = 'u32[144,128]{1,0:T(1,128)}', space=vmem, size = 0x12000, scoped, tag = 'internal scratch']
  #allocation2 [shape = 'f32[128,128]{1,0:T(8,128)}', space=vmem, size = 0x10000, scoped, tag = 'scratch operand']
  #allocation3 [shape = 'f32[128,128]{1,0:T(8,128)}', space=vmem, size = 0x10000, scoped, tag = 'scratch operand']
  %s0 = inlined_call_operand.vmem [shape: f32[128,128], index: 0, kind: input, shape index: {}]
  %s1 = inlined_call_operand.hbm [shape: f32[128,128], index: 1, kind: input, shape index: {}]
  %s2 = inlined_call_operand.hbm [shape: f32[128,128], index: 2, kind: input, shape index: {}]
  %s3 = inlined_call_operand.hbm [shape: f32[8,128], index: 3, kind: input, shape index: {}]
  %s4 = inlined_call_operand.vmem [shape: f32[128,16], index: 4, kind: input, shape index: {}]
  %s5 = inlined_call_operand.vmem [shape: f32[8,1], index: 5, kind: input, shape index: {}]
  %s6 = inlined_call_operand.hbm [shape: f32[8,128], index: 6, kind: input, shape index: {}]
  %s7 = inlined_call_operand.hbm [shape: f32[128,128], index: 7, kind: input, shape index: {}]
  %s8 = inlined_call_operand.hbm [shape: f32[128,128], index: 8, kind: input, shape index: {}]
  %s9 = inlined_call_operand.vmem [shape: f32[16,128], index: 9, kind: input, shape index: {}]
  %s10 = inlined_call_operand.vmem [shape: f32[1,128], index: 10, kind: input, shape index: {}]
  %s11 = inlined_call_operand.hbm [shape: f32[128,128], index: 11, kind: input, shape index: {}]
  %s12 = inlined_call_operand.vmem [shape: f32[1,128], index: 12, kind: input, shape index: {}]
  %s13 = inlined_call_operand.hbm [shape: f32[128,128], index: 13, kind: input, shape index: {}]
  %s14 = inlined_call_operand.vmem [shape: f32[1,128], index: 14, kind: input, shape index: {}]
  %s15 = inlined_call_operand.hbm [shape: f32[128,384], index: 15, kind: input, shape index: {}]
  %s16 = inlined_call_operand.hbm [shape: f32[128,384], index: 16, kind: input, shape index: {}]
  %s17 = inlined_call_operand.vmem [shape: f32[1,384], index: 17, kind: input, shape index: {}]
  %s18 = inlined_call_operand.vmem [shape: f32[1,384], index: 18, kind: input, shape index: {}]
  %s19 = inlined_call_operand.hbm [shape: f32[128,128], index: 19, kind: input, shape index: {}]
  %s20 = inlined_call_operand.vmem [shape: f32[1,128], index: 20, kind: input, shape index: {}]
  %s21 = inlined_call_operand.vmem [shape: f32[1,128], index: 21, kind: input, shape index: {}]
  %s22 = inlined_call_operand.hbm [shape: f32[128,128], index: 22, kind: input, shape index: {}]
  %s23 = inlined_call_operand.vmem [shape: f32[1,128], index: 23, kind: input, shape index: {}]
  %s24 = inlined_call_operand.hbm [shape: f32[128,128], index: 24, kind: input, shape index: {}]
  %s25 = inlined_call_operand.vmem [shape: f32[1,128], index: 25, kind: input, shape index: {}]
  %s26 = inlined_call_operand.hbm [shape: f32[16,128], index: 26, kind: output, shape index: {}]
  %s27 = sld [smem:[#allocation0]]
  $region166: #{tpu_custom_call.1} parent=0
    _
  %s29 = ssub.s32 1, %s27
  %s30 = scalar_select 0, %s29, %s27
  $region1: #{tpu_custom_call.1} parent=0
    #allocation4 [shape = 'u8[65536]{0}', space=vmem, size = 0x10000, scoped, tag = 'input window, operand 1, single buffered']
    #allocation5 [shape = 's32[1]{0}', space=sflag, size = 0x4, scoped, tag = 'scoped memory for tpu_custom_call.1']
    #allocation6 [shape = 's32[1]{0}', space=sflag, size = 0x4, scoped, tag = 'scoped memory for tpu_custom_call.1']
    #allocation7 [shape = 'u8[65536]{0}', space=vmem, size = 0x10000, scoped, tag = 'input window, operand 2, single buffered']
    #allocation8 [shape = 's32[1]{0}', space=sflag, size = 0x4, scoped, tag = 'scoped memory for tpu_custom_call.1']
    #allocation9 [shape = 'u8[4096]{0}', space=vmem, size = 0x1000, scoped, tag = 'input window, operand 3, single buffered']
    #allocation10 [shape = 'u8[4096]{0}', space=vmem, size = 0x1000, scoped, tag = 'input window, operand 6, single buffered']
    #allocation11 [shape = 's32[1]{0}', space=sflag, size = 0x4, scoped, tag = 'scoped memory for tpu_custom_call.1']
    #allocation12 [shape = 'u8[65536]{0}', space=vmem, size = 0x10000, scoped, tag = 'input window, operand 7, single buffered']
    #allocation13 [shape = 'u8[65536]{0}', space=vmem, size = 0x10000, scoped, tag = 'input window, operand 8, single buffered']
    #allocation14 [shape = 's32[1]{0}', space=sflag, size = 0x4, scoped, tag = 'scoped memory for tpu_custom_call.1']
    #allocation15 [shape = 'u8[65536]{0}', space=vmem, size = 0x10000, scoped, tag = 'input window, operand 11, single buffered']
    #allocation16 [shape = 'u8[65536]{0}', space=vmem, size = 0x10000, scoped, tag = 'input window, operand 13, single buffered']
    #allocation17 [shape = 's32[1]{0}', space=sflag, size = 0x4, scoped, tag = 'scoped memory for tpu_custom_call.1']
    #allocation18 [shape = 'u8[196608]{0}', space=vmem, size = 0x30000, scoped, tag = 'input window, operand 15, single buffered']
    #allocation19 [shape = 'u8[196608]{0}', space=vmem, size = 0x30000, scoped, tag = 'input window, operand 16, single buffered']
    #allocation20 [shape = 's32[1]{0}', space=sflag, size = 0x4, scoped, tag = 'scoped memory for tpu_custom_call.1']
    #allocation21 [shape = 'u8[65536]{0}', space=vmem, size = 0x10000, scoped, tag = 'input window, operand 19, single buffered']
    #allocation22 [shape = 'u8[65536]{0}', space=vmem, size = 0x10000, scoped, tag = 'input window, operand 22, single buffered']
    #allocation23 [shape = 's32[1]{0}', space=sflag, size = 0x4, scoped, tag = 'scoped memory for tpu_custom_call.1']
    #allocation24 [shape = 'u8[65536]{0}', space=vmem, size = 0x10000, scoped, tag = 'input window, operand 24, single buffered']
    #allocation25 [shape = 'u8[8192]{0}', space=vmem, size = 0x2000, scoped, tag = 'output window, operand 0, single buffered']
    %31 = vsyncpa [#allocation5], 0
    %32 = vsyncpa [#allocation8], 0
    %33 = vsyncpa [#allocation11], 0
    %34 = vsyncpa [#allocation14], 0
    %35 = vsyncpa [#allocation17], 0
    %36 = vsyncpa [#allocation20], 0
    %37 = vsyncpa [#allocation23], 0
    %38 = vsyncpa [#allocation6], 0
    // Predicated region
    $region2: #{tpu_custom_call.1} parent=1 // pred_check
      _
    $region3: #{tpu_custom_call.1} parent=1 // pred_check_branch
      %40 = sbr.rel (0) target = $region5
    $region4: #{tpu_custom_call.1} parent=1 // pred_region
      _
    $region5: #{tpu_custom_call.1} parent=1 // pred_fallthru
      _
    // Predicated region
    $region6: #{tpu_custom_call.1} parent=1 // pred_check
      _
    $region7: #{tpu_custom_call.1} parent=1 // pred_check_branch
      %42 = sbr.rel (0) target = $region9
    $region8: #{tpu_custom_call.1} parent=1 // pred_region
      %s44 = ssub.s32 2048, 2048
      %45 = vsyncadd [#allocation5], %s44
      %s46 = sshll.u32 [#allocation4], 4
      %s47 = int_to_ptr.vmem [resolvable:$true] %s46
      %52 = dma.hbm_to_vmem [thread:$0]  %s1, 2048, %s47, [#allocation5], 128, 128, 8
    $region9: #{tpu_custom_call.1} parent=1 // pred_fallthru
      _
    // Predicated region
    $region10: #{tpu_custom_call.1} parent=1 // pred_check
      _
    $region11: #{tpu_custom_call.1} parent=1 // pred_check_branch
      %54 = sbr.rel (0) target = $region13
    $region12: #{tpu_custom_call.1} parent=1 // pred_region
      %s56 = ssub.s32 2048, 2048
      %57 = vsyncadd [#allocation8], %s56
      %s58 = sshll.u32 [#allocation7], 4
      %s59 = int_to_ptr.vmem [resolvable:$true] %s58
      %64 = dma.hbm_to_vmem [thread:$0]  %s2, 2048, %s59, [#allocation8], 128, 128, 8
    $region13: #{tpu_custom_call.1} parent=1 // pred_fallthru
      _
    // Predicated region
    $region14: #{tpu_custom_call.1} parent=1 // pred_check
      _
    $region15: #{tpu_custom_call.1} parent=1 // pred_check_branch
      %66 = sbr.rel (0) target = $region17
    $region16: #{tpu_custom_call.1} parent=1 // pred_region
      %s68 = ssub.s32 128, 128
      %69 = vsyncadd [#allocation8], %s68
      %s71 = sshll.u32 [#allocation9], 4
      %s72 = int_to_ptr.vmem [resolvable:$true] %s71
      %74 = dma.hbm_to_vmem [thread:$0]  %s3, 128, %s72, [#allocation8]
    $region17: #{tpu_custom_call.1} parent=1 // pred_fallthru
      _
    // Predicated region
    $region18: #{tpu_custom_call.1} parent=1 // pred_check
      _
    $region19: #{tpu_custom_call.1} parent=1 // pred_check_branch
      %76 = sbr.rel (0) target = $region21
    $region20: #{tpu_custom_call.1} parent=1 // pred_region
      _
    $region21: #{tpu_custom_call.1} parent=1 // pred_fallthru
      _
    // Predicated region
    $region22: #{tpu_custom_call.1} parent=1 // pred_check
      _
    $region23: #{tpu_custom_call.1} parent=1 // pred_check_branch
      %78 = sbr.rel (0) target = $region25
    $region24: #{tpu_custom_call.1} parent=1 // pred_region
      _
    $region25: #{tpu_custom_call.1} parent=1 // pred_fallthru
      _
    // Predicated region
    $region26: #{tpu_custom_call.1} parent=1 // pred_check
      _
    $region27: #{tpu_custom_call.1} parent=1 // pred_check_branch
      %80 = sbr.rel (0) target = $region29
    $region28: #{tpu_custom_call.1} parent=1 // pred_region
      %s82 = ssub.s32 128, 128
      %83 = vsyncadd [#allocation11], %s82
      %s85 = sshll.u32 [#allocation10], 4
      %s86 = int_to_ptr.vmem [resolvable:$true] %s85
      %88 = dma.hbm_to_vmem [thread:$0]  %s6, 128, %s86, [#allocation11]
    $region29: #{tpu_custom_call.1} parent=1 // pred_fallthru
      _
    // Predicated region
    $region30: #{tpu_custom_call.1} parent=1 // pred_check
      _
    $region31: #{tpu_custom_call.1} parent=1 // pred_check_branch
      %90 = sbr.rel (0) target = $region33
    $region32: #{tpu_custom_call.1} parent=1 // pred_region
      %s92 = ssub.s32 2048, 2048
      %93 = vsyncadd [#allocation11], %s92
      %s94 = sshll.u32 [#allocation12], 4
      %s95 = int_to_ptr.vmem [resolvable:$true] %s94
      %100 = dma.hbm_to_vmem [thread:$0]  %s7, 2048, %s95, [#allocation11], 128, 128, 8
    $region33: #{tpu_custom_call.1} parent=1 // pred_fallthru
      _
    // Predicated region
    $region34: #{tpu_custom_call.1} parent=1 // pred_check
      _
    $region35: #{tpu_custom_call.1} parent=1 // pred_check_branch
      %102 = sbr.rel (0) target = $region37
    $region36: #{tpu_custom_call.1} parent=1 // pred_region
      %s104 = ssub.s32 2048, 2048
      %105 = vsyncadd [#allocation14], %s104
      %s106 = sshll.u32 [#allocation13], 4
      %s107 = int_to_ptr.vmem [resolvable:$true] %s106
      %112 = dma.hbm_to_vmem [thread:$0]  %s8, 2048, %s107, [#allocation14], 128, 128, 8
    $region37: #{tpu_custom_call.1} parent=1 // pred_fallthru
      _
    // Predicated region
    $region38: #{tpu_custom_call.1} parent=1 // pred_check
      _
    $region39: #{tpu_custom_call.1} parent=1 // pred_check_branch
      %114 = sbr.rel (0) target = $region41
    $region40: #{tpu_custom_call.1} parent=1 // pred_region
      _
    $region41: #{tpu_custom_call.1} parent=1 // pred_fallthru
      _
    // Predicated region
    $region42: #{tpu_custom_call.1} parent=1 // pred_check
      _
    $region43: #{tpu_custom_call.1} parent=1 // pred_check_branch
      %116 = sbr.rel (0) target = $region45
    $region44: #{tpu_custom_call.1} parent=1 // pred_region
      _
    $region45: #{tpu_custom_call.1} parent=1 // pred_fallthru
      _
    // Predicated region
    $region46: #{tpu_custom_call.1} parent=1 // pred_check
      _
    $region47: #{tpu_custom_call.1} parent=1 // pred_check_branch
      %118 = sbr.rel (0) target = $region49
    $region48: #{tpu_custom_call.1} parent=1 // pred_region
      %s120 = ssub.s32 2048, 2048
      %121 = vsyncadd [#allocation14], %s120
      %s122 = sshll.u32 [#allocation15], 4
      %s123 = int_to_ptr.vmem [resolvable:$true] %s122
      %128 = dma.hbm_to_vmem [thread:$0]  %s11, 2048, %s123, [#allocation14], 128, 128, 8
    $region49: #{tpu_custom_call.1} parent=1 // pred_fallthru
      _
    // Predicated region
    $region50: #{tpu_custom_call.1} parent=1 // pred_check
      _
    $region51: #{tpu_custom_call.1} parent=1 // pred_check_branch
      %130 = sbr.rel (0) target = $region53
    $region52: #{tpu_custom_call.1} parent=1 // pred_region
      _
    $region53: #{tpu_custom_call.1} parent=1 // pred_fallthru
      _
    // Predicated region
    $region54: #{tpu_custom_call.1} parent=1 // pred_check
      _
    $region55: #{tpu_custom_call.1} parent=1 // pred_check_branch
      %132 = sbr.rel (0) target = $region57
    $region56: #{tpu_custom_call.1} parent=1 // pred_region
      %s134 = ssub.s32 2048, 2048
      %135 = vsyncadd [#allocation17], %s134
      %s136 = sshll.u32 [#allocation16], 4
      %s137 = int_to_ptr.vmem [resolvable:$true] %s136
      %142 = dma.hbm_to_vmem [thread:$0]  %s13, 2048, %s137, [#allocation17], 128, 128, 8
    $region57: #{tpu_custom_call.1} parent=1 // pred_fallthru
      _
    // Predicated region
    $region58: #{tpu_custom_call.1} parent=1 // pred_check
      _
    $region59: #{tpu_custom_call.1} parent=1 // pred_check_branch
      %144 = sbr.rel (0) target = $region61
    $region60: #{tpu_custom_call.1} parent=1 // pred_region
      _
    $region61: #{tpu_custom_call.1} parent=1 // pred_fallthru
      _
    // Predicated region
    $region62: #{tpu_custom_call.1} parent=1 // pred_check
      _
    $region63: #{tpu_custom_call.1} parent=1 // pred_check_branch
      %146 = sbr.rel (0) target = $region65
    $region64: #{tpu_custom_call.1} parent=1 // pred_region
      %s148 = ssub.s32 6144, 6144
      %149 = vsyncadd [#allocation17], %s148
      %s150 = sshll.u32 [#allocation18], 4
      %s151 = int_to_ptr.vmem [resolvable:$true] %s150
      %156 = dma.hbm_to_vmem [thread:$0]  %s15, 6144, %s151, [#allocation17], 384, 384, 24
    $region65: #{tpu_custom_call.1} parent=1 // pred_fallthru
      _
    // Predicated region
    $region66: #{tpu_custom_call.1} parent=1 // pred_check
      _
    $region67: #{tpu_custom_call.1} parent=1 // pred_check_branch
      %158 = sbr.rel (0) target = $region69
    $region68: #{tpu_custom_call.1} parent=1 // pred_region
      %s160 = ssub.s32 6144, 6144
      %161 = vsyncadd [#allocation20], %s160
      %s162 = sshll.u32 [#allocation19], 4
      %s163 = int_to_ptr.vmem [resolvable:$true] %s162
      %168 = dma.hbm_to_vmem [thread:$0]  %s16, 6144, %s163, [#allocation20], 384, 384, 24
    $region69: #{tpu_custom_call.1} parent=1 // pred_fallthru
      _
    // Predicated region
    $region70: #{tpu_custom_call.1} parent=1 // pred_check
      _
    $region71: #{tpu_custom_call.1} parent=1 // pred_check_branch
      %170 = sbr.rel (0) target = $region73
    $region72: #{tpu_custom_call.1} parent=1 // pred_region
      _
    $region73: #{tpu_custom_call.1} parent=1 // pred_fallthru
      _
    // Predicated region
    $region74: #{tpu_custom_call.1} parent=1 // pred_check
      _
    $region75: #{tpu_custom_call.1} parent=1 // pred_check_branch
      %172 = sbr.rel (0) target = $region77
    $region76: #{tpu_custom_call.1} parent=1 // pred_region
      _
    $region77: #{tpu_custom_call.1} parent=1 // pred_fallthru
      _
    // Predicated region
    $region78: #{tpu_custom_call.1} parent=1 // pred_check
      _
    $region79: #{tpu_custom_call.1} parent=1 // pred_check_branch
      %174 = sbr.rel (0) target = $region81
    $region80: #{tpu_custom_call.1} parent=1 // pred_region
      %s176 = ssub.s32 2048, 2048
      %177 = vsyncadd [#allocation20], %s176
      %s178 = sshll.u32 [#allocation21], 4
      %s179 = int_to_ptr.vmem [resolvable:$true] %s178
      %184 = dma.hbm_to_vmem [thread:$0]  %s19, 2048, %s179, [#allocation20], 128, 128, 8
    $region81: #{tpu_custom_call.1} parent=1 // pred_fallthru
      _
    // Predicated region
    $region82: #{tpu_custom_call.1} parent=1 // pred_check
      _
    $region83: #{tpu_custom_call.1} parent=1 // pred_check_branch
      %186 = sbr.rel (0) target = $region85
    $region84: #{tpu_custom_call.1} parent=1 // pred_region
      _
    $region85: #{tpu_custom_call.1} parent=1 // pred_fallthru
      _
    // Predicated region
    $region86: #{tpu_custom_call.1} parent=1 // pred_check
      _
    $region87: #{tpu_custom_call.1} parent=1 // pred_check_branch
      %188 = sbr.rel (0) target = $region89
    $region88: #{tpu_custom_call.1} parent=1 // pred_region
      _
    $region89: #{tpu_custom_call.1} parent=1 // pred_fallthru
      _
    // Predicated region
    $region90: #{tpu_custom_call.1} parent=1 // pred_check
      _
    $region91: #{tpu_custom_call.1} parent=1 // pred_check_branch
      %190 = sbr.rel (0) target = $region93
    $region92: #{tpu_custom_call.1} parent=1 // pred_region
      %s192 = ssub.s32 2048, 2048
      %193 = vsyncadd [#allocation23], %s192
      %s194 = sshll.u32 [#allocation22], 4
      %s195 = int_to_ptr.vmem [resolvable:$true] %s194
      %200 = dma.hbm_to_vmem [thread:$0]  %s22, 2048, %s195, [#allocation23], 128, 128, 8
    $region93: #{tpu_custom_call.1} parent=1 // pred_fallthru
      _
    // Predicated region
    $region94: #{tpu_custom_call.1} parent=1 // pred_check
      _
    $region95: #{tpu_custom_call.1} parent=1 // pred_check_branch
      %202 = sbr.rel (0) target = $region97
    $region96: #{tpu_custom_call.1} parent=1 // pred_region
      _
    $region97: #{tpu_custom_call.1} parent=1 // pred_fallthru
      _
    // Predicated region
    $region98: #{tpu_custom_call.1} parent=1 // pred_check
      _
    $region99: #{tpu_custom_call.1} parent=1 // pred_check_branch
      %204 = sbr.rel (0) target = $region101
    $region100: #{tpu_custom_call.1} parent=1 // pred_region
      %s206 = ssub.s32 2048, 2048
      %207 = vsyncadd [#allocation23], %s206
      %s208 = sshll.u32 [#allocation24], 4
      %s209 = int_to_ptr.vmem [resolvable:$true] %s208
      %214 = dma.hbm_to_vmem [thread:$0]  %s24, 2048, %s209, [#allocation23], 128, 128, 8
    $region101: #{tpu_custom_call.1} parent=1 // pred_fallthru
      _
    // Predicated region
    $region102: #{tpu_custom_call.1} parent=1 // pred_check
      _
    $region103: #{tpu_custom_call.1} parent=1 // pred_check_branch
      %216 = sbr.rel (0) target = $region105
    $region104: #{tpu_custom_call.1} parent=1 // pred_region
      _
    $region105: #{tpu_custom_call.1} parent=1 // pred_fallthru
      _
    // Predicated region
    $region106: #{tpu_custom_call.1} parent=1 // pred_check
      _
    $region107: #{tpu_custom_call.1} parent=1 // pred_check_branch
      %218 = sbr.rel (0) target = $region109
    $region108: #{tpu_custom_call.1} parent=1 // pred_region
      %219 = dma.done [#allocation5], 2048
    $region109: #{tpu_custom_call.1} parent=1 // pred_fallthru
      _
    // Predicated region
    $region110: #{tpu_custom_call.1} parent=1 // pred_check
      _
    $region111: #{tpu_custom_call.1} parent=1 // pred_check_branch
      %221 = sbr.rel (0) target = $region113
    $region112: #{tpu_custom_call.1} parent=1 // pred_region
      %222 = dma.done [#allocation8], 2048
    $region113: #{tpu_custom_call.1} parent=1 // pred_fallthru
      _
    // Predicated region
    $region114: #{tpu_custom_call.1} parent=1 // pred_check
      _
    $region115: #{tpu_custom_call.1} parent=1 // pred_check_branch
      %224 = sbr.rel (0) target = $region117
    $region116: #{tpu_custom_call.1} parent=1 // pred_region
      %225 = dma.done [#allocation8], 128
    $region117: #{tpu_custom_call.1} parent=1 // pred_fallthru
      _
    // Predicated region
    $region118: #{tpu_custom_call.1} parent=1 // pred_check
      _
    $region119: #{tpu_custom_call.1} parent=1 // pred_check_branch
      %227 = sbr.rel (0) target = $region121
    $region120: #{tpu_custom_call.1} parent=1 // pred_region
      %228 = dma.done [#allocation11], 128
    $region121: #{tpu_custom_call.1} parent=1 // pred_fallthru
      _
    // Predicated region
    $region122: #{tpu_custom_call.1} parent=1 // pred_check
      _
    $region123: #{tpu_custom_call.1} parent=1 // pred_check_branch
      %230 = sbr.rel (0) target = $region125
    $region124: #{tpu_custom_call.1} parent=1 // pred_region
      %231 = dma.done [#allocation11], 2048
    $region125: #{tpu_custom_call.1} parent=1 // pred_fallthru
      _
    // Predicated region
    $region126: #{tpu_custom_call.1} parent=1 // pred_check
      _
    $region127: #{tpu_custom_call.1} parent=1 // pred_check_branch
      %233 = sbr.rel (0) target = $region129
    $region128: #{tpu_custom_call.1} parent=1 // pred_region
      %234 = dma.done [#allocation14], 2048
    $region129: #{tpu_custom_call.1} parent=1 // pred_fallthru
      _
    // Predicated region
    $region130: #{tpu_custom_call.1} parent=1 // pred_check
      _
    $region131: #{tpu_custom_call.1} parent=1 // pred_check_branch
      %236 = sbr.rel (0) target = $region133
    $region132: #{tpu_custom_call.1} parent=1 // pred_region
      %237 = dma.done [#allocation14], 2048
    $region133: #{tpu_custom_call.1} parent=1 // pred_fallthru
      _
    // Predicated region
    $region134: #{tpu_custom_call.1} parent=1 // pred_check
      _
    $region135: #{tpu_custom_call.1} parent=1 // pred_check_branch
      %239 = sbr.rel (0) target = $region137
    $region136: #{tpu_custom_call.1} parent=1 // pred_region
      %240 = dma.done [#allocation17], 2048
    $region137: #{tpu_custom_call.1} parent=1 // pred_fallthru
      _
    // Predicated region
    $region138: #{tpu_custom_call.1} parent=1 // pred_check
      _
    $region139: #{tpu_custom_call.1} parent=1 // pred_check_branch
      %242 = sbr.rel (0) target = $region141
    $region140: #{tpu_custom_call.1} parent=1 // pred_region
      %243 = dma.done [#allocation17], 6144
    $region141: #{tpu_custom_call.1} parent=1 // pred_fallthru
      _
    // Predicated region
    $region142: #{tpu_custom_call.1} parent=1 // pred_check
      _
    $region143: #{tpu_custom_call.1} parent=1 // pred_check_branch
      %245 = sbr.rel (0) target = $region145
    $region144: #{tpu_custom_call.1} parent=1 // pred_region
      %246 = dma.done [#allocation20], 6144
    $region145: #{tpu_custom_call.1} parent=1 // pred_fallthru
      _
    // Predicated region
    $region146: #{tpu_custom_call.1} parent=1 // pred_check
      _
    $region147: #{tpu_custom_call.1} parent=1 // pred_check_branch
      %248 = sbr.rel (0) target = $region149
    $region148: #{tpu_custom_call.1} parent=1 // pred_region
      %249 = dma.done [#allocation20], 2048
    $region149: #{tpu_custom_call.1} parent=1 // pred_fallthru
      _
    // Predicated region
    $region150: #{tpu_custom_call.1} parent=1 // pred_check
      _
    $region151: #{tpu_custom_call.1} parent=1 // pred_check_branch
      %251 = sbr.rel (0) target = $region153
    $region152: #{tpu_custom_call.1} parent=1 // pred_region
      %252 = dma.done [#allocation23], 2048
    $region153: #{tpu_custom_call.1} parent=1 // pred_fallthru
      _
    // Predicated region
    $region154: #{tpu_custom_call.1} parent=1 // pred_check
      _
    $region155: #{tpu_custom_call.1} parent=1 // pred_check_branch
      %254 = sbr.rel (0) target = $region157
    $region156: #{tpu_custom_call.1} parent=1 // pred_region
      %255 = dma.done [#allocation23], 2048
    $region157: #{tpu_custom_call.1} parent=1 // pred_fallthru
      _
    %256 = vst [vmem:[#allocation2] sm:$0xff] 0.0
    %257 = vst [vmem:[#allocation2 + $0x8] sm:$0xff] 0.0
    %258 = vst [vmem:[#allocation2 + $0x10] sm:$0xff] 0.0
    %259 = vst [vmem:[#allocation2 + $0x18] sm:$0xff] 0.0
    %260 = vst [vmem:[#allocation2 + $0x20] sm:$0xff] 0.0
    %261 = vst [vmem:[#allocation2 + $0x28] sm:$0xff] 0.0
    %262 = vst [vmem:[#allocation2 + $0x30] sm:$0xff] 0.0
    %263 = vst [vmem:[#allocation2 + $0x38] sm:$0xff] 0.0
    %264 = vst [vmem:[#allocation2 + $0x40] sm:$0xff] 0.0
    %265 = vst [vmem:[#allocation2 + $0x48] sm:$0xff] 0.0
    %266 = vst [vmem:[#allocation2 + $0x50] sm:$0xff] 0.0
    %267 = vst [vmem:[#allocation2 + $0x58] sm:$0xff] 0.0
    %268 = vst [vmem:[#allocation2 + $0x60] sm:$0xff] 0.0
    %269 = vst [vmem:[#allocation2 + $0x68] sm:$0xff] 0.0
    %270 = vst [vmem:[#allocation2 + $0x70] sm:$0xff] 0.0
    %271 = vst [vmem:[#allocation2 + $0x78] sm:$0xff] 0.0
    %v272 = vld [vmem:[%s4] sm:$0xff]
    %v273 = vld [vmem:[%s4 + $0x8] sm:$0xff]
    %v274 = vld [vmem:[%s4 + $0x10] sm:$0xff]
    %v275 = vld [vmem:[%s4 + $0x18] sm:$0xff]
    %v276 = vld [vmem:[%s4 + $0x20] sm:$0xff]
    %v277 = vld [vmem:[%s4 + $0x28] sm:$0xff]
    %v278 = vld [vmem:[%s4 + $0x30] sm:$0xff]
    %v279 = vld [vmem:[%s4 + $0x38] sm:$0xff]
    %v280 = vld [vmem:[%s4 + $0x40] sm:$0xff]
    %v281 = vld [vmem:[%s4 + $0x48] sm:$0xff]
    %v282 = vld [vmem:[%s4 + $0x50] sm:$0xff]
    %v283 = vld [vmem:[%s4 + $0x58] sm:$0xff]
    %v284 = vld [vmem:[%s4 + $0x60] sm:$0xff]
    %v285 = vld [vmem:[%s4 + $0x68] sm:$0xff]
    %v286 = vld [vmem:[%s4 + $0x70] sm:$0xff]
    %v287 = vld [vmem:[%s4 + $0x78] sm:$0xff]
    %v288 = vld [vmem:[%s9] sm:$0xff]
    %v289 = vld [vmem:[%s9 + $0x8] sm:$0xff]
    %v290 = vld [vmem:[%s10] sm:$0x1]
    %v292 = vlaneseq
    %v293 = vshrl.u32 %v292, 7
    %v294 = vsub.s32 0, %v293
    %v295 = vrot.slane %v290, %v294
    %vm297 = vcmask 130048
    %v299 = vsel %vm297, %v272, 0
    %v302 = vsel %vm297, %v273, 0
    %v305 = vsel %vm297, %v274, 0
    %v308 = vsel %vm297, %v275, 0
    %v311 = vsel %vm297, %v276, 0
    %v314 = vsel %vm297, %v277, 0
    %v317 = vsel %vm297, %v278, 0
    %v320 = vsel %vm297, %v279, 0
    %v323 = vsel %vm297, %v280, 0
    %v326 = vsel %vm297, %v281, 0
    %v329 = vsel %vm297, %v282, 0
    %v332 = vsel %vm297, %v283, 0
    %v335 = vsel %vm297, %v284, 0
    %v338 = vsel %vm297, %v285, 0
    %v341 = vsel %vm297, %v286, 0
    %v344 = vsel %vm297, %v287, 0
    %346 = vmatprep.subr.mxu0 0.0
    %347 = vmatpush1.msra.mxu0 0.0
    %348 = vmatprep.subr.mxu0 0.0
    %349 = vmatpush1.msra.mxu0 0.0
    %350 = vmatprep.subr.mxu0 0.0
    %351 = vmatpush1.msra.mxu0 0.0
    %352 = vmatprep.subr.mxu0 0.0
    %353 = vmatpush1.msra.mxu0 0.0
    %354 = vmatprep.subr.mxu0 0.0
    %355 = vmatpush1.msra.mxu0 0.0
    %356 = vmatprep.subr.mxu0 0.0
    %357 = vmatpush1.msra.mxu0 0.0
    %358 = vmatprep.subr.mxu0 0.0
    %359 = vmatpush1.msra.mxu0 0.0
    %360 = vmatprep.subr.mxu0 0.0
    %361 = vmatpush1.msra.mxu0 0.0
    %362 = vmatprep.subr.mxu0 0.0
    %363 = vmatpush1.msra.mxu0 0.0
    %364 = vmatprep.subr.mxu0 0.0
    %365 = vmatpush1.msra.mxu0 0.0
    %366 = vmatprep.subr.mxu0 0.0
    %367 = vmatpush1.msra.mxu0 0.0
    %368 = vmatprep.subr.mxu0 0.0
    %369 = vmatpush1.msra.mxu0 0.0
    %370 = vmatprep.subr.mxu0 0.0
    %371 = vmatpush1.msra.mxu0 0.0
    %372 = vmatprep.subr.mxu0 0.0
    %373 = vmatpush1.msra.mxu0 0.0
    %374 = vmatprep.subr.mxu0 0.0
    %375 = vmatpush1.msra.mxu0 %v289
    %376 = vmatprep.subr.mxu0 0.0
    %377 = vmatpush1.msra.mxu0 %v288
    %378 = vmatprep.subr.mxu0 0.0
    %379 = vmatpush2.msra.mxu0 0.0
    %380 = vmatprep.subr.mxu0 0.0
    %381 = vmatpush2.msra.mxu0 0.0
    %382 = vmatprep.subr.mxu0 0.0
    %383 = vmatpush2.msra.mxu0 0.0
    %384 = vmatprep.subr.mxu0 0.0
    %385 = vmatpush2.msra.mxu0 0.0
    %386 = vmatprep.subr.mxu0 0.0
    %387 = vmatpush2.msra.mxu0 0.0
    %388 = vmatprep.subr.mxu0 0.0
    %389 = vmatpush2.msra.mxu0 0.0
    %390 = vmatprep.subr.mxu0 0.0
    %391 = vmatpush2.msra.mxu0 0.0
    %392 = vmatprep.subr.mxu0 0.0
    %393 = vmatpush2.msra.mxu0 0.0
    %394 = vmatprep.subr.mxu0 0.0
    %395 = vmatpush2.msra.mxu0 0.0
    %396 = vmatprep.subr.mxu0 0.0
    %397 = vmatpush2.msra.mxu0 0.0
    %398 = vmatprep.subr.mxu0 0.0
    %399 = vmatpush2.msra.mxu0 0.0
    %400 = vmatprep.subr.mxu0 0.0
    %401 = vmatpush2.msra.mxu0 0.0
    %402 = vmatprep.subr.mxu0 0.0
    %403 = vmatpush2.msra.mxu0 0.0
    %404 = vmatprep.subr.mxu0 0.0
    %405 = vmatpush2.msra.mxu0 0.0
    %406 = vmatprep.subr.mxu0 0.0
    %407 = vmatpush2.msra.mxu0 0.0
    %408 = vmatprep.subr.mxu0 0.0
    %409 = vmatpush2.msra.mxu0 0.0
    %410 = vmatprep.mubr.f32.mxu0 0.0
    %411 = vmatmul.mubr.f32.gmra.mxu0 %v299
    %v412 = vpop.f32.mrf.mxu0
    %v413 = vadd.f32 %v295, %v412
    %v414 = vpop.f32.mrf.mxu0
    %415 = vmatprep.mubr.f32.mxu0 0.0
    %416 = vmatmul.mubr.f32.gmra.mxu0 %v302
    %v417 = vpop.f32.mrf.mxu0
    %v418 = vadd.f32 %v295, %v417
    %v419 = vpop.f32.mrf.mxu0
    %420 = vmatprep.mubr.f32.mxu0 0.0
    %421 = vmatmul.mubr.f32.gmra.mxu0 %v305
    %v422 = vpop.f32.mrf.mxu0
    %v423 = vadd.f32 %v295, %v422
    %v424 = vpop.f32.mrf.mxu0
    %425 = vmatprep.mubr.f32.mxu0 0.0
    %426 = vmatmul.mubr.f32.gmra.mxu0 %v308
    %v427 = vpop.f32.mrf.mxu0
    %v428 = vadd.f32 %v295, %v427
    %v429 = vpop.f32.mrf.mxu0
    %430 = vmatprep.mubr.f32.mxu0 0.0
    %431 = vmatmul.mubr.f32.gmra.mxu0 %v311
    %v432 = vpop.f32.mrf.mxu0
    %v433 = vadd.f32 %v295, %v432
    %v434 = vpop.f32.mrf.mxu0
    %435 = vmatprep.mubr.f32.mxu0 0.0
    %436 = vmatmul.mubr.f32.gmra.mxu0 %v314
    %v437 = vpop.f32.mrf.mxu0
    %v438 = vadd.f32 %v295, %v437
    %v439 = vpop.f32.mrf.mxu0
    %440 = vmatprep.mubr.f32.mxu0 0.0
    %441 = vmatmul.mubr.f32.gmra.mxu0 %v317
    %v442 = vpop.f32.mrf.mxu0
    %v443 = vadd.f32 %v295, %v442
    %v444 = vpop.f32.mrf.mxu0
    %445 = vmatprep.mubr.f32.mxu0 0.0
    %446 = vmatmul.mubr.f32.gmra.mxu0 %v320
    %v447 = vpop.f32.mrf.mxu0
    %v448 = vadd.f32 %v295, %v447
    %v449 = vpop.f32.mrf.mxu0
    %450 = vmatprep.mubr.f32.mxu0 0.0
    %451 = vmatmul.mubr.f32.gmra.mxu0 %v323
    %v452 = vpop.f32.mrf.mxu0
    %v453 = vadd.f32 %v295, %v452
    %v454 = vpop.f32.mrf.mxu0
    %455 = vmatprep.mubr.f32.mxu0 0.0
    %456 = vmatmul.mubr.f32.gmra.mxu0 %v326
    %v457 = vpop.f32.mrf.mxu0
    %v458 = vadd.f32 %v295, %v457
    %v459 = vpop.f32.mrf.mxu0
    %460 = vmatprep.mubr.f32.mxu0 0.0
    %461 = vmatmul.mubr.f32.gmra.mxu0 %v329
    %v462 = vpop.f32.mrf.mxu0
    %v463 = vadd.f32 %v295, %v462
    %v464 = vpop.f32.mrf.mxu0
    %465 = vmatprep.mubr.f32.mxu0 0.0
    %466 = vmatmul.mubr.f32.gmra.mxu0 %v332
    %v467 = vpop.f32.mrf.mxu0
    %v468 = vadd.f32 %v295, %v467
    %v469 = vpop.f32.mrf.mxu0
    %470 = vmatprep.mubr.f32.mxu0 0.0
    %471 = vmatmul.mubr.f32.gmra.mxu0 %v335
    %v472 = vpop.f32.mrf.mxu0
    %v473 = vadd.f32 %v295, %v472
    %v474 = vpop.f32.mrf.mxu0
    %475 = vmatprep.mubr.f32.mxu0 0.0
    %476 = vmatmul.mubr.f32.gmra.mxu0 %v338
    %v477 = vpop.f32.mrf.mxu0
    %v478 = vadd.f32 %v295, %v477
    %v479 = vpop.f32.mrf.mxu0
    %480 = vmatprep.mubr.f32.mxu0 0.0
    %481 = vmatmul.mubr.f32.gmra.mxu0 %v341
    %v482 = vpop.f32.mrf.mxu0
    %v483 = vadd.f32 %v295, %v482
    %v484 = vpop.f32.mrf.mxu0
    %485 = vmatprep.mubr.f32.mxu0 0.0
    %486 = vmatmul.mubr.f32.gmra.mxu0 %v344
    %v487 = vpop.f32.mrf.mxu0
    %v488 = vadd.f32 %v295, %v487
    %v489 = vpop.f32.mrf.mxu0
    %490 = vdwg.mxu0
    %491 = vst [vmem:[#allocation3] sm:$0xff] %v413
    %492 = vst [vmem:[#allocation3 + $0x8] sm:$0xff] %v418
    %493 = vst [vmem:[#allocation3 + $0x10] sm:$0xff] %v423
    %494 = vst [vmem:[#allocation3 + $0x18] sm:$0xff] %v428
    %495 = vst [vmem:[#allocation3 + $0x20] sm:$0xff] %v433
    %496 = vst [vmem:[#allocation3 + $0x28] sm:$0xff] %v438
    %497 = vst [vmem:[#allocation3 + $0x30] sm:$0xff] %v443
    %498 = vst [vmem:[#allocation3 + $0x38] sm:$0xff] %v448
    %499 = vst [vmem:[#allocation3 + $0x40] sm:$0xff] %v453
    %500 = vst [vmem:[#allocation3 + $0x48] sm:$0xff] %v458
    %501 = vst [vmem:[#allocation3 + $0x50] sm:$0xff] %v463
    %502 = vst [vmem:[#allocation3 + $0x58] sm:$0xff] %v468
    %503 = vst [vmem:[#allocation3 + $0x60] sm:$0xff] %v473
    %504 = vst [vmem:[#allocation3 + $0x68] sm:$0xff] %v478
    %505 = vst [vmem:[#allocation3 + $0x70] sm:$0xff] %v483
    %506 = vst [vmem:[#allocation3 + $0x78] sm:$0xff] %v488
    %v507 = vld [vmem:[#allocation2] sm:$0xff]
    %v508 = vld [vmem:[#allocation2 + $0x8] sm:$0xff]
    %v509 = vld [vmem:[#allocation2 + $0x10] sm:$0xff]
    %v510 = vld [vmem:[#allocation2 + $0x18] sm:$0xff]
    %v511 = vld [vmem:[#allocation2 + $0x20] sm:$0xff]
    %v512 = vld [vmem:[#allocation2 + $0x28] sm:$0xff]
    %v513 = vld [vmem:[#allocation2 + $0x30] sm:$0xff]
    %v514 = vld [vmem:[#allocation2 + $0x38] sm:$0xff]
    %v515 = vld [vmem:[#allocation2 + $0x40] sm:$0xff]
    %v516 = vld [vmem:[#allocation2 + $0x48] sm:$0xff]
    %v517 = vld [vmem:[#allocation2 + $0x50] sm:$0xff]
    %v518 = vld [vmem:[#allocation2 + $0x58] sm:$0xff]
    %v519 = vld [vmem:[#allocation2 + $0x60] sm:$0xff]
    %v520 = vld [vmem:[#allocation2 + $0x68] sm:$0xff]
    %v521 = vld [vmem:[#allocation2 + $0x70] sm:$0xff]
    %v522 = vld [vmem:[#allocation2 + $0x78] sm:$0xff]
    %v523 = vld [vmem:[%s0] sm:$0xff]
    %v524 = vld [vmem:[%s0 + $0x8] sm:$0xff]
    %v525 = vld [vmem:[%s0 + $0x10] sm:$0xff]
    %v526 = vld [vmem:[%s0 + $0x18] sm:$0xff]
    %v527 = vld [vmem:[%s0 + $0x20] sm:$0xff]
    %v528 = vld [vmem:[%s0 + $0x28] sm:$0xff]
    %v529 = vld [vmem:[%s0 + $0x30] sm:$0xff]
    %v530 = vld [vmem:[%s0 + $0x38] sm:$0xff]
    %v531 = vld [vmem:[%s0 + $0x40] sm:$0xff]
    %v532 = vld [vmem:[%s0 + $0x48] sm:$0xff]
    %v533 = vld [vmem:[%s0 + $0x50] sm:$0xff]
    %v534 = vld [vmem:[%s0 + $0x58] sm:$0xff]
    %v535 = vld [vmem:[%s0 + $0x60] sm:$0xff]
    %v536 = vld [vmem:[%s0 + $0x68] sm:$0xff]
    %v537 = vld [vmem:[%s0 + $0x70] sm:$0xff]
    %v538 = vld [vmem:[%s0 + $0x78] sm:$0xff]
    %539 = vmatprep.subr.mxu0 0.0
    %540 = vmatpush1.msra.mxu0 %v522
    %541 = vmatprep.subr.mxu0 0.0
    %542 = vmatpush1.msra.mxu0 %v521
    %543 = vmatprep.subr.mxu0 0.0
    %544 = vmatpush1.msra.mxu0 %v520
    %545 = vmatprep.subr.mxu0 0.0
    %546 = vmatpush1.msra.mxu0 %v519
    %547 = vmatprep.subr.mxu0 0.0
    %548 = vmatpush1.msra.mxu0 %v518
    %549 = vmatprep.subr.mxu0 0.0
    %550 = vmatpush1.msra.mxu0 %v517
    %551 = vmatprep.subr.mxu0 0.0
    %552 = vmatpush1.msra.mxu0 %v516
    %553 = vmatprep.subr.mxu0 0.0
    %554 = vmatpush1.msra.mxu0 %v515
    %555 = vmatprep.subr.mxu0 0.0
    %556 = vmatpush1.msra.mxu0 %v514
    %557 = vmatprep.subr.mxu0 0.0
    %558 = vmatpush1.msra.mxu0 %v513
    %559 = vmatprep.subr.mxu0 0.0
    %560 = vmatpush1.msra.mxu0 %v512
    %561 = vmatprep.subr.mxu0 0.0
    %562 = vmatpush1.msra.mxu0 %v511
    %563 = vmatprep.subr.mxu0 0.0
    %564 = vmatpush1.msra.mxu0 %v510
    %565 = vmatprep.subr.mxu0 0.0
    %566 = vmatpush1.msra.mxu0 %v509
    %567 = vmatprep.subr.mxu0 0.0
    %568 = vmatpush1.msra.mxu0 %v508
    %569 = vmatprep.subr.mxu0 0.0
    %570 = vmatpush1.msra.mxu0 %v507
    %571 = vmatprep.subr.mxu0 0.0
    %572 = vmatpush2.msra.mxu0 0.0
    %573 = vmatprep.subr.mxu0 0.0
    %574 = vmatpush2.msra.mxu0 0.0
    %575 = vmatprep.subr.mxu0 0.0
    %576 = vmatpush2.msra.mxu0 0.0
    %577 = vmatprep.subr.mxu0 0.0
    %578 = vmatpush2.msra.mxu0 0.0
    %579 = vmatprep.subr.mxu0 0.0
    %580 = vmatpush2.msra.mxu0 0.0
    %581 = vmatprep.subr.mxu0 0.0
    %582 = vmatpush2.msra.mxu0 0.0
    %583 = vmatprep.subr.mxu0 0.0
    %584 = vmatpush2.msra.mxu0 0.0
    %585 = vmatprep.subr.mxu0 0.0
    %586 = vmatpush2.msra.mxu0 0.0
    %587 = vmatprep.subr.mxu0 0.0
    %588 = vmatpush2.msra.mxu0 0.0
    %589 = vmatprep.subr.mxu0 0.0
    %590 = vmatpush2.msra.mxu0 0.0
    %591 = vmatprep.subr.mxu0 0.0
    %592 = vmatpush2.msra.mxu0 0.0
    %593 = vmatprep.subr.mxu0 0.0
    %594 = vmatpush2.msra.mxu0 0.0
    %595 = vmatprep.subr.mxu0 0.0
    %596 = vmatpush2.msra.mxu0 0.0
    %597 = vmatprep.subr.mxu0 0.0
    %598 = vmatpush2.msra.mxu0 0.0
    %599 = vmatprep.subr.mxu0 0.0
    %600 = vmatpush2.msra.mxu0 0.0
    %601 = vmatprep.subr.mxu0 0.0
    %602 = vmatpush2.msra.mxu0 0.0
    %603 = vmatprep.mubr.f32.mxu0 0.0
    %604 = vmatmul.mubr.f32.gmra.mxu0 %v523
    %v605 = vpop.f32.mrf.mxu0
    %v606 = vadd.f32 0.0, %v605
    %v607 = vpop.f32.mrf.mxu0
    %608 = vmatprep.mubr.f32.mxu0 0.0
    %609 = vmatmul.mubr.f32.gmra.mxu0 %v524
    %v610 = vpop.f32.mrf.mxu0
    %v611 = vadd.f32 0.0, %v610
    %v612 = vpop.f32.mrf.mxu0
    %613 = vmatprep.mubr.f32.mxu0 0.0
    %614 = vmatmul.mubr.f32.gmra.mxu0 %v525
    %v615 = vpop.f32.mrf.mxu0
    %v616 = vadd.f32 0.0, %v615
    %v617 = vpop.f32.mrf.mxu0
    %618 = vmatprep.mubr.f32.mxu0 0.0
    %619 = vmatmul.mubr.f32.gmra.mxu0 %v526
    %v620 = vpop.f32.mrf.mxu0
    %v621 = vadd.f32 0.0, %v620
    %v622 = vpop.f32.mrf.mxu0
    %623 = vmatprep.mubr.f32.mxu0 0.0
    %624 = vmatmul.mubr.f32.gmra.mxu0 %v527
    %v625 = vpop.f32.mrf.mxu0
    %v626 = vadd.f32 0.0, %v625
    %v627 = vpop.f32.mrf.mxu0
    %628 = vmatprep.mubr.f32.mxu0 0.0
    %629 = vmatmul.mubr.f32.gmra.mxu0 %v528
    %v630 = vpop.f32.mrf.mxu0
    %v631 = vadd.f32 0.0, %v630
    %v632 = vpop.f32.mrf.mxu0
    %633 = vmatprep.mubr.f32.mxu0 0.0
    %634 = vmatmul.mubr.f32.gmra.mxu0 %v529
    %v635 = vpop.f32.mrf.mxu0
    %v636 = vadd.f32 0.0, %v635
    %v637 = vpop.f32.mrf.mxu0
    %638 = vmatprep.mubr.f32.mxu0 0.0
    %639 = vmatmul.mubr.f32.gmra.mxu0 %v530
    %v640 = vpop.f32.mrf.mxu0
    %v641 = vadd.f32 0.0, %v640
    %v642 = vpop.f32.mrf.mxu0
    %643 = vmatprep.mubr.f32.mxu0 0.0
    %644 = vmatmul.mubr.f32.gmra.mxu0 %v531
    %v645 = vpop.f32.mrf.mxu0
    %v646 = vadd.f32 0.0, %v645
    %v647 = vpop.f32.mrf.mxu0
    %648 = vmatprep.mubr.f32.mxu0 0.0
    %649 = vmatmul.mubr.f32.gmra.mxu0 %v532
    %v650 = vpop.f32.mrf.mxu0
    %v651 = vadd.f32 0.0, %v650
    %v652 = vpop.f32.mrf.mxu0
    %653 = vmatprep.mubr.f32.mxu0 0.0
    %654 = vmatmul.mubr.f32.gmra.mxu0 %v533
    %v655 = vpop.f32.mrf.mxu0
    %v656 = vadd.f32 0.0, %v655
    %v657 = vpop.f32.mrf.mxu0
    %658 = vmatprep.mubr.f32.mxu0 0.0
    %659 = vmatmul.mubr.f32.gmra.mxu0 %v534
    %v660 = vpop.f32.mrf.mxu0
    %v661 = vadd.f32 0.0, %v660
    %v662 = vpop.f32.mrf.mxu0
    %663 = vmatprep.mubr.f32.mxu0 0.0
    %664 = vmatmul.mubr.f32.gmra.mxu0 %v535
    %v665 = vpop.f32.mrf.mxu0
    %v666 = vadd.f32 0.0, %v665
    %v667 = vpop.f32.mrf.mxu0
    %668 = vmatprep.mubr.f32.mxu0 0.0
    %669 = vmatmul.mubr.f32.gmra.mxu0 %v536
    %v670 = vpop.f32.mrf.mxu0
    %v671 = vadd.f32 0.0, %v670
    %v672 = vpop.f32.mrf.mxu0
    %673 = vmatprep.mubr.f32.mxu0 0.0
    %674 = vmatmul.mubr.f32.gmra.mxu0 %v537
    %v675 = vpop.f32.mrf.mxu0
    %v676 = vadd.f32 0.0, %v675
    %v677 = vpop.f32.mrf.mxu0
    %678 = vmatprep.mubr.f32.mxu0 0.0
    %679 = vmatmul.mubr.f32.gmra.mxu0 %v538
    %v680 = vpop.f32.mrf.mxu0
    %v681 = vadd.f32 0.0, %v680
    %v682 = vpop.f32.mrf.mxu0
    %683 = vdwg.mxu0
    %v684 = vld [vmem:[#allocation4] sm:$0xff]
    %v685 = vld [vmem:[#allocation4 + $0x8] sm:$0xff]
    %v686 = vld [vmem:[#allocation4 + $0x10] sm:$0xff]
    %v687 = vld [vmem:[#allocation4 + $0x18] sm:$0xff]
    %v688 = vld [vmem:[#allocation4 + $0x20] sm:$0xff]
    %v689 = vld [vmem:[#allocation4 + $0x28] sm:$0xff]
    %v690 = vld [vmem:[#allocation4 + $0x30] sm:$0xff]
    %v691 = vld [vmem:[#allocation4 + $0x38] sm:$0xff]
    %v692 = vld [vmem:[#allocation4 + $0x40] sm:$0xff]
    %v693 = vld [vmem:[#allocation4 + $0x48] sm:$0xff]
    %v694 = vld [vmem:[#allocation4 + $0x50] sm:$0xff]
    %v695 = vld [vmem:[#allocation4 + $0x58] sm:$0xff]
    %v696 = vld [vmem:[#allocation4 + $0x60] sm:$0xff]
    %v697 = vld [vmem:[#allocation4 + $0x68] sm:$0xff]
    %v698 = vld [vmem:[#allocation4 + $0x70] sm:$0xff]
    %v699 = vld [vmem:[#allocation4 + $0x78] sm:$0xff]
    %700 = vmatprep.subr.mxu0 0.0
    %701 = vmatpush1.msra.mxu0 %v522
    %702 = vmatprep.subr.mxu0 0.0
    %703 = vmatpush1.msra.mxu0 %v521
    %704 = vmatprep.subr.mxu0 0.0
    %705 = vmatpush1.msra.mxu0 %v520
    %706 = vmatprep.subr.mxu0 0.0
    %707 = vmatpush1.msra.mxu0 %v519
    %708 = vmatprep.subr.mxu0 0.0
    %709 = vmatpush1.msra.mxu0 %v518
    %710 = vmatprep.subr.mxu0 0.0
    %711 = vmatpush1.msra.mxu0 %v517
    %712 = vmatprep.subr.mxu0 0.0
    %713 = vmatpush1.msra.mxu0 %v516
    %714 = vmatprep.subr.mxu0 0.0
    %715 = vmatpush1.msra.mxu0 %v515
    %716 = vmatprep.subr.mxu0 0.0
    %717 = vmatpush1.msra.mxu0 %v514
    %718 = vmatprep.subr.mxu0 0.0
    %719 = vmatpush1.msra.mxu0 %v513
    %720 = vmatprep.subr.mxu0 0.0
    %721 = vmatpush1.msra.mxu0 %v512
    %722 = vmatprep.subr.mxu0 0.0
    %723 = vmatpush1.msra.mxu0 %v511
    %724 = vmatprep.subr.mxu0 0.0
    %725 = vmatpush1.msra.mxu0 %v510
    %726 = vmatprep.subr.mxu0 0.0
    %727 = vmatpush1.msra.mxu0 %v509
    %728 = vmatprep.subr.mxu0 0.0
    %729 = vmatpush1.msra.mxu0 %v508
    %730 = vmatprep.subr.mxu0 0.0
    %731 = vmatpush1.msra.mxu0 %v507
    %732 = vmatprep.subr.mxu0 0.0
    %733 = vmatpush2.msra.mxu0 0.0
    %734 = vmatprep.subr.mxu0 0.0
    %735 = vmatpush2.msra.mxu0 0.0
    %736 = vmatprep.subr.mxu0 0.0
    %737 = vmatpush2.msra.mxu0 0.0
    %738 = vmatprep.subr.mxu0 0.0
    %739 = vmatpush2.msra.mxu0 0.0
    %740 = vmatprep.subr.mxu0 0.0
    %741 = vmatpush2.msra.mxu0 0.0
    %742 = vmatprep.subr.mxu0 0.0
    %743 = vmatpush2.msra.mxu0 0.0
    %744 = vmatprep.subr.mxu0 0.0
    %745 = vmatpush2.msra.mxu0 0.0
    %746 = vmatprep.subr.mxu0 0.0
    %747 = vmatpush2.msra.mxu0 0.0
    %748 = vmatprep.subr.mxu0 0.0
    %749 = vmatpush2.msra.mxu0 0.0
    %750 = vmatprep.subr.mxu0 0.0
    %751 = vmatpush2.msra.mxu0 0.0
    %752 = vmatprep.subr.mxu0 0.0
    %753 = vmatpush2.msra.mxu0 0.0
    %754 = vmatprep.subr.mxu0 0.0
    %755 = vmatpush2.msra.mxu0 0.0
    %756 = vmatprep.subr.mxu0 0.0
    %757 = vmatpush2.msra.mxu0 0.0
    %758 = vmatprep.subr.mxu0 0.0
    %759 = vmatpush2.msra.mxu0 0.0
    %760 = vmatprep.subr.mxu0 0.0
    %761 = vmatpush2.msra.mxu0 0.0
    %762 = vmatprep.subr.mxu0 0.0
    %763 = vmatpush2.msra.mxu0 0.0
    %764 = vmatprep.mubr.f32.mxu0 0.0
    %765 = vmatmul.mubr.f32.gmra.mxu0 %v684
    %v766 = vpop.f32.mrf.mxu0
    %v767 = vadd.f32 0.0, %v766
    %v768 = vpop.f32.mrf.mxu0
    %769 = vmatprep.mubr.f32.mxu0 0.0
    %770 = vmatmul.mubr.f32.gmra.mxu0 %v685
    %v771 = vpop.f32.mrf.mxu0
    %v772 = vadd.f32 0.0, %v771
    %v773 = vpop.f32.mrf.mxu0
    %774 = vmatprep.mubr.f32.mxu0 0.0
    %775 = vmatmul.mubr.f32.gmra.mxu0 %v686
    %v776 = vpop.f32.mrf.mxu0
    %v777 = vadd.f32 0.0, %v776
    %v778 = vpop.f32.mrf.mxu0
    %779 = vmatprep.mubr.f32.mxu0 0.0
    %780 = vmatmul.mubr.f32.gmra.mxu0 %v687
    %v781 = vpop.f32.mrf.mxu0
    %v782 = vadd.f32 0.0, %v781
    %v783 = vpop.f32.mrf.mxu0
    %784 = vmatprep.mubr.f32.mxu0 0.0
    %785 = vmatmul.mubr.f32.gmra.mxu0 %v688
    %v786 = vpop.f32.mrf.mxu0
    %v787 = vadd.f32 0.0, %v786
    %v788 = vpop.f32.mrf.mxu0
    %789 = vmatprep.mubr.f32.mxu0 0.0
    %790 = vmatmul.mubr.f32.gmra.mxu0 %v689
    %v791 = vpop.f32.mrf.mxu0
    %v792 = vadd.f32 0.0, %v791
    %v793 = vpop.f32.mrf.mxu0
    %794 = vmatprep.mubr.f32.mxu0 0.0
    %795 = vmatmul.mubr.f32.gmra.mxu0 %v690
    %v796 = vpop.f32.mrf.mxu0
    %v797 = vadd.f32 0.0, %v796
    %v798 = vpop.f32.mrf.mxu0
    %799 = vmatprep.mubr.f32.mxu0 0.0
    %800 = vmatmul.mubr.f32.gmra.mxu0 %v691
    %v801 = vpop.f32.mrf.mxu0
    %v802 = vadd.f32 0.0, %v801
    %v803 = vpop.f32.mrf.mxu0
    %804 = vmatprep.mubr.f32.mxu0 0.0
    %805 = vmatmul.mubr.f32.gmra.mxu0 %v692
    %v806 = vpop.f32.mrf.mxu0
    %v807 = vadd.f32 0.0, %v806
    %v808 = vpop.f32.mrf.mxu0
    %809 = vmatprep.mubr.f32.mxu0 0.0
    %810 = vmatmul.mubr.f32.gmra.mxu0 %v693
    %v811 = vpop.f32.mrf.mxu0
    %v812 = vadd.f32 0.0, %v811
    %v813 = vpop.f32.mrf.mxu0
    %814 = vmatprep.mubr.f32.mxu0 0.0
    %815 = vmatmul.mubr.f32.gmra.mxu0 %v694
    %v816 = vpop.f32.mrf.mxu0
    %v817 = vadd.f32 0.0, %v816
    %v818 = vpop.f32.mrf.mxu0
    %819 = vmatprep.mubr.f32.mxu0 0.0
    %820 = vmatmul.mubr.f32.gmra.mxu0 %v695
    %v821 = vpop.f32.mrf.mxu0
    %v822 = vadd.f32 0.0, %v821
    %v823 = vpop.f32.mrf.mxu0
    %824 = vmatprep.mubr.f32.mxu0 0.0
    %825 = vmatmul.mubr.f32.gmra.mxu0 %v696
    %v826 = vpop.f32.mrf.mxu0
    %v827 = vadd.f32 0.0, %v826
    %v828 = vpop.f32.mrf.mxu0
    %829 = vmatprep.mubr.f32.mxu0 0.0
    %830 = vmatmul.mubr.f32.gmra.mxu0 %v697
    %v831 = vpop.f32.mrf.mxu0
    %v832 = vadd.f32 0.0, %v831
    %v833 = vpop.f32.mrf.mxu0
    %834 = vmatprep.mubr.f32.mxu0 0.0
    %835 = vmatmul.mubr.f32.gmra.mxu0 %v698
    %v836 = vpop.f32.mrf.mxu0
    %v837 = vadd.f32 0.0, %v836
    %v838 = vpop.f32.mrf.mxu0
    %839 = vmatprep.mubr.f32.mxu0 0.0
    %840 = vmatmul.mubr.f32.gmra.mxu0 %v699
    %v841 = vpop.f32.mrf.mxu0
    %v842 = vadd.f32 0.0, %v841
    %v843 = vpop.f32.mrf.mxu0
    %844 = vdwg.mxu0
    %v845 = vld [vmem:[#allocation12] sm:$0xff]
    %v846 = vld [vmem:[#allocation12 + $0x8] sm:$0xff]
    %v847 = vld [vmem:[#allocation12 + $0x10] sm:$0xff]
    %v848 = vld [vmem:[#allocation12 + $0x18] sm:$0xff]
    %v849 = vld [vmem:[#allocation12 + $0x20] sm:$0xff]
    %v850 = vld [vmem:[#allocation12 + $0x28] sm:$0xff]
    %v851 = vld [vmem:[#allocation12 + $0x30] sm:$0xff]
    %v852 = vld [vmem:[#allocation12 + $0x38] sm:$0xff]
    %v853 = vld [vmem:[#allocation12 + $0x40] sm:$0xff]
    %v854 = vld [vmem:[#allocation12 + $0x48] sm:$0xff]
    %v855 = vld [vmem:[#allocation12 + $0x50] sm:$0xff]
    %v856 = vld [vmem:[#allocation12 + $0x58] sm:$0xff]
    %v857 = vld [vmem:[#allocation12 + $0x60] sm:$0xff]
    %v858 = vld [vmem:[#allocation12 + $0x68] sm:$0xff]
    %v859 = vld [vmem:[#allocation12 + $0x70] sm:$0xff]
    %v860 = vld [vmem:[#allocation12 + $0x78] sm:$0xff]
    %v861 = vld [vmem:[#allocation13] sm:$0xff]
    %v862 = vld [vmem:[#allocation13 + $0x8] sm:$0xff]
    %v863 = vld [vmem:[#allocation13 + $0x10] sm:$0xff]
    %v864 = vld [vmem:[#allocation13 + $0x18] sm:$0xff]
    %v865 = vld [vmem:[#allocation13 + $0x20] sm:$0xff]
    %v866 = vld [vmem:[#allocation13 + $0x28] sm:$0xff]
    %v867 = vld [vmem:[#allocation13 + $0x30] sm:$0xff]
    %v868 = vld [vmem:[#allocation13 + $0x38] sm:$0xff]
    %v869 = vld [vmem:[#allocation13 + $0x40] sm:$0xff]
    %v870 = vld [vmem:[#allocation13 + $0x48] sm:$0xff]
    %v871 = vld [vmem:[#allocation13 + $0x50] sm:$0xff]
    %v872 = vld [vmem:[#allocation13 + $0x58] sm:$0xff]
    %v873 = vld [vmem:[#allocation13 + $0x60] sm:$0xff]
    %v874 = vld [vmem:[#allocation13 + $0x68] sm:$0xff]
    %v875 = vld [vmem:[#allocation13 + $0x70] sm:$0xff]
    %v876 = vld [vmem:[#allocation13 + $0x78] sm:$0xff]
    %877 = vmatprep.subr.mxu0 0.0
    %878 = vmatpush1.msra.mxu0 %v876
    %879 = vmatprep.subr.mxu0 0.0
    %880 = vmatpush1.msra.mxu0 %v875
    %881 = vmatprep.subr.mxu0 0.0
    %882 = vmatpush1.msra.mxu0 %v874
    %883 = vmatprep.subr.mxu0 0.0
    %884 = vmatpush1.msra.mxu0 %v873
    %885 = vmatprep.subr.mxu0 0.0
    %886 = vmatpush1.msra.mxu0 %v872
    %887 = vmatprep.subr.mxu0 0.0
    %888 = vmatpush1.msra.mxu0 %v871
    %889 = vmatprep.subr.mxu0 0.0
    %890 = vmatpush1.msra.mxu0 %v870
    %891 = vmatprep.subr.mxu0 0.0
    %892 = vmatpush1.msra.mxu0 %v869
    %893 = vmatprep.subr.mxu0 0.0
    %894 = vmatpush1.msra.mxu0 %v868
    %895 = vmatprep.subr.mxu0 0.0
    %896 = vmatpush1.msra.mxu0 %v867
    %897 = vmatprep.subr.mxu0 0.0
    %898 = vmatpush1.msra.mxu0 %v866
    %899 = vmatprep.subr.mxu0 0.0
    %900 = vmatpush1.msra.mxu0 %v865
    %901 = vmatprep.subr.mxu0 0.0
    %902 = vmatpush1.msra.mxu0 %v864
    %903 = vmatprep.subr.mxu0 0.0
    %904 = vmatpush1.msra.mxu0 %v863
    %905 = vmatprep.subr.mxu0 0.0
    %906 = vmatpush1.msra.mxu0 %v862
    %907 = vmatprep.subr.mxu0 0.0
    %908 = vmatpush1.msra.mxu0 %v861
    %909 = vmatprep.subr.mxu0 0.0
    %910 = vmatpush2.msra.mxu0 0.0
    %911 = vmatprep.subr.mxu0 0.0
    %912 = vmatpush2.msra.mxu0 0.0
    %913 = vmatprep.subr.mxu0 0.0
    %914 = vmatpush2.msra.mxu0 0.0
    %915 = vmatprep.subr.mxu0 0.0
    %916 = vmatpush2.msra.mxu0 0.0
    %917 = vmatprep.subr.mxu0 0.0
    %918 = vmatpush2.msra.mxu0 0.0
    %919 = vmatprep.subr.mxu0 0.0
    %920 = vmatpush2.msra.mxu0 0.0
    %921 = vmatprep.subr.mxu0 0.0
    %922 = vmatpush2.msra.mxu0 0.0
    %923 = vmatprep.subr.mxu0 0.0
    %924 = vmatpush2.msra.mxu0 0.0
    %925 = vmatprep.subr.mxu0 0.0
    %926 = vmatpush2.msra.mxu0 0.0
    %927 = vmatprep.subr.mxu0 0.0
    %928 = vmatpush2.msra.mxu0 0.0
    %929 = vmatprep.subr.mxu0 0.0
    %930 = vmatpush2.msra.mxu0 0.0
    %931 = vmatprep.subr.mxu0 0.0
    %932 = vmatpush2.msra.mxu0 0.0
    %933 = vmatprep.subr.mxu0 0.0
    %934 = vmatpush2.msra.mxu0 0.0
    %935 = vmatprep.subr.mxu0 0.0
    %936 = vmatpush2.msra.mxu0 0.0
    %937 = vmatprep.subr.mxu0 0.0
    %938 = vmatpush2.msra.mxu0 0.0
    %939 = vmatprep.subr.mxu0 0.0
    %940 = vmatpush2.msra.mxu0 0.0
    %941 = vmatprep.mubr.f32.mxu0 0.0
    %942 = vmatmul.mubr.f32.gmra.mxu0 %v767
    %v943 = vpop.f32.mrf.mxu0
    %v944 = vadd.f32 0.0, %v943
    %v945 = vpop.f32.mrf.mxu0
    %946 = vmatprep.mubr.f32.mxu0 0.0
    %947 = vmatmul.mubr.f32.gmra.mxu0 %v772
    %v948 = vpop.f32.mrf.mxu0
    %v949 = vadd.f32 0.0, %v948
    %v950 = vpop.f32.mrf.mxu0
    %951 = vmatprep.mubr.f32.mxu0 0.0
    %952 = vmatmul.mubr.f32.gmra.mxu0 %v777
    %v953 = vpop.f32.mrf.mxu0
    %v954 = vadd.f32 0.0, %v953
    %v955 = vpop.f32.mrf.mxu0
    %956 = vmatprep.mubr.f32.mxu0 0.0
    %957 = vmatmul.mubr.f32.gmra.mxu0 %v782
    %v958 = vpop.f32.mrf.mxu0
    %v959 = vadd.f32 0.0, %v958
    %v960 = vpop.f32.mrf.mxu0
    %961 = vmatprep.mubr.f32.mxu0 0.0
    %962 = vmatmul.mubr.f32.gmra.mxu0 %v787
    %v963 = vpop.f32.mrf.mxu0
    %v964 = vadd.f32 0.0, %v963
    %v965 = vpop.f32.mrf.mxu0
    %966 = vmatprep.mubr.f32.mxu0 0.0
    %967 = vmatmul.mubr.f32.gmra.mxu0 %v792
    %v968 = vpop.f32.mrf.mxu0
    %v969 = vadd.f32 0.0, %v968
    %v970 = vpop.f32.mrf.mxu0
    %971 = vmatprep.mubr.f32.mxu0 0.0
    %972 = vmatmul.mubr.f32.gmra.mxu0 %v797
    %v973 = vpop.f32.mrf.mxu0
    %v974 = vadd.f32 0.0, %v973
    %v975 = vpop.f32.mrf.mxu0
    %976 = vmatprep.mubr.f32.mxu0 0.0
    %977 = vmatmul.mubr.f32.gmra.mxu0 %v802
    %v978 = vpop.f32.mrf.mxu0
    %v979 = vadd.f32 0.0, %v978
    %v980 = vpop.f32.mrf.mxu0
    %981 = vmatprep.mubr.f32.mxu0 0.0
    %982 = vmatmul.mubr.f32.gmra.mxu0 %v807
    %v983 = vpop.f32.mrf.mxu0
    %v984 = vadd.f32 0.0, %v983
    %v985 = vpop.f32.mrf.mxu0
    %986 = vmatprep.mubr.f32.mxu0 0.0
    %987 = vmatmul.mubr.f32.gmra.mxu0 %v812
    %v988 = vpop.f32.mrf.mxu0
    %v989 = vadd.f32 0.0, %v988
    %v990 = vpop.f32.mrf.mxu0
    %991 = vmatprep.mubr.f32.mxu0 0.0
    %992 = vmatmul.mubr.f32.gmra.mxu0 %v817
    %v993 = vpop.f32.mrf.mxu0
    %v994 = vadd.f32 0.0, %v993
    %v995 = vpop.f32.mrf.mxu0
    %996 = vmatprep.mubr.f32.mxu0 0.0
    %997 = vmatmul.mubr.f32.gmra.mxu0 %v822
    %v998 = vpop.f32.mrf.mxu0
    %v999 = vadd.f32 0.0, %v998
    %v1000 = vpop.f32.mrf.mxu0
    %1001 = vmatprep.mubr.f32.mxu0 0.0
    %1002 = vmatmul.mubr.f32.gmra.mxu0 %v827
    %v1003 = vpop.f32.mrf.mxu0
    %v1004 = vadd.f32 0.0, %v1003
    %v1005 = vpop.f32.mrf.mxu0
    %1006 = vmatprep.mubr.f32.mxu0 0.0
    %1007 = vmatmul.mubr.f32.gmra.mxu0 %v832
    %v1008 = vpop.f32.mrf.mxu0
    %v1009 = vadd.f32 0.0, %v1008
    %v1010 = vpop.f32.mrf.mxu0
    %1011 = vmatprep.mubr.f32.mxu0 0.0
    %1012 = vmatmul.mubr.f32.gmra.mxu0 %v837
    %v1013 = vpop.f32.mrf.mxu0
    %v1014 = vadd.f32 0.0, %v1013
    %v1015 = vpop.f32.mrf.mxu0
    %1016 = vmatprep.mubr.f32.mxu0 0.0
    %1017 = vmatmul.mubr.f32.gmra.mxu0 %v842
    %v1018 = vpop.f32.mrf.mxu0
    %v1019 = vadd.f32 0.0, %v1018
    %v1020 = vpop.f32.mrf.mxu0
    %1021 = vdwg.mxu0
    %1022 = vmatprep.subr.mxu0 0.0
    %1023 = vmatpush1.msra.mxu0 %v860
    %1024 = vmatprep.subr.mxu0 0.0
    %1025 = vmatpush1.msra.mxu0 %v859
    %1026 = vmatprep.subr.mxu0 0.0
    %1027 = vmatpush1.msra.mxu0 %v858
    %1028 = vmatprep.subr.mxu0 0.0
    %1029 = vmatpush1.msra.mxu0 %v857
    %1030 = vmatprep.subr.mxu0 0.0
    %1031 = vmatpush1.msra.mxu0 %v856
    %1032 = vmatprep.subr.mxu0 0.0
    %1033 = vmatpush1.msra.mxu0 %v855
    %1034 = vmatprep.subr.mxu0 0.0
    %1035 = vmatpush1.msra.mxu0 %v854
    %1036 = vmatprep.subr.mxu0 0.0
    %1037 = vmatpush1.msra.mxu0 %v853
    %1038 = vmatprep.subr.mxu0 0.0
    %1039 = vmatpush1.msra.mxu0 %v852
    %1040 = vmatprep.subr.mxu0 0.0
    %1041 = vmatpush1.msra.mxu0 %v851
    %1042 = vmatprep.subr.mxu0 0.0
    %1043 = vmatpush1.msra.mxu0 %v850
    %1044 = vmatprep.subr.mxu0 0.0
    %1045 = vmatpush1.msra.mxu0 %v849
    %1046 = vmatprep.subr.mxu0 0.0
    %1047 = vmatpush1.msra.mxu0 %v848
    %1048 = vmatprep.subr.mxu0 0.0
    %1049 = vmatpush1.msra.mxu0 %v847
    %1050 = vmatprep.subr.mxu0 0.0
    %1051 = vmatpush1.msra.mxu0 %v846
    %1052 = vmatprep.subr.mxu0 0.0
    %1053 = vmatpush1.msra.mxu0 %v845
    %1054 = vmatprep.subr.mxu0 0.0
    %1055 = vmatpush2.msra.mxu0 0.0
    %1056 = vmatprep.subr.mxu0 0.0
    %1057 = vmatpush2.msra.mxu0 0.0
    %1058 = vmatprep.subr.mxu0 0.0
    %1059 = vmatpush2.msra.mxu0 0.0
    %1060 = vmatprep.subr.mxu0 0.0
    %1061 = vmatpush2.msra.mxu0 0.0
    %1062 = vmatprep.subr.mxu0 0.0
    %1063 = vmatpush2.msra.mxu0 0.0
    %1064 = vmatprep.subr.mxu0 0.0
    %1065 = vmatpush2.msra.mxu0 0.0
    %1066 = vmatprep.subr.mxu0 0.0
    %1067 = vmatpush2.msra.mxu0 0.0
    %1068 = vmatprep.subr.mxu0 0.0
    %1069 = vmatpush2.msra.mxu0 0.0
    %1070 = vmatprep.subr.mxu0 0.0
    %1071 = vmatpush2.msra.mxu0 0.0
    %1072 = vmatprep.subr.mxu0 0.0
    %1073 = vmatpush2.msra.mxu0 0.0
    %1074 = vmatprep.subr.mxu0 0.0
    %1075 = vmatpush2.msra.mxu0 0.0
    %1076 = vmatprep.subr.mxu0 0.0
    %1077 = vmatpush2.msra.mxu0 0.0
    %1078 = vmatprep.subr.mxu0 0.0
    %1079 = vmatpush2.msra.mxu0 0.0
    %1080 = vmatprep.subr.mxu0 0.0
    %1081 = vmatpush2.msra.mxu0 0.0
    %1082 = vmatprep.subr.mxu0 0.0
    %1083 = vmatpush2.msra.mxu0 0.0
    %1084 = vmatprep.subr.mxu0 0.0
    %1085 = vmatpush2.msra.mxu0 0.0
    %1086 = vmatprep.mubr.f32.mxu0 0.0
    %1087 = vmatmul.mubr.f32.gmra.mxu0 %v606
    %v1088 = vpop.f32.mrf.mxu0
    %v1089 = vadd.f32 %v944, %v1088
    %v1090 = vpop.f32.mrf.mxu0
    %1091 = vmatprep.mubr.f32.mxu0 0.0
    %1092 = vmatmul.mubr.f32.gmra.mxu0 %v611
    %v1093 = vpop.f32.mrf.mxu0
    %v1094 = vadd.f32 %v949, %v1093
    %v1095 = vpop.f32.mrf.mxu0
    %1096 = vmatprep.mubr.f32.mxu0 0.0
    %1097 = vmatmul.mubr.f32.gmra.mxu0 %v616
    %v1098 = vpop.f32.mrf.mxu0
    %v1099 = vadd.f32 %v954, %v1098
    %v1100 = vpop.f32.mrf.mxu0
    %1101 = vmatprep.mubr.f32.mxu0 0.0
    %1102 = vmatmul.mubr.f32.gmra.mxu0 %v621
    %v1103 = vpop.f32.mrf.mxu0
    %v1104 = vadd.f32 %v959, %v1103
    %v1105 = vpop.f32.mrf.mxu0
    %1106 = vmatprep.mubr.f32.mxu0 0.0
    %1107 = vmatmul.mubr.f32.gmra.mxu0 %v626
    %v1108 = vpop.f32.mrf.mxu0
    %v1109 = vadd.f32 %v964, %v1108
    %v1110 = vpop.f32.mrf.mxu0
    %1111 = vmatprep.mubr.f32.mxu0 0.0
    %1112 = vmatmul.mubr.f32.gmra.mxu0 %v631
    %v1113 = vpop.f32.mrf.mxu0
    %v1114 = vadd.f32 %v969, %v1113
    %v1115 = vpop.f32.mrf.mxu0
    %1116 = vmatprep.mubr.f32.mxu0 0.0
    %1117 = vmatmul.mubr.f32.gmra.mxu0 %v636
    %v1118 = vpop.f32.mrf.mxu0
    %v1119 = vadd.f32 %v974, %v1118
    %v1120 = vpop.f32.mrf.mxu0
    %1121 = vmatprep.mubr.f32.mxu0 0.0
    %1122 = vmatmul.mubr.f32.gmra.mxu0 %v641
    %v1123 = vpop.f32.mrf.mxu0
    %v1124 = vadd.f32 %v979, %v1123
    %v1125 = vpop.f32.mrf.mxu0
    %1126 = vmatprep.mubr.f32.mxu0 0.0
    %1127 = vmatmul.mubr.f32.gmra.mxu0 %v646
    %v1128 = vpop.f32.mrf.mxu0
    %v1129 = vadd.f32 %v984, %v1128
    %v1130 = vpop.f32.mrf.mxu0
    %1131 = vmatprep.mubr.f32.mxu0 0.0
    %1132 = vmatmul.mubr.f32.gmra.mxu0 %v651
    %v1133 = vpop.f32.mrf.mxu0
    %v1134 = vadd.f32 %v989, %v1133
    %v1135 = vpop.f32.mrf.mxu0
    %1136 = vmatprep.mubr.f32.mxu0 0.0
    %1137 = vmatmul.mubr.f32.gmra.mxu0 %v656
    %v1138 = vpop.f32.mrf.mxu0
    %v1139 = vadd.f32 %v994, %v1138
    %v1140 = vpop.f32.mrf.mxu0
    %1141 = vmatprep.mubr.f32.mxu0 0.0
    %1142 = vmatmul.mubr.f32.gmra.mxu0 %v661
    %v1143 = vpop.f32.mrf.mxu0
    %v1144 = vadd.f32 %v999, %v1143
    %v1145 = vpop.f32.mrf.mxu0
    %1146 = vmatprep.mubr.f32.mxu0 0.0
    %1147 = vmatmul.mubr.f32.gmra.mxu0 %v666
    %v1148 = vpop.f32.mrf.mxu0
    %v1149 = vadd.f32 %v1004, %v1148
    %v1150 = vpop.f32.mrf.mxu0
    %1151 = vmatprep.mubr.f32.mxu0 0.0
    %1152 = vmatmul.mubr.f32.gmra.mxu0 %v671
    %v1153 = vpop.f32.mrf.mxu0
    %v1154 = vadd.f32 %v1009, %v1153
    %v1155 = vpop.f32.mrf.mxu0
    %1156 = vmatprep.mubr.f32.mxu0 0.0
    %1157 = vmatmul.mubr.f32.gmra.mxu0 %v676
    %v1158 = vpop.f32.mrf.mxu0
    %v1159 = vadd.f32 %v1014, %v1158
    %v1160 = vpop.f32.mrf.mxu0
    %1161 = vmatprep.mubr.f32.mxu0 0.0
    %1162 = vmatmul.mubr.f32.gmra.mxu0 %v681
    %v1163 = vpop.f32.mrf.mxu0
    %v1164 = vadd.f32 %v1019, %v1163
    %v1165 = vpop.f32.mrf.mxu0
    %1166 = vdwg.mxu0
    %v1167 = vld [vmem:[#allocation3] sm:$0xff]
    %v1168 = vld [vmem:[#allocation3 + $0x8] sm:$0xff]
    %v1169 = vld [vmem:[#allocation3 + $0x10] sm:$0xff]
    %v1170 = vld [vmem:[#allocation3 + $0x18] sm:$0xff]
    %v1171 = vld [vmem:[#allocation3 + $0x20] sm:$0xff]
    %v1172 = vld [vmem:[#allocation3 + $0x28] sm:$0xff]
    %v1173 = vld [vmem:[#allocation3 + $0x30] sm:$0xff]
    %v1174 = vld [vmem:[#allocation3 + $0x38] sm:$0xff]
    %v1175 = vld [vmem:[#allocation3 + $0x40] sm:$0xff]
    %v1176 = vld [vmem:[#allocation3 + $0x48] sm:$0xff]
    %v1177 = vld [vmem:[#allocation3 + $0x50] sm:$0xff]
    %v1178 = vld [vmem:[#allocation3 + $0x58] sm:$0xff]
    %v1179 = vld [vmem:[#allocation3 + $0x60] sm:$0xff]
    %v1180 = vld [vmem:[#allocation3 + $0x68] sm:$0xff]
    %v1181 = vld [vmem:[#allocation3 + $0x70] sm:$0xff]
    %v1182 = vld [vmem:[#allocation3 + $0x78] sm:$0xff]
    %v1183 = vadd.f32 %v1089, %v1167
    %v1184 = vadd.f32 %v1094, %v1168
    %v1185 = vadd.f32 %v1099, %v1169
    %v1186 = vadd.f32 %v1104, %v1170
    %v1187 = vadd.f32 %v1109, %v1171
    %v1188 = vadd.f32 %v1114, %v1172
    %v1189 = vadd.f32 %v1119, %v1173
    %v1190 = vadd.f32 %v1124, %v1174
    %v1191 = vadd.f32 %v1129, %v1175
    %v1192 = vadd.f32 %v1134, %v1176
    %v1193 = vadd.f32 %v1139, %v1177
    %v1194 = vadd.f32 %v1144, %v1178
    %v1195 = vadd.f32 %v1149, %v1179
    %v1196 = vadd.f32 %v1154, %v1180
    %v1197 = vadd.f32 %v1159, %v1181
    %v1198 = vadd.f32 %v1164, %v1182
    %v1199 = vmax.f32 %v1183, 0.0
    %v1200 = vmax.f32 %v1184, 0.0
    %v1201 = vmax.f32 %v1185, 0.0
    %v1202 = vmax.f32 %v1186, 0.0
    %v1203 = vmax.f32 %v1187, 0.0
    %v1204 = vmax.f32 %v1188, 0.0
    %v1205 = vmax.f32 %v1189, 0.0
    %v1206 = vmax.f32 %v1190, 0.0
    %v1207 = vmax.f32 %v1191, 0.0
    %v1208 = vmax.f32 %v1192, 0.0
    %v1209 = vmax.f32 %v1193, 0.0
    %v1210 = vmax.f32 %v1194, 0.0
    %v1211 = vmax.f32 %v1195, 0.0
    %v1212 = vmax.f32 %v1196, 0.0
    %v1213 = vmax.f32 %v1197, 0.0
    %v1214 = vmax.f32 %v1198, 0.0
    %v1215 = vld [vmem:[#allocation15] sm:$0xff]
    %v1216 = vld [vmem:[#allocation15 + $0x8] sm:$0xff]
    %v1217 = vld [vmem:[#allocation15 + $0x10] sm:$0xff]
    %v1218 = vld [vmem:[#allocation15 + $0x18] sm:$0xff]
    %v1219 = vld [vmem:[#allocation15 + $0x20] sm:$0xff]
    %v1220 = vld [vmem:[#allocation15 + $0x28] sm:$0xff]
    %v1221 = vld [vmem:[#allocation15 + $0x30] sm:$0xff]
    %v1222 = vld [vmem:[#allocation15 + $0x38] sm:$0xff]
    %v1223 = vld [vmem:[#allocation15 + $0x40] sm:$0xff]
    %v1224 = vld [vmem:[#allocation15 + $0x48] sm:$0xff]
    %v1225 = vld [vmem:[#allocation15 + $0x50] sm:$0xff]
    %v1226 = vld [vmem:[#allocation15 + $0x58] sm:$0xff]
    %v1227 = vld [vmem:[#allocation15 + $0x60] sm:$0xff]
    %v1228 = vld [vmem:[#allocation15 + $0x68] sm:$0xff]
    %v1229 = vld [vmem:[#allocation15 + $0x70] sm:$0xff]
    %v1230 = vld [vmem:[#allocation15 + $0x78] sm:$0xff]
    %v1231 = vld [vmem:[%s12] sm:$0x1]
    %v1233 = vlaneseq
    %v1234 = vshrl.u32 %v1233, 7
    %v1235 = vsub.s32 0, %v1234
    %v1236 = vrot.slane %v1231, %v1235
    %1238 = vmatprep.subr.mxu0 0.0
    %1239 = vmatpush1.msra.mxu0 %v1230
    %1240 = vmatprep.subr.mxu0 0.0
    %1241 = vmatpush1.msra.mxu0 %v1229
    %1242 = vmatprep.subr.mxu0 0.0
    %1243 = vmatpush1.msra.mxu0 %v1228
    %1244 = vmatprep.subr.mxu0 0.0
    %1245 = vmatpush1.msra.mxu0 %v1227
    %1246 = vmatprep.subr.mxu0 0.0
    %1247 = vmatpush1.msra.mxu0 %v1226
    %1248 = vmatprep.subr.mxu0 0.0
    %1249 = vmatpush1.msra.mxu0 %v1225
    %1250 = vmatprep.subr.mxu0 0.0
    %1251 = vmatpush1.msra.mxu0 %v1224
    %1252 = vmatprep.subr.mxu0 0.0
    %1253 = vmatpush1.msra.mxu0 %v1223
    %1254 = vmatprep.subr.mxu0 0.0
    %1255 = vmatpush1.msra.mxu0 %v1222
    %1256 = vmatprep.subr.mxu0 0.0
    %1257 = vmatpush1.msra.mxu0 %v1221
    %1258 = vmatprep.subr.mxu0 0.0
    %1259 = vmatpush1.msra.mxu0 %v1220
    %1260 = vmatprep.subr.mxu0 0.0
    %1261 = vmatpush1.msra.mxu0 %v1219
    %1262 = vmatprep.subr.mxu0 0.0
    %1263 = vmatpush1.msra.mxu0 %v1218
    %1264 = vmatprep.subr.mxu0 0.0
    %1265 = vmatpush1.msra.mxu0 %v1217
    %1266 = vmatprep.subr.mxu0 0.0
    %1267 = vmatpush1.msra.mxu0 %v1216
    %1268 = vmatprep.subr.mxu0 0.0
    %1269 = vmatpush1.msra.mxu0 %v1215
    %1270 = vmatprep.subr.mxu0 0.0
    %1271 = vmatpush2.msra.mxu0 0.0
    %1272 = vmatprep.subr.mxu0 0.0
    %1273 = vmatpush2.msra.mxu0 0.0
    %1274 = vmatprep.subr.mxu0 0.0
    %1275 = vmatpush2.msra.mxu0 0.0
    %1276 = vmatprep.subr.mxu0 0.0
    %1277 = vmatpush2.msra.mxu0 0.0
    %1278 = vmatprep.subr.mxu0 0.0
    %1279 = vmatpush2.msra.mxu0 0.0
    %1280 = vmatprep.subr.mxu0 0.0
    %1281 = vmatpush2.msra.mxu0 0.0
    %1282 = vmatprep.subr.mxu0 0.0
    %1283 = vmatpush2.msra.mxu0 0.0
    %1284 = vmatprep.subr.mxu0 0.0
    %1285 = vmatpush2.msra.mxu0 0.0
    %1286 = vmatprep.subr.mxu0 0.0
    %1287 = vmatpush2.msra.mxu0 0.0
    %1288 = vmatprep.subr.mxu0 0.0
    %1289 = vmatpush2.msra.mxu0 0.0
    %1290 = vmatprep.subr.mxu0 0.0
    %1291 = vmatpush2.msra.mxu0 0.0
    %1292 = vmatprep.subr.mxu0 0.0
    %1293 = vmatpush2.msra.mxu0 0.0
    %1294 = vmatprep.subr.mxu0 0.0
    %1295 = vmatpush2.msra.mxu0 0.0
    %1296 = vmatprep.subr.mxu0 0.0
    %1297 = vmatpush2.msra.mxu0 0.0
    %1298 = vmatprep.subr.mxu0 0.0
    %1299 = vmatpush2.msra.mxu0 0.0
    %1300 = vmatprep.subr.mxu0 0.0
    %1301 = vmatpush2.msra.mxu0 0.0
    %1302 = vmatprep.mubr.f32.mxu0 0.0
    %1303 = vmatmul.mubr.f32.gmra.mxu0 %v1199
    %v1304 = vpop.f32.mrf.mxu0
    %v1305 = vadd.f32 %v1236, %v1304
    %v1306 = vpop.f32.mrf.mxu0
    %1307 = vmatprep.mubr.f32.mxu0 0.0
    %1308 = vmatmul.mubr.f32.gmra.mxu0 %v1200
    %v1309 = vpop.f32.mrf.mxu0
    %v1310 = vadd.f32 %v1236, %v1309
    %v1311 = vpop.f32.mrf.mxu0
    %1312 = vmatprep.mubr.f32.mxu0 0.0
    %1313 = vmatmul.mubr.f32.gmra.mxu0 %v1201
    %v1314 = vpop.f32.mrf.mxu0
    %v1315 = vadd.f32 %v1236, %v1314
    %v1316 = vpop.f32.mrf.mxu0
    %1317 = vmatprep.mubr.f32.mxu0 0.0
    %1318 = vmatmul.mubr.f32.gmra.mxu0 %v1202
    %v1319 = vpop.f32.mrf.mxu0
    %v1320 = vadd.f32 %v1236, %v1319
    %v1321 = vpop.f32.mrf.mxu0
    %1322 = vmatprep.mubr.f32.mxu0 0.0
    %1323 = vmatmul.mubr.f32.gmra.mxu0 %v1203
    %v1324 = vpop.f32.mrf.mxu0
    %v1325 = vadd.f32 %v1236, %v1324
    %v1326 = vpop.f32.mrf.mxu0
    %1327 = vmatprep.mubr.f32.mxu0 0.0
    %1328 = vmatmul.mubr.f32.gmra.mxu0 %v1204
    %v1329 = vpop.f32.mrf.mxu0
    %v1330 = vadd.f32 %v1236, %v1329
    %v1331 = vpop.f32.mrf.mxu0
    %1332 = vmatprep.mubr.f32.mxu0 0.0
    %1333 = vmatmul.mubr.f32.gmra.mxu0 %v1205
    %v1334 = vpop.f32.mrf.mxu0
    %v1335 = vadd.f32 %v1236, %v1334
    %v1336 = vpop.f32.mrf.mxu0
    %1337 = vmatprep.mubr.f32.mxu0 0.0
    %1338 = vmatmul.mubr.f32.gmra.mxu0 %v1206
    %v1339 = vpop.f32.mrf.mxu0
    %v1340 = vadd.f32 %v1236, %v1339
    %v1341 = vpop.f32.mrf.mxu0
    %1342 = vmatprep.mubr.f32.mxu0 0.0
    %1343 = vmatmul.mubr.f32.gmra.mxu0 %v1207
    %v1344 = vpop.f32.mrf.mxu0
    %v1345 = vadd.f32 %v1236, %v1344
    %v1346 = vpop.f32.mrf.mxu0
    %1347 = vmatprep.mubr.f32.mxu0 0.0
    %1348 = vmatmul.mubr.f32.gmra.mxu0 %v1208
    %v1349 = vpop.f32.mrf.mxu0
    %v1350 = vadd.f32 %v1236, %v1349
    %v1351 = vpop.f32.mrf.mxu0
    %1352 = vmatprep.mubr.f32.mxu0 0.0
    %1353 = vmatmul.mubr.f32.gmra.mxu0 %v1209
    %v1354 = vpop.f32.mrf.mxu0
    %v1355 = vadd.f32 %v1236, %v1354
    %v1356 = vpop.f32.mrf.mxu0
    %1357 = vmatprep.mubr.f32.mxu0 0.0
    %1358 = vmatmul.mubr.f32.gmra.mxu0 %v1210
    %v1359 = vpop.f32.mrf.mxu0
    %v1360 = vadd.f32 %v1236, %v1359
    %v1361 = vpop.f32.mrf.mxu0
    %1362 = vmatprep.mubr.f32.mxu0 0.0
    %1363 = vmatmul.mubr.f32.gmra.mxu0 %v1211
    %v1364 = vpop.f32.mrf.mxu0
    %v1365 = vadd.f32 %v1236, %v1364
    %v1366 = vpop.f32.mrf.mxu0
    %1367 = vmatprep.mubr.f32.mxu0 0.0
    %1368 = vmatmul.mubr.f32.gmra.mxu0 %v1212
    %v1369 = vpop.f32.mrf.mxu0
    %v1370 = vadd.f32 %v1236, %v1369
    %v1371 = vpop.f32.mrf.mxu0
    %1372 = vmatprep.mubr.f32.mxu0 0.0
    %1373 = vmatmul.mubr.f32.gmra.mxu0 %v1213
    %v1374 = vpop.f32.mrf.mxu0
    %v1375 = vadd.f32 %v1236, %v1374
    %v1376 = vpop.f32.mrf.mxu0
    %1377 = vmatprep.mubr.f32.mxu0 0.0
    %1378 = vmatmul.mubr.f32.gmra.mxu0 %v1214
    %v1379 = vpop.f32.mrf.mxu0
    %v1380 = vadd.f32 %v1236, %v1379
    %v1381 = vpop.f32.mrf.mxu0
    %1382 = vdwg.mxu0
    %v1383 = vmax.f32 %v1305, 0.0
    %v1384 = vmax.f32 %v1310, 0.0
    %v1385 = vmax.f32 %v1315, 0.0
    %v1386 = vmax.f32 %v1320, 0.0
    %v1387 = vmax.f32 %v1325, 0.0
    %v1388 = vmax.f32 %v1330, 0.0
    %v1389 = vmax.f32 %v1335, 0.0
    %v1390 = vmax.f32 %v1340, 0.0
    %v1391 = vmax.f32 %v1345, 0.0
    %v1392 = vmax.f32 %v1350, 0.0
    %v1393 = vmax.f32 %v1355, 0.0
    %v1394 = vmax.f32 %v1360, 0.0
    %v1395 = vmax.f32 %v1365, 0.0
    %v1396 = vmax.f32 %v1370, 0.0
    %v1397 = vmax.f32 %v1375, 0.0
    %v1398 = vmax.f32 %v1380, 0.0
    %v1399 = vld [vmem:[#allocation16] sm:$0xff]
    %v1400 = vld [vmem:[#allocation16 + $0x8] sm:$0xff]
    %v1401 = vld [vmem:[#allocation16 + $0x10] sm:$0xff]
    %v1402 = vld [vmem:[#allocation16 + $0x18] sm:$0xff]
    %v1403 = vld [vmem:[#allocation16 + $0x20] sm:$0xff]
    %v1404 = vld [vmem:[#allocation16 + $0x28] sm:$0xff]
    %v1405 = vld [vmem:[#allocation16 + $0x30] sm:$0xff]
    %v1406 = vld [vmem:[#allocation16 + $0x38] sm:$0xff]
    %v1407 = vld [vmem:[#allocation16 + $0x40] sm:$0xff]
    %v1408 = vld [vmem:[#allocation16 + $0x48] sm:$0xff]
    %v1409 = vld [vmem:[#allocation16 + $0x50] sm:$0xff]
    %v1410 = vld [vmem:[#allocation16 + $0x58] sm:$0xff]
    %v1411 = vld [vmem:[#allocation16 + $0x60] sm:$0xff]
    %v1412 = vld [vmem:[#allocation16 + $0x68] sm:$0xff]
    %v1413 = vld [vmem:[#allocation16 + $0x70] sm:$0xff]
    %v1414 = vld [vmem:[#allocation16 + $0x78] sm:$0xff]
    %v1415 = vld [vmem:[%s14] sm:$0x1]
    %v1417 = vlaneseq
    %v1418 = vshrl.u32 %v1417, 7
    %v1419 = vsub.s32 0, %v1418
    %v1420 = vrot.slane %v1415, %v1419
    %1422 = vmatprep.subr.mxu0 0.0
    %1423 = vmatpush1.msra.mxu0 %v1414
    %1424 = vmatprep.subr.mxu0 0.0
    %1425 = vmatpush1.msra.mxu0 %v1413
    %1426 = vmatprep.subr.mxu0 0.0
    %1427 = vmatpush1.msra.mxu0 %v1412
    %1428 = vmatprep.subr.mxu0 0.0
    %1429 = vmatpush1.msra.mxu0 %v1411
    %1430 = vmatprep.subr.mxu0 0.0
    %1431 = vmatpush1.msra.mxu0 %v1410
    %1432 = vmatprep.subr.mxu0 0.0
    %1433 = vmatpush1.msra.mxu0 %v1409
    %1434 = vmatprep.subr.mxu0 0.0
    %1435 = vmatpush1.msra.mxu0 %v1408
    %1436 = vmatprep.subr.mxu0 0.0
    %1437 = vmatpush1.msra.mxu0 %v1407
    %1438 = vmatprep.subr.mxu0 0.0
    %1439 = vmatpush1.msra.mxu0 %v1406
    %1440 = vmatprep.subr.mxu0 0.0
    %1441 = vmatpush1.msra.mxu0 %v1405
    %1442 = vmatprep.subr.mxu0 0.0
    %1443 = vmatpush1.msra.mxu0 %v1404
    %1444 = vmatprep.subr.mxu0 0.0
    %1445 = vmatpush1.msra.mxu0 %v1403
    %1446 = vmatprep.subr.mxu0 0.0
    %1447 = vmatpush1.msra.mxu0 %v1402
    %1448 = vmatprep.subr.mxu0 0.0
    %1449 = vmatpush1.msra.mxu0 %v1401
    %1450 = vmatprep.subr.mxu0 0.0
    %1451 = vmatpush1.msra.mxu0 %v1400
    %1452 = vmatprep.subr.mxu0 0.0
    %1453 = vmatpush1.msra.mxu0 %v1399
    %1454 = vmatprep.subr.mxu0 0.0
    %1455 = vmatpush2.msra.mxu0 0.0
    %1456 = vmatprep.subr.mxu0 0.0
    %1457 = vmatpush2.msra.mxu0 0.0
    %1458 = vmatprep.subr.mxu0 0.0
    %1459 = vmatpush2.msra.mxu0 0.0
    %1460 = vmatprep.subr.mxu0 0.0
    %1461 = vmatpush2.msra.mxu0 0.0
    %1462 = vmatprep.subr.mxu0 0.0
    %1463 = vmatpush2.msra.mxu0 0.0
    %1464 = vmatprep.subr.mxu0 0.0
    %1465 = vmatpush2.msra.mxu0 0.0
    %1466 = vmatprep.subr.mxu0 0.0
    %1467 = vmatpush2.msra.mxu0 0.0
    %1468 = vmatprep.subr.mxu0 0.0
    %1469 = vmatpush2.msra.mxu0 0.0
    %1470 = vmatprep.subr.mxu0 0.0
    %1471 = vmatpush2.msra.mxu0 0.0
    %1472 = vmatprep.subr.mxu0 0.0
    %1473 = vmatpush2.msra.mxu0 0.0
    %1474 = vmatprep.subr.mxu0 0.0
    %1475 = vmatpush2.msra.mxu0 0.0
    %1476 = vmatprep.subr.mxu0 0.0
    %1477 = vmatpush2.msra.mxu0 0.0
    %1478 = vmatprep.subr.mxu0 0.0
    %1479 = vmatpush2.msra.mxu0 0.0
    %1480 = vmatprep.subr.mxu0 0.0
    %1481 = vmatpush2.msra.mxu0 0.0
    %1482 = vmatprep.subr.mxu0 0.0
    %1483 = vmatpush2.msra.mxu0 0.0
    %1484 = vmatprep.subr.mxu0 0.0
    %1485 = vmatpush2.msra.mxu0 0.0
    %1486 = vmatprep.mubr.f32.mxu0 0.0
    %1487 = vmatmul.mubr.f32.gmra.mxu0 %v1383
    %v1488 = vpop.f32.mrf.mxu0
    %v1489 = vadd.f32 %v1420, %v1488
    %v1490 = vpop.f32.mrf.mxu0
    %1491 = vmatprep.mubr.f32.mxu0 0.0
    %1492 = vmatmul.mubr.f32.gmra.mxu0 %v1384
    %v1493 = vpop.f32.mrf.mxu0
    %v1494 = vadd.f32 %v1420, %v1493
    %v1495 = vpop.f32.mrf.mxu0
    %1496 = vmatprep.mubr.f32.mxu0 0.0
    %1497 = vmatmul.mubr.f32.gmra.mxu0 %v1385
    %v1498 = vpop.f32.mrf.mxu0
    %v1499 = vadd.f32 %v1420, %v1498
    %v1500 = vpop.f32.mrf.mxu0
    %1501 = vmatprep.mubr.f32.mxu0 0.0
    %1502 = vmatmul.mubr.f32.gmra.mxu0 %v1386
    %v1503 = vpop.f32.mrf.mxu0
    %v1504 = vadd.f32 %v1420, %v1503
    %v1505 = vpop.f32.mrf.mxu0
    %1506 = vmatprep.mubr.f32.mxu0 0.0
    %1507 = vmatmul.mubr.f32.gmra.mxu0 %v1387
    %v1508 = vpop.f32.mrf.mxu0
    %v1509 = vadd.f32 %v1420, %v1508
    %v1510 = vpop.f32.mrf.mxu0
    %1511 = vmatprep.mubr.f32.mxu0 0.0
    %1512 = vmatmul.mubr.f32.gmra.mxu0 %v1388
    %v1513 = vpop.f32.mrf.mxu0
    %v1514 = vadd.f32 %v1420, %v1513
    %v1515 = vpop.f32.mrf.mxu0
    %1516 = vmatprep.mubr.f32.mxu0 0.0
    %1517 = vmatmul.mubr.f32.gmra.mxu0 %v1389
    %v1518 = vpop.f32.mrf.mxu0
    %v1519 = vadd.f32 %v1420, %v1518
    %v1520 = vpop.f32.mrf.mxu0
    %1521 = vmatprep.mubr.f32.mxu0 0.0
    %1522 = vmatmul.mubr.f32.gmra.mxu0 %v1390
    %v1523 = vpop.f32.mrf.mxu0
    %v1524 = vadd.f32 %v1420, %v1523
    %v1525 = vpop.f32.mrf.mxu0
    %1526 = vmatprep.mubr.f32.mxu0 0.0
    %1527 = vmatmul.mubr.f32.gmra.mxu0 %v1391
    %v1528 = vpop.f32.mrf.mxu0
    %v1529 = vadd.f32 %v1420, %v1528
    %v1530 = vpop.f32.mrf.mxu0
    %1531 = vmatprep.mubr.f32.mxu0 0.0
    %1532 = vmatmul.mubr.f32.gmra.mxu0 %v1392
    %v1533 = vpop.f32.mrf.mxu0
    %v1534 = vadd.f32 %v1420, %v1533
    %v1535 = vpop.f32.mrf.mxu0
    %1536 = vmatprep.mubr.f32.mxu0 0.0
    %1537 = vmatmul.mubr.f32.gmra.mxu0 %v1393
    %v1538 = vpop.f32.mrf.mxu0
    %v1539 = vadd.f32 %v1420, %v1538
    %v1540 = vpop.f32.mrf.mxu0
    %1541 = vmatprep.mubr.f32.mxu0 0.0
    %1542 = vmatmul.mubr.f32.gmra.mxu0 %v1394
    %v1543 = vpop.f32.mrf.mxu0
    %v1544 = vadd.f32 %v1420, %v1543
    %v1545 = vpop.f32.mrf.mxu0
    %1546 = vmatprep.mubr.f32.mxu0 0.0
    %1547 = vmatmul.mubr.f32.gmra.mxu0 %v1395
    %v1548 = vpop.f32.mrf.mxu0
    %v1549 = vadd.f32 %v1420, %v1548
    %v1550 = vpop.f32.mrf.mxu0
    %1551 = vmatprep.mubr.f32.mxu0 0.0
    %1552 = vmatmul.mubr.f32.gmra.mxu0 %v1396
    %v1553 = vpop.f32.mrf.mxu0
    %v1554 = vadd.f32 %v1420, %v1553
    %v1555 = vpop.f32.mrf.mxu0
    %1556 = vmatprep.mubr.f32.mxu0 0.0
    %1557 = vmatmul.mubr.f32.gmra.mxu0 %v1397
    %v1558 = vpop.f32.mrf.mxu0
    %v1559 = vadd.f32 %v1420, %v1558
    %v1560 = vpop.f32.mrf.mxu0
    %1561 = vmatprep.mubr.f32.mxu0 0.0
    %1562 = vmatmul.mubr.f32.gmra.mxu0 %v1398
    %v1563 = vpop.f32.mrf.mxu0
    %v1564 = vadd.f32 %v1420, %v1563
    %v1565 = vpop.f32.mrf.mxu0
    %1566 = vdwg.mxu0
    %v1567 = vld [vmem:[#allocation7] sm:$0xff]
    %v1568 = vld [vmem:[#allocation7 + $0x8] sm:$0xff]
    %v1569 = vld [vmem:[#allocation7 + $0x10] sm:$0xff]
    %v1570 = vld [vmem:[#allocation7 + $0x18] sm:$0xff]
    %v1571 = vld [vmem:[#allocation7 + $0x20] sm:$0xff]
    %v1572 = vld [vmem:[#allocation7 + $0x28] sm:$0xff]
    %v1573 = vld [vmem:[#allocation7 + $0x30] sm:$0xff]
    %v1574 = vld [vmem:[#allocation7 + $0x38] sm:$0xff]
    %v1575 = vld [vmem:[#allocation7 + $0x40] sm:$0xff]
    %v1576 = vld [vmem:[#allocation7 + $0x48] sm:$0xff]
    %v1577 = vld [vmem:[#allocation7 + $0x50] sm:$0xff]
    %v1578 = vld [vmem:[#allocation7 + $0x58] sm:$0xff]
    %v1579 = vld [vmem:[#allocation7 + $0x60] sm:$0xff]
    %v1580 = vld [vmem:[#allocation7 + $0x68] sm:$0xff]
    %v1581 = vld [vmem:[#allocation7 + $0x70] sm:$0xff]
    %v1582 = vld [vmem:[#allocation7 + $0x78] sm:$0xff]
    %1583 = vmatprep.subr.mxu0 0.0
    %1584 = vmatpush1.msra.mxu0 %v1564
    %1585 = vmatprep.subr.mxu0 0.0
    %1586 = vmatpush1.msra.mxu0 %v1559
    %1587 = vmatprep.subr.mxu0 0.0
    %1588 = vmatpush1.msra.mxu0 %v1554
    %1589 = vmatprep.subr.mxu0 0.0
    %1590 = vmatpush1.msra.mxu0 %v1549
    %1591 = vmatprep.subr.mxu0 0.0
    %1592 = vmatpush1.msra.mxu0 %v1544
    %1593 = vmatprep.subr.mxu0 0.0
    %1594 = vmatpush1.msra.mxu0 %v1539
    %1595 = vmatprep.subr.mxu0 0.0
    %1596 = vmatpush1.msra.mxu0 %v1534
    %1597 = vmatprep.subr.mxu0 0.0
    %1598 = vmatpush1.msra.mxu0 %v1529
    %1599 = vmatprep.subr.mxu0 0.0
    %1600 = vmatpush1.msra.mxu0 %v1524
    %1601 = vmatprep.subr.mxu0 0.0
    %1602 = vmatpush1.msra.mxu0 %v1519
    %1603 = vmatprep.subr.mxu0 0.0
    %1604 = vmatpush1.msra.mxu0 %v1514
    %1605 = vmatprep.subr.mxu0 0.0
    %1606 = vmatpush1.msra.mxu0 %v1509
    %1607 = vmatprep.subr.mxu0 0.0
    %1608 = vmatpush1.msra.mxu0 %v1504
    %1609 = vmatprep.subr.mxu0 0.0
    %1610 = vmatpush1.msra.mxu0 %v1499
    %1611 = vmatprep.subr.mxu0 0.0
    %1612 = vmatpush1.msra.mxu0 %v1494
    %1613 = vmatprep.subr.mxu0 0.0
    %1614 = vmatpush1.msra.mxu0 %v1489
    %1615 = vmatprep.subr.mxu0 0.0
    %1616 = vmatpush2.msra.mxu0 0.0
    %1617 = vmatprep.subr.mxu0 0.0
    %1618 = vmatpush2.msra.mxu0 0.0
    %1619 = vmatprep.subr.mxu0 0.0
    %1620 = vmatpush2.msra.mxu0 0.0
    %1621 = vmatprep.subr.mxu0 0.0
    %1622 = vmatpush2.msra.mxu0 0.0
    %1623 = vmatprep.subr.mxu0 0.0
    %1624 = vmatpush2.msra.mxu0 0.0
    %1625 = vmatprep.subr.mxu0 0.0
    %1626 = vmatpush2.msra.mxu0 0.0
    %1627 = vmatprep.subr.mxu0 0.0
    %1628 = vmatpush2.msra.mxu0 0.0
    %1629 = vmatprep.subr.mxu0 0.0
    %1630 = vmatpush2.msra.mxu0 0.0
    %1631 = vmatprep.subr.mxu0 0.0
    %1632 = vmatpush2.msra.mxu0 0.0
    %1633 = vmatprep.subr.mxu0 0.0
    %1634 = vmatpush2.msra.mxu0 0.0
    %1635 = vmatprep.subr.mxu0 0.0
    %1636 = vmatpush2.msra.mxu0 0.0
    %1637 = vmatprep.subr.mxu0 0.0
    %1638 = vmatpush2.msra.mxu0 0.0
    %1639 = vmatprep.subr.mxu0 0.0
    %1640 = vmatpush2.msra.mxu0 0.0
    %1641 = vmatprep.subr.mxu0 0.0
    %1642 = vmatpush2.msra.mxu0 0.0
    %1643 = vmatprep.subr.mxu0 0.0
    %1644 = vmatpush2.msra.mxu0 0.0
    %1645 = vmatprep.subr.mxu0 0.0
    %1646 = vmatpush2.msra.mxu0 0.0
    %1647 = vmatprep.mubr.f32.mxu0 0.0
    %1648 = vmatmul.mubr.f32.gmra.mxu0 %v1567
    %v1649 = vpop.f32.mrf.mxu0
    %v1650 = vadd.f32 0.0, %v1649
    %v1651 = vpop.f32.mrf.mxu0
    %1652 = vmatprep.mubr.f32.mxu0 0.0
    %1653 = vmatmul.mubr.f32.gmra.mxu0 %v1568
    %v1654 = vpop.f32.mrf.mxu0
    %v1655 = vadd.f32 0.0, %v1654
    %v1656 = vpop.f32.mrf.mxu0
    %1657 = vmatprep.mubr.f32.mxu0 0.0
    %1658 = vmatmul.mubr.f32.gmra.mxu0 %v1569
    %v1659 = vpop.f32.mrf.mxu0
    %v1660 = vadd.f32 0.0, %v1659
    %v1661 = vpop.f32.mrf.mxu0
    %1662 = vmatprep.mubr.f32.mxu0 0.0
    %1663 = vmatmul.mubr.f32.gmra.mxu0 %v1570
    %v1664 = vpop.f32.mrf.mxu0
    %v1665 = vadd.f32 0.0, %v1664
    %v1666 = vpop.f32.mrf.mxu0
    %1667 = vmatprep.mubr.f32.mxu0 0.0
    %1668 = vmatmul.mubr.f32.gmra.mxu0 %v1571
    %v1669 = vpop.f32.mrf.mxu0
    %v1670 = vadd.f32 0.0, %v1669
    %v1671 = vpop.f32.mrf.mxu0
    %1672 = vmatprep.mubr.f32.mxu0 0.0
    %1673 = vmatmul.mubr.f32.gmra.mxu0 %v1572
    %v1674 = vpop.f32.mrf.mxu0
    %v1675 = vadd.f32 0.0, %v1674
    %v1676 = vpop.f32.mrf.mxu0
    %1677 = vmatprep.mubr.f32.mxu0 0.0
    %1678 = vmatmul.mubr.f32.gmra.mxu0 %v1573
    %v1679 = vpop.f32.mrf.mxu0
    %v1680 = vadd.f32 0.0, %v1679
    %v1681 = vpop.f32.mrf.mxu0
    %1682 = vmatprep.mubr.f32.mxu0 0.0
    %1683 = vmatmul.mubr.f32.gmra.mxu0 %v1574
    %v1684 = vpop.f32.mrf.mxu0
    %v1685 = vadd.f32 0.0, %v1684
    %v1686 = vpop.f32.mrf.mxu0
    %1687 = vmatprep.mubr.f32.mxu0 0.0
    %1688 = vmatmul.mubr.f32.gmra.mxu0 %v1575
    %v1689 = vpop.f32.mrf.mxu0
    %v1690 = vadd.f32 0.0, %v1689
    %v1691 = vpop.f32.mrf.mxu0
    %1692 = vmatprep.mubr.f32.mxu0 0.0
    %1693 = vmatmul.mubr.f32.gmra.mxu0 %v1576
    %v1694 = vpop.f32.mrf.mxu0
    %v1695 = vadd.f32 0.0, %v1694
    %v1696 = vpop.f32.mrf.mxu0
    %1697 = vmatprep.mubr.f32.mxu0 0.0
    %1698 = vmatmul.mubr.f32.gmra.mxu0 %v1577
    %v1699 = vpop.f32.mrf.mxu0
    %v1700 = vadd.f32 0.0, %v1699
    %v1701 = vpop.f32.mrf.mxu0
    %1702 = vmatprep.mubr.f32.mxu0 0.0
    %1703 = vmatmul.mubr.f32.gmra.mxu0 %v1578
    %v1704 = vpop.f32.mrf.mxu0
    %v1705 = vadd.f32 0.0, %v1704
    %v1706 = vpop.f32.mrf.mxu0
    %1707 = vmatprep.mubr.f32.mxu0 0.0
    %1708 = vmatmul.mubr.f32.gmra.mxu0 %v1579
    %v1709 = vpop.f32.mrf.mxu0
    %v1710 = vadd.f32 0.0, %v1709
    %v1711 = vpop.f32.mrf.mxu0
    %1712 = vmatprep.mubr.f32.mxu0 0.0
    %1713 = vmatmul.mubr.f32.gmra.mxu0 %v1580
    %v1714 = vpop.f32.mrf.mxu0
    %v1715 = vadd.f32 0.0, %v1714
    %v1716 = vpop.f32.mrf.mxu0
    %1717 = vmatprep.mubr.f32.mxu0 0.0
    %1718 = vmatmul.mubr.f32.gmra.mxu0 %v1581
    %v1719 = vpop.f32.mrf.mxu0
    %v1720 = vadd.f32 0.0, %v1719
    %v1721 = vpop.f32.mrf.mxu0
    %1722 = vmatprep.mubr.f32.mxu0 0.0
    %1723 = vmatmul.mubr.f32.gmra.mxu0 %v1582
    %v1724 = vpop.f32.mrf.mxu0
    %v1725 = vadd.f32 0.0, %v1724
    %v1726 = vpop.f32.mrf.mxu0
    %1727 = vdwg.mxu0
    %v1728 = vld [vmem:[#allocation18] sm:$0xff]
    %v1729 = vld [vmem:[#allocation18 + $0x8] sm:$0xff]
    %v1730 = vld [vmem:[#allocation18 + $0x10] sm:$0xff]
    %v1731 = vld [vmem:[#allocation18 + $0x18] sm:$0xff]
    %v1732 = vld [vmem:[#allocation18 + $0x20] sm:$0xff]
    %v1733 = vld [vmem:[#allocation18 + $0x28] sm:$0xff]
    %v1734 = vld [vmem:[#allocation18 + $0x30] sm:$0xff]
    %v1735 = vld [vmem:[#allocation18 + $0x38] sm:$0xff]
    %v1736 = vld [vmem:[#allocation18 + $0x40] sm:$0xff]
    %v1737 = vld [vmem:[#allocation18 + $0x48] sm:$0xff]
    %v1738 = vld [vmem:[#allocation18 + $0x50] sm:$0xff]
    %v1739 = vld [vmem:[#allocation18 + $0x58] sm:$0xff]
    %v1740 = vld [vmem:[#allocation18 + $0x60] sm:$0xff]
    %v1741 = vld [vmem:[#allocation18 + $0x68] sm:$0xff]
    %v1742 = vld [vmem:[#allocation18 + $0x70] sm:$0xff]
    %v1743 = vld [vmem:[#allocation18 + $0x78] sm:$0xff]
    %v1744 = vld [vmem:[#allocation18 + $0x80] sm:$0xff]
    %v1745 = vld [vmem:[#allocation18 + $0x88] sm:$0xff]
    %v1746 = vld [vmem:[#allocation18 + $0x90] sm:$0xff]
    %v1747 = vld [vmem:[#allocation18 + $0x98] sm:$0xff]
    %v1748 = vld [vmem:[#allocation18 + $0xa0] sm:$0xff]
    %v1749 = vld [vmem:[#allocation18 + $0xa8] sm:$0xff]
    %v1750 = vld [vmem:[#allocation18 + $0xb0] sm:$0xff]
    %v1751 = vld [vmem:[#allocation18 + $0xb8] sm:$0xff]
    %v1752 = vld [vmem:[#allocation18 + $0xc0] sm:$0xff]
    %v1753 = vld [vmem:[#allocation18 + $0xc8] sm:$0xff]
    %v1754 = vld [vmem:[#allocation18 + $0xd0] sm:$0xff]
    %v1755 = vld [vmem:[#allocation18 + $0xd8] sm:$0xff]
    %v1756 = vld [vmem:[#allocation18 + $0xe0] sm:$0xff]
    %v1757 = vld [vmem:[#allocation18 + $0xe8] sm:$0xff]
    %v1758 = vld [vmem:[#allocation18 + $0xf0] sm:$0xff]
    %v1759 = vld [vmem:[#allocation18 + $0xf8] sm:$0xff]
    %v1760 = vld [vmem:[#allocation18 + $0x100] sm:$0xff]
    %v1761 = vld [vmem:[#allocation18 + $0x108] sm:$0xff]
    %v1762 = vld [vmem:[#allocation18 + $0x110] sm:$0xff]
    %v1763 = vld [vmem:[#allocation18 + $0x118] sm:$0xff]
    %v1764 = vld [vmem:[#allocation18 + $0x120] sm:$0xff]
    %v1765 = vld [vmem:[#allocation18 + $0x128] sm:$0xff]
    %v1766 = vld [vmem:[#allocation18 + $0x130] sm:$0xff]
    %v1767 = vld [vmem:[#allocation18 + $0x138] sm:$0xff]
    %v1768 = vld [vmem:[#allocation18 + $0x140] sm:$0xff]
    %v1769 = vld [vmem:[#allocation18 + $0x148] sm:$0xff]
    %v1770 = vld [vmem:[#allocation18 + $0x150] sm:$0xff]
    %v1771 = vld [vmem:[#allocation18 + $0x158] sm:$0xff]
    %v1772 = vld [vmem:[#allocation18 + $0x160] sm:$0xff]
    %v1773 = vld [vmem:[#allocation18 + $0x168] sm:$0xff]
    %v1774 = vld [vmem:[#allocation18 + $0x170] sm:$0xff]
    %v1775 = vld [vmem:[#allocation18 + $0x178] sm:$0xff]
    %v1776 = vld [vmem:[%s17] sm:$0x7]
    %v1778 = vlaneseq
    %v1779 = vshrl.u32 %v1778, 7
    %v1780 = vsub.s32 0, %v1779
    %v1781 = vrot.slane %v1776, %v1780
    %v1782 = vlaneseq
    %v1783 = vshrl.u32 %v1782, 7
    %v1784 = vsub.s32 1, %v1783
    %v1785 = vrot.slane %v1776, %v1784
    %v1786 = vlaneseq
    %v1787 = vshrl.u32 %v1786, 7
    %v1788 = vsub.s32 2, %v1787
    %v1789 = vrot.slane %v1776, %v1788
    %1793 = vmatprep.subr.mxu0 %v1774
    %1794 = vmatpush1.msra.mxu0 %v1773
    %1795 = vmatprep.subr.mxu0 %v1771
    %1796 = vmatpush1.msra.mxu0 %v1770
    %1797 = vmatprep.subr.mxu0 %v1768
    %1798 = vmatpush1.msra.mxu0 %v1767
    %1799 = vmatprep.subr.mxu0 %v1765
    %1800 = vmatpush1.msra.mxu0 %v1764
    %1801 = vmatprep.subr.mxu0 %v1762
    %1802 = vmatpush1.msra.mxu0 %v1761
    %1803 = vmatprep.subr.mxu0 %v1759
    %1804 = vmatpush1.msra.mxu0 %v1758
    %1805 = vmatprep.subr.mxu0 %v1756
    %1806 = vmatpush1.msra.mxu0 %v1755
    %1807 = vmatprep.subr.mxu0 %v1753
    %1808 = vmatpush1.msra.mxu0 %v1752
    %1809 = vmatprep.subr.mxu0 %v1750
    %1810 = vmatpush1.msra.mxu0 %v1749
    %1811 = vmatprep.subr.mxu0 %v1747
    %1812 = vmatpush1.msra.mxu0 %v1746
    %1813 = vmatprep.subr.mxu0 %v1744
    %1814 = vmatpush1.msra.mxu0 %v1743
    %1815 = vmatprep.subr.mxu0 %v1741
    %1816 = vmatpush1.msra.mxu0 %v1740
    %1817 = vmatprep.subr.mxu0 %v1738
    %1818 = vmatpush1.msra.mxu0 %v1737
    %1819 = vmatprep.subr.mxu0 %v1735
    %1820 = vmatpush1.msra.mxu0 %v1734
    %1821 = vmatprep.subr.mxu0 %v1732
    %1822 = vmatpush1.msra.mxu0 %v1731
    %1823 = vmatprep.subr.mxu0 %v1729
    %1824 = vmatpush1.msra.mxu0 %v1728
    %1825 = vmatprep.subr.mxu0 0.0
    %1826 = vmatpush2.msra.mxu0 0.0
    %1827 = vmatprep.subr.mxu0 0.0
    %1828 = vmatpush2.msra.mxu0 0.0
    %1829 = vmatprep.subr.mxu0 0.0
    %1830 = vmatpush2.msra.mxu0 0.0
    %1831 = vmatprep.subr.mxu0 0.0
    %1832 = vmatpush2.msra.mxu0 0.0
    %1833 = vmatprep.subr.mxu0 0.0
    %1834 = vmatpush2.msra.mxu0 0.0
    %1835 = vmatprep.subr.mxu0 0.0
    %1836 = vmatpush2.msra.mxu0 0.0
    %1837 = vmatprep.subr.mxu0 0.0
    %1838 = vmatpush2.msra.mxu0 0.0
    %1839 = vmatprep.subr.mxu0 0.0
    %1840 = vmatpush2.msra.mxu0 0.0
    %1841 = vmatprep.subr.mxu0 0.0
    %1842 = vmatpush2.msra.mxu0 0.0
    %1843 = vmatprep.subr.mxu0 0.0
    %1844 = vmatpush2.msra.mxu0 0.0
    %1845 = vmatprep.subr.mxu0 0.0
    %1846 = vmatpush2.msra.mxu0 0.0
    %1847 = vmatprep.subr.mxu0 0.0
    %1848 = vmatpush2.msra.mxu0 0.0
    %1849 = vmatprep.subr.mxu0 0.0
    %1850 = vmatpush2.msra.mxu0 0.0
    %1851 = vmatprep.subr.mxu0 0.0
    %1852 = vmatpush2.msra.mxu0 0.0
    %1853 = vmatprep.subr.mxu0 0.0
    %1854 = vmatpush2.msra.mxu0 0.0
    %1855 = vmatprep.subr.mxu0 0.0
    %1856 = vmatpush2.msra.mxu0 0.0
    %1857 = vmatprep.mubr.f32.mxu0 0.0
    %1858 = vmatmul.mubr.f32.gmra.mxu0 %v1650
    %v1859 = vpop.f32.mrf.mxu0
    %v1860 = vadd.f32 %v1781, %v1859
    %v1861 = vpop.f32.mrf.mxu0
    %v1862 = vadd.f32 %v1785, %v1861
    %1863 = vmatprep.mubr.f32.mxu0 0.0
    %1864 = vmatmul.mubr.f32.gmra.mxu0 %v1655
    %v1865 = vpop.f32.mrf.mxu0
    %v1866 = vadd.f32 %v1781, %v1865
    %v1867 = vpop.f32.mrf.mxu0
    %v1868 = vadd.f32 %v1785, %v1867
    %1869 = vmatprep.mubr.f32.mxu0 0.0
    %1870 = vmatmul.mubr.f32.gmra.mxu0 %v1660
    %v1871 = vpop.f32.mrf.mxu0
    %v1872 = vadd.f32 %v1781, %v1871
    %v1873 = vpop.f32.mrf.mxu0
    %v1874 = vadd.f32 %v1785, %v1873
    %1875 = vmatprep.mubr.f32.mxu0 0.0
    %1876 = vmatmul.mubr.f32.gmra.mxu0 %v1665
    %v1877 = vpop.f32.mrf.mxu0
    %v1878 = vadd.f32 %v1781, %v1877
    %v1879 = vpop.f32.mrf.mxu0
    %v1880 = vadd.f32 %v1785, %v1879
    %1881 = vmatprep.mubr.f32.mxu0 0.0
    %1882 = vmatmul.mubr.f32.gmra.mxu0 %v1670
    %v1883 = vpop.f32.mrf.mxu0
    %v1884 = vadd.f32 %v1781, %v1883
    %v1885 = vpop.f32.mrf.mxu0
    %v1886 = vadd.f32 %v1785, %v1885
    %1887 = vmatprep.mubr.f32.mxu0 0.0
    %1888 = vmatmul.mubr.f32.gmra.mxu0 %v1675
    %v1889 = vpop.f32.mrf.mxu0
    %v1890 = vadd.f32 %v1781, %v1889
    %v1891 = vpop.f32.mrf.mxu0
    %v1892 = vadd.f32 %v1785, %v1891
    %1893 = vmatprep.mubr.f32.mxu0 0.0
    %1894 = vmatmul.mubr.f32.gmra.mxu0 %v1680
    %v1895 = vpop.f32.mrf.mxu0
    %v1896 = vadd.f32 %v1781, %v1895
    %v1897 = vpop.f32.mrf.mxu0
    %v1898 = vadd.f32 %v1785, %v1897
    %1899 = vmatprep.mubr.f32.mxu0 0.0
    %1900 = vmatmul.mubr.f32.gmra.mxu0 %v1685
    %v1901 = vpop.f32.mrf.mxu0
    %v1902 = vadd.f32 %v1781, %v1901
    %v1903 = vpop.f32.mrf.mxu0
    %v1904 = vadd.f32 %v1785, %v1903
    %1905 = vmatprep.mubr.f32.mxu0 0.0
    %1906 = vmatmul.mubr.f32.gmra.mxu0 %v1690
    %v1907 = vpop.f32.mrf.mxu0
    %v1908 = vadd.f32 %v1781, %v1907
    %v1909 = vpop.f32.mrf.mxu0
    %v1910 = vadd.f32 %v1785, %v1909
    %1911 = vmatprep.mubr.f32.mxu0 0.0
    %1912 = vmatmul.mubr.f32.gmra.mxu0 %v1695
    %v1913 = vpop.f32.mrf.mxu0
    %v1914 = vadd.f32 %v1781, %v1913
    %v1915 = vpop.f32.mrf.mxu0
    %v1916 = vadd.f32 %v1785, %v1915
    %1917 = vmatprep.mubr.f32.mxu0 0.0
    %1918 = vmatmul.mubr.f32.gmra.mxu0 %v1700
    %v1919 = vpop.f32.mrf.mxu0
    %v1920 = vadd.f32 %v1781, %v1919
    %v1921 = vpop.f32.mrf.mxu0
    %v1922 = vadd.f32 %v1785, %v1921
    %1923 = vmatprep.mubr.f32.mxu0 0.0
    %1924 = vmatmul.mubr.f32.gmra.mxu0 %v1705
    %v1925 = vpop.f32.mrf.mxu0
    %v1926 = vadd.f32 %v1781, %v1925
    %v1927 = vpop.f32.mrf.mxu0
    %v1928 = vadd.f32 %v1785, %v1927
    %1929 = vmatprep.mubr.f32.mxu0 0.0
    %1930 = vmatmul.mubr.f32.gmra.mxu0 %v1710
    %v1931 = vpop.f32.mrf.mxu0
    %v1932 = vadd.f32 %v1781, %v1931
    %v1933 = vpop.f32.mrf.mxu0
    %v1934 = vadd.f32 %v1785, %v1933
    %1935 = vmatprep.mubr.f32.mxu0 0.0
    %1936 = vmatmul.mubr.f32.gmra.mxu0 %v1715
    %v1937 = vpop.f32.mrf.mxu0
    %v1938 = vadd.f32 %v1781, %v1937
    %v1939 = vpop.f32.mrf.mxu0
    %v1940 = vadd.f32 %v1785, %v1939
    %1941 = vmatprep.mubr.f32.mxu0 0.0
    %1942 = vmatmul.mubr.f32.gmra.mxu0 %v1720
    %v1943 = vpop.f32.mrf.mxu0
    %v1944 = vadd.f32 %v1781, %v1943
    %v1945 = vpop.f32.mrf.mxu0
    %v1946 = vadd.f32 %v1785, %v1945
    %1947 = vmatprep.mubr.f32.mxu0 0.0
    %1948 = vmatmul.mubr.f32.gmra.mxu0 %v1725
    %v1949 = vpop.f32.mrf.mxu0
    %v1950 = vadd.f32 %v1781, %v1949
    %v1951 = vpop.f32.mrf.mxu0
    %v1952 = vadd.f32 %v1785, %v1951
    %1953 = vdwg.mxu0
    %1954 = vmatprep.subr.mxu0 0.0
    %1955 = vmatpush1.msra.mxu0 %v1775
    %1956 = vmatprep.subr.mxu0 0.0
    %1957 = vmatpush1.msra.mxu0 %v1772
    %1958 = vmatprep.subr.mxu0 0.0
    %1959 = vmatpush1.msra.mxu0 %v1769
    %1960 = vmatprep.subr.mxu0 0.0
    %1961 = vmatpush1.msra.mxu0 %v1766
    %1962 = vmatprep.subr.mxu0 0.0
    %1963 = vmatpush1.msra.mxu0 %v1763
    %1964 = vmatprep.subr.mxu0 0.0
    %1965 = vmatpush1.msra.mxu0 %v1760
    %1966 = vmatprep.subr.mxu0 0.0
    %1967 = vmatpush1.msra.mxu0 %v1757
    %1968 = vmatprep.subr.mxu0 0.0
    %1969 = vmatpush1.msra.mxu0 %v1754
    %1970 = vmatprep.subr.mxu0 0.0
    %1971 = vmatpush1.msra.mxu0 %v1751
    %1972 = vmatprep.subr.mxu0 0.0
    %1973 = vmatpush1.msra.mxu0 %v1748
    %1974 = vmatprep.subr.mxu0 0.0
    %1975 = vmatpush1.msra.mxu0 %v1745
    %1976 = vmatprep.subr.mxu0 0.0
    %1977 = vmatpush1.msra.mxu0 %v1742
    %1978 = vmatprep.subr.mxu0 0.0
    %1979 = vmatpush1.msra.mxu0 %v1739
    %1980 = vmatprep.subr.mxu0 0.0
    %1981 = vmatpush1.msra.mxu0 %v1736
    %1982 = vmatprep.subr.mxu0 0.0
    %1983 = vmatpush1.msra.mxu0 %v1733
    %1984 = vmatprep.subr.mxu0 0.0
    %1985 = vmatpush1.msra.mxu0 %v1730
    %1986 = vmatprep.subr.mxu0 0.0
    %1987 = vmatpush2.msra.mxu0 0.0
    %1988 = vmatprep.subr.mxu0 0.0
    %1989 = vmatpush2.msra.mxu0 0.0
    %1990 = vmatprep.subr.mxu0 0.0
    %1991 = vmatpush2.msra.mxu0 0.0
    %1992 = vmatprep.subr.mxu0 0.0
    %1993 = vmatpush2.msra.mxu0 0.0
    %1994 = vmatprep.subr.mxu0 0.0
    %1995 = vmatpush2.msra.mxu0 0.0
    %1996 = vmatprep.subr.mxu0 0.0
    %1997 = vmatpush2.msra.mxu0 0.0
    %1998 = vmatprep.subr.mxu0 0.0
    %1999 = vmatpush2.msra.mxu0 0.0
    %2000 = vmatprep.subr.mxu0 0.0
    %2001 = vmatpush2.msra.mxu0 0.0
    %2002 = vmatprep.subr.mxu0 0.0
    %2003 = vmatpush2.msra.mxu0 0.0
    %2004 = vmatprep.subr.mxu0 0.0
    %2005 = vmatpush2.msra.mxu0 0.0
    %2006 = vmatprep.subr.mxu0 0.0
    %2007 = vmatpush2.msra.mxu0 0.0
    %2008 = vmatprep.subr.mxu0 0.0
    %2009 = vmatpush2.msra.mxu0 0.0
    %2010 = vmatprep.subr.mxu0 0.0
    %2011 = vmatpush2.msra.mxu0 0.0
    %2012 = vmatprep.subr.mxu0 0.0
    %2013 = vmatpush2.msra.mxu0 0.0
    %2014 = vmatprep.subr.mxu0 0.0
    %2015 = vmatpush2.msra.mxu0 0.0
    %2016 = vmatprep.subr.mxu0 0.0
    %2017 = vmatpush2.msra.mxu0 0.0
    %2018 = vmatprep.mubr.f32.mxu0 0.0
    %2019 = vmatmul.mubr.f32.gmra.mxu0 %v1650
    %v2020 = vpop.f32.mrf.mxu0
    %v2021 = vadd.f32 %v1789, %v2020
    %v2022 = vpop.f32.mrf.mxu0
    %2023 = vmatprep.mubr.f32.mxu0 0.0
    %2024 = vmatmul.mubr.f32.gmra.mxu0 %v1655
    %v2025 = vpop.f32.mrf.mxu0
    %v2026 = vadd.f32 %v1789, %v2025
    %v2027 = vpop.f32.mrf.mxu0
    %2028 = vmatprep.mubr.f32.mxu0 0.0
    %2029 = vmatmul.mubr.f32.gmra.mxu0 %v1660
    %v2030 = vpop.f32.mrf.mxu0
    %v2031 = vadd.f32 %v1789, %v2030
    %v2032 = vpop.f32.mrf.mxu0
    %2033 = vmatprep.mubr.f32.mxu0 0.0
    %2034 = vmatmul.mubr.f32.gmra.mxu0 %v1665
    %v2035 = vpop.f32.mrf.mxu0
    %v2036 = vadd.f32 %v1789, %v2035
    %v2037 = vpop.f32.mrf.mxu0
    %2038 = vmatprep.mubr.f32.mxu0 0.0
    %2039 = vmatmul.mubr.f32.gmra.mxu0 %v1670
    %v2040 = vpop.f32.mrf.mxu0
    %v2041 = vadd.f32 %v1789, %v2040
    %v2042 = vpop.f32.mrf.mxu0
    %2043 = vmatprep.mubr.f32.mxu0 0.0
    %2044 = vmatmul.mubr.f32.gmra.mxu0 %v1675
    %v2045 = vpop.f32.mrf.mxu0
    %v2046 = vadd.f32 %v1789, %v2045
    %v2047 = vpop.f32.mrf.mxu0
    %2048 = vmatprep.mubr.f32.mxu0 0.0
    %2049 = vmatmul.mubr.f32.gmra.mxu0 %v1680
    %v2050 = vpop.f32.mrf.mxu0
    %v2051 = vadd.f32 %v1789, %v2050
    %v2052 = vpop.f32.mrf.mxu0
    %2053 = vmatprep.mubr.f32.mxu0 0.0
    %2054 = vmatmul.mubr.f32.gmra.mxu0 %v1685
    %v2055 = vpop.f32.mrf.mxu0
    %v2056 = vadd.f32 %v1789, %v2055
    %v2057 = vpop.f32.mrf.mxu0
    %2058 = vmatprep.mubr.f32.mxu0 0.0
    %2059 = vmatmul.mubr.f32.gmra.mxu0 %v1690
    %v2060 = vpop.f32.mrf.mxu0
    %v2061 = vadd.f32 %v1789, %v2060
    %v2062 = vpop.f32.mrf.mxu0
    %2063 = vmatprep.mubr.f32.mxu0 0.0
    %2064 = vmatmul.mubr.f32.gmra.mxu0 %v1695
    %v2065 = vpop.f32.mrf.mxu0
    %v2066 = vadd.f32 %v1789, %v2065
    %v2067 = vpop.f32.mrf.mxu0
    %2068 = vmatprep.mubr.f32.mxu0 0.0
    %2069 = vmatmul.mubr.f32.gmra.mxu0 %v1700
    %v2070 = vpop.f32.mrf.mxu0
    %v2071 = vadd.f32 %v1789, %v2070
    %v2072 = vpop.f32.mrf.mxu0
    %2073 = vmatprep.mubr.f32.mxu0 0.0
    %2074 = vmatmul.mubr.f32.gmra.mxu0 %v1705
    %v2075 = vpop.f32.mrf.mxu0
    %v2076 = vadd.f32 %v1789, %v2075
    %v2077 = vpop.f32.mrf.mxu0
    %2078 = vmatprep.mubr.f32.mxu0 0.0
    %2079 = vmatmul.mubr.f32.gmra.mxu0 %v1710
    %v2080 = vpop.f32.mrf.mxu0
    %v2081 = vadd.f32 %v1789, %v2080
    %v2082 = vpop.f32.mrf.mxu0
    %2083 = vmatprep.mubr.f32.mxu0 0.0
    %2084 = vmatmul.mubr.f32.gmra.mxu0 %v1715
    %v2085 = vpop.f32.mrf.mxu0
    %v2086 = vadd.f32 %v1789, %v2085
    %v2087 = vpop.f32.mrf.mxu0
    %2088 = vmatprep.mubr.f32.mxu0 0.0
    %2089 = vmatmul.mubr.f32.gmra.mxu0 %v1720
    %v2090 = vpop.f32.mrf.mxu0
    %v2091 = vadd.f32 %v1789, %v2090
    %v2092 = vpop.f32.mrf.mxu0
    %2093 = vmatprep.mubr.f32.mxu0 0.0
    %2094 = vmatmul.mubr.f32.gmra.mxu0 %v1725
    %v2095 = vpop.f32.mrf.mxu0
    %v2096 = vadd.f32 %v1789, %v2095
    %v2097 = vpop.f32.mrf.mxu0
    %2098 = vdwg.mxu0
    %v2099 = vld [vmem:[#allocation19] sm:$0xff]
    %v2100 = vld [vmem:[#allocation19 + $0x8] sm:$0xff]
    %v2101 = vld [vmem:[#allocation19 + $0x10] sm:$0xff]
    %v2102 = vld [vmem:[#allocation19 + $0x18] sm:$0xff]
    %v2103 = vld [vmem:[#allocation19 + $0x20] sm:$0xff]
    %v2104 = vld [vmem:[#allocation19 + $0x28] sm:$0xff]
    %v2105 = vld [vmem:[#allocation19 + $0x30] sm:$0xff]
    %v2106 = vld [vmem:[#allocation19 + $0x38] sm:$0xff]
    %v2107 = vld [vmem:[#allocation19 + $0x40] sm:$0xff]
    %v2108 = vld [vmem:[#allocation19 + $0x48] sm:$0xff]
    %v2109 = vld [vmem:[#allocation19 + $0x50] sm:$0xff]
    %v2110 = vld [vmem:[#allocation19 + $0x58] sm:$0xff]
    %v2111 = vld [vmem:[#allocation19 + $0x60] sm:$0xff]
    %v2112 = vld [vmem:[#allocation19 + $0x68] sm:$0xff]
    %v2113 = vld [vmem:[#allocation19 + $0x70] sm:$0xff]
    %v2114 = vld [vmem:[#allocation19 + $0x78] sm:$0xff]
    %v2115 = vld [vmem:[#allocation19 + $0x80] sm:$0xff]
    %v2116 = vld [vmem:[#allocation19 + $0x88] sm:$0xff]
    %v2117 = vld [vmem:[#allocation19 + $0x90] sm:$0xff]
    %v2118 = vld [vmem:[#allocation19 + $0x98] sm:$0xff]
    %v2119 = vld [vmem:[#allocation19 + $0xa0] sm:$0xff]
    %v2120 = vld [vmem:[#allocation19 + $0xa8] sm:$0xff]
    %v2121 = vld [vmem:[#allocation19 + $0xb0] sm:$0xff]
    %v2122 = vld [vmem:[#allocation19 + $0xb8] sm:$0xff]
    %v2123 = vld [vmem:[#allocation19 + $0xc0] sm:$0xff]
    %v2124 = vld [vmem:[#allocation19 + $0xc8] sm:$0xff]
    %v2125 = vld [vmem:[#allocation19 + $0xd0] sm:$0xff]
    %v2126 = vld [vmem:[#allocation19 + $0xd8] sm:$0xff]
    %v2127 = vld [vmem:[#allocation19 + $0xe0] sm:$0xff]
    %v2128 = vld [vmem:[#allocation19 + $0xe8] sm:$0xff]
    %v2129 = vld [vmem:[#allocation19 + $0xf0] sm:$0xff]
    %v2130 = vld [vmem:[#allocation19 + $0xf8] sm:$0xff]
    %v2131 = vld [vmem:[#allocation19 + $0x100] sm:$0xff]
    %v2132 = vld [vmem:[#allocation19 + $0x108] sm:$0xff]
    %v2133 = vld [vmem:[#allocation19 + $0x110] sm:$0xff]
    %v2134 = vld [vmem:[#allocation19 + $0x118] sm:$0xff]
    %v2135 = vld [vmem:[#allocation19 + $0x120] sm:$0xff]
    %v2136 = vld [vmem:[#allocation19 + $0x128] sm:$0xff]
    %v2137 = vld [vmem:[#allocation19 + $0x130] sm:$0xff]
    %v2138 = vld [vmem:[#allocation19 + $0x138] sm:$0xff]
    %v2139 = vld [vmem:[#allocation19 + $0x140] sm:$0xff]
    %v2140 = vld [vmem:[#allocation19 + $0x148] sm:$0xff]
    %v2141 = vld [vmem:[#allocation19 + $0x150] sm:$0xff]
    %v2142 = vld [vmem:[#allocation19 + $0x158] sm:$0xff]
    %v2143 = vld [vmem:[#allocation19 + $0x160] sm:$0xff]
    %v2144 = vld [vmem:[#allocation19 + $0x168] sm:$0xff]
    %v2145 = vld [vmem:[#allocation19 + $0x170] sm:$0xff]
    %v2146 = vld [vmem:[#allocation19 + $0x178] sm:$0xff]
    %v2147 = vld [vmem:[%s18] sm:$0x7]
    %v2149 = vlaneseq
    %v2150 = vshrl.u32 %v2149, 7
    %v2151 = vsub.s32 0, %v2150
    %v2152 = vrot.slane %v2147, %v2151
    %v2153 = vlaneseq
    %v2154 = vshrl.u32 %v2153, 7
    %v2155 = vsub.s32 1, %v2154
    %v2156 = vrot.slane %v2147, %v2155
    %v2157 = vlaneseq
    %v2158 = vshrl.u32 %v2157, 7
    %v2159 = vsub.s32 2, %v2158
    %v2160 = vrot.slane %v2147, %v2159
    %2164 = vmatprep.subr.mxu0 %v2145
    %2165 = vmatpush1.msra.mxu0 %v2144
    %2166 = vmatprep.subr.mxu0 %v2142
    %2167 = vmatpush1.msra.mxu0 %v2141
    %2168 = vmatprep.subr.mxu0 %v2139
    %2169 = vmatpush1.msra.mxu0 %v2138
    %2170 = vmatprep.subr.mxu0 %v2136
    %2171 = vmatpush1.msra.mxu0 %v2135
    %2172 = vmatprep.subr.mxu0 %v2133
    %2173 = vmatpush1.msra.mxu0 %v2132
    %2174 = vmatprep.subr.mxu0 %v2130
    %2175 = vmatpush1.msra.mxu0 %v2129
    %2176 = vmatprep.subr.mxu0 %v2127
    %2177 = vmatpush1.msra.mxu0 %v2126
    %2178 = vmatprep.subr.mxu0 %v2124
    %2179 = vmatpush1.msra.mxu0 %v2123
    %2180 = vmatprep.subr.mxu0 %v2121
    %2181 = vmatpush1.msra.mxu0 %v2120
    %2182 = vmatprep.subr.mxu0 %v2118
    %2183 = vmatpush1.msra.mxu0 %v2117
    %2184 = vmatprep.subr.mxu0 %v2115
    %2185 = vmatpush1.msra.mxu0 %v2114
    %2186 = vmatprep.subr.mxu0 %v2112
    %2187 = vmatpush1.msra.mxu0 %v2111
    %2188 = vmatprep.subr.mxu0 %v2109
    %2189 = vmatpush1.msra.mxu0 %v2108
    %2190 = vmatprep.subr.mxu0 %v2106
    %2191 = vmatpush1.msra.mxu0 %v2105
    %2192 = vmatprep.subr.mxu0 %v2103
    %2193 = vmatpush1.msra.mxu0 %v2102
    %2194 = vmatprep.subr.mxu0 %v2100
    %2195 = vmatpush1.msra.mxu0 %v2099
    %2196 = vmatprep.subr.mxu0 0.0
    %2197 = vmatpush2.msra.mxu0 0.0
    %2198 = vmatprep.subr.mxu0 0.0
    %2199 = vmatpush2.msra.mxu0 0.0
    %2200 = vmatprep.subr.mxu0 0.0
    %2201 = vmatpush2.msra.mxu0 0.0
    %2202 = vmatprep.subr.mxu0 0.0
    %2203 = vmatpush2.msra.mxu0 0.0
    %2204 = vmatprep.subr.mxu0 0.0
    %2205 = vmatpush2.msra.mxu0 0.0
    %2206 = vmatprep.subr.mxu0 0.0
    %2207 = vmatpush2.msra.mxu0 0.0
    %2208 = vmatprep.subr.mxu0 0.0
    %2209 = vmatpush2.msra.mxu0 0.0
    %2210 = vmatprep.subr.mxu0 0.0
    %2211 = vmatpush2.msra.mxu0 0.0
    %2212 = vmatprep.subr.mxu0 0.0
    %2213 = vmatpush2.msra.mxu0 0.0
    %2214 = vmatprep.subr.mxu0 0.0
    %2215 = vmatpush2.msra.mxu0 0.0
    %2216 = vmatprep.subr.mxu0 0.0
    %2217 = vmatpush2.msra.mxu0 0.0
    %2218 = vmatprep.subr.mxu0 0.0
    %2219 = vmatpush2.msra.mxu0 0.0
    %2220 = vmatprep.subr.mxu0 0.0
    %2221 = vmatpush2.msra.mxu0 0.0
    %2222 = vmatprep.subr.mxu0 0.0
    %2223 = vmatpush2.msra.mxu0 0.0
    %2224 = vmatprep.subr.mxu0 0.0
    %2225 = vmatpush2.msra.mxu0 0.0
    %2226 = vmatprep.subr.mxu0 0.0
    %2227 = vmatpush2.msra.mxu0 0.0
    %2228 = vmatprep.mubr.f32.mxu0 0.0
    %2229 = vmatmul.mubr.f32.gmra.mxu0 %v507
    %v2230 = vpop.f32.mrf.mxu0
    %v2231 = vadd.f32 %v2152, %v2230
    %v2232 = vpop.f32.mrf.mxu0
    %v2233 = vadd.f32 %v2156, %v2232
    %2234 = vmatprep.mubr.f32.mxu0 0.0
    %2235 = vmatmul.mubr.f32.gmra.mxu0 %v508
    %v2236 = vpop.f32.mrf.mxu0
    %v2237 = vadd.f32 %v2152, %v2236
    %v2238 = vpop.f32.mrf.mxu0
    %v2239 = vadd.f32 %v2156, %v2238
    %2240 = vmatprep.mubr.f32.mxu0 0.0
    %2241 = vmatmul.mubr.f32.gmra.mxu0 %v509
    %v2242 = vpop.f32.mrf.mxu0
    %v2243 = vadd.f32 %v2152, %v2242
    %v2244 = vpop.f32.mrf.mxu0
    %v2245 = vadd.f32 %v2156, %v2244
    %2246 = vmatprep.mubr.f32.mxu0 0.0
    %2247 = vmatmul.mubr.f32.gmra.mxu0 %v510
    %v2248 = vpop.f32.mrf.mxu0
    %v2249 = vadd.f32 %v2152, %v2248
    %v2250 = vpop.f32.mrf.mxu0
    %v2251 = vadd.f32 %v2156, %v2250
    %2252 = vmatprep.mubr.f32.mxu0 0.0
    %2253 = vmatmul.mubr.f32.gmra.mxu0 %v511
    %v2254 = vpop.f32.mrf.mxu0
    %v2255 = vadd.f32 %v2152, %v2254
    %v2256 = vpop.f32.mrf.mxu0
    %v2257 = vadd.f32 %v2156, %v2256
    %2258 = vmatprep.mubr.f32.mxu0 0.0
    %2259 = vmatmul.mubr.f32.gmra.mxu0 %v512
    %v2260 = vpop.f32.mrf.mxu0
    %v2261 = vadd.f32 %v2152, %v2260
    %v2262 = vpop.f32.mrf.mxu0
    %v2263 = vadd.f32 %v2156, %v2262
    %2264 = vmatprep.mubr.f32.mxu0 0.0
    %2265 = vmatmul.mubr.f32.gmra.mxu0 %v513
    %v2266 = vpop.f32.mrf.mxu0
    %v2267 = vadd.f32 %v2152, %v2266
    %v2268 = vpop.f32.mrf.mxu0
    %v2269 = vadd.f32 %v2156, %v2268
    %2270 = vmatprep.mubr.f32.mxu0 0.0
    %2271 = vmatmul.mubr.f32.gmra.mxu0 %v514
    %v2272 = vpop.f32.mrf.mxu0
    %v2273 = vadd.f32 %v2152, %v2272
    %v2274 = vpop.f32.mrf.mxu0
    %v2275 = vadd.f32 %v2156, %v2274
    %2276 = vmatprep.mubr.f32.mxu0 0.0
    %2277 = vmatmul.mubr.f32.gmra.mxu0 %v515
    %v2278 = vpop.f32.mrf.mxu0
    %v2279 = vadd.f32 %v2152, %v2278
    %v2280 = vpop.f32.mrf.mxu0
    %v2281 = vadd.f32 %v2156, %v2280
    %2282 = vmatprep.mubr.f32.mxu0 0.0
    %2283 = vmatmul.mubr.f32.gmra.mxu0 %v516
    %v2284 = vpop.f32.mrf.mxu0
    %v2285 = vadd.f32 %v2152, %v2284
    %v2286 = vpop.f32.mrf.mxu0
    %v2287 = vadd.f32 %v2156, %v2286
    %2288 = vmatprep.mubr.f32.mxu0 0.0
    %2289 = vmatmul.mubr.f32.gmra.mxu0 %v517
    %v2290 = vpop.f32.mrf.mxu0
    %v2291 = vadd.f32 %v2152, %v2290
    %v2292 = vpop.f32.mrf.mxu0
    %v2293 = vadd.f32 %v2156, %v2292
    %2294 = vmatprep.mubr.f32.mxu0 0.0
    %2295 = vmatmul.mubr.f32.gmra.mxu0 %v518
    %v2296 = vpop.f32.mrf.mxu0
    %v2297 = vadd.f32 %v2152, %v2296
    %v2298 = vpop.f32.mrf.mxu0
    %v2299 = vadd.f32 %v2156, %v2298
    %2300 = vmatprep.mubr.f32.mxu0 0.0
    %2301 = vmatmul.mubr.f32.gmra.mxu0 %v519
    %v2302 = vpop.f32.mrf.mxu0
    %v2303 = vadd.f32 %v2152, %v2302
    %v2304 = vpop.f32.mrf.mxu0
    %v2305 = vadd.f32 %v2156, %v2304
    %2306 = vmatprep.mubr.f32.mxu0 0.0
    %2307 = vmatmul.mubr.f32.gmra.mxu0 %v520
    %v2308 = vpop.f32.mrf.mxu0
    %v2309 = vadd.f32 %v2152, %v2308
    %v2310 = vpop.f32.mrf.mxu0
    %v2311 = vadd.f32 %v2156, %v2310
    %2312 = vmatprep.mubr.f32.mxu0 0.0
    %2313 = vmatmul.mubr.f32.gmra.mxu0 %v521
    %v2314 = vpop.f32.mrf.mxu0
    %v2315 = vadd.f32 %v2152, %v2314
    %v2316 = vpop.f32.mrf.mxu0
    %v2317 = vadd.f32 %v2156, %v2316
    %2318 = vmatprep.mubr.f32.mxu0 0.0
    %2319 = vmatmul.mubr.f32.gmra.mxu0 %v522
    %v2320 = vpop.f32.mrf.mxu0
    %v2321 = vadd.f32 %v2152, %v2320
    %v2322 = vpop.f32.mrf.mxu0
    %v2323 = vadd.f32 %v2156, %v2322
    %2324 = vdwg.mxu0
    %2325 = vmatprep.subr.mxu0 0.0
    %2326 = vmatpush1.msra.mxu0 %v2146
    %2327 = vmatprep.subr.mxu0 0.0
    %2328 = vmatpush1.msra.mxu0 %v2143
    %2329 = vmatprep.subr.mxu0 0.0
    %2330 = vmatpush1.msra.mxu0 %v2140
    %2331 = vmatprep.subr.mxu0 0.0
    %2332 = vmatpush1.msra.mxu0 %v2137
    %2333 = vmatprep.subr.mxu0 0.0
    %2334 = vmatpush1.msra.mxu0 %v2134
    %2335 = vmatprep.subr.mxu0 0.0
    %2336 = vmatpush1.msra.mxu0 %v2131
    %2337 = vmatprep.subr.mxu0 0.0
    %2338 = vmatpush1.msra.mxu0 %v2128
    %2339 = vmatprep.subr.mxu0 0.0
    %2340 = vmatpush1.msra.mxu0 %v2125
    %2341 = vmatprep.subr.mxu0 0.0
    %2342 = vmatpush1.msra.mxu0 %v2122
    %2343 = vmatprep.subr.mxu0 0.0
    %2344 = vmatpush1.msra.mxu0 %v2119
    %2345 = vmatprep.subr.mxu0 0.0
    %2346 = vmatpush1.msra.mxu0 %v2116
    %2347 = vmatprep.subr.mxu0 0.0
    %2348 = vmatpush1.msra.mxu0 %v2113
    %2349 = vmatprep.subr.mxu0 0.0
    %2350 = vmatpush1.msra.mxu0 %v2110
    %2351 = vmatprep.subr.mxu0 0.0
    %2352 = vmatpush1.msra.mxu0 %v2107
    %2353 = vmatprep.subr.mxu0 0.0
    %2354 = vmatpush1.msra.mxu0 %v2104
    %2355 = vmatprep.subr.mxu0 0.0
    %2356 = vmatpush1.msra.mxu0 %v2101
    %2357 = vmatprep.subr.mxu0 0.0
    %2358 = vmatpush2.msra.mxu0 0.0
    %2359 = vmatprep.subr.mxu0 0.0
    %2360 = vmatpush2.msra.mxu0 0.0
    %2361 = vmatprep.subr.mxu0 0.0
    %2362 = vmatpush2.msra.mxu0 0.0
    %2363 = vmatprep.subr.mxu0 0.0
    %2364 = vmatpush2.msra.mxu0 0.0
    %2365 = vmatprep.subr.mxu0 0.0
    %2366 = vmatpush2.msra.mxu0 0.0
    %2367 = vmatprep.subr.mxu0 0.0
    %2368 = vmatpush2.msra.mxu0 0.0
    %2369 = vmatprep.subr.mxu0 0.0
    %2370 = vmatpush2.msra.mxu0 0.0
    %2371 = vmatprep.subr.mxu0 0.0
    %2372 = vmatpush2.msra.mxu0 0.0
    %2373 = vmatprep.subr.mxu0 0.0
    %2374 = vmatpush2.msra.mxu0 0.0
    %2375 = vmatprep.subr.mxu0 0.0
    %2376 = vmatpush2.msra.mxu0 0.0
    %2377 = vmatprep.subr.mxu0 0.0
    %2378 = vmatpush2.msra.mxu0 0.0
    %2379 = vmatprep.subr.mxu0 0.0
    %2380 = vmatpush2.msra.mxu0 0.0
    %2381 = vmatprep.subr.mxu0 0.0
    %2382 = vmatpush2.msra.mxu0 0.0
    %2383 = vmatprep.subr.mxu0 0.0
    %2384 = vmatpush2.msra.mxu0 0.0
    %2385 = vmatprep.subr.mxu0 0.0
    %2386 = vmatpush2.msra.mxu0 0.0
    %2387 = vmatprep.subr.mxu0 0.0
    %2388 = vmatpush2.msra.mxu0 0.0
    %2389 = vmatprep.mubr.f32.mxu0 0.0
    %2390 = vmatmul.mubr.f32.gmra.mxu0 %v507
    %v2391 = vpop.f32.mrf.mxu0
    %v2392 = vadd.f32 %v2160, %v2391
    %v2393 = vpop.f32.mrf.mxu0
    %2394 = vmatprep.mubr.f32.mxu0 0.0
    %2395 = vmatmul.mubr.f32.gmra.mxu0 %v508
    %v2396 = vpop.f32.mrf.mxu0
    %v2397 = vadd.f32 %v2160, %v2396
    %v2398 = vpop.f32.mrf.mxu0
    %2399 = vmatprep.mubr.f32.mxu0 0.0
    %2400 = vmatmul.mubr.f32.gmra.mxu0 %v509
    %v2401 = vpop.f32.mrf.mxu0
    %v2402 = vadd.f32 %v2160, %v2401
    %v2403 = vpop.f32.mrf.mxu0
    %2404 = vmatprep.mubr.f32.mxu0 0.0
    %2405 = vmatmul.mubr.f32.gmra.mxu0 %v510
    %v2406 = vpop.f32.mrf.mxu0
    %v2407 = vadd.f32 %v2160, %v2406
    %v2408 = vpop.f32.mrf.mxu0
    %2409 = vmatprep.mubr.f32.mxu0 0.0
    %2410 = vmatmul.mubr.f32.gmra.mxu0 %v511
    %v2411 = vpop.f32.mrf.mxu0
    %v2412 = vadd.f32 %v2160, %v2411
    %v2413 = vpop.f32.mrf.mxu0
    %2414 = vmatprep.mubr.f32.mxu0 0.0
    %2415 = vmatmul.mubr.f32.gmra.mxu0 %v512
    %v2416 = vpop.f32.mrf.mxu0
    %v2417 = vadd.f32 %v2160, %v2416
    %v2418 = vpop.f32.mrf.mxu0
    %2419 = vmatprep.mubr.f32.mxu0 0.0
    %2420 = vmatmul.mubr.f32.gmra.mxu0 %v513
    %v2421 = vpop.f32.mrf.mxu0
    %v2422 = vadd.f32 %v2160, %v2421
    %v2423 = vpop.f32.mrf.mxu0
    %2424 = vmatprep.mubr.f32.mxu0 0.0
    %2425 = vmatmul.mubr.f32.gmra.mxu0 %v514
    %v2426 = vpop.f32.mrf.mxu0
    %v2427 = vadd.f32 %v2160, %v2426
    %v2428 = vpop.f32.mrf.mxu0
    %2429 = vmatprep.mubr.f32.mxu0 0.0
    %2430 = vmatmul.mubr.f32.gmra.mxu0 %v515
    %v2431 = vpop.f32.mrf.mxu0
    %v2432 = vadd.f32 %v2160, %v2431
    %v2433 = vpop.f32.mrf.mxu0
    %2434 = vmatprep.mubr.f32.mxu0 0.0
    %2435 = vmatmul.mubr.f32.gmra.mxu0 %v516
    %v2436 = vpop.f32.mrf.mxu0
    %v2437 = vadd.f32 %v2160, %v2436
    %v2438 = vpop.f32.mrf.mxu0
    %2439 = vmatprep.mubr.f32.mxu0 0.0
    %2440 = vmatmul.mubr.f32.gmra.mxu0 %v517
    %v2441 = vpop.f32.mrf.mxu0
    %v2442 = vadd.f32 %v2160, %v2441
    %v2443 = vpop.f32.mrf.mxu0
    %2444 = vmatprep.mubr.f32.mxu0 0.0
    %2445 = vmatmul.mubr.f32.gmra.mxu0 %v518
    %v2446 = vpop.f32.mrf.mxu0
    %v2447 = vadd.f32 %v2160, %v2446
    %v2448 = vpop.f32.mrf.mxu0
    %2449 = vmatprep.mubr.f32.mxu0 0.0
    %2450 = vmatmul.mubr.f32.gmra.mxu0 %v519
    %v2451 = vpop.f32.mrf.mxu0
    %v2452 = vadd.f32 %v2160, %v2451
    %v2453 = vpop.f32.mrf.mxu0
    %2454 = vmatprep.mubr.f32.mxu0 0.0
    %2455 = vmatmul.mubr.f32.gmra.mxu0 %v520
    %v2456 = vpop.f32.mrf.mxu0
    %v2457 = vadd.f32 %v2160, %v2456
    %v2458 = vpop.f32.mrf.mxu0
    %2459 = vmatprep.mubr.f32.mxu0 0.0
    %2460 = vmatmul.mubr.f32.gmra.mxu0 %v521
    %v2461 = vpop.f32.mrf.mxu0
    %v2462 = vadd.f32 %v2160, %v2461
    %v2463 = vpop.f32.mrf.mxu0
    %2464 = vmatprep.mubr.f32.mxu0 0.0
    %2465 = vmatmul.mubr.f32.gmra.mxu0 %v522
    %v2466 = vpop.f32.mrf.mxu0
    %v2467 = vadd.f32 %v2160, %v2466
    %v2468 = vpop.f32.mrf.mxu0
    %2469 = vdwg.mxu0
    %v2470 = vadd.f32 %v1860, %v2231
    %v2471 = vadd.f32 %v1866, %v2237
    %v2472 = vadd.f32 %v1872, %v2243
    %v2473 = vadd.f32 %v1878, %v2249
    %v2474 = vadd.f32 %v1884, %v2255
    %v2475 = vadd.f32 %v1890, %v2261
    %v2476 = vadd.f32 %v1896, %v2267
    %v2477 = vadd.f32 %v1902, %v2273
    %v2478 = vadd.f32 %v1908, %v2279
    %v2479 = vadd.f32 %v1914, %v2285
    %v2480 = vadd.f32 %v1920, %v2291
    %v2481 = vadd.f32 %v1926, %v2297
    %v2482 = vadd.f32 %v1932, %v2303
    %v2483 = vadd.f32 %v1938, %v2309
    %v2484 = vadd.f32 %v1944, %v2315
    %v2485 = vadd.f32 %v1950, %v2321
    %v2486 = vxor.u32 %v2470, 2147483648
    %v2487 = vxor.u32 %v2471, 2147483648
    %v2488 = vxor.u32 %v2472, 2147483648
    %v2489 = vxor.u32 %v2473, 2147483648
    %v2490 = vxor.u32 %v2474, 2147483648
    %v2491 = vxor.u32 %v2475, 2147483648
    %v2492 = vxor.u32 %v2476, 2147483648
    %v2493 = vxor.u32 %v2477, 2147483648
    %v2494 = vxor.u32 %v2478, 2147483648
    %v2495 = vxor.u32 %v2479, 2147483648
    %v2496 = vxor.u32 %v2480, 2147483648
    %v2497 = vxor.u32 %v2481, 2147483648
    %v2498 = vxor.u32 %v2482, 2147483648
    %v2499 = vxor.u32 %v2483, 2147483648
    %v2500 = vxor.u32 %v2484, 2147483648
    %v2501 = vxor.u32 %v2485, 2147483648
    %v2502 = vmul.f32 %v2486, 1.442695
    %v2503 = vpow.pop %v2502
    %v2504 = vmul.f32 %v2487, 1.442695
    %v2505 = vpow.pop %v2504
    %v2506 = vmul.f32 %v2488, 1.442695
    %v2507 = vpow.pop %v2506
    %v2508 = vmul.f32 %v2489, 1.442695
    %v2509 = vpow.pop %v2508
    %v2510 = vmul.f32 %v2490, 1.442695
    %v2511 = vpow.pop %v2510
    %v2512 = vmul.f32 %v2491, 1.442695
    %v2513 = vpow.pop %v2512
    %v2514 = vmul.f32 %v2492, 1.442695
    %v2515 = vpow.pop %v2514
    %v2516 = vmul.f32 %v2493, 1.442695
    %v2517 = vpow.pop %v2516
    %v2518 = vmul.f32 %v2494, 1.442695
    %v2519 = vpow.pop %v2518
    %v2520 = vmul.f32 %v2495, 1.442695
    %v2521 = vpow.pop %v2520
    %v2522 = vmul.f32 %v2496, 1.442695
    %v2523 = vpow.pop %v2522
    %v2524 = vmul.f32 %v2497, 1.442695
    %v2525 = vpow.pop %v2524
    %v2526 = vmul.f32 %v2498, 1.442695
    %v2527 = vpow.pop %v2526
    %v2528 = vmul.f32 %v2499, 1.442695
    %v2529 = vpow.pop %v2528
    %v2530 = vmul.f32 %v2500, 1.442695
    %v2531 = vpow.pop %v2530
    %v2532 = vmul.f32 %v2501, 1.442695
    %v2533 = vpow.pop %v2532
    %v2534 = vadd.f32 %v2503, 1.0
    %v2535 = vadd.f32 %v2505, 1.0
    %v2536 = vadd.f32 %v2507, 1.0
    %v2537 = vadd.f32 %v2509, 1.0
    %v2538 = vadd.f32 %v2511, 1.0
    %v2539 = vadd.f32 %v2513, 1.0
    %v2540 = vadd.f32 %v2515, 1.0
    %v2541 = vadd.f32 %v2517, 1.0
    %v2542 = vadd.f32 %v2519, 1.0
    %v2543 = vadd.f32 %v2521, 1.0
    %v2544 = vadd.f32 %v2523, 1.0
    %v2545 = vadd.f32 %v2525, 1.0
    %v2546 = vadd.f32 %v2527, 1.0
    %v2547 = vadd.f32 %v2529, 1.0
    %v2548 = vadd.f32 %v2531, 1.0
    %v2549 = vadd.f32 %v2533, 1.0
    %v2550 = vrcp.pop %v2534
    %v2551 = vmul.f32 1.0, %v2550
    %v2552 = vrcp.pop %v2535
    %v2553 = vmul.f32 1.0, %v2552
    %v2554 = vrcp.pop %v2536
    %v2555 = vmul.f32 1.0, %v2554
    %v2556 = vrcp.pop %v2537
    %v2557 = vmul.f32 1.0, %v2556
    %v2558 = vrcp.pop %v2538
    %v2559 = vmul.f32 1.0, %v2558
    %v2560 = vrcp.pop %v2539
    %v2561 = vmul.f32 1.0, %v2560
    %v2562 = vrcp.pop %v2540
    %v2563 = vmul.f32 1.0, %v2562
    %v2564 = vrcp.pop %v2541
    %v2565 = vmul.f32 1.0, %v2564
    %v2566 = vrcp.pop %v2542
    %v2567 = vmul.f32 1.0, %v2566
    %v2568 = vrcp.pop %v2543
    %v2569 = vmul.f32 1.0, %v2568
    %v2570 = vrcp.pop %v2544
    %v2571 = vmul.f32 1.0, %v2570
    %v2572 = vrcp.pop %v2545
    %v2573 = vmul.f32 1.0, %v2572
    %v2574 = vrcp.pop %v2546
    %v2575 = vmul.f32 1.0, %v2574
    %v2576 = vrcp.pop %v2547
    %v2577 = vmul.f32 1.0, %v2576
    %v2578 = vrcp.pop %v2548
    %v2579 = vmul.f32 1.0, %v2578
    %v2580 = vrcp.pop %v2549
    %v2581 = vmul.f32 1.0, %v2580
    %v2582 = vadd.f32 %v1862, %v2233
    %v2583 = vadd.f32 %v1868, %v2239
    %v2584 = vadd.f32 %v1874, %v2245
    %v2585 = vadd.f32 %v1880, %v2251
    %v2586 = vadd.f32 %v1886, %v2257
    %v2587 = vadd.f32 %v1892, %v2263
    %v2588 = vadd.f32 %v1898, %v2269
    %v2589 = vadd.f32 %v1904, %v2275
    %v2590 = vadd.f32 %v1910, %v2281
    %v2591 = vadd.f32 %v1916, %v2287
    %v2592 = vadd.f32 %v1922, %v2293
    %v2593 = vadd.f32 %v1928, %v2299
    %v2594 = vadd.f32 %v1934, %v2305
    %v2595 = vadd.f32 %v1940, %v2311
    %v2596 = vadd.f32 %v1946, %v2317
    %v2597 = vadd.f32 %v1952, %v2323
    %v2598 = vxor.u32 %v2582, 2147483648
    %v2599 = vxor.u32 %v2583, 2147483648
    %v2600 = vxor.u32 %v2584, 2147483648
    %v2601 = vxor.u32 %v2585, 2147483648
    %v2602 = vxor.u32 %v2586, 2147483648
    %v2603 = vxor.u32 %v2587, 2147483648
    %v2604 = vxor.u32 %v2588, 2147483648
    %v2605 = vxor.u32 %v2589, 2147483648
    %v2606 = vxor.u32 %v2590, 2147483648
    %v2607 = vxor.u32 %v2591, 2147483648
    %v2608 = vxor.u32 %v2592, 2147483648
    %v2609 = vxor.u32 %v2593, 2147483648
    %v2610 = vxor.u32 %v2594, 2147483648
    %v2611 = vxor.u32 %v2595, 2147483648
    %v2612 = vxor.u32 %v2596, 2147483648
    %v2613 = vxor.u32 %v2597, 2147483648
    %v2614 = vmul.f32 %v2598, 1.442695
    %v2615 = vpow.pop %v2614
    %v2616 = vmul.f32 %v2599, 1.442695
    %v2617 = vpow.pop %v2616
    %v2618 = vmul.f32 %v2600, 1.442695
    %v2619 = vpow.pop %v2618
    %v2620 = vmul.f32 %v2601, 1.442695
    %v2621 = vpow.pop %v2620
    %v2622 = vmul.f32 %v2602, 1.442695
    %v2623 = vpow.pop %v2622
    %v2624 = vmul.f32 %v2603, 1.442695
    %v2625 = vpow.pop %v2624
    %v2626 = vmul.f32 %v2604, 1.442695
    %v2627 = vpow.pop %v2626
    %v2628 = vmul.f32 %v2605, 1.442695
    %v2629 = vpow.pop %v2628
    %v2630 = vmul.f32 %v2606, 1.442695
    %v2631 = vpow.pop %v2630
    %v2632 = vmul.f32 %v2607, 1.442695
    %v2633 = vpow.pop %v2632
    %v2634 = vmul.f32 %v2608, 1.442695
    %v2635 = vpow.pop %v2634
    %v2636 = vmul.f32 %v2609, 1.442695
    %v2637 = vpow.pop %v2636
    %v2638 = vmul.f32 %v2610, 1.442695
    %v2639 = vpow.pop %v2638
    %v2640 = vmul.f32 %v2611, 1.442695
    %v2641 = vpow.pop %v2640
    %v2642 = vmul.f32 %v2612, 1.442695
    %v2643 = vpow.pop %v2642
    %v2644 = vmul.f32 %v2613, 1.442695
    %v2645 = vpow.pop %v2644
    %v2646 = vadd.f32 %v2615, 1.0
    %v2647 = vadd.f32 %v2617, 1.0
    %v2648 = vadd.f32 %v2619, 1.0
    %v2649 = vadd.f32 %v2621, 1.0
    %v2650 = vadd.f32 %v2623, 1.0
    %v2651 = vadd.f32 %v2625, 1.0
    %v2652 = vadd.f32 %v2627, 1.0
    %v2653 = vadd.f32 %v2629, 1.0
    %v2654 = vadd.f32 %v2631, 1.0
    %v2655 = vadd.f32 %v2633, 1.0
    %v2656 = vadd.f32 %v2635, 1.0
    %v2657 = vadd.f32 %v2637, 1.0
    %v2658 = vadd.f32 %v2639, 1.0
    %v2659 = vadd.f32 %v2641, 1.0
    %v2660 = vadd.f32 %v2643, 1.0
    %v2661 = vadd.f32 %v2645, 1.0
    %v2662 = vrcp.pop %v2646
    %v2663 = vmul.f32 1.0, %v2662
    %v2664 = vrcp.pop %v2647
    %v2665 = vmul.f32 1.0, %v2664
    %v2666 = vrcp.pop %v2648
    %v2667 = vmul.f32 1.0, %v2666
    %v2668 = vrcp.pop %v2649
    %v2669 = vmul.f32 1.0, %v2668
    %v2670 = vrcp.pop %v2650
    %v2671 = vmul.f32 1.0, %v2670
    %v2672 = vrcp.pop %v2651
    %v2673 = vmul.f32 1.0, %v2672
    %v2674 = vrcp.pop %v2652
    %v2675 = vmul.f32 1.0, %v2674
    %v2676 = vrcp.pop %v2653
    %v2677 = vmul.f32 1.0, %v2676
    %v2678 = vrcp.pop %v2654
    %v2679 = vmul.f32 1.0, %v2678
    %v2680 = vrcp.pop %v2655
    %v2681 = vmul.f32 1.0, %v2680
    %v2682 = vrcp.pop %v2656
    %v2683 = vmul.f32 1.0, %v2682
    %v2684 = vrcp.pop %v2657
    %v2685 = vmul.f32 1.0, %v2684
    %v2686 = vrcp.pop %v2658
    %v2687 = vmul.f32 1.0, %v2686
    %v2688 = vrcp.pop %v2659
    %v2689 = vmul.f32 1.0, %v2688
    %v2690 = vrcp.pop %v2660
    %v2691 = vmul.f32 1.0, %v2690
    %v2692 = vrcp.pop %v2661
    %v2693 = vmul.f32 1.0, %v2692
    %v2694 = vmul.f32 %v2551, %v2392
    %v2695 = vmul.f32 %v2553, %v2397
    %v2696 = vmul.f32 %v2555, %v2402
    %v2697 = vmul.f32 %v2557, %v2407
    %v2698 = vmul.f32 %v2559, %v2412
    %v2699 = vmul.f32 %v2561, %v2417
    %v2700 = vmul.f32 %v2563, %v2422
    %v2701 = vmul.f32 %v2565, %v2427
    %v2702 = vmul.f32 %v2567, %v2432
    %v2703 = vmul.f32 %v2569, %v2437
    %v2704 = vmul.f32 %v2571, %v2442
    %v2705 = vmul.f32 %v2573, %v2447
    %v2706 = vmul.f32 %v2575, %v2452
    %v2707 = vmul.f32 %v2577, %v2457
    %v2708 = vmul.f32 %v2579, %v2462
    %v2709 = vmul.f32 %v2581, %v2467
    %v2710 = vadd.f32 %v2021, %v2694
    %v2711 = vadd.f32 %v2026, %v2695
    %v2712 = vadd.f32 %v2031, %v2696
    %v2713 = vadd.f32 %v2036, %v2697
    %v2714 = vadd.f32 %v2041, %v2698
    %v2715 = vadd.f32 %v2046, %v2699
    %v2716 = vadd.f32 %v2051, %v2700
    %v2717 = vadd.f32 %v2056, %v2701
    %v2718 = vadd.f32 %v2061, %v2702
    %v2719 = vadd.f32 %v2066, %v2703
    %v2720 = vadd.f32 %v2071, %v2704
    %v2721 = vadd.f32 %v2076, %v2705
    %v2722 = vadd.f32 %v2081, %v2706
    %v2723 = vadd.f32 %v2086, %v2707
    %v2724 = vadd.f32 %v2091, %v2708
    %v2725 = vadd.f32 %v2096, %v2709
    %v2726 = vtanh.pop %v2710
    %v2727 = vtanh.pop %v2711
    %v2728 = vtanh.pop %v2712
    %v2729 = vtanh.pop %v2713
    %v2730 = vtanh.pop %v2714
    %v2731 = vtanh.pop %v2715
    %v2732 = vtanh.pop %v2716
    %v2733 = vtanh.pop %v2717
    %v2734 = vtanh.pop %v2718
    %v2735 = vtanh.pop %v2719
    %v2736 = vtanh.pop %v2720
    %v2737 = vtanh.pop %v2721
    %v2738 = vtanh.pop %v2722
    %v2739 = vtanh.pop %v2723
    %v2740 = vtanh.pop %v2724
    %v2741 = vtanh.pop %v2725
    %v2742 = vsub.f32 1.0, %v2663
    %v2743 = vsub.f32 1.0, %v2665
    %v2744 = vsub.f32 1.0, %v2667
    %v2745 = vsub.f32 1.0, %v2669
    %v2746 = vsub.f32 1.0, %v2671
    %v2747 = vsub.f32 1.0, %v2673
    %v2748 = vsub.f32 1.0, %v2675
    %v2749 = vsub.f32 1.0, %v2677
    %v2750 = vsub.f32 1.0, %v2679
    %v2751 = vsub.f32 1.0, %v2681
    %v2752 = vsub.f32 1.0, %v2683
    %v2753 = vsub.f32 1.0, %v2685
    %v2754 = vsub.f32 1.0, %v2687
    %v2755 = vsub.f32 1.0, %v2689
    %v2756 = vsub.f32 1.0, %v2691
    %v2757 = vsub.f32 1.0, %v2693
    %v2758 = vmul.f32 %v2742, %v2726
    %v2759 = vmul.f32 %v2743, %v2727
    %v2760 = vmul.f32 %v2744, %v2728
    %v2761 = vmul.f32 %v2745, %v2729
    %v2762 = vmul.f32 %v2746, %v2730
    %v2763 = vmul.f32 %v2747, %v2731
    %v2764 = vmul.f32 %v2748, %v2732
    %v2765 = vmul.f32 %v2749, %v2733
    %v2766 = vmul.f32 %v2750, %v2734
    %v2767 = vmul.f32 %v2751, %v2735
    %v2768 = vmul.f32 %v2752, %v2736
    %v2769 = vmul.f32 %v2753, %v2737
    %v2770 = vmul.f32 %v2754, %v2738
    %v2771 = vmul.f32 %v2755, %v2739
    %v2772 = vmul.f32 %v2756, %v2740
    %v2773 = vmul.f32 %v2757, %v2741
    %v2774 = vmul.f32 %v2663, %v507
    %v2775 = vmul.f32 %v2665, %v508
    %v2776 = vmul.f32 %v2667, %v509
    %v2777 = vmul.f32 %v2669, %v510
    %v2778 = vmul.f32 %v2671, %v511
    %v2779 = vmul.f32 %v2673, %v512
    %v2780 = vmul.f32 %v2675, %v513
    %v2781 = vmul.f32 %v2677, %v514
    %v2782 = vmul.f32 %v2679, %v515
    %v2783 = vmul.f32 %v2681, %v516
    %v2784 = vmul.f32 %v2683, %v517
    %v2785 = vmul.f32 %v2685, %v518
    %v2786 = vmul.f32 %v2687, %v519
    %v2787 = vmul.f32 %v2689, %v520
    %v2788 = vmul.f32 %v2691, %v521
    %v2789 = vmul.f32 %v2693, %v522
    %v2790 = vadd.f32 %v2758, %v2774
    %v2791 = vadd.f32 %v2759, %v2775
    %v2792 = vadd.f32 %v2760, %v2776
    %v2793 = vadd.f32 %v2761, %v2777
    %v2794 = vadd.f32 %v2762, %v2778
    %v2795 = vadd.f32 %v2763, %v2779
    %v2796 = vadd.f32 %v2764, %v2780
    %v2797 = vadd.f32 %v2765, %v2781
    %v2798 = vadd.f32 %v2766, %v2782
    %v2799 = vadd.f32 %v2767, %v2783
    %v2800 = vadd.f32 %v2768, %v2784
    %v2801 = vadd.f32 %v2769, %v2785
    %v2802 = vadd.f32 %v2770, %v2786
    %v2803 = vadd.f32 %v2771, %v2787
    %v2804 = vadd.f32 %v2772, %v2788
    %v2805 = vadd.f32 %v2773, %v2789
    %2806 = vst [vmem:[#allocation2] sm:$0xff] %v2790
    %2807 = vst [vmem:[#allocation2 + $0x8] sm:$0xff] %v2791
    %2808 = vst [vmem:[#allocation2 + $0x10] sm:$0xff] %v2792
    %2809 = vst [vmem:[#allocation2 + $0x18] sm:$0xff] %v2793
    %2810 = vst [vmem:[#allocation2 + $0x20] sm:$0xff] %v2794
    %2811 = vst [vmem:[#allocation2 + $0x28] sm:$0xff] %v2795
    %2812 = vst [vmem:[#allocation2 + $0x30] sm:$0xff] %v2796
    %2813 = vst [vmem:[#allocation2 + $0x38] sm:$0xff] %v2797
    %2814 = vst [vmem:[#allocation2 + $0x40] sm:$0xff] %v2798
    %2815 = vst [vmem:[#allocation2 + $0x48] sm:$0xff] %v2799
    %2816 = vst [vmem:[#allocation2 + $0x50] sm:$0xff] %v2800
    %2817 = vst [vmem:[#allocation2 + $0x58] sm:$0xff] %v2801
    %2818 = vst [vmem:[#allocation2 + $0x60] sm:$0xff] %v2802
    %2819 = vst [vmem:[#allocation2 + $0x68] sm:$0xff] %v2803
    %2820 = vst [vmem:[#allocation2 + $0x70] sm:$0xff] %v2804
    %2821 = vst [vmem:[#allocation2 + $0x78] sm:$0xff] %v2805
    %v2822 = vld [vmem:[#allocation2] sm:$0xff]
    %v2823 = vld [vmem:[#allocation2 + $0x8] sm:$0xff]
    %v2824 = vld [vmem:[#allocation2 + $0x10] sm:$0xff]
    %v2825 = vld [vmem:[#allocation2 + $0x18] sm:$0xff]
    %v2826 = vld [vmem:[#allocation2 + $0x20] sm:$0xff]
    %v2827 = vld [vmem:[#allocation2 + $0x28] sm:$0xff]
    %v2828 = vld [vmem:[#allocation2 + $0x30] sm:$0xff]
    %v2829 = vld [vmem:[#allocation2 + $0x38] sm:$0xff]
    %v2830 = vld [vmem:[#allocation2 + $0x40] sm:$0xff]
    %v2831 = vld [vmem:[#allocation2 + $0x48] sm:$0xff]
    %v2832 = vld [vmem:[#allocation2 + $0x50] sm:$0xff]
    %v2833 = vld [vmem:[#allocation2 + $0x58] sm:$0xff]
    %v2834 = vld [vmem:[#allocation2 + $0x60] sm:$0xff]
    %v2835 = vld [vmem:[#allocation2 + $0x68] sm:$0xff]
    %v2836 = vld [vmem:[#allocation2 + $0x70] sm:$0xff]
    %v2837 = vld [vmem:[#allocation2 + $0x78] sm:$0xff]
    %v2838 = vld [vmem:[%s0] sm:$0xff]
    %v2839 = vld [vmem:[%s0 + $0x8] sm:$0xff]
    %v2840 = vld [vmem:[%s0 + $0x10] sm:$0xff]
    %v2841 = vld [vmem:[%s0 + $0x18] sm:$0xff]
    %v2842 = vld [vmem:[%s0 + $0x20] sm:$0xff]
    %v2843 = vld [vmem:[%s0 + $0x28] sm:$0xff]
    %v2844 = vld [vmem:[%s0 + $0x30] sm:$0xff]
    %v2845 = vld [vmem:[%s0 + $0x38] sm:$0xff]
    %v2846 = vld [vmem:[%s0 + $0x40] sm:$0xff]
    %v2847 = vld [vmem:[%s0 + $0x48] sm:$0xff]
    %v2848 = vld [vmem:[%s0 + $0x50] sm:$0xff]
    %v2849 = vld [vmem:[%s0 + $0x58] sm:$0xff]
    %v2850 = vld [vmem:[%s0 + $0x60] sm:$0xff]
    %v2851 = vld [vmem:[%s0 + $0x68] sm:$0xff]
    %v2852 = vld [vmem:[%s0 + $0x70] sm:$0xff]
    %v2853 = vld [vmem:[%s0 + $0x78] sm:$0xff]
    %2854 = vmatprep.subr.mxu0 0.0
    %2855 = vmatpush1.msra.mxu0 %v2837
    %2856 = vmatprep.subr.mxu0 0.0
    %2857 = vmatpush1.msra.mxu0 %v2836
    %2858 = vmatprep.subr.mxu0 0.0
    %2859 = vmatpush1.msra.mxu0 %v2835
    %2860 = vmatprep.subr.mxu0 0.0
    %2861 = vmatpush1.msra.mxu0 %v2834
    %2862 = vmatprep.subr.mxu0 0.0
    %2863 = vmatpush1.msra.mxu0 %v2833
    %2864 = vmatprep.subr.mxu0 0.0
    %2865 = vmatpush1.msra.mxu0 %v2832
    %2866 = vmatprep.subr.mxu0 0.0
    %2867 = vmatpush1.msra.mxu0 %v2831
    %2868 = vmatprep.subr.mxu0 0.0
    %2869 = vmatpush1.msra.mxu0 %v2830
    %2870 = vmatprep.subr.mxu0 0.0
    %2871 = vmatpush1.msra.mxu0 %v2829
    %2872 = vmatprep.subr.mxu0 0.0
    %2873 = vmatpush1.msra.mxu0 %v2828
    %2874 = vmatprep.subr.mxu0 0.0
    %2875 = vmatpush1.msra.mxu0 %v2827
    %2876 = vmatprep.subr.mxu0 0.0
    %2877 = vmatpush1.msra.mxu0 %v2826
    %2878 = vmatprep.subr.mxu0 0.0
    %2879 = vmatpush1.msra.mxu0 %v2825
    %2880 = vmatprep.subr.mxu0 0.0
    %2881 = vmatpush1.msra.mxu0 %v2824
    %2882 = vmatprep.subr.mxu0 0.0
    %2883 = vmatpush1.msra.mxu0 %v2823
    %2884 = vmatprep.subr.mxu0 0.0
    %2885 = vmatpush1.msra.mxu0 %v2822
    %2886 = vmatprep.subr.mxu0 0.0
    %2887 = vmatpush2.msra.mxu0 0.0
    %2888 = vmatprep.subr.mxu0 0.0
    %2889 = vmatpush2.msra.mxu0 0.0
    %2890 = vmatprep.subr.mxu0 0.0
    %2891 = vmatpush2.msra.mxu0 0.0
    %2892 = vmatprep.subr.mxu0 0.0
    %2893 = vmatpush2.msra.mxu0 0.0
    %2894 = vmatprep.subr.mxu0 0.0
    %2895 = vmatpush2.msra.mxu0 0.0
    %2896 = vmatprep.subr.mxu0 0.0
    %2897 = vmatpush2.msra.mxu0 0.0
    %2898 = vmatprep.subr.mxu0 0.0
    %2899 = vmatpush2.msra.mxu0 0.0
    %2900 = vmatprep.subr.mxu0 0.0
    %2901 = vmatpush2.msra.mxu0 0.0
    %2902 = vmatprep.subr.mxu0 0.0
    %2903 = vmatpush2.msra.mxu0 0.0
    %2904 = vmatprep.subr.mxu0 0.0
    %2905 = vmatpush2.msra.mxu0 0.0
    %2906 = vmatprep.subr.mxu0 0.0
    %2907 = vmatpush2.msra.mxu0 0.0
    %2908 = vmatprep.subr.mxu0 0.0
    %2909 = vmatpush2.msra.mxu0 0.0
    %2910 = vmatprep.subr.mxu0 0.0
    %2911 = vmatpush2.msra.mxu0 0.0
    %2912 = vmatprep.subr.mxu0 0.0
    %2913 = vmatpush2.msra.mxu0 0.0
    %2914 = vmatprep.subr.mxu0 0.0
    %2915 = vmatpush2.msra.mxu0 0.0
    %2916 = vmatprep.subr.mxu0 0.0
    %2917 = vmatpush2.msra.mxu0 0.0
    %2918 = vmatprep.mubr.f32.mxu0 0.0
    %2919 = vmatmul.mubr.f32.gmra.mxu0 %v2838
    %v2920 = vpop.f32.mrf.mxu0
    %v2921 = vadd.f32 0.0, %v2920
    %v2922 = vpop.f32.mrf.mxu0
    %2923 = vmatprep.mubr.f32.mxu0 0.0
    %2924 = vmatmul.mubr.f32.gmra.mxu0 %v2839
    %v2925 = vpop.f32.mrf.mxu0
    %v2926 = vadd.f32 0.0, %v2925
    %v2927 = vpop.f32.mrf.mxu0
    %2928 = vmatprep.mubr.f32.mxu0 0.0
    %2929 = vmatmul.mubr.f32.gmra.mxu0 %v2840
    %v2930 = vpop.f32.mrf.mxu0
    %v2931 = vadd.f32 0.0, %v2930
    %v2932 = vpop.f32.mrf.mxu0
    %2933 = vmatprep.mubr.f32.mxu0 0.0
    %2934 = vmatmul.mubr.f32.gmra.mxu0 %v2841
    %v2935 = vpop.f32.mrf.mxu0
    %v2936 = vadd.f32 0.0, %v2935
    %v2937 = vpop.f32.mrf.mxu0
    %2938 = vmatprep.mubr.f32.mxu0 0.0
    %2939 = vmatmul.mubr.f32.gmra.mxu0 %v2842
    %v2940 = vpop.f32.mrf.mxu0
    %v2941 = vadd.f32 0.0, %v2940
    %v2942 = vpop.f32.mrf.mxu0
    %2943 = vmatprep.mubr.f32.mxu0 0.0
    %2944 = vmatmul.mubr.f32.gmra.mxu0 %v2843
    %v2945 = vpop.f32.mrf.mxu0
    %v2946 = vadd.f32 0.0, %v2945
    %v2947 = vpop.f32.mrf.mxu0
    %2948 = vmatprep.mubr.f32.mxu0 0.0
    %2949 = vmatmul.mubr.f32.gmra.mxu0 %v2844
    %v2950 = vpop.f32.mrf.mxu0
    %v2951 = vadd.f32 0.0, %v2950
    %v2952 = vpop.f32.mrf.mxu0
    %2953 = vmatprep.mubr.f32.mxu0 0.0
    %2954 = vmatmul.mubr.f32.gmra.mxu0 %v2845
    %v2955 = vpop.f32.mrf.mxu0
    %v2956 = vadd.f32 0.0, %v2955
    %v2957 = vpop.f32.mrf.mxu0
    %2958 = vmatprep.mubr.f32.mxu0 0.0
    %2959 = vmatmul.mubr.f32.gmra.mxu0 %v2846
    %v2960 = vpop.f32.mrf.mxu0
    %v2961 = vadd.f32 0.0, %v2960
    %v2962 = vpop.f32.mrf.mxu0
    %2963 = vmatprep.mubr.f32.mxu0 0.0
    %2964 = vmatmul.mubr.f32.gmra.mxu0 %v2847
    %v2965 = vpop.f32.mrf.mxu0
    %v2966 = vadd.f32 0.0, %v2965
    %v2967 = vpop.f32.mrf.mxu0
    %2968 = vmatprep.mubr.f32.mxu0 0.0
    %2969 = vmatmul.mubr.f32.gmra.mxu0 %v2848
    %v2970 = vpop.f32.mrf.mxu0
    %v2971 = vadd.f32 0.0, %v2970
    %v2972 = vpop.f32.mrf.mxu0
    %2973 = vmatprep.mubr.f32.mxu0 0.0
    %2974 = vmatmul.mubr.f32.gmra.mxu0 %v2849
    %v2975 = vpop.f32.mrf.mxu0
    %v2976 = vadd.f32 0.0, %v2975
    %v2977 = vpop.f32.mrf.mxu0
    %2978 = vmatprep.mubr.f32.mxu0 0.0
    %2979 = vmatmul.mubr.f32.gmra.mxu0 %v2850
    %v2980 = vpop.f32.mrf.mxu0
    %v2981 = vadd.f32 0.0, %v2980
    %v2982 = vpop.f32.mrf.mxu0
    %2983 = vmatprep.mubr.f32.mxu0 0.0
    %2984 = vmatmul.mubr.f32.gmra.mxu0 %v2851
    %v2985 = vpop.f32.mrf.mxu0
    %v2986 = vadd.f32 0.0, %v2985
    %v2987 = vpop.f32.mrf.mxu0
    %2988 = vmatprep.mubr.f32.mxu0 0.0
    %2989 = vmatmul.mubr.f32.gmra.mxu0 %v2852
    %v2990 = vpop.f32.mrf.mxu0
    %v2991 = vadd.f32 0.0, %v2990
    %v2992 = vpop.f32.mrf.mxu0
    %2993 = vmatprep.mubr.f32.mxu0 0.0
    %2994 = vmatmul.mubr.f32.gmra.mxu0 %v2853
    %v2995 = vpop.f32.mrf.mxu0
    %v2996 = vadd.f32 0.0, %v2995
    %v2997 = vpop.f32.mrf.mxu0
    %2998 = vdwg.mxu0
    %v2999 = vld [vmem:[#allocation4] sm:$0xff]
    %v3000 = vld [vmem:[#allocation4 + $0x8] sm:$0xff]
    %v3001 = vld [vmem:[#allocation4 + $0x10] sm:$0xff]
    %v3002 = vld [vmem:[#allocation4 + $0x18] sm:$0xff]
    %v3003 = vld [vmem:[#allocation4 + $0x20] sm:$0xff]
    %v3004 = vld [vmem:[#allocation4 + $0x28] sm:$0xff]
    %v3005 = vld [vmem:[#allocation4 + $0x30] sm:$0xff]
    %v3006 = vld [vmem:[#allocation4 + $0x38] sm:$0xff]
    %v3007 = vld [vmem:[#allocation4 + $0x40] sm:$0xff]
    %v3008 = vld [vmem:[#allocation4 + $0x48] sm:$0xff]
    %v3009 = vld [vmem:[#allocation4 + $0x50] sm:$0xff]
    %v3010 = vld [vmem:[#allocation4 + $0x58] sm:$0xff]
    %v3011 = vld [vmem:[#allocation4 + $0x60] sm:$0xff]
    %v3012 = vld [vmem:[#allocation4 + $0x68] sm:$0xff]
    %v3013 = vld [vmem:[#allocation4 + $0x70] sm:$0xff]
    %v3014 = vld [vmem:[#allocation4 + $0x78] sm:$0xff]
    %3015 = vmatprep.subr.mxu0 0.0
    %3016 = vmatpush1.msra.mxu0 %v2837
    %3017 = vmatprep.subr.mxu0 0.0
    %3018 = vmatpush1.msra.mxu0 %v2836
    %3019 = vmatprep.subr.mxu0 0.0
    %3020 = vmatpush1.msra.mxu0 %v2835
    %3021 = vmatprep.subr.mxu0 0.0
    %3022 = vmatpush1.msra.mxu0 %v2834
    %3023 = vmatprep.subr.mxu0 0.0
    %3024 = vmatpush1.msra.mxu0 %v2833
    %3025 = vmatprep.subr.mxu0 0.0
    %3026 = vmatpush1.msra.mxu0 %v2832
    %3027 = vmatprep.subr.mxu0 0.0
    %3028 = vmatpush1.msra.mxu0 %v2831
    %3029 = vmatprep.subr.mxu0 0.0
    %3030 = vmatpush1.msra.mxu0 %v2830
    %3031 = vmatprep.subr.mxu0 0.0
    %3032 = vmatpush1.msra.mxu0 %v2829
    %3033 = vmatprep.subr.mxu0 0.0
    %3034 = vmatpush1.msra.mxu0 %v2828
    %3035 = vmatprep.subr.mxu0 0.0
    %3036 = vmatpush1.msra.mxu0 %v2827
    %3037 = vmatprep.subr.mxu0 0.0
    %3038 = vmatpush1.msra.mxu0 %v2826
    %3039 = vmatprep.subr.mxu0 0.0
    %3040 = vmatpush1.msra.mxu0 %v2825
    %3041 = vmatprep.subr.mxu0 0.0
    %3042 = vmatpush1.msra.mxu0 %v2824
    %3043 = vmatprep.subr.mxu0 0.0
    %3044 = vmatpush1.msra.mxu0 %v2823
    %3045 = vmatprep.subr.mxu0 0.0
    %3046 = vmatpush1.msra.mxu0 %v2822
    %3047 = vmatprep.subr.mxu0 0.0
    %3048 = vmatpush2.msra.mxu0 0.0
    %3049 = vmatprep.subr.mxu0 0.0
    %3050 = vmatpush2.msra.mxu0 0.0
    %3051 = vmatprep.subr.mxu0 0.0
    %3052 = vmatpush2.msra.mxu0 0.0
    %3053 = vmatprep.subr.mxu0 0.0
    %3054 = vmatpush2.msra.mxu0 0.0
    %3055 = vmatprep.subr.mxu0 0.0
    %3056 = vmatpush2.msra.mxu0 0.0
    %3057 = vmatprep.subr.mxu0 0.0
    %3058 = vmatpush2.msra.mxu0 0.0
    %3059 = vmatprep.subr.mxu0 0.0
    %3060 = vmatpush2.msra.mxu0 0.0
    %3061 = vmatprep.subr.mxu0 0.0
    %3062 = vmatpush2.msra.mxu0 0.0
    %3063 = vmatprep.subr.mxu0 0.0
    %3064 = vmatpush2.msra.mxu0 0.0
    %3065 = vmatprep.subr.mxu0 0.0
    %3066 = vmatpush2.msra.mxu0 0.0
    %3067 = vmatprep.subr.mxu0 0.0
    %3068 = vmatpush2.msra.mxu0 0.0
    %3069 = vmatprep.subr.mxu0 0.0
    %3070 = vmatpush2.msra.mxu0 0.0
    %3071 = vmatprep.subr.mxu0 0.0
    %3072 = vmatpush2.msra.mxu0 0.0
    %3073 = vmatprep.subr.mxu0 0.0
    %3074 = vmatpush2.msra.mxu0 0.0
    %3075 = vmatprep.subr.mxu0 0.0
    %3076 = vmatpush2.msra.mxu0 0.0
    %3077 = vmatprep.subr.mxu0 0.0
    %3078 = vmatpush2.msra.mxu0 0.0
    %3079 = vmatprep.mubr.f32.mxu0 0.0
    %3080 = vmatmul.mubr.f32.gmra.mxu0 %v2999
    %v3081 = vpop.f32.mrf.mxu0
    %v3082 = vadd.f32 0.0, %v3081
    %v3083 = vpop.f32.mrf.mxu0
    %3084 = vmatprep.mubr.f32.mxu0 0.0
    %3085 = vmatmul.mubr.f32.gmra.mxu0 %v3000
    %v3086 = vpop.f32.mrf.mxu0
    %v3087 = vadd.f32 0.0, %v3086
    %v3088 = vpop.f32.mrf.mxu0
    %3089 = vmatprep.mubr.f32.mxu0 0.0
    %3090 = vmatmul.mubr.f32.gmra.mxu0 %v3001
    %v3091 = vpop.f32.mrf.mxu0
    %v3092 = vadd.f32 0.0, %v3091
    %v3093 = vpop.f32.mrf.mxu0
    %3094 = vmatprep.mubr.f32.mxu0 0.0
    %3095 = vmatmul.mubr.f32.gmra.mxu0 %v3002
    %v3096 = vpop.f32.mrf.mxu0
    %v3097 = vadd.f32 0.0, %v3096
    %v3098 = vpop.f32.mrf.mxu0
    %3099 = vmatprep.mubr.f32.mxu0 0.0
    %3100 = vmatmul.mubr.f32.gmra.mxu0 %v3003
    %v3101 = vpop.f32.mrf.mxu0
    %v3102 = vadd.f32 0.0, %v3101
    %v3103 = vpop.f32.mrf.mxu0
    %3104 = vmatprep.mubr.f32.mxu0 0.0
    %3105 = vmatmul.mubr.f32.gmra.mxu0 %v3004
    %v3106 = vpop.f32.mrf.mxu0
    %v3107 = vadd.f32 0.0, %v3106
    %v3108 = vpop.f32.mrf.mxu0
    %3109 = vmatprep.mubr.f32.mxu0 0.0
    %3110 = vmatmul.mubr.f32.gmra.mxu0 %v3005
    %v3111 = vpop.f32.mrf.mxu0
    %v3112 = vadd.f32 0.0, %v3111
    %v3113 = vpop.f32.mrf.mxu0
    %3114 = vmatprep.mubr.f32.mxu0 0.0
    %3115 = vmatmul.mubr.f32.gmra.mxu0 %v3006
    %v3116 = vpop.f32.mrf.mxu0
    %v3117 = vadd.f32 0.0, %v3116
    %v3118 = vpop.f32.mrf.mxu0
    %3119 = vmatprep.mubr.f32.mxu0 0.0
    %3120 = vmatmul.mubr.f32.gmra.mxu0 %v3007
    %v3121 = vpop.f32.mrf.mxu0
    %v3122 = vadd.f32 0.0, %v3121
    %v3123 = vpop.f32.mrf.mxu0
    %3124 = vmatprep.mubr.f32.mxu0 0.0
    %3125 = vmatmul.mubr.f32.gmra.mxu0 %v3008
    %v3126 = vpop.f32.mrf.mxu0
    %v3127 = vadd.f32 0.0, %v3126
    %v3128 = vpop.f32.mrf.mxu0
    %3129 = vmatprep.mubr.f32.mxu0 0.0
    %3130 = vmatmul.mubr.f32.gmra.mxu0 %v3009
    %v3131 = vpop.f32.mrf.mxu0
    %v3132 = vadd.f32 0.0, %v3131
    %v3133 = vpop.f32.mrf.mxu0
    %3134 = vmatprep.mubr.f32.mxu0 0.0
    %3135 = vmatmul.mubr.f32.gmra.mxu0 %v3010
    %v3136 = vpop.f32.mrf.mxu0
    %v3137 = vadd.f32 0.0, %v3136
    %v3138 = vpop.f32.mrf.mxu0
    %3139 = vmatprep.mubr.f32.mxu0 0.0
    %3140 = vmatmul.mubr.f32.gmra.mxu0 %v3011
    %v3141 = vpop.f32.mrf.mxu0
    %v3142 = vadd.f32 0.0, %v3141
    %v3143 = vpop.f32.mrf.mxu0
    %3144 = vmatprep.mubr.f32.mxu0 0.0
    %3145 = vmatmul.mubr.f32.gmra.mxu0 %v3012
    %v3146 = vpop.f32.mrf.mxu0
    %v3147 = vadd.f32 0.0, %v3146
    %v3148 = vpop.f32.mrf.mxu0
    %3149 = vmatprep.mubr.f32.mxu0 0.0
    %3150 = vmatmul.mubr.f32.gmra.mxu0 %v3013
    %v3151 = vpop.f32.mrf.mxu0
    %v3152 = vadd.f32 0.0, %v3151
    %v3153 = vpop.f32.mrf.mxu0
    %3154 = vmatprep.mubr.f32.mxu0 0.0
    %3155 = vmatmul.mubr.f32.gmra.mxu0 %v3014
    %v3156 = vpop.f32.mrf.mxu0
    %v3157 = vadd.f32 0.0, %v3156
    %v3158 = vpop.f32.mrf.mxu0
    %3159 = vdwg.mxu0
    %v3160 = vld [vmem:[#allocation12] sm:$0xff]
    %v3161 = vld [vmem:[#allocation12 + $0x8] sm:$0xff]
    %v3162 = vld [vmem:[#allocation12 + $0x10] sm:$0xff]
    %v3163 = vld [vmem:[#allocation12 + $0x18] sm:$0xff]
    %v3164 = vld [vmem:[#allocation12 + $0x20] sm:$0xff]
    %v3165 = vld [vmem:[#allocation12 + $0x28] sm:$0xff]
    %v3166 = vld [vmem:[#allocation12 + $0x30] sm:$0xff]
    %v3167 = vld [vmem:[#allocation12 + $0x38] sm:$0xff]
    %v3168 = vld [vmem:[#allocation12 + $0x40] sm:$0xff]
    %v3169 = vld [vmem:[#allocation12 + $0x48] sm:$0xff]
    %v3170 = vld [vmem:[#allocation12 + $0x50] sm:$0xff]
    %v3171 = vld [vmem:[#allocation12 + $0x58] sm:$0xff]
    %v3172 = vld [vmem:[#allocation12 + $0x60] sm:$0xff]
    %v3173 = vld [vmem:[#allocation12 + $0x68] sm:$0xff]
    %v3174 = vld [vmem:[#allocation12 + $0x70] sm:$0xff]
    %v3175 = vld [vmem:[#allocation12 + $0x78] sm:$0xff]
    %v3176 = vld [vmem:[#allocation13] sm:$0xff]
    %v3177 = vld [vmem:[#allocation13 + $0x8] sm:$0xff]
    %v3178 = vld [vmem:[#allocation13 + $0x10] sm:$0xff]
    %v3179 = vld [vmem:[#allocation13 + $0x18] sm:$0xff]
    %v3180 = vld [vmem:[#allocation13 + $0x20] sm:$0xff]
    %v3181 = vld [vmem:[#allocation13 + $0x28] sm:$0xff]
    %v3182 = vld [vmem:[#allocation13 + $0x30] sm:$0xff]
    %v3183 = vld [vmem:[#allocation13 + $0x38] sm:$0xff]
    %v3184 = vld [vmem:[#allocation13 + $0x40] sm:$0xff]
    %v3185 = vld [vmem:[#allocation13 + $0x48] sm:$0xff]
    %v3186 = vld [vmem:[#allocation13 + $0x50] sm:$0xff]
    %v3187 = vld [vmem:[#allocation13 + $0x58] sm:$0xff]
    %v3188 = vld [vmem:[#allocation13 + $0x60] sm:$0xff]
    %v3189 = vld [vmem:[#allocation13 + $0x68] sm:$0xff]
    %v3190 = vld [vmem:[#allocation13 + $0x70] sm:$0xff]
    %v3191 = vld [vmem:[#allocation13 + $0x78] sm:$0xff]
    %3192 = vmatprep.subr.mxu0 0.0
    %3193 = vmatpush1.msra.mxu0 %v3191
    %3194 = vmatprep.subr.mxu0 0.0
    %3195 = vmatpush1.msra.mxu0 %v3190
    %3196 = vmatprep.subr.mxu0 0.0
    %3197 = vmatpush1.msra.mxu0 %v3189
    %3198 = vmatprep.subr.mxu0 0.0
    %3199 = vmatpush1.msra.mxu0 %v3188
    %3200 = vmatprep.subr.mxu0 0.0
    %3201 = vmatpush1.msra.mxu0 %v3187
    %3202 = vmatprep.subr.mxu0 0.0
    %3203 = vmatpush1.msra.mxu0 %v3186
    %3204 = vmatprep.subr.mxu0 0.0
    %3205 = vmatpush1.msra.mxu0 %v3185
    %3206 = vmatprep.subr.mxu0 0.0
    %3207 = vmatpush1.msra.mxu0 %v3184
    %3208 = vmatprep.subr.mxu0 0.0
    %3209 = vmatpush1.msra.mxu0 %v3183
    %3210 = vmatprep.subr.mxu0 0.0
    %3211 = vmatpush1.msra.mxu0 %v3182
    %3212 = vmatprep.subr.mxu0 0.0
    %3213 = vmatpush1.msra.mxu0 %v3181
    %3214 = vmatprep.subr.mxu0 0.0
    %3215 = vmatpush1.msra.mxu0 %v3180
    %3216 = vmatprep.subr.mxu0 0.0
    %3217 = vmatpush1.msra.mxu0 %v3179
    %3218 = vmatprep.subr.mxu0 0.0
    %3219 = vmatpush1.msra.mxu0 %v3178
    %3220 = vmatprep.subr.mxu0 0.0
    %3221 = vmatpush1.msra.mxu0 %v3177
    %3222 = vmatprep.subr.mxu0 0.0
    %3223 = vmatpush1.msra.mxu0 %v3176
    %3224 = vmatprep.subr.mxu0 0.0
    %3225 = vmatpush2.msra.mxu0 0.0
    %3226 = vmatprep.subr.mxu0 0.0
    %3227 = vmatpush2.msra.mxu0 0.0
    %3228 = vmatprep.subr.mxu0 0.0
    %3229 = vmatpush2.msra.mxu0 0.0
    %3230 = vmatprep.subr.mxu0 0.0
    %3231 = vmatpush2.msra.mxu0 0.0
    %3232 = vmatprep.subr.mxu0 0.0
    %3233 = vmatpush2.msra.mxu0 0.0
    %3234 = vmatprep.subr.mxu0 0.0
    %3235 = vmatpush2.msra.mxu0 0.0
    %3236 = vmatprep.subr.mxu0 0.0
    %3237 = vmatpush2.msra.mxu0 0.0
    %3238 = vmatprep.subr.mxu0 0.0
    %3239 = vmatpush2.msra.mxu0 0.0
    %3240 = vmatprep.subr.mxu0 0.0
    %3241 = vmatpush2.msra.mxu0 0.0
    %3242 = vmatprep.subr.mxu0 0.0
    %3243 = vmatpush2.msra.mxu0 0.0
    %3244 = vmatprep.subr.mxu0 0.0
    %3245 = vmatpush2.msra.mxu0 0.0
    %3246 = vmatprep.subr.mxu0 0.0
    %3247 = vmatpush2.msra.mxu0 0.0
    %3248 = vmatprep.subr.mxu0 0.0
    %3249 = vmatpush2.msra.mxu0 0.0
    %3250 = vmatprep.subr.mxu0 0.0
    %3251 = vmatpush2.msra.mxu0 0.0
    %3252 = vmatprep.subr.mxu0 0.0
    %3253 = vmatpush2.msra.mxu0 0.0
    %3254 = vmatprep.subr.mxu0 0.0
    %3255 = vmatpush2.msra.mxu0 0.0
    %3256 = vmatprep.mubr.f32.mxu0 0.0
    %3257 = vmatmul.mubr.f32.gmra.mxu0 %v3082
    %v3258 = vpop.f32.mrf.mxu0
    %v3259 = vadd.f32 0.0, %v3258
    %v3260 = vpop.f32.mrf.mxu0
    %3261 = vmatprep.mubr.f32.mxu0 0.0
    %3262 = vmatmul.mubr.f32.gmra.mxu0 %v3087
    %v3263 = vpop.f32.mrf.mxu0
    %v3264 = vadd.f32 0.0, %v3263
    %v3265 = vpop.f32.mrf.mxu0
    %3266 = vmatprep.mubr.f32.mxu0 0.0
    %3267 = vmatmul.mubr.f32.gmra.mxu0 %v3092
    %v3268 = vpop.f32.mrf.mxu0
    %v3269 = vadd.f32 0.0, %v3268
    %v3270 = vpop.f32.mrf.mxu0
    %3271 = vmatprep.mubr.f32.mxu0 0.0
    %3272 = vmatmul.mubr.f32.gmra.mxu0 %v3097
    %v3273 = vpop.f32.mrf.mxu0
    %v3274 = vadd.f32 0.0, %v3273
    %v3275 = vpop.f32.mrf.mxu0
    %3276 = vmatprep.mubr.f32.mxu0 0.0
    %3277 = vmatmul.mubr.f32.gmra.mxu0 %v3102
    %v3278 = vpop.f32.mrf.mxu0
    %v3279 = vadd.f32 0.0, %v3278
    %v3280 = vpop.f32.mrf.mxu0
    %3281 = vmatprep.mubr.f32.mxu0 0.0
    %3282 = vmatmul.mubr.f32.gmra.mxu0 %v3107
    %v3283 = vpop.f32.mrf.mxu0
    %v3284 = vadd.f32 0.0, %v3283
    %v3285 = vpop.f32.mrf.mxu0
    %3286 = vmatprep.mubr.f32.mxu0 0.0
    %3287 = vmatmul.mubr.f32.gmra.mxu0 %v3112
    %v3288 = vpop.f32.mrf.mxu0
    %v3289 = vadd.f32 0.0, %v3288
    %v3290 = vpop.f32.mrf.mxu0
    %3291 = vmatprep.mubr.f32.mxu0 0.0
    %3292 = vmatmul.mubr.f32.gmra.mxu0 %v3117
    %v3293 = vpop.f32.mrf.mxu0
    %v3294 = vadd.f32 0.0, %v3293
    %v3295 = vpop.f32.mrf.mxu0
    %3296 = vmatprep.mubr.f32.mxu0 0.0
    %3297 = vmatmul.mubr.f32.gmra.mxu0 %v3122
    %v3298 = vpop.f32.mrf.mxu0
    %v3299 = vadd.f32 0.0, %v3298
    %v3300 = vpop.f32.mrf.mxu0
    %3301 = vmatprep.mubr.f32.mxu0 0.0
    %3302 = vmatmul.mubr.f32.gmra.mxu0 %v3127
    %v3303 = vpop.f32.mrf.mxu0
    %v3304 = vadd.f32 0.0, %v3303
    %v3305 = vpop.f32.mrf.mxu0
    %3306 = vmatprep.mubr.f32.mxu0 0.0
    %3307 = vmatmul.mubr.f32.gmra.mxu0 %v3132
    %v3308 = vpop.f32.mrf.mxu0
    %v3309 = vadd.f32 0.0, %v3308
    %v3310 = vpop.f32.mrf.mxu0
    %3311 = vmatprep.mubr.f32.mxu0 0.0
    %3312 = vmatmul.mubr.f32.gmra.mxu0 %v3137
    %v3313 = vpop.f32.mrf.mxu0
    %v3314 = vadd.f32 0.0, %v3313
    %v3315 = vpop.f32.mrf.mxu0
    %3316 = vmatprep.mubr.f32.mxu0 0.0
    %3317 = vmatmul.mubr.f32.gmra.mxu0 %v3142
    %v3318 = vpop.f32.mrf.mxu0
    %v3319 = vadd.f32 0.0, %v3318
    %v3320 = vpop.f32.mrf.mxu0
    %3321 = vmatprep.mubr.f32.mxu0 0.0
    %3322 = vmatmul.mubr.f32.gmra.mxu0 %v3147
    %v3323 = vpop.f32.mrf.mxu0
    %v3324 = vadd.f32 0.0, %v3323
    %v3325 = vpop.f32.mrf.mxu0
    %3326 = vmatprep.mubr.f32.mxu0 0.0
    %3327 = vmatmul.mubr.f32.gmra.mxu0 %v3152
    %v3328 = vpop.f32.mrf.mxu0
    %v3329 = vadd.f32 0.0, %v3328
    %v3330 = vpop.f32.mrf.mxu0
    %3331 = vmatprep.mubr.f32.mxu0 0.0
    %3332 = vmatmul.mubr.f32.gmra.mxu0 %v3157
    %v3333 = vpop.f32.mrf.mxu0
    %v3334 = vadd.f32 0.0, %v3333
    %v3335 = vpop.f32.mrf.mxu0
    %3336 = vdwg.mxu0
    %3337 = vmatprep.subr.mxu0 0.0
    %3338 = vmatpush1.msra.mxu0 %v3175
    %3339 = vmatprep.subr.mxu0 0.0
    %3340 = vmatpush1.msra.mxu0 %v3174
    %3341 = vmatprep.subr.mxu0 0.0
    %3342 = vmatpush1.msra.mxu0 %v3173
    %3343 = vmatprep.subr.mxu0 0.0
    %3344 = vmatpush1.msra.mxu0 %v3172
    %3345 = vmatprep.subr.mxu0 0.0
    %3346 = vmatpush1.msra.mxu0 %v3171
    %3347 = vmatprep.subr.mxu0 0.0
    %3348 = vmatpush1.msra.mxu0 %v3170
    %3349 = vmatprep.subr.mxu0 0.0
    %3350 = vmatpush1.msra.mxu0 %v3169
    %3351 = vmatprep.subr.mxu0 0.0
    %3352 = vmatpush1.msra.mxu0 %v3168
    %3353 = vmatprep.subr.mxu0 0.0
    %3354 = vmatpush1.msra.mxu0 %v3167
    %3355 = vmatprep.subr.mxu0 0.0
    %3356 = vmatpush1.msra.mxu0 %v3166
    %3357 = vmatprep.subr.mxu0 0.0
    %3358 = vmatpush1.msra.mxu0 %v3165
    %3359 = vmatprep.subr.mxu0 0.0
    %3360 = vmatpush1.msra.mxu0 %v3164
    %3361 = vmatprep.subr.mxu0 0.0
    %3362 = vmatpush1.msra.mxu0 %v3163
    %3363 = vmatprep.subr.mxu0 0.0
    %3364 = vmatpush1.msra.mxu0 %v3162
    %3365 = vmatprep.subr.mxu0 0.0
    %3366 = vmatpush1.msra.mxu0 %v3161
    %3367 = vmatprep.subr.mxu0 0.0
    %3368 = vmatpush1.msra.mxu0 %v3160
    %3369 = vmatprep.subr.mxu0 0.0
    %3370 = vmatpush2.msra.mxu0 0.0
    %3371 = vmatprep.subr.mxu0 0.0
    %3372 = vmatpush2.msra.mxu0 0.0
    %3373 = vmatprep.subr.mxu0 0.0
    %3374 = vmatpush2.msra.mxu0 0.0
    %3375 = vmatprep.subr.mxu0 0.0
    %3376 = vmatpush2.msra.mxu0 0.0
    %3377 = vmatprep.subr.mxu0 0.0
    %3378 = vmatpush2.msra.mxu0 0.0
    %3379 = vmatprep.subr.mxu0 0.0
    %3380 = vmatpush2.msra.mxu0 0.0
    %3381 = vmatprep.subr.mxu0 0.0
    %3382 = vmatpush2.msra.mxu0 0.0
    %3383 = vmatprep.subr.mxu0 0.0
    %3384 = vmatpush2.msra.mxu0 0.0
    %3385 = vmatprep.subr.mxu0 0.0
    %3386 = vmatpush2.msra.mxu0 0.0
    %3387 = vmatprep.subr.mxu0 0.0
    %3388 = vmatpush2.msra.mxu0 0.0
    %3389 = vmatprep.subr.mxu0 0.0
    %3390 = vmatpush2.msra.mxu0 0.0
    %3391 = vmatprep.subr.mxu0 0.0
    %3392 = vmatpush2.msra.mxu0 0.0
    %3393 = vmatprep.subr.mxu0 0.0
    %3394 = vmatpush2.msra.mxu0 0.0
    %3395 = vmatprep.subr.mxu0 0.0
    %3396 = vmatpush2.msra.mxu0 0.0
    %3397 = vmatprep.subr.mxu0 0.0
    %3398 = vmatpush2.msra.mxu0 0.0
    %3399 = vmatprep.subr.mxu0 0.0
    %3400 = vmatpush2.msra.mxu0 0.0
    %3401 = vmatprep.mubr.f32.mxu0 0.0
    %3402 = vmatmul.mubr.f32.gmra.mxu0 %v2921
    %v3403 = vpop.f32.mrf.mxu0
    %v3404 = vadd.f32 %v3259, %v3403
    %v3405 = vpop.f32.mrf.mxu0
    %3406 = vmatprep.mubr.f32.mxu0 0.0
    %3407 = vmatmul.mubr.f32.gmra.mxu0 %v2926
    %v3408 = vpop.f32.mrf.mxu0
    %v3409 = vadd.f32 %v3264, %v3408
    %v3410 = vpop.f32.mrf.mxu0
    %3411 = vmatprep.mubr.f32.mxu0 0.0
    %3412 = vmatmul.mubr.f32.gmra.mxu0 %v2931
    %v3413 = vpop.f32.mrf.mxu0
    %v3414 = vadd.f32 %v3269, %v3413
    %v3415 = vpop.f32.mrf.mxu0
    %3416 = vmatprep.mubr.f32.mxu0 0.0
    %3417 = vmatmul.mubr.f32.gmra.mxu0 %v2936
    %v3418 = vpop.f32.mrf.mxu0
    %v3419 = vadd.f32 %v3274, %v3418
    %v3420 = vpop.f32.mrf.mxu0
    %3421 = vmatprep.mubr.f32.mxu0 0.0
    %3422 = vmatmul.mubr.f32.gmra.mxu0 %v2941
    %v3423 = vpop.f32.mrf.mxu0
    %v3424 = vadd.f32 %v3279, %v3423
    %v3425 = vpop.f32.mrf.mxu0
    %3426 = vmatprep.mubr.f32.mxu0 0.0
    %3427 = vmatmul.mubr.f32.gmra.mxu0 %v2946
    %v3428 = vpop.f32.mrf.mxu0
    %v3429 = vadd.f32 %v3284, %v3428
    %v3430 = vpop.f32.mrf.mxu0
    %3431 = vmatprep.mubr.f32.mxu0 0.0
    %3432 = vmatmul.mubr.f32.gmra.mxu0 %v2951
    %v3433 = vpop.f32.mrf.mxu0
    %v3434 = vadd.f32 %v3289, %v3433
    %v3435 = vpop.f32.mrf.mxu0
    %3436 = vmatprep.mubr.f32.mxu0 0.0
    %3437 = vmatmul.mubr.f32.gmra.mxu0 %v2956
    %v3438 = vpop.f32.mrf.mxu0
    %v3439 = vadd.f32 %v3294, %v3438
    %v3440 = vpop.f32.mrf.mxu0
    %3441 = vmatprep.mubr.f32.mxu0 0.0
    %3442 = vmatmul.mubr.f32.gmra.mxu0 %v2961
    %v3443 = vpop.f32.mrf.mxu0
    %v3444 = vadd.f32 %v3299, %v3443
    %v3445 = vpop.f32.mrf.mxu0
    %3446 = vmatprep.mubr.f32.mxu0 0.0
    %3447 = vmatmul.mubr.f32.gmra.mxu0 %v2966
    %v3448 = vpop.f32.mrf.mxu0
    %v3449 = vadd.f32 %v3304, %v3448
    %v3450 = vpop.f32.mrf.mxu0
    %3451 = vmatprep.mubr.f32.mxu0 0.0
    %3452 = vmatmul.mubr.f32.gmra.mxu0 %v2971
    %v3453 = vpop.f32.mrf.mxu0
    %v3454 = vadd.f32 %v3309, %v3453
    %v3455 = vpop.f32.mrf.mxu0
    %3456 = vmatprep.mubr.f32.mxu0 0.0
    %3457 = vmatmul.mubr.f32.gmra.mxu0 %v2976
    %v3458 = vpop.f32.mrf.mxu0
    %v3459 = vadd.f32 %v3314, %v3458
    %v3460 = vpop.f32.mrf.mxu0
    %3461 = vmatprep.mubr.f32.mxu0 0.0
    %3462 = vmatmul.mubr.f32.gmra.mxu0 %v2981
    %v3463 = vpop.f32.mrf.mxu0
    %v3464 = vadd.f32 %v3319, %v3463
    %v3465 = vpop.f32.mrf.mxu0
    %3466 = vmatprep.mubr.f32.mxu0 0.0
    %3467 = vmatmul.mubr.f32.gmra.mxu0 %v2986
    %v3468 = vpop.f32.mrf.mxu0
    %v3469 = vadd.f32 %v3324, %v3468
    %v3470 = vpop.f32.mrf.mxu0
    %3471 = vmatprep.mubr.f32.mxu0 0.0
    %3472 = vmatmul.mubr.f32.gmra.mxu0 %v2991
    %v3473 = vpop.f32.mrf.mxu0
    %v3474 = vadd.f32 %v3329, %v3473
    %v3475 = vpop.f32.mrf.mxu0
    %3476 = vmatprep.mubr.f32.mxu0 0.0
    %3477 = vmatmul.mubr.f32.gmra.mxu0 %v2996
    %v3478 = vpop.f32.mrf.mxu0
    %v3479 = vadd.f32 %v3334, %v3478
    %v3480 = vpop.f32.mrf.mxu0
    %3481 = vdwg.mxu0
    %v3482 = vld [vmem:[#allocation3] sm:$0xff]
    %v3483 = vld [vmem:[#allocation3 + $0x8] sm:$0xff]
    %v3484 = vld [vmem:[#allocation3 + $0x10] sm:$0xff]
    %v3485 = vld [vmem:[#allocation3 + $0x18] sm:$0xff]
    %v3486 = vld [vmem:[#allocation3 + $0x20] sm:$0xff]
    %v3487 = vld [vmem:[#allocation3 + $0x28] sm:$0xff]
    %v3488 = vld [vmem:[#allocation3 + $0x30] sm:$0xff]
    %v3489 = vld [vmem:[#allocation3 + $0x38] sm:$0xff]
    %v3490 = vld [vmem:[#allocation3 + $0x40] sm:$0xff]
    %v3491 = vld [vmem:[#allocation3 + $0x48] sm:$0xff]
    %v3492 = vld [vmem:[#allocation3 + $0x50] sm:$0xff]
    %v3493 = vld [vmem:[#allocation3 + $0x58] sm:$0xff]
    %v3494 = vld [vmem:[#allocation3 + $0x60] sm:$0xff]
    %v3495 = vld [vmem:[#allocation3 + $0x68] sm:$0xff]
    %v3496 = vld [vmem:[#allocation3 + $0x70] sm:$0xff]
    %v3497 = vld [vmem:[#allocation3 + $0x78] sm:$0xff]
    %v3498 = vadd.f32 %v3404, %v3482
    %v3499 = vadd.f32 %v3409, %v3483
    %v3500 = vadd.f32 %v3414, %v3484
    %v3501 = vadd.f32 %v3419, %v3485
    %v3502 = vadd.f32 %v3424, %v3486
    %v3503 = vadd.f32 %v3429, %v3487
    %v3504 = vadd.f32 %v3434, %v3488
    %v3505 = vadd.f32 %v3439, %v3489
    %v3506 = vadd.f32 %v3444, %v3490
    %v3507 = vadd.f32 %v3449, %v3491
    %v3508 = vadd.f32 %v3454, %v3492
    %v3509 = vadd.f32 %v3459, %v3493
    %v3510 = vadd.f32 %v3464, %v3494
    %v3511 = vadd.f32 %v3469, %v3495
    %v3512 = vadd.f32 %v3474, %v3496
    %v3513 = vadd.f32 %v3479, %v3497
    %v3514 = vmax.f32 %v3498, 0.0
    %v3515 = vmax.f32 %v3499, 0.0
    %v3516 = vmax.f32 %v3500, 0.0
    %v3517 = vmax.f32 %v3501, 0.0
    %v3518 = vmax.f32 %v3502, 0.0
    %v3519 = vmax.f32 %v3503, 0.0
    %v3520 = vmax.f32 %v3504, 0.0
    %v3521 = vmax.f32 %v3505, 0.0
    %v3522 = vmax.f32 %v3506, 0.0
    %v3523 = vmax.f32 %v3507, 0.0
    %v3524 = vmax.f32 %v3508, 0.0
    %v3525 = vmax.f32 %v3509, 0.0
    %v3526 = vmax.f32 %v3510, 0.0
    %v3527 = vmax.f32 %v3511, 0.0
    %v3528 = vmax.f32 %v3512, 0.0
    %v3529 = vmax.f32 %v3513, 0.0
    %v3530 = vld [vmem:[#allocation15] sm:$0xff]
    %v3531 = vld [vmem:[#allocation15 + $0x8] sm:$0xff]
    %v3532 = vld [vmem:[#allocation15 + $0x10] sm:$0xff]
    %v3533 = vld [vmem:[#allocation15 + $0x18] sm:$0xff]
    %v3534 = vld [vmem:[#allocation15 + $0x20] sm:$0xff]
    %v3535 = vld [vmem:[#allocation15 + $0x28] sm:$0xff]
    %v3536 = vld [vmem:[#allocation15 + $0x30] sm:$0xff]
    %v3537 = vld [vmem:[#allocation15 + $0x38] sm:$0xff]
    %v3538 = vld [vmem:[#allocation15 + $0x40] sm:$0xff]
    %v3539 = vld [vmem:[#allocation15 + $0x48] sm:$0xff]
    %v3540 = vld [vmem:[#allocation15 + $0x50] sm:$0xff]
    %v3541 = vld [vmem:[#allocation15 + $0x58] sm:$0xff]
    %v3542 = vld [vmem:[#allocation15 + $0x60] sm:$0xff]
    %v3543 = vld [vmem:[#allocation15 + $0x68] sm:$0xff]
    %v3544 = vld [vmem:[#allocation15 + $0x70] sm:$0xff]
    %v3545 = vld [vmem:[#allocation15 + $0x78] sm:$0xff]
    %v3546 = vld [vmem:[%s12] sm:$0x1]
    %v3548 = vlaneseq
    %v3549 = vshrl.u32 %v3548, 7
    %v3550 = vsub.s32 0, %v3549
    %v3551 = vrot.slane %v3546, %v3550
    %3553 = vmatprep.subr.mxu0 0.0
    %3554 = vmatpush1.msra.mxu0 %v3545
    %3555 = vmatprep.subr.mxu0 0.0
    %3556 = vmatpush1.msra.mxu0 %v3544
    %3557 = vmatprep.subr.mxu0 0.0
    %3558 = vmatpush1.msra.mxu0 %v3543
    %3559 = vmatprep.subr.mxu0 0.0
    %3560 = vmatpush1.msra.mxu0 %v3542
    %3561 = vmatprep.subr.mxu0 0.0
    %3562 = vmatpush1.msra.mxu0 %v3541
    %3563 = vmatprep.subr.mxu0 0.0
    %3564 = vmatpush1.msra.mxu0 %v3540
    %3565 = vmatprep.subr.mxu0 0.0
    %3566 = vmatpush1.msra.mxu0 %v3539
    %3567 = vmatprep.subr.mxu0 0.0
    %3568 = vmatpush1.msra.mxu0 %v3538
    %3569 = vmatprep.subr.mxu0 0.0
    %3570 = vmatpush1.msra.mxu0 %v3537
    %3571 = vmatprep.subr.mxu0 0.0
    %3572 = vmatpush1.msra.mxu0 %v3536
    %3573 = vmatprep.subr.mxu0 0.0
    %3574 = vmatpush1.msra.mxu0 %v3535
    %3575 = vmatprep.subr.mxu0 0.0
    %3576 = vmatpush1.msra.mxu0 %v3534
    %3577 = vmatprep.subr.mxu0 0.0
    %3578 = vmatpush1.msra.mxu0 %v3533
    %3579 = vmatprep.subr.mxu0 0.0
    %3580 = vmatpush1.msra.mxu0 %v3532
    %3581 = vmatprep.subr.mxu0 0.0
    %3582 = vmatpush1.msra.mxu0 %v3531
    %3583 = vmatprep.subr.mxu0 0.0
    %3584 = vmatpush1.msra.mxu0 %v3530
    %3585 = vmatprep.subr.mxu0 0.0
    %3586 = vmatpush2.msra.mxu0 0.0
    %3587 = vmatprep.subr.mxu0 0.0
    %3588 = vmatpush2.msra.mxu0 0.0
    %3589 = vmatprep.subr.mxu0 0.0
    %3590 = vmatpush2.msra.mxu0 0.0
    %3591 = vmatprep.subr.mxu0 0.0
    %3592 = vmatpush2.msra.mxu0 0.0
    %3593 = vmatprep.subr.mxu0 0.0
    %3594 = vmatpush2.msra.mxu0 0.0
    %3595 = vmatprep.subr.mxu0 0.0
    %3596 = vmatpush2.msra.mxu0 0.0
    %3597 = vmatprep.subr.mxu0 0.0
    %3598 = vmatpush2.msra.mxu0 0.0
    %3599 = vmatprep.subr.mxu0 0.0
    %3600 = vmatpush2.msra.mxu0 0.0
    %3601 = vmatprep.subr.mxu0 0.0
    %3602 = vmatpush2.msra.mxu0 0.0
    %3603 = vmatprep.subr.mxu0 0.0
    %3604 = vmatpush2.msra.mxu0 0.0
    %3605 = vmatprep.subr.mxu0 0.0
    %3606 = vmatpush2.msra.mxu0 0.0
    %3607 = vmatprep.subr.mxu0 0.0
    %3608 = vmatpush2.msra.mxu0 0.0
    %3609 = vmatprep.subr.mxu0 0.0
    %3610 = vmatpush2.msra.mxu0 0.0
    %3611 = vmatprep.subr.mxu0 0.0
    %3612 = vmatpush2.msra.mxu0 0.0
    %3613 = vmatprep.subr.mxu0 0.0
    %3614 = vmatpush2.msra.mxu0 0.0
    %3615 = vmatprep.subr.mxu0 0.0
    %3616 = vmatpush2.msra.mxu0 0.0
    %3617 = vmatprep.mubr.f32.mxu0 0.0
    %3618 = vmatmul.mubr.f32.gmra.mxu0 %v3514
    %v3619 = vpop.f32.mrf.mxu0
    %v3620 = vadd.f32 %v3551, %v3619
    %v3621 = vpop.f32.mrf.mxu0
    %3622 = vmatprep.mubr.f32.mxu0 0.0
    %3623 = vmatmul.mubr.f32.gmra.mxu0 %v3515
    %v3624 = vpop.f32.mrf.mxu0
    %v3625 = vadd.f32 %v3551, %v3624
    %v3626 = vpop.f32.mrf.mxu0
    %3627 = vmatprep.mubr.f32.mxu0 0.0
    %3628 = vmatmul.mubr.f32.gmra.mxu0 %v3516
    %v3629 = vpop.f32.mrf.mxu0
    %v3630 = vadd.f32 %v3551, %v3629
    %v3631 = vpop.f32.mrf.mxu0
    %3632 = vmatprep.mubr.f32.mxu0 0.0
    %3633 = vmatmul.mubr.f32.gmra.mxu0 %v3517
    %v3634 = vpop.f32.mrf.mxu0
    %v3635 = vadd.f32 %v3551, %v3634
    %v3636 = vpop.f32.mrf.mxu0
    %3637 = vmatprep.mubr.f32.mxu0 0.0
    %3638 = vmatmul.mubr.f32.gmra.mxu0 %v3518
    %v3639 = vpop.f32.mrf.mxu0
    %v3640 = vadd.f32 %v3551, %v3639
    %v3641 = vpop.f32.mrf.mxu0
    %3642 = vmatprep.mubr.f32.mxu0 0.0
    %3643 = vmatmul.mubr.f32.gmra.mxu0 %v3519
    %v3644 = vpop.f32.mrf.mxu0
    %v3645 = vadd.f32 %v3551, %v3644
    %v3646 = vpop.f32.mrf.mxu0
    %3647 = vmatprep.mubr.f32.mxu0 0.0
    %3648 = vmatmul.mubr.f32.gmra.mxu0 %v3520
    %v3649 = vpop.f32.mrf.mxu0
    %v3650 = vadd.f32 %v3551, %v3649
    %v3651 = vpop.f32.mrf.mxu0
    %3652 = vmatprep.mubr.f32.mxu0 0.0
    %3653 = vmatmul.mubr.f32.gmra.mxu0 %v3521
    %v3654 = vpop.f32.mrf.mxu0
    %v3655 = vadd.f32 %v3551, %v3654
    %v3656 = vpop.f32.mrf.mxu0
    %3657 = vmatprep.mubr.f32.mxu0 0.0
    %3658 = vmatmul.mubr.f32.gmra.mxu0 %v3522
    %v3659 = vpop.f32.mrf.mxu0
    %v3660 = vadd.f32 %v3551, %v3659
    %v3661 = vpop.f32.mrf.mxu0
    %3662 = vmatprep.mubr.f32.mxu0 0.0
    %3663 = vmatmul.mubr.f32.gmra.mxu0 %v3523
    %v3664 = vpop.f32.mrf.mxu0
    %v3665 = vadd.f32 %v3551, %v3664
    %v3666 = vpop.f32.mrf.mxu0
    %3667 = vmatprep.mubr.f32.mxu0 0.0
    %3668 = vmatmul.mubr.f32.gmra.mxu0 %v3524
    %v3669 = vpop.f32.mrf.mxu0
    %v3670 = vadd.f32 %v3551, %v3669
    %v3671 = vpop.f32.mrf.mxu0
    %3672 = vmatprep.mubr.f32.mxu0 0.0
    %3673 = vmatmul.mubr.f32.gmra.mxu0 %v3525
    %v3674 = vpop.f32.mrf.mxu0
    %v3675 = vadd.f32 %v3551, %v3674
    %v3676 = vpop.f32.mrf.mxu0
    %3677 = vmatprep.mubr.f32.mxu0 0.0
    %3678 = vmatmul.mubr.f32.gmra.mxu0 %v3526
    %v3679 = vpop.f32.mrf.mxu0
    %v3680 = vadd.f32 %v3551, %v3679
    %v3681 = vpop.f32.mrf.mxu0
    %3682 = vmatprep.mubr.f32.mxu0 0.0
    %3683 = vmatmul.mubr.f32.gmra.mxu0 %v3527
    %v3684 = vpop.f32.mrf.mxu0
    %v3685 = vadd.f32 %v3551, %v3684
    %v3686 = vpop.f32.mrf.mxu0
    %3687 = vmatprep.mubr.f32.mxu0 0.0
    %3688 = vmatmul.mubr.f32.gmra.mxu0 %v3528
    %v3689 = vpop.f32.mrf.mxu0
    %v3690 = vadd.f32 %v3551, %v3689
    %v3691 = vpop.f32.mrf.mxu0
    %3692 = vmatprep.mubr.f32.mxu0 0.0
    %3693 = vmatmul.mubr.f32.gmra.mxu0 %v3529
    %v3694 = vpop.f32.mrf.mxu0
    %v3695 = vadd.f32 %v3551, %v3694
    %v3696 = vpop.f32.mrf.mxu0
    %3697 = vdwg.mxu0
    %v3698 = vmax.f32 %v3620, 0.0
    %v3699 = vmax.f32 %v3625, 0.0
    %v3700 = vmax.f32 %v3630, 0.0
    %v3701 = vmax.f32 %v3635, 0.0
    %v3702 = vmax.f32 %v3640, 0.0
    %v3703 = vmax.f32 %v3645, 0.0
    %v3704 = vmax.f32 %v3650, 0.0
    %v3705 = vmax.f32 %v3655, 0.0
    %v3706 = vmax.f32 %v3660, 0.0
    %v3707 = vmax.f32 %v3665, 0.0
    %v3708 = vmax.f32 %v3670, 0.0
    %v3709 = vmax.f32 %v3675, 0.0
    %v3710 = vmax.f32 %v3680, 0.0
    %v3711 = vmax.f32 %v3685, 0.0
    %v3712 = vmax.f32 %v3690, 0.0
    %v3713 = vmax.f32 %v3695, 0.0
    %v3714 = vld [vmem:[#allocation16] sm:$0xff]
    %v3715 = vld [vmem:[#allocation16 + $0x8] sm:$0xff]
    %v3716 = vld [vmem:[#allocation16 + $0x10] sm:$0xff]
    %v3717 = vld [vmem:[#allocation16 + $0x18] sm:$0xff]
    %v3718 = vld [vmem:[#allocation16 + $0x20] sm:$0xff]
    %v3719 = vld [vmem:[#allocation16 + $0x28] sm:$0xff]
    %v3720 = vld [vmem:[#allocation16 + $0x30] sm:$0xff]
    %v3721 = vld [vmem:[#allocation16 + $0x38] sm:$0xff]
    %v3722 = vld [vmem:[#allocation16 + $0x40] sm:$0xff]
    %v3723 = vld [vmem:[#allocation16 + $0x48] sm:$0xff]
    %v3724 = vld [vmem:[#allocation16 + $0x50] sm:$0xff]
    %v3725 = vld [vmem:[#allocation16 + $0x58] sm:$0xff]
    %v3726 = vld [vmem:[#allocation16 + $0x60] sm:$0xff]
    %v3727 = vld [vmem:[#allocation16 + $0x68] sm:$0xff]
    %v3728 = vld [vmem:[#allocation16 + $0x70] sm:$0xff]
    %v3729 = vld [vmem:[#allocation16 + $0x78] sm:$0xff]
    %v3730 = vld [vmem:[%s14] sm:$0x1]
    %v3732 = vlaneseq
    %v3733 = vshrl.u32 %v3732, 7
    %v3734 = vsub.s32 0, %v3733
    %v3735 = vrot.slane %v3730, %v3734
    %3737 = vmatprep.subr.mxu0 0.0
    %3738 = vmatpush1.msra.mxu0 %v3729
    %3739 = vmatprep.subr.mxu0 0.0
    %3740 = vmatpush1.msra.mxu0 %v3728
    %3741 = vmatprep.subr.mxu0 0.0
    %3742 = vmatpush1.msra.mxu0 %v3727
    %3743 = vmatprep.subr.mxu0 0.0
    %3744 = vmatpush1.msra.mxu0 %v3726
    %3745 = vmatprep.subr.mxu0 0.0
    %3746 = vmatpush1.msra.mxu0 %v3725
    %3747 = vmatprep.subr.mxu0 0.0
    %3748 = vmatpush1.msra.mxu0 %v3724
    %3749 = vmatprep.subr.mxu0 0.0
    %3750 = vmatpush1.msra.mxu0 %v3723
    %3751 = vmatprep.subr.mxu0 0.0
    %3752 = vmatpush1.msra.mxu0 %v3722
    %3753 = vmatprep.subr.mxu0 0.0
    %3754 = vmatpush1.msra.mxu0 %v3721
    %3755 = vmatprep.subr.mxu0 0.0
    %3756 = vmatpush1.msra.mxu0 %v3720
    %3757 = vmatprep.subr.mxu0 0.0
    %3758 = vmatpush1.msra.mxu0 %v3719
    %3759 = vmatprep.subr.mxu0 0.0
    %3760 = vmatpush1.msra.mxu0 %v3718
    %3761 = vmatprep.subr.mxu0 0.0
    %3762 = vmatpush1.msra.mxu0 %v3717
    %3763 = vmatprep.subr.mxu0 0.0
    %3764 = vmatpush1.msra.mxu0 %v3716
    %3765 = vmatprep.subr.mxu0 0.0
    %3766 = vmatpush1.msra.mxu0 %v3715
    %3767 = vmatprep.subr.mxu0 0.0
    %3768 = vmatpush1.msra.mxu0 %v3714
    %3769 = vmatprep.subr.mxu0 0.0
    %3770 = vmatpush2.msra.mxu0 0.0
    %3771 = vmatprep.subr.mxu0 0.0
    %3772 = vmatpush2.msra.mxu0 0.0
    %3773 = vmatprep.subr.mxu0 0.0
    %3774 = vmatpush2.msra.mxu0 0.0
    %3775 = vmatprep.subr.mxu0 0.0
    %3776 = vmatpush2.msra.mxu0 0.0
    %3777 = vmatprep.subr.mxu0 0.0
    %3778 = vmatpush2.msra.mxu0 0.0
    %3779 = vmatprep.subr.mxu0 0.0
    %3780 = vmatpush2.msra.mxu0 0.0
    %3781 = vmatprep.subr.mxu0 0.0
    %3782 = vmatpush2.msra.mxu0 0.0
    %3783 = vmatprep.subr.mxu0 0.0
    %3784 = vmatpush2.msra.mxu0 0.0
    %3785 = vmatprep.subr.mxu0 0.0
    %3786 = vmatpush2.msra.mxu0 0.0
    %3787 = vmatprep.subr.mxu0 0.0
    %3788 = vmatpush2.msra.mxu0 0.0
    %3789 = vmatprep.subr.mxu0 0.0
    %3790 = vmatpush2.msra.mxu0 0.0
    %3791 = vmatprep.subr.mxu0 0.0
    %3792 = vmatpush2.msra.mxu0 0.0
    %3793 = vmatprep.subr.mxu0 0.0
    %3794 = vmatpush2.msra.mxu0 0.0
    %3795 = vmatprep.subr.mxu0 0.0
    %3796 = vmatpush2.msra.mxu0 0.0
    %3797 = vmatprep.subr.mxu0 0.0
    %3798 = vmatpush2.msra.mxu0 0.0
    %3799 = vmatprep.subr.mxu0 0.0
    %3800 = vmatpush2.msra.mxu0 0.0
    %3801 = vmatprep.mubr.f32.mxu0 0.0
    %3802 = vmatmul.mubr.f32.gmra.mxu0 %v3698
    %v3803 = vpop.f32.mrf.mxu0
    %v3804 = vadd.f32 %v3735, %v3803
    %v3805 = vpop.f32.mrf.mxu0
    %3806 = vmatprep.mubr.f32.mxu0 0.0
    %3807 = vmatmul.mubr.f32.gmra.mxu0 %v3699
    %v3808 = vpop.f32.mrf.mxu0
    %v3809 = vadd.f32 %v3735, %v3808
    %v3810 = vpop.f32.mrf.mxu0
    %3811 = vmatprep.mubr.f32.mxu0 0.0
    %3812 = vmatmul.mubr.f32.gmra.mxu0 %v3700
    %v3813 = vpop.f32.mrf.mxu0
    %v3814 = vadd.f32 %v3735, %v3813
    %v3815 = vpop.f32.mrf.mxu0
    %3816 = vmatprep.mubr.f32.mxu0 0.0
    %3817 = vmatmul.mubr.f32.gmra.mxu0 %v3701
    %v3818 = vpop.f32.mrf.mxu0
    %v3819 = vadd.f32 %v3735, %v3818
    %v3820 = vpop.f32.mrf.mxu0
    %3821 = vmatprep.mubr.f32.mxu0 0.0
    %3822 = vmatmul.mubr.f32.gmra.mxu0 %v3702
    %v3823 = vpop.f32.mrf.mxu0
    %v3824 = vadd.f32 %v3735, %v3823
    %v3825 = vpop.f32.mrf.mxu0
    %3826 = vmatprep.mubr.f32.mxu0 0.0
    %3827 = vmatmul.mubr.f32.gmra.mxu0 %v3703
    %v3828 = vpop.f32.mrf.mxu0
    %v3829 = vadd.f32 %v3735, %v3828
    %v3830 = vpop.f32.mrf.mxu0
    %3831 = vmatprep.mubr.f32.mxu0 0.0
    %3832 = vmatmul.mubr.f32.gmra.mxu0 %v3704
    %v3833 = vpop.f32.mrf.mxu0
    %v3834 = vadd.f32 %v3735, %v3833
    %v3835 = vpop.f32.mrf.mxu0
    %3836 = vmatprep.mubr.f32.mxu0 0.0
    %3837 = vmatmul.mubr.f32.gmra.mxu0 %v3705
    %v3838 = vpop.f32.mrf.mxu0
    %v3839 = vadd.f32 %v3735, %v3838
    %v3840 = vpop.f32.mrf.mxu0
    %3841 = vmatprep.mubr.f32.mxu0 0.0
    %3842 = vmatmul.mubr.f32.gmra.mxu0 %v3706
    %v3843 = vpop.f32.mrf.mxu0
    %v3844 = vadd.f32 %v3735, %v3843
    %v3845 = vpop.f32.mrf.mxu0
    %3846 = vmatprep.mubr.f32.mxu0 0.0
    %3847 = vmatmul.mubr.f32.gmra.mxu0 %v3707
    %v3848 = vpop.f32.mrf.mxu0
    %v3849 = vadd.f32 %v3735, %v3848
    %v3850 = vpop.f32.mrf.mxu0
    %3851 = vmatprep.mubr.f32.mxu0 0.0
    %3852 = vmatmul.mubr.f32.gmra.mxu0 %v3708
    %v3853 = vpop.f32.mrf.mxu0
    %v3854 = vadd.f32 %v3735, %v3853
    %v3855 = vpop.f32.mrf.mxu0
    %3856 = vmatprep.mubr.f32.mxu0 0.0
    %3857 = vmatmul.mubr.f32.gmra.mxu0 %v3709
    %v3858 = vpop.f32.mrf.mxu0
    %v3859 = vadd.f32 %v3735, %v3858
    %v3860 = vpop.f32.mrf.mxu0
    %3861 = vmatprep.mubr.f32.mxu0 0.0
    %3862 = vmatmul.mubr.f32.gmra.mxu0 %v3710
    %v3863 = vpop.f32.mrf.mxu0
    %v3864 = vadd.f32 %v3735, %v3863
    %v3865 = vpop.f32.mrf.mxu0
    %3866 = vmatprep.mubr.f32.mxu0 0.0
    %3867 = vmatmul.mubr.f32.gmra.mxu0 %v3711
    %v3868 = vpop.f32.mrf.mxu0
    %v3869 = vadd.f32 %v3735, %v3868
    %v3870 = vpop.f32.mrf.mxu0
    %3871 = vmatprep.mubr.f32.mxu0 0.0
    %3872 = vmatmul.mubr.f32.gmra.mxu0 %v3712
    %v3873 = vpop.f32.mrf.mxu0
    %v3874 = vadd.f32 %v3735, %v3873
    %v3875 = vpop.f32.mrf.mxu0
    %3876 = vmatprep.mubr.f32.mxu0 0.0
    %3877 = vmatmul.mubr.f32.gmra.mxu0 %v3713
    %v3878 = vpop.f32.mrf.mxu0
    %v3879 = vadd.f32 %v3735, %v3878
    %v3880 = vpop.f32.mrf.mxu0
    %3881 = vdwg.mxu0
    %v3882 = vld [vmem:[#allocation7] sm:$0xff]
    %v3883 = vld [vmem:[#allocation7 + $0x8] sm:$0xff]
    %v3884 = vld [vmem:[#allocation7 + $0x10] sm:$0xff]
    %v3885 = vld [vmem:[#allocation7 + $0x18] sm:$0xff]
    %v3886 = vld [vmem:[#allocation7 + $0x20] sm:$0xff]
    %v3887 = vld [vmem:[#allocation7 + $0x28] sm:$0xff]
    %v3888 = vld [vmem:[#allocation7 + $0x30] sm:$0xff]
    %v3889 = vld [vmem:[#allocation7 + $0x38] sm:$0xff]
    %v3890 = vld [vmem:[#allocation7 + $0x40] sm:$0xff]
    %v3891 = vld [vmem:[#allocation7 + $0x48] sm:$0xff]
    %v3892 = vld [vmem:[#allocation7 + $0x50] sm:$0xff]
    %v3893 = vld [vmem:[#allocation7 + $0x58] sm:$0xff]
    %v3894 = vld [vmem:[#allocation7 + $0x60] sm:$0xff]
    %v3895 = vld [vmem:[#allocation7 + $0x68] sm:$0xff]
    %v3896 = vld [vmem:[#allocation7 + $0x70] sm:$0xff]
    %v3897 = vld [vmem:[#allocation7 + $0x78] sm:$0xff]
    %3898 = vmatprep.subr.mxu0 0.0
    %3899 = vmatpush1.msra.mxu0 %v3879
    %3900 = vmatprep.subr.mxu0 0.0
    %3901 = vmatpush1.msra.mxu0 %v3874
    %3902 = vmatprep.subr.mxu0 0.0
    %3903 = vmatpush1.msra.mxu0 %v3869
    %3904 = vmatprep.subr.mxu0 0.0
    %3905 = vmatpush1.msra.mxu0 %v3864
    %3906 = vmatprep.subr.mxu0 0.0
    %3907 = vmatpush1.msra.mxu0 %v3859
    %3908 = vmatprep.subr.mxu0 0.0
    %3909 = vmatpush1.msra.mxu0 %v3854
    %3910 = vmatprep.subr.mxu0 0.0
    %3911 = vmatpush1.msra.mxu0 %v3849
    %3912 = vmatprep.subr.mxu0 0.0
    %3913 = vmatpush1.msra.mxu0 %v3844
    %3914 = vmatprep.subr.mxu0 0.0
    %3915 = vmatpush1.msra.mxu0 %v3839
    %3916 = vmatprep.subr.mxu0 0.0
    %3917 = vmatpush1.msra.mxu0 %v3834
    %3918 = vmatprep.subr.mxu0 0.0
    %3919 = vmatpush1.msra.mxu0 %v3829
    %3920 = vmatprep.subr.mxu0 0.0
    %3921 = vmatpush1.msra.mxu0 %v3824
    %3922 = vmatprep.subr.mxu0 0.0
    %3923 = vmatpush1.msra.mxu0 %v3819
    %3924 = vmatprep.subr.mxu0 0.0
    %3925 = vmatpush1.msra.mxu0 %v3814
    %3926 = vmatprep.subr.mxu0 0.0
    %3927 = vmatpush1.msra.mxu0 %v3809
    %3928 = vmatprep.subr.mxu0 0.0
    %3929 = vmatpush1.msra.mxu0 %v3804
    %3930 = vmatprep.subr.mxu0 0.0
    %3931 = vmatpush2.msra.mxu0 0.0
    %3932 = vmatprep.subr.mxu0 0.0
    %3933 = vmatpush2.msra.mxu0 0.0
    %3934 = vmatprep.subr.mxu0 0.0
    %3935 = vmatpush2.msra.mxu0 0.0
    %3936 = vmatprep.subr.mxu0 0.0
    %3937 = vmatpush2.msra.mxu0 0.0
    %3938 = vmatprep.subr.mxu0 0.0
    %3939 = vmatpush2.msra.mxu0 0.0
    %3940 = vmatprep.subr.mxu0 0.0
    %3941 = vmatpush2.msra.mxu0 0.0
    %3942 = vmatprep.subr.mxu0 0.0
    %3943 = vmatpush2.msra.mxu0 0.0
    %3944 = vmatprep.subr.mxu0 0.0
    %3945 = vmatpush2.msra.mxu0 0.0
    %3946 = vmatprep.subr.mxu0 0.0
    %3947 = vmatpush2.msra.mxu0 0.0
    %3948 = vmatprep.subr.mxu0 0.0
    %3949 = vmatpush2.msra.mxu0 0.0
    %3950 = vmatprep.subr.mxu0 0.0
    %3951 = vmatpush2.msra.mxu0 0.0
    %3952 = vmatprep.subr.mxu0 0.0
    %3953 = vmatpush2.msra.mxu0 0.0
    %3954 = vmatprep.subr.mxu0 0.0
    %3955 = vmatpush2.msra.mxu0 0.0
    %3956 = vmatprep.subr.mxu0 0.0
    %3957 = vmatpush2.msra.mxu0 0.0
    %3958 = vmatprep.subr.mxu0 0.0
    %3959 = vmatpush2.msra.mxu0 0.0
    %3960 = vmatprep.subr.mxu0 0.0
    %3961 = vmatpush2.msra.mxu0 0.0
    %3962 = vmatprep.mubr.f32.mxu0 0.0
    %3963 = vmatmul.mubr.f32.gmra.mxu0 %v3882
    %v3964 = vpop.f32.mrf.mxu0
    %v3965 = vadd.f32 0.0, %v3964
    %v3966 = vpop.f32.mrf.mxu0
    %3967 = vmatprep.mubr.f32.mxu0 0.0
    %3968 = vmatmul.mubr.f32.gmra.mxu0 %v3883
    %v3969 = vpop.f32.mrf.mxu0
    %v3970 = vadd.f32 0.0, %v3969
    %v3971 = vpop.f32.mrf.mxu0
    %3972 = vmatprep.mubr.f32.mxu0 0.0
    %3973 = vmatmul.mubr.f32.gmra.mxu0 %v3884
    %v3974 = vpop.f32.mrf.mxu0
    %v3975 = vadd.f32 0.0, %v3974
    %v3976 = vpop.f32.mrf.mxu0
    %3977 = vmatprep.mubr.f32.mxu0 0.0
    %3978 = vmatmul.mubr.f32.gmra.mxu0 %v3885
    %v3979 = vpop.f32.mrf.mxu0
    %v3980 = vadd.f32 0.0, %v3979
    %v3981 = vpop.f32.mrf.mxu0
    %3982 = vmatprep.mubr.f32.mxu0 0.0
    %3983 = vmatmul.mubr.f32.gmra.mxu0 %v3886
    %v3984 = vpop.f32.mrf.mxu0
    %v3985 = vadd.f32 0.0, %v3984
    %v3986 = vpop.f32.mrf.mxu0
    %3987 = vmatprep.mubr.f32.mxu0 0.0
    %3988 = vmatmul.mubr.f32.gmra.mxu0 %v3887
    %v3989 = vpop.f32.mrf.mxu0
    %v3990 = vadd.f32 0.0, %v3989
    %v3991 = vpop.f32.mrf.mxu0
    %3992 = vmatprep.mubr.f32.mxu0 0.0
    %3993 = vmatmul.mubr.f32.gmra.mxu0 %v3888
    %v3994 = vpop.f32.mrf.mxu0
    %v3995 = vadd.f32 0.0, %v3994
    %v3996 = vpop.f32.mrf.mxu0
    %3997 = vmatprep.mubr.f32.mxu0 0.0
    %3998 = vmatmul.mubr.f32.gmra.mxu0 %v3889
    %v3999 = vpop.f32.mrf.mxu0
    %v4000 = vadd.f32 0.0, %v3999
    %v4001 = vpop.f32.mrf.mxu0
    %4002 = vmatprep.mubr.f32.mxu0 0.0
    %4003 = vmatmul.mubr.f32.gmra.mxu0 %v3890
    %v4004 = vpop.f32.mrf.mxu0
    %v4005 = vadd.f32 0.0, %v4004
    %v4006 = vpop.f32.mrf.mxu0
    %4007 = vmatprep.mubr.f32.mxu0 0.0
    %4008 = vmatmul.mubr.f32.gmra.mxu0 %v3891
    %v4009 = vpop.f32.mrf.mxu0
    %v4010 = vadd.f32 0.0, %v4009
    %v4011 = vpop.f32.mrf.mxu0
    %4012 = vmatprep.mubr.f32.mxu0 0.0
    %4013 = vmatmul.mubr.f32.gmra.mxu0 %v3892
    %v4014 = vpop.f32.mrf.mxu0
    %v4015 = vadd.f32 0.0, %v4014
    %v4016 = vpop.f32.mrf.mxu0
    %4017 = vmatprep.mubr.f32.mxu0 0.0
    %4018 = vmatmul.mubr.f32.gmra.mxu0 %v3893
    %v4019 = vpop.f32.mrf.mxu0
    %v4020 = vadd.f32 0.0, %v4019
    %v4021 = vpop.f32.mrf.mxu0
    %4022 = vmatprep.mubr.f32.mxu0 0.0
    %4023 = vmatmul.mubr.f32.gmra.mxu0 %v3894
    %v4024 = vpop.f32.mrf.mxu0
    %v4025 = vadd.f32 0.0, %v4024
    %v4026 = vpop.f32.mrf.mxu0
    %4027 = vmatprep.mubr.f32.mxu0 0.0
    %4028 = vmatmul.mubr.f32.gmra.mxu0 %v3895
    %v4029 = vpop.f32.mrf.mxu0
    %v4030 = vadd.f32 0.0, %v4029
    %v4031 = vpop.f32.mrf.mxu0
    %4032 = vmatprep.mubr.f32.mxu0 0.0
    %4033 = vmatmul.mubr.f32.gmra.mxu0 %v3896
    %v4034 = vpop.f32.mrf.mxu0
    %v4035 = vadd.f32 0.0, %v4034
    %v4036 = vpop.f32.mrf.mxu0
    %4037 = vmatprep.mubr.f32.mxu0 0.0
    %4038 = vmatmul.mubr.f32.gmra.mxu0 %v3897
    %v4039 = vpop.f32.mrf.mxu0
    %v4040 = vadd.f32 0.0, %v4039
    %v4041 = vpop.f32.mrf.mxu0
    %4042 = vdwg.mxu0
    %v4043 = vld [vmem:[#allocation18] sm:$0xff]
    %v4044 = vld [vmem:[#allocation18 + $0x8] sm:$0xff]
    %v4045 = vld [vmem:[#allocation18 + $0x10] sm:$0xff]
    %v4046 = vld [vmem:[#allocation18 + $0x18] sm:$0xff]
    %v4047 = vld [vmem:[#allocation18 + $0x20] sm:$0xff]
    %v4048 = vld [vmem:[#allocation18 + $0x28] sm:$0xff]
    %v4049 = vld [vmem:[#allocation18 + $0x30] sm:$0xff]
    %v4050 = vld [vmem:[#allocation18 + $0x38] sm:$0xff]
    %v4051 = vld [vmem:[#allocation18 + $0x40] sm:$0xff]
    %v4052 = vld [vmem:[#allocation18 + $0x48] sm:$0xff]
    %v4053 = vld [vmem:[#allocation18 + $0x50] sm:$0xff]
    %v4054 = vld [vmem:[#allocation18 + $0x58] sm:$0xff]
    %v4055 = vld [vmem:[#allocation18 + $0x60] sm:$0xff]
    %v4056 = vld [vmem:[#allocation18 + $0x68] sm:$0xff]
    %v4057 = vld [vmem:[#allocation18 + $0x70] sm:$0xff]
    %v4058 = vld [vmem:[#allocation18 + $0x78] sm:$0xff]
    %v4059 = vld [vmem:[#allocation18 + $0x80] sm:$0xff]
    %v4060 = vld [vmem:[#allocation18 + $0x88] sm:$0xff]
    %v4061 = vld [vmem:[#allocation18 + $0x90] sm:$0xff]
    %v4062 = vld [vmem:[#allocation18 + $0x98] sm:$0xff]
    %v4063 = vld [vmem:[#allocation18 + $0xa0] sm:$0xff]
    %v4064 = vld [vmem:[#allocation18 + $0xa8] sm:$0xff]
    %v4065 = vld [vmem:[#allocation18 + $0xb0] sm:$0xff]
    %v4066 = vld [vmem:[#allocation18 + $0xb8] sm:$0xff]
    %v4067 = vld [vmem:[#allocation18 + $0xc0] sm:$0xff]
    %v4068 = vld [vmem:[#allocation18 + $0xc8] sm:$0xff]
    %v4069 = vld [vmem:[#allocation18 + $0xd0] sm:$0xff]
    %v4070 = vld [vmem:[#allocation18 + $0xd8] sm:$0xff]
    %v4071 = vld [vmem:[#allocation18 + $0xe0] sm:$0xff]
    %v4072 = vld [vmem:[#allocation18 + $0xe8] sm:$0xff]
    %v4073 = vld [vmem:[#allocation18 + $0xf0] sm:$0xff]
    %v4074 = vld [vmem:[#allocation18 + $0xf8] sm:$0xff]
    %v4075 = vld [vmem:[#allocation18 + $0x100] sm:$0xff]
    %v4076 = vld [vmem:[#allocation18 + $0x108] sm:$0xff]
    %v4077 = vld [vmem:[#allocation18 + $0x110] sm:$0xff]
    %v4078 = vld [vmem:[#allocation18 + $0x118] sm:$0xff]
    %v4079 = vld [vmem:[#allocation18 + $0x120] sm:$0xff]
    %v4080 = vld [vmem:[#allocation18 + $0x128] sm:$0xff]
    %v4081 = vld [vmem:[#allocation18 + $0x130] sm:$0xff]
    %v4082 = vld [vmem:[#allocation18 + $0x138] sm:$0xff]
    %v4083 = vld [vmem:[#allocation18 + $0x140] sm:$0xff]
    %v4084 = vld [vmem:[#allocation18 + $0x148] sm:$0xff]
    %v4085 = vld [vmem:[#allocation18 + $0x150] sm:$0xff]
    %v4086 = vld [vmem:[#allocation18 + $0x158] sm:$0xff]
    %v4087 = vld [vmem:[#allocation18 + $0x160] sm:$0xff]
    %v4088 = vld [vmem:[#allocation18 + $0x168] sm:$0xff]
    %v4089 = vld [vmem:[#allocation18 + $0x170] sm:$0xff]
    %v4090 = vld [vmem:[#allocation18 + $0x178] sm:$0xff]
    %v4091 = vld [vmem:[%s17] sm:$0x7]
    %v4093 = vlaneseq
    %v4094 = vshrl.u32 %v4093, 7
    %v4095 = vsub.s32 0, %v4094
    %v4096 = vrot.slane %v4091, %v4095
    %v4097 = vlaneseq
    %v4098 = vshrl.u32 %v4097, 7
    %v4099 = vsub.s32 1, %v4098
    %v4100 = vrot.slane %v4091, %v4099
    %v4101 = vlaneseq
    %v4102 = vshrl.u32 %v4101, 7
    %v4103 = vsub.s32 2, %v4102
    %v4104 = vrot.slane %v4091, %v4103
    %4108 = vmatprep.subr.mxu0 %v4089
    %4109 = vmatpush1.msra.mxu0 %v4088
    %4110 = vmatprep.subr.mxu0 %v4086
    %4111 = vmatpush1.msra.mxu0 %v4085
    %4112 = vmatprep.subr.mxu0 %v4083
    %4113 = vmatpush1.msra.mxu0 %v4082
    %4114 = vmatprep.subr.mxu0 %v4080
    %4115 = vmatpush1.msra.mxu0 %v4079
    %4116 = vmatprep.subr.mxu0 %v4077
    %4117 = vmatpush1.msra.mxu0 %v4076
    %4118 = vmatprep.subr.mxu0 %v4074
    %4119 = vmatpush1.msra.mxu0 %v4073
    %4120 = vmatprep.subr.mxu0 %v4071
    %4121 = vmatpush1.msra.mxu0 %v4070
    %4122 = vmatprep.subr.mxu0 %v4068
    %4123 = vmatpush1.msra.mxu0 %v4067
    %4124 = vmatprep.subr.mxu0 %v4065
    %4125 = vmatpush1.msra.mxu0 %v4064
    %4126 = vmatprep.subr.mxu0 %v4062
    %4127 = vmatpush1.msra.mxu0 %v4061
    %4128 = vmatprep.subr.mxu0 %v4059
    %4129 = vmatpush1.msra.mxu0 %v4058
    %4130 = vmatprep.subr.mxu0 %v4056
    %4131 = vmatpush1.msra.mxu0 %v4055
    %4132 = vmatprep.subr.mxu0 %v4053
    %4133 = vmatpush1.msra.mxu0 %v4052
    %4134 = vmatprep.subr.mxu0 %v4050
    %4135 = vmatpush1.msra.mxu0 %v4049
    %4136 = vmatprep.subr.mxu0 %v4047
    %4137 = vmatpush1.msra.mxu0 %v4046
    %4138 = vmatprep.subr.mxu0 %v4044
    %4139 = vmatpush1.msra.mxu0 %v4043
    %4140 = vmatprep.subr.mxu0 0.0
    %4141 = vmatpush2.msra.mxu0 0.0
    %4142 = vmatprep.subr.mxu0 0.0
    %4143 = vmatpush2.msra.mxu0 0.0
    %4144 = vmatprep.subr.mxu0 0.0
    %4145 = vmatpush2.msra.mxu0 0.0
    %4146 = vmatprep.subr.mxu0 0.0
    %4147 = vmatpush2.msra.mxu0 0.0
    %4148 = vmatprep.subr.mxu0 0.0
    %4149 = vmatpush2.msra.mxu0 0.0
    %4150 = vmatprep.subr.mxu0 0.0
    %4151 = vmatpush2.msra.mxu0 0.0
    %4152 = vmatprep.subr.mxu0 0.0
    %4153 = vmatpush2.msra.mxu0 0.0
    %4154 = vmatprep.subr.mxu0 0.0
    %4155 = vmatpush2.msra.mxu0 0.0
    %4156 = vmatprep.subr.mxu0 0.0
    %4157 = vmatpush2.msra.mxu0 0.0
    %4158 = vmatprep.subr.mxu0 0.0
    %4159 = vmatpush2.msra.mxu0 0.0
    %4160 = vmatprep.subr.mxu0 0.0
    %4161 = vmatpush2.msra.mxu0 0.0
    %4162 = vmatprep.subr.mxu0 0.0
    %4163 = vmatpush2.msra.mxu0 0.0
    %4164 = vmatprep.subr.mxu0 0.0
    %4165 = vmatpush2.msra.mxu0 0.0
    %4166 = vmatprep.subr.mxu0 0.0
    %4167 = vmatpush2.msra.mxu0 0.0
    %4168 = vmatprep.subr.mxu0 0.0
    %4169 = vmatpush2.msra.mxu0 0.0
    %4170 = vmatprep.subr.mxu0 0.0
    %4171 = vmatpush2.msra.mxu0 0.0
    %4172 = vmatprep.mubr.f32.mxu0 0.0
    %4173 = vmatmul.mubr.f32.gmra.mxu0 %v3965
    %v4174 = vpop.f32.mrf.mxu0
    %v4175 = vadd.f32 %v4096, %v4174
    %v4176 = vpop.f32.mrf.mxu0
    %v4177 = vadd.f32 %v4100, %v4176
    %4178 = vmatprep.mubr.f32.mxu0 0.0
    %4179 = vmatmul.mubr.f32.gmra.mxu0 %v3970
    %v4180 = vpop.f32.mrf.mxu0
    %v4181 = vadd.f32 %v4096, %v4180
    %v4182 = vpop.f32.mrf.mxu0
    %v4183 = vadd.f32 %v4100, %v4182
    %4184 = vmatprep.mubr.f32.mxu0 0.0
    %4185 = vmatmul.mubr.f32.gmra.mxu0 %v3975
    %v4186 = vpop.f32.mrf.mxu0
    %v4187 = vadd.f32 %v4096, %v4186
    %v4188 = vpop.f32.mrf.mxu0
    %v4189 = vadd.f32 %v4100, %v4188
    %4190 = vmatprep.mubr.f32.mxu0 0.0
    %4191 = vmatmul.mubr.f32.gmra.mxu0 %v3980
    %v4192 = vpop.f32.mrf.mxu0
    %v4193 = vadd.f32 %v4096, %v4192
    %v4194 = vpop.f32.mrf.mxu0
    %v4195 = vadd.f32 %v4100, %v4194
    %4196 = vmatprep.mubr.f32.mxu0 0.0
    %4197 = vmatmul.mubr.f32.gmra.mxu0 %v3985
    %v4198 = vpop.f32.mrf.mxu0
    %v4199 = vadd.f32 %v4096, %v4198
    %v4200 = vpop.f32.mrf.mxu0
    %v4201 = vadd.f32 %v4100, %v4200
    %4202 = vmatprep.mubr.f32.mxu0 0.0
    %4203 = vmatmul.mubr.f32.gmra.mxu0 %v3990
    %v4204 = vpop.f32.mrf.mxu0
    %v4205 = vadd.f32 %v4096, %v4204
    %v4206 = vpop.f32.mrf.mxu0
    %v4207 = vadd.f32 %v4100, %v4206
    %4208 = vmatprep.mubr.f32.mxu0 0.0
    %4209 = vmatmul.mubr.f32.gmra.mxu0 %v3995
    %v4210 = vpop.f32.mrf.mxu0
    %v4211 = vadd.f32 %v4096, %v4210
    %v4212 = vpop.f32.mrf.mxu0
    %v4213 = vadd.f32 %v4100, %v4212
    %4214 = vmatprep.mubr.f32.mxu0 0.0
    %4215 = vmatmul.mubr.f32.gmra.mxu0 %v4000
    %v4216 = vpop.f32.mrf.mxu0
    %v4217 = vadd.f32 %v4096, %v4216
    %v4218 = vpop.f32.mrf.mxu0
    %v4219 = vadd.f32 %v4100, %v4218
    %4220 = vmatprep.mubr.f32.mxu0 0.0
    %4221 = vmatmul.mubr.f32.gmra.mxu0 %v4005
    %v4222 = vpop.f32.mrf.mxu0
    %v4223 = vadd.f32 %v4096, %v4222
    %v4224 = vpop.f32.mrf.mxu0
    %v4225 = vadd.f32 %v4100, %v4224
    %4226 = vmatprep.mubr.f32.mxu0 0.0
    %4227 = vmatmul.mubr.f32.gmra.mxu0 %v4010
    %v4228 = vpop.f32.mrf.mxu0
    %v4229 = vadd.f32 %v4096, %v4228
    %v4230 = vpop.f32.mrf.mxu0
    %v4231 = vadd.f32 %v4100, %v4230
    %4232 = vmatprep.mubr.f32.mxu0 0.0
    %4233 = vmatmul.mubr.f32.gmra.mxu0 %v4015
    %v4234 = vpop.f32.mrf.mxu0
    %v4235 = vadd.f32 %v4096, %v4234
    %v4236 = vpop.f32.mrf.mxu0
    %v4237 = vadd.f32 %v4100, %v4236
    %4238 = vmatprep.mubr.f32.mxu0 0.0
    %4239 = vmatmul.mubr.f32.gmra.mxu0 %v4020
    %v4240 = vpop.f32.mrf.mxu0
    %v4241 = vadd.f32 %v4096, %v4240
    %v4242 = vpop.f32.mrf.mxu0
    %v4243 = vadd.f32 %v4100, %v4242
    %4244 = vmatprep.mubr.f32.mxu0 0.0
    %4245 = vmatmul.mubr.f32.gmra.mxu0 %v4025
    %v4246 = vpop.f32.mrf.mxu0
    %v4247 = vadd.f32 %v4096, %v4246
    %v4248 = vpop.f32.mrf.mxu0
    %v4249 = vadd.f32 %v4100, %v4248
    %4250 = vmatprep.mubr.f32.mxu0 0.0
    %4251 = vmatmul.mubr.f32.gmra.mxu0 %v4030
    %v4252 = vpop.f32.mrf.mxu0
    %v4253 = vadd.f32 %v4096, %v4252
    %v4254 = vpop.f32.mrf.mxu0
    %v4255 = vadd.f32 %v4100, %v4254
    %4256 = vmatprep.mubr.f32.mxu0 0.0
    %4257 = vmatmul.mubr.f32.gmra.mxu0 %v4035
    %v4258 = vpop.f32.mrf.mxu0
    %v4259 = vadd.f32 %v4096, %v4258
    %v4260 = vpop.f32.mrf.mxu0
    %v4261 = vadd.f32 %v4100, %v4260
    %4262 = vmatprep.mubr.f32.mxu0 0.0
    %4263 = vmatmul.mubr.f32.gmra.mxu0 %v4040
    %v4264 = vpop.f32.mrf.mxu0
    %v4265 = vadd.f32 %v4096, %v4264
    %v4266 = vpop.f32.mrf.mxu0
    %v4267 = vadd.f32 %v4100, %v4266
    %4268 = vdwg.mxu0
    %4269 = vmatprep.subr.mxu0 0.0
    %4270 = vmatpush1.msra.mxu0 %v4090
    %4271 = vmatprep.subr.mxu0 0.0
    %4272 = vmatpush1.msra.mxu0 %v4087
    %4273 = vmatprep.subr.mxu0 0.0
    %4274 = vmatpush1.msra.mxu0 %v4084
    %4275 = vmatprep.subr.mxu0 0.0
    %4276 = vmatpush1.msra.mxu0 %v4081
    %4277 = vmatprep.subr.mxu0 0.0
    %4278 = vmatpush1.msra.mxu0 %v4078
    %4279 = vmatprep.subr.mxu0 0.0
    %4280 = vmatpush1.msra.mxu0 %v4075
    %4281 = vmatprep.subr.mxu0 0.0
    %4282 = vmatpush1.msra.mxu0 %v4072
    %4283 = vmatprep.subr.mxu0 0.0
    %4284 = vmatpush1.msra.mxu0 %v4069
    %4285 = vmatprep.subr.mxu0 0.0
    %4286 = vmatpush1.msra.mxu0 %v4066
    %4287 = vmatprep.subr.mxu0 0.0
    %4288 = vmatpush1.msra.mxu0 %v4063
    %4289 = vmatprep.subr.mxu0 0.0
    %4290 = vmatpush1.msra.mxu0 %v4060
    %4291 = vmatprep.subr.mxu0 0.0
    %4292 = vmatpush1.msra.mxu0 %v4057
    %4293 = vmatprep.subr.mxu0 0.0
    %4294 = vmatpush1.msra.mxu0 %v4054
    %4295 = vmatprep.subr.mxu0 0.0
    %4296 = vmatpush1.msra.mxu0 %v4051
    %4297 = vmatprep.subr.mxu0 0.0
    %4298 = vmatpush1.msra.mxu0 %v4048
    %4299 = vmatprep.subr.mxu0 0.0
    %4300 = vmatpush1.msra.mxu0 %v4045
    %4301 = vmatprep.subr.mxu0 0.0
    %4302 = vmatpush2.msra.mxu0 0.0
    %4303 = vmatprep.subr.mxu0 0.0
    %4304 = vmatpush2.msra.mxu0 0.0
    %4305 = vmatprep.subr.mxu0 0.0
    %4306 = vmatpush2.msra.mxu0 0.0
    %4307 = vmatprep.subr.mxu0 0.0
    %4308 = vmatpush2.msra.mxu0 0.0
    %4309 = vmatprep.subr.mxu0 0.0
    %4310 = vmatpush2.msra.mxu0 0.0
    %4311 = vmatprep.subr.mxu0 0.0
    %4312 = vmatpush2.msra.mxu0 0.0
    %4313 = vmatprep.subr.mxu0 0.0
    %4314 = vmatpush2.msra.mxu0 0.0
    %4315 = vmatprep.subr.mxu0 0.0
    %4316 = vmatpush2.msra.mxu0 0.0
    %4317 = vmatprep.subr.mxu0 0.0
    %4318 = vmatpush2.msra.mxu0 0.0
    %4319 = vmatprep.subr.mxu0 0.0
    %4320 = vmatpush2.msra.mxu0 0.0
    %4321 = vmatprep.subr.mxu0 0.0
    %4322 = vmatpush2.msra.mxu0 0.0
    %4323 = vmatprep.subr.mxu0 0.0
    %4324 = vmatpush2.msra.mxu0 0.0
    %4325 = vmatprep.subr.mxu0 0.0
    %4326 = vmatpush2.msra.mxu0 0.0
    %4327 = vmatprep.subr.mxu0 0.0
    %4328 = vmatpush2.msra.mxu0 0.0
    %4329 = vmatprep.subr.mxu0 0.0
    %4330 = vmatpush2.msra.mxu0 0.0
    %4331 = vmatprep.subr.mxu0 0.0
    %4332 = vmatpush2.msra.mxu0 0.0
    %4333 = vmatprep.mubr.f32.mxu0 0.0
    %4334 = vmatmul.mubr.f32.gmra.mxu0 %v3965
    %v4335 = vpop.f32.mrf.mxu0
    %v4336 = vadd.f32 %v4104, %v4335
    %v4337 = vpop.f32.mrf.mxu0
    %4338 = vmatprep.mubr.f32.mxu0 0.0
    %4339 = vmatmul.mubr.f32.gmra.mxu0 %v3970
    %v4340 = vpop.f32.mrf.mxu0
    %v4341 = vadd.f32 %v4104, %v4340
    %v4342 = vpop.f32.mrf.mxu0
    %4343 = vmatprep.mubr.f32.mxu0 0.0
    %4344 = vmatmul.mubr.f32.gmra.mxu0 %v3975
    %v4345 = vpop.f32.mrf.mxu0
    %v4346 = vadd.f32 %v4104, %v4345
    %v4347 = vpop.f32.mrf.mxu0
    %4348 = vmatprep.mubr.f32.mxu0 0.0
    %4349 = vmatmul.mubr.f32.gmra.mxu0 %v3980
    %v4350 = vpop.f32.mrf.mxu0
    %v4351 = vadd.f32 %v4104, %v4350
    %v4352 = vpop.f32.mrf.mxu0
    %4353 = vmatprep.mubr.f32.mxu0 0.0
    %4354 = vmatmul.mubr.f32.gmra.mxu0 %v3985
    %v4355 = vpop.f32.mrf.mxu0
    %v4356 = vadd.f32 %v4104, %v4355
    %v4357 = vpop.f32.mrf.mxu0
    %4358 = vmatprep.mubr.f32.mxu0 0.0
    %4359 = vmatmul.mubr.f32.gmra.mxu0 %v3990
    %v4360 = vpop.f32.mrf.mxu0
    %v4361 = vadd.f32 %v4104, %v4360
    %v4362 = vpop.f32.mrf.mxu0
    %4363 = vmatprep.mubr.f32.mxu0 0.0
    %4364 = vmatmul.mubr.f32.gmra.mxu0 %v3995
    %v4365 = vpop.f32.mrf.mxu0
    %v4366 = vadd.f32 %v4104, %v4365
    %v4367 = vpop.f32.mrf.mxu0
    %4368 = vmatprep.mubr.f32.mxu0 0.0
    %4369 = vmatmul.mubr.f32.gmra.mxu0 %v4000
    %v4370 = vpop.f32.mrf.mxu0
    %v4371 = vadd.f32 %v4104, %v4370
    %v4372 = vpop.f32.mrf.mxu0
    %4373 = vmatprep.mubr.f32.mxu0 0.0
    %4374 = vmatmul.mubr.f32.gmra.mxu0 %v4005
    %v4375 = vpop.f32.mrf.mxu0
    %v4376 = vadd.f32 %v4104, %v4375
    %v4377 = vpop.f32.mrf.mxu0
    %4378 = vmatprep.mubr.f32.mxu0 0.0
    %4379 = vmatmul.mubr.f32.gmra.mxu0 %v4010
    %v4380 = vpop.f32.mrf.mxu0
    %v4381 = vadd.f32 %v4104, %v4380
    %v4382 = vpop.f32.mrf.mxu0
    %4383 = vmatprep.mubr.f32.mxu0 0.0
    %4384 = vmatmul.mubr.f32.gmra.mxu0 %v4015
    %v4385 = vpop.f32.mrf.mxu0
    %v4386 = vadd.f32 %v4104, %v4385
    %v4387 = vpop.f32.mrf.mxu0
    %4388 = vmatprep.mubr.f32.mxu0 0.0
    %4389 = vmatmul.mubr.f32.gmra.mxu0 %v4020
    %v4390 = vpop.f32.mrf.mxu0
    %v4391 = vadd.f32 %v4104, %v4390
    %v4392 = vpop.f32.mrf.mxu0
    %4393 = vmatprep.mubr.f32.mxu0 0.0
    %4394 = vmatmul.mubr.f32.gmra.mxu0 %v4025
    %v4395 = vpop.f32.mrf.mxu0
    %v4396 = vadd.f32 %v4104, %v4395
    %v4397 = vpop.f32.mrf.mxu0
    %4398 = vmatprep.mubr.f32.mxu0 0.0
    %4399 = vmatmul.mubr.f32.gmra.mxu0 %v4030
    %v4400 = vpop.f32.mrf.mxu0
    %v4401 = vadd.f32 %v4104, %v4400
    %v4402 = vpop.f32.mrf.mxu0
    %4403 = vmatprep.mubr.f32.mxu0 0.0
    %4404 = vmatmul.mubr.f32.gmra.mxu0 %v4035
    %v4405 = vpop.f32.mrf.mxu0
    %v4406 = vadd.f32 %v4104, %v4405
    %v4407 = vpop.f32.mrf.mxu0
    %4408 = vmatprep.mubr.f32.mxu0 0.0
    %4409 = vmatmul.mubr.f32.gmra.mxu0 %v4040
    %v4410 = vpop.f32.mrf.mxu0
    %v4411 = vadd.f32 %v4104, %v4410
    %v4412 = vpop.f32.mrf.mxu0
    %4413 = vdwg.mxu0
    %v4414 = vld [vmem:[#allocation19] sm:$0xff]
    %v4415 = vld [vmem:[#allocation19 + $0x8] sm:$0xff]
    %v4416 = vld [vmem:[#allocation19 + $0x10] sm:$0xff]
    %v4417 = vld [vmem:[#allocation19 + $0x18] sm:$0xff]
    %v4418 = vld [vmem:[#allocation19 + $0x20] sm:$0xff]
    %v4419 = vld [vmem:[#allocation19 + $0x28] sm:$0xff]
    %v4420 = vld [vmem:[#allocation19 + $0x30] sm:$0xff]
    %v4421 = vld [vmem:[#allocation19 + $0x38] sm:$0xff]
    %v4422 = vld [vmem:[#allocation19 + $0x40] sm:$0xff]
    %v4423 = vld [vmem:[#allocation19 + $0x48] sm:$0xff]
    %v4424 = vld [vmem:[#allocation19 + $0x50] sm:$0xff]
    %v4425 = vld [vmem:[#allocation19 + $0x58] sm:$0xff]
    %v4426 = vld [vmem:[#allocation19 + $0x60] sm:$0xff]
    %v4427 = vld [vmem:[#allocation19 + $0x68] sm:$0xff]
    %v4428 = vld [vmem:[#allocation19 + $0x70] sm:$0xff]
    %v4429 = vld [vmem:[#allocation19 + $0x78] sm:$0xff]
    %v4430 = vld [vmem:[#allocation19 + $0x80] sm:$0xff]
    %v4431 = vld [vmem:[#allocation19 + $0x88] sm:$0xff]
    %v4432 = vld [vmem:[#allocation19 + $0x90] sm:$0xff]
    %v4433 = vld [vmem:[#allocation19 + $0x98] sm:$0xff]
    %v4434 = vld [vmem:[#allocation19 + $0xa0] sm:$0xff]
    %v4435 = vld [vmem:[#allocation19 + $0xa8] sm:$0xff]
    %v4436 = vld [vmem:[#allocation19 + $0xb0] sm:$0xff]
    %v4437 = vld [vmem:[#allocation19 + $0xb8] sm:$0xff]
    %v4438 = vld [vmem:[#allocation19 + $0xc0] sm:$0xff]
    %v4439 = vld [vmem:[#allocation19 + $0xc8] sm:$0xff]
    %v4440 = vld [vmem:[#allocation19 + $0xd0] sm:$0xff]
    %v4441 = vld [vmem:[#allocation19 + $0xd8] sm:$0xff]
    %v4442 = vld [vmem:[#allocation19 + $0xe0] sm:$0xff]
    %v4443 = vld [vmem:[#allocation19 + $0xe8] sm:$0xff]
    %v4444 = vld [vmem:[#allocation19 + $0xf0] sm:$0xff]
    %v4445 = vld [vmem:[#allocation19 + $0xf8] sm:$0xff]
    %v4446 = vld [vmem:[#allocation19 + $0x100] sm:$0xff]
    %v4447 = vld [vmem:[#allocation19 + $0x108] sm:$0xff]
    %v4448 = vld [vmem:[#allocation19 + $0x110] sm:$0xff]
    %v4449 = vld [vmem:[#allocation19 + $0x118] sm:$0xff]
    %v4450 = vld [vmem:[#allocation19 + $0x120] sm:$0xff]
    %v4451 = vld [vmem:[#allocation19 + $0x128] sm:$0xff]
    %v4452 = vld [vmem:[#allocation19 + $0x130] sm:$0xff]
    %v4453 = vld [vmem:[#allocation19 + $0x138] sm:$0xff]
    %v4454 = vld [vmem:[#allocation19 + $0x140] sm:$0xff]
    %v4455 = vld [vmem:[#allocation19 + $0x148] sm:$0xff]
    %v4456 = vld [vmem:[#allocation19 + $0x150] sm:$0xff]
    %v4457 = vld [vmem:[#allocation19 + $0x158] sm:$0xff]
    %v4458 = vld [vmem:[#allocation19 + $0x160] sm:$0xff]
    %v4459 = vld [vmem:[#allocation19 + $0x168] sm:$0xff]
    %v4460 = vld [vmem:[#allocation19 + $0x170] sm:$0xff]
    %v4461 = vld [vmem:[#allocation19 + $0x178] sm:$0xff]
    %v4462 = vld [vmem:[%s18] sm:$0x7]
    %v4464 = vlaneseq
    %v4465 = vshrl.u32 %v4464, 7
    %v4466 = vsub.s32 0, %v4465
    %v4467 = vrot.slane %v4462, %v4466
    %v4468 = vlaneseq
    %v4469 = vshrl.u32 %v4468, 7
    %v4470 = vsub.s32 1, %v4469
    %v4471 = vrot.slane %v4462, %v4470
    %v4472 = vlaneseq
    %v4473 = vshrl.u32 %v4472, 7
    %v4474 = vsub.s32 2, %v4473
    %v4475 = vrot.slane %v4462, %v4474
    %4479 = vmatprep.subr.mxu0 %v4460
    %4480 = vmatpush1.msra.mxu0 %v4459
    %4481 = vmatprep.subr.mxu0 %v4457
    %4482 = vmatpush1.msra.mxu0 %v4456
    %4483 = vmatprep.subr.mxu0 %v4454
    %4484 = vmatpush1.msra.mxu0 %v4453
    %4485 = vmatprep.subr.mxu0 %v4451
    %4486 = vmatpush1.msra.mxu0 %v4450
    %4487 = vmatprep.subr.mxu0 %v4448
    %4488 = vmatpush1.msra.mxu0 %v4447
    %4489 = vmatprep.subr.mxu0 %v4445
    %4490 = vmatpush1.msra.mxu0 %v4444
    %4491 = vmatprep.subr.mxu0 %v4442
    %4492 = vmatpush1.msra.mxu0 %v4441
    %4493 = vmatprep.subr.mxu0 %v4439
    %4494 = vmatpush1.msra.mxu0 %v4438
    %4495 = vmatprep.subr.mxu0 %v4436
    %4496 = vmatpush1.msra.mxu0 %v4435
    %4497 = vmatprep.subr.mxu0 %v4433
    %4498 = vmatpush1.msra.mxu0 %v4432
    %4499 = vmatprep.subr.mxu0 %v4430
    %4500 = vmatpush1.msra.mxu0 %v4429
    %4501 = vmatprep.subr.mxu0 %v4427
    %4502 = vmatpush1.msra.mxu0 %v4426
    %4503 = vmatprep.subr.mxu0 %v4424
    %4504 = vmatpush1.msra.mxu0 %v4423
    %4505 = vmatprep.subr.mxu0 %v4421
    %4506 = vmatpush1.msra.mxu0 %v4420
    %4507 = vmatprep.subr.mxu0 %v4418
    %4508 = vmatpush1.msra.mxu0 %v4417
    %4509 = vmatprep.subr.mxu0 %v4415
    %4510 = vmatpush1.msra.mxu0 %v4414
    %4511 = vmatprep.subr.mxu0 0.0
    %4512 = vmatpush2.msra.mxu0 0.0
    %4513 = vmatprep.subr.mxu0 0.0
    %4514 = vmatpush2.msra.mxu0 0.0
    %4515 = vmatprep.subr.mxu0 0.0
    %4516 = vmatpush2.msra.mxu0 0.0
    %4517 = vmatprep.subr.mxu0 0.0
    %4518 = vmatpush2.msra.mxu0 0.0
    %4519 = vmatprep.subr.mxu0 0.0
    %4520 = vmatpush2.msra.mxu0 0.0
    %4521 = vmatprep.subr.mxu0 0.0
    %4522 = vmatpush2.msra.mxu0 0.0
    %4523 = vmatprep.subr.mxu0 0.0
    %4524 = vmatpush2.msra.mxu0 0.0
    %4525 = vmatprep.subr.mxu0 0.0
    %4526 = vmatpush2.msra.mxu0 0.0
    %4527 = vmatprep.subr.mxu0 0.0
    %4528 = vmatpush2.msra.mxu0 0.0
    %4529 = vmatprep.subr.mxu0 0.0
    %4530 = vmatpush2.msra.mxu0 0.0
    %4531 = vmatprep.subr.mxu0 0.0
    %4532 = vmatpush2.msra.mxu0 0.0
    %4533 = vmatprep.subr.mxu0 0.0
    %4534 = vmatpush2.msra.mxu0 0.0
    %4535 = vmatprep.subr.mxu0 0.0
    %4536 = vmatpush2.msra.mxu0 0.0
    %4537 = vmatprep.subr.mxu0 0.0
    %4538 = vmatpush2.msra.mxu0 0.0
    %4539 = vmatprep.subr.mxu0 0.0
    %4540 = vmatpush2.msra.mxu0 0.0
    %4541 = vmatprep.subr.mxu0 0.0
    %4542 = vmatpush2.msra.mxu0 0.0
    %4543 = vmatprep.mubr.f32.mxu0 0.0
    %4544 = vmatmul.mubr.f32.gmra.mxu0 %v2822
    %v4545 = vpop.f32.mrf.mxu0
    %v4546 = vadd.f32 %v4467, %v4545
    %v4547 = vpop.f32.mrf.mxu0
    %v4548 = vadd.f32 %v4471, %v4547
    %4549 = vmatprep.mubr.f32.mxu0 0.0
    %4550 = vmatmul.mubr.f32.gmra.mxu0 %v2823
    %v4551 = vpop.f32.mrf.mxu0
    %v4552 = vadd.f32 %v4467, %v4551
    %v4553 = vpop.f32.mrf.mxu0
    %v4554 = vadd.f32 %v4471, %v4553
    %4555 = vmatprep.mubr.f32.mxu0 0.0
    %4556 = vmatmul.mubr.f32.gmra.mxu0 %v2824
    %v4557 = vpop.f32.mrf.mxu0
    %v4558 = vadd.f32 %v4467, %v4557
    %v4559 = vpop.f32.mrf.mxu0
    %v4560 = vadd.f32 %v4471, %v4559
    %4561 = vmatprep.mubr.f32.mxu0 0.0
    %4562 = vmatmul.mubr.f32.gmra.mxu0 %v2825
    %v4563 = vpop.f32.mrf.mxu0
    %v4564 = vadd.f32 %v4467, %v4563
    %v4565 = vpop.f32.mrf.mxu0
    %v4566 = vadd.f32 %v4471, %v4565
    %4567 = vmatprep.mubr.f32.mxu0 0.0
    %4568 = vmatmul.mubr.f32.gmra.mxu0 %v2826
    %v4569 = vpop.f32.mrf.mxu0
    %v4570 = vadd.f32 %v4467, %v4569
    %v4571 = vpop.f32.mrf.mxu0
    %v4572 = vadd.f32 %v4471, %v4571
    %4573 = vmatprep.mubr.f32.mxu0 0.0
    %4574 = vmatmul.mubr.f32.gmra.mxu0 %v2827
    %v4575 = vpop.f32.mrf.mxu0
    %v4576 = vadd.f32 %v4467, %v4575
    %v4577 = vpop.f32.mrf.mxu0
    %v4578 = vadd.f32 %v4471, %v4577
    %4579 = vmatprep.mubr.f32.mxu0 0.0
    %4580 = vmatmul.mubr.f32.gmra.mxu0 %v2828
    %v4581 = vpop.f32.mrf.mxu0
    %v4582 = vadd.f32 %v4467, %v4581
    %v4583 = vpop.f32.mrf.mxu0
    %v4584 = vadd.f32 %v4471, %v4583
    %4585 = vmatprep.mubr.f32.mxu0 0.0
    %4586 = vmatmul.mubr.f32.gmra.mxu0 %v2829
    %v4587 = vpop.f32.mrf.mxu0
    %v4588 = vadd.f32 %v4467, %v4587
    %v4589 = vpop.f32.mrf.mxu0
    %v4590 = vadd.f32 %v4471, %v4589
    %4591 = vmatprep.mubr.f32.mxu0 0.0
    %4592 = vmatmul.mubr.f32.gmra.mxu0 %v2830
    %v4593 = vpop.f32.mrf.mxu0
    %v4594 = vadd.f32 %v4467, %v4593
    %v4595 = vpop.f32.mrf.mxu0
    %v4596 = vadd.f32 %v4471, %v4595
    %4597 = vmatprep.mubr.f32.mxu0 0.0
    %4598 = vmatmul.mubr.f32.gmra.mxu0 %v2831
    %v4599 = vpop.f32.mrf.mxu0
    %v4600 = vadd.f32 %v4467, %v4599
    %v4601 = vpop.f32.mrf.mxu0
    %v4602 = vadd.f32 %v4471, %v4601
    %4603 = vmatprep.mubr.f32.mxu0 0.0
    %4604 = vmatmul.mubr.f32.gmra.mxu0 %v2832
    %v4605 = vpop.f32.mrf.mxu0
    %v4606 = vadd.f32 %v4467, %v4605
    %v4607 = vpop.f32.mrf.mxu0
    %v4608 = vadd.f32 %v4471, %v4607
    %4609 = vmatprep.mubr.f32.mxu0 0.0
    %4610 = vmatmul.mubr.f32.gmra.mxu0 %v2833
    %v4611 = vpop.f32.mrf.mxu0
    %v4612 = vadd.f32 %v4467, %v4611
    %v4613 = vpop.f32.mrf.mxu0
    %v4614 = vadd.f32 %v4471, %v4613
    %4615 = vmatprep.mubr.f32.mxu0 0.0
    %4616 = vmatmul.mubr.f32.gmra.mxu0 %v2834
    %v4617 = vpop.f32.mrf.mxu0
    %v4618 = vadd.f32 %v4467, %v4617
    %v4619 = vpop.f32.mrf.mxu0
    %v4620 = vadd.f32 %v4471, %v4619
    %4621 = vmatprep.mubr.f32.mxu0 0.0
    %4622 = vmatmul.mubr.f32.gmra.mxu0 %v2835
    %v4623 = vpop.f32.mrf.mxu0
    %v4624 = vadd.f32 %v4467, %v4623
    %v4625 = vpop.f32.mrf.mxu0
    %v4626 = vadd.f32 %v4471, %v4625
    %4627 = vmatprep.mubr.f32.mxu0 0.0
    %4628 = vmatmul.mubr.f32.gmra.mxu0 %v2836
    %v4629 = vpop.f32.mrf.mxu0
    %v4630 = vadd.f32 %v4467, %v4629
    %v4631 = vpop.f32.mrf.mxu0
    %v4632 = vadd.f32 %v4471, %v4631
    %4633 = vmatprep.mubr.f32.mxu0 0.0
    %4634 = vmatmul.mubr.f32.gmra.mxu0 %v2837
    %v4635 = vpop.f32.mrf.mxu0
    %v4636 = vadd.f32 %v4467, %v4635
    %v4637 = vpop.f32.mrf.mxu0
    %v4638 = vadd.f32 %v4471, %v4637
    %4639 = vdwg.mxu0
    %4640 = vmatprep.subr.mxu0 0.0
    %4641 = vmatpush1.msra.mxu0 %v4461
    %4642 = vmatprep.subr.mxu0 0.0
    %4643 = vmatpush1.msra.mxu0 %v4458
    %4644 = vmatprep.subr.mxu0 0.0
    %4645 = vmatpush1.msra.mxu0 %v4455
    %4646 = vmatprep.subr.mxu0 0.0
    %4647 = vmatpush1.msra.mxu0 %v4452
    %4648 = vmatprep.subr.mxu0 0.0
    %4649 = vmatpush1.msra.mxu0 %v4449
    %4650 = vmatprep.subr.mxu0 0.0
    %4651 = vmatpush1.msra.mxu0 %v4446
    %4652 = vmatprep.subr.mxu0 0.0
    %4653 = vmatpush1.msra.mxu0 %v4443
    %4654 = vmatprep.subr.mxu0 0.0
    %4655 = vmatpush1.msra.mxu0 %v4440
    %4656 = vmatprep.subr.mxu0 0.0
    %4657 = vmatpush1.msra.mxu0 %v4437
    %4658 = vmatprep.subr.mxu0 0.0
    %4659 = vmatpush1.msra.mxu0 %v4434
    %4660 = vmatprep.subr.mxu0 0.0
    %4661 = vmatpush1.msra.mxu0 %v4431
    %4662 = vmatprep.subr.mxu0 0.0
    %4663 = vmatpush1.msra.mxu0 %v4428
    %4664 = vmatprep.subr.mxu0 0.0
    %4665 = vmatpush1.msra.mxu0 %v4425
    %4666 = vmatprep.subr.mxu0 0.0
    %4667 = vmatpush1.msra.mxu0 %v4422
    %4668 = vmatprep.subr.mxu0 0.0
    %4669 = vmatpush1.msra.mxu0 %v4419
    %4670 = vmatprep.subr.mxu0 0.0
    %4671 = vmatpush1.msra.mxu0 %v4416
    %4672 = vmatprep.subr.mxu0 0.0
    %4673 = vmatpush2.msra.mxu0 0.0
    %4674 = vmatprep.subr.mxu0 0.0
    %4675 = vmatpush2.msra.mxu0 0.0
    %4676 = vmatprep.subr.mxu0 0.0
    %4677 = vmatpush2.msra.mxu0 0.0
    %4678 = vmatprep.subr.mxu0 0.0
    %4679 = vmatpush2.msra.mxu0 0.0
    %4680 = vmatprep.subr.mxu0 0.0
    %4681 = vmatpush2.msra.mxu0 0.0
    %4682 = vmatprep.subr.mxu0 0.0
    %4683 = vmatpush2.msra.mxu0 0.0
    %4684 = vmatprep.subr.mxu0 0.0
    %4685 = vmatpush2.msra.mxu0 0.0
    %4686 = vmatprep.subr.mxu0 0.0
    %4687 = vmatpush2.msra.mxu0 0.0
    %4688 = vmatprep.subr.mxu0 0.0
    %4689 = vmatpush2.msra.mxu0 0.0
    %4690 = vmatprep.subr.mxu0 0.0
    %4691 = vmatpush2.msra.mxu0 0.0
    %4692 = vmatprep.subr.mxu0 0.0
    %4693 = vmatpush2.msra.mxu0 0.0
    %4694 = vmatprep.subr.mxu0 0.0
    %4695 = vmatpush2.msra.mxu0 0.0
    %4696 = vmatprep.subr.mxu0 0.0
    %4697 = vmatpush2.msra.mxu0 0.0
    %4698 = vmatprep.subr.mxu0 0.0
    %4699 = vmatpush2.msra.mxu0 0.0
    %4700 = vmatprep.subr.mxu0 0.0
    %4701 = vmatpush2.msra.mxu0 0.0
    %4702 = vmatprep.subr.mxu0 0.0
    %4703 = vmatpush2.msra.mxu0 0.0
    %4704 = vmatprep.mubr.f32.mxu0 0.0
    %4705 = vmatmul.mubr.f32.gmra.mxu0 %v2822
    %v4706 = vpop.f32.mrf.mxu0
    %v4707 = vadd.f32 %v4475, %v4706
    %v4708 = vpop.f32.mrf.mxu0
    %4709 = vmatprep.mubr.f32.mxu0 0.0
    %4710 = vmatmul.mubr.f32.gmra.mxu0 %v2823
    %v4711 = vpop.f32.mrf.mxu0
    %v4712 = vadd.f32 %v4475, %v4711
    %v4713 = vpop.f32.mrf.mxu0
    %4714 = vmatprep.mubr.f32.mxu0 0.0
    %4715 = vmatmul.mubr.f32.gmra.mxu0 %v2824
    %v4716 = vpop.f32.mrf.mxu0
    %v4717 = vadd.f32 %v4475, %v4716
    %v4718 = vpop.f32.mrf.mxu0
    %4719 = vmatprep.mubr.f32.mxu0 0.0
    %4720 = vmatmul.mubr.f32.gmra.mxu0 %v2825
    %v4721 = vpop.f32.mrf.mxu0
    %v4722 = vadd.f32 %v4475, %v4721
    %v4723 = vpop.f32.mrf.mxu0
    %4724 = vmatprep.mubr.f32.mxu0 0.0
    %4725 = vmatmul.mubr.f32.gmra.mxu0 %v2826
    %v4726 = vpop.f32.mrf.mxu0
    %v4727 = vadd.f32 %v4475, %v4726
    %v4728 = vpop.f32.mrf.mxu0
    %4729 = vmatprep.mubr.f32.mxu0 0.0
    %4730 = vmatmul.mubr.f32.gmra.mxu0 %v2827
    %v4731 = vpop.f32.mrf.mxu0
    %v4732 = vadd.f32 %v4475, %v4731
    %v4733 = vpop.f32.mrf.mxu0
    %4734 = vmatprep.mubr.f32.mxu0 0.0
    %4735 = vmatmul.mubr.f32.gmra.mxu0 %v2828
    %v4736 = vpop.f32.mrf.mxu0
    %v4737 = vadd.f32 %v4475, %v4736
    %v4738 = vpop.f32.mrf.mxu0
    %4739 = vmatprep.mubr.f32.mxu0 0.0
    %4740 = vmatmul.mubr.f32.gmra.mxu0 %v2829
    %v4741 = vpop.f32.mrf.mxu0
    %v4742 = vadd.f32 %v4475, %v4741
    %v4743 = vpop.f32.mrf.mxu0
    %4744 = vmatprep.mubr.f32.mxu0 0.0
    %4745 = vmatmul.mubr.f32.gmra.mxu0 %v2830
    %v4746 = vpop.f32.mrf.mxu0
    %v4747 = vadd.f32 %v4475, %v4746
    %v4748 = vpop.f32.mrf.mxu0
    %4749 = vmatprep.mubr.f32.mxu0 0.0
    %4750 = vmatmul.mubr.f32.gmra.mxu0 %v2831
    %v4751 = vpop.f32.mrf.mxu0
    %v4752 = vadd.f32 %v4475, %v4751
    %v4753 = vpop.f32.mrf.mxu0
    %4754 = vmatprep.mubr.f32.mxu0 0.0
    %4755 = vmatmul.mubr.f32.gmra.mxu0 %v2832
    %v4756 = vpop.f32.mrf.mxu0
    %v4757 = vadd.f32 %v4475, %v4756
    %v4758 = vpop.f32.mrf.mxu0
    %4759 = vmatprep.mubr.f32.mxu0 0.0
    %4760 = vmatmul.mubr.f32.gmra.mxu0 %v2833
    %v4761 = vpop.f32.mrf.mxu0
    %v4762 = vadd.f32 %v4475, %v4761
    %v4763 = vpop.f32.mrf.mxu0
    %4764 = vmatprep.mubr.f32.mxu0 0.0
    %4765 = vmatmul.mubr.f32.gmra.mxu0 %v2834
    %v4766 = vpop.f32.mrf.mxu0
    %v4767 = vadd.f32 %v4475, %v4766
    %v4768 = vpop.f32.mrf.mxu0
    %4769 = vmatprep.mubr.f32.mxu0 0.0
    %4770 = vmatmul.mubr.f32.gmra.mxu0 %v2835
    %v4771 = vpop.f32.mrf.mxu0
    %v4772 = vadd.f32 %v4475, %v4771
    %v4773 = vpop.f32.mrf.mxu0
    %4774 = vmatprep.mubr.f32.mxu0 0.0
    %4775 = vmatmul.mubr.f32.gmra.mxu0 %v2836
    %v4776 = vpop.f32.mrf.mxu0
    %v4777 = vadd.f32 %v4475, %v4776
    %v4778 = vpop.f32.mrf.mxu0
    %4779 = vmatprep.mubr.f32.mxu0 0.0
    %4780 = vmatmul.mubr.f32.gmra.mxu0 %v2837
    %v4781 = vpop.f32.mrf.mxu0
    %v4782 = vadd.f32 %v4475, %v4781
    %v4783 = vpop.f32.mrf.mxu0
    %4784 = vdwg.mxu0
    %v4785 = vadd.f32 %v4175, %v4546
    %v4786 = vadd.f32 %v4181, %v4552
    %v4787 = vadd.f32 %v4187, %v4558
    %v4788 = vadd.f32 %v4193, %v4564
    %v4789 = vadd.f32 %v4199, %v4570
    %v4790 = vadd.f32 %v4205, %v4576
    %v4791 = vadd.f32 %v4211, %v4582
    %v4792 = vadd.f32 %v4217, %v4588
    %v4793 = vadd.f32 %v4223, %v4594
    %v4794 = vadd.f32 %v4229, %v4600
    %v4795 = vadd.f32 %v4235, %v4606
    %v4796 = vadd.f32 %v4241, %v4612
    %v4797 = vadd.f32 %v4247, %v4618
    %v4798 = vadd.f32 %v4253, %v4624
    %v4799 = vadd.f32 %v4259, %v4630
    %v4800 = vadd.f32 %v4265, %v4636
    %v4801 = vxor.u32 %v4785, 2147483648
    %v4802 = vxor.u32 %v4786, 2147483648
    %v4803 = vxor.u32 %v4787, 2147483648
    %v4804 = vxor.u32 %v4788, 2147483648
    %v4805 = vxor.u32 %v4789, 2147483648
    %v4806 = vxor.u32 %v4790, 2147483648
    %v4807 = vxor.u32 %v4791, 2147483648
    %v4808 = vxor.u32 %v4792, 2147483648
    %v4809 = vxor.u32 %v4793, 2147483648
    %v4810 = vxor.u32 %v4794, 2147483648
    %v4811 = vxor.u32 %v4795, 2147483648
    %v4812 = vxor.u32 %v4796, 2147483648
    %v4813 = vxor.u32 %v4797, 2147483648
    %v4814 = vxor.u32 %v4798, 2147483648
    %v4815 = vxor.u32 %v4799, 2147483648
    %v4816 = vxor.u32 %v4800, 2147483648
    %v4817 = vmul.f32 %v4801, 1.442695
    %v4818 = vpow.pop %v4817
    %v4819 = vmul.f32 %v4802, 1.442695
    %v4820 = vpow.pop %v4819
    %v4821 = vmul.f32 %v4803, 1.442695
    %v4822 = vpow.pop %v4821
    %v4823 = vmul.f32 %v4804, 1.442695
    %v4824 = vpow.pop %v4823
    %v4825 = vmul.f32 %v4805, 1.442695
    %v4826 = vpow.pop %v4825
    %v4827 = vmul.f32 %v4806, 1.442695
    %v4828 = vpow.pop %v4827
    %v4829 = vmul.f32 %v4807, 1.442695
    %v4830 = vpow.pop %v4829
    %v4831 = vmul.f32 %v4808, 1.442695
    %v4832 = vpow.pop %v4831
    %v4833 = vmul.f32 %v4809, 1.442695
    %v4834 = vpow.pop %v4833
    %v4835 = vmul.f32 %v4810, 1.442695
    %v4836 = vpow.pop %v4835
    %v4837 = vmul.f32 %v4811, 1.442695
    %v4838 = vpow.pop %v4837
    %v4839 = vmul.f32 %v4812, 1.442695
    %v4840 = vpow.pop %v4839
    %v4841 = vmul.f32 %v4813, 1.442695
    %v4842 = vpow.pop %v4841
    %v4843 = vmul.f32 %v4814, 1.442695
    %v4844 = vpow.pop %v4843
    %v4845 = vmul.f32 %v4815, 1.442695
    %v4846 = vpow.pop %v4845
    %v4847 = vmul.f32 %v4816, 1.442695
    %v4848 = vpow.pop %v4847
    %v4849 = vadd.f32 %v4818, 1.0
    %v4850 = vadd.f32 %v4820, 1.0
    %v4851 = vadd.f32 %v4822, 1.0
    %v4852 = vadd.f32 %v4824, 1.0
    %v4853 = vadd.f32 %v4826, 1.0
    %v4854 = vadd.f32 %v4828, 1.0
    %v4855 = vadd.f32 %v4830, 1.0
    %v4856 = vadd.f32 %v4832, 1.0
    %v4857 = vadd.f32 %v4834, 1.0
    %v4858 = vadd.f32 %v4836, 1.0
    %v4859 = vadd.f32 %v4838, 1.0
    %v4860 = vadd.f32 %v4840, 1.0
    %v4861 = vadd.f32 %v4842, 1.0
    %v4862 = vadd.f32 %v4844, 1.0
    %v4863 = vadd.f32 %v4846, 1.0
    %v4864 = vadd.f32 %v4848, 1.0
    %v4865 = vrcp.pop %v4849
    %v4866 = vmul.f32 1.0, %v4865
    %v4867 = vrcp.pop %v4850
    %v4868 = vmul.f32 1.0, %v4867
    %v4869 = vrcp.pop %v4851
    %v4870 = vmul.f32 1.0, %v4869
    %v4871 = vrcp.pop %v4852
    %v4872 = vmul.f32 1.0, %v4871
    %v4873 = vrcp.pop %v4853
    %v4874 = vmul.f32 1.0, %v4873
    %v4875 = vrcp.pop %v4854
    %v4876 = vmul.f32 1.0, %v4875
    %v4877 = vrcp.pop %v4855
    %v4878 = vmul.f32 1.0, %v4877
    %v4879 = vrcp.pop %v4856
    %v4880 = vmul.f32 1.0, %v4879
    %v4881 = vrcp.pop %v4857
    %v4882 = vmul.f32 1.0, %v4881
    %v4883 = vrcp.pop %v4858
    %v4884 = vmul.f32 1.0, %v4883
    %v4885 = vrcp.pop %v4859
    %v4886 = vmul.f32 1.0, %v4885
    %v4887 = vrcp.pop %v4860
    %v4888 = vmul.f32 1.0, %v4887
    %v4889 = vrcp.pop %v4861
    %v4890 = vmul.f32 1.0, %v4889
    %v4891 = vrcp.pop %v4862
    %v4892 = vmul.f32 1.0, %v4891
    %v4893 = vrcp.pop %v4863
    %v4894 = vmul.f32 1.0, %v4893
    %v4895 = vrcp.pop %v4864
    %v4896 = vmul.f32 1.0, %v4895
    %v4897 = vadd.f32 %v4177, %v4548
    %v4898 = vadd.f32 %v4183, %v4554
    %v4899 = vadd.f32 %v4189, %v4560
    %v4900 = vadd.f32 %v4195, %v4566
    %v4901 = vadd.f32 %v4201, %v4572
    %v4902 = vadd.f32 %v4207, %v4578
    %v4903 = vadd.f32 %v4213, %v4584
    %v4904 = vadd.f32 %v4219, %v4590
    %v4905 = vadd.f32 %v4225, %v4596
    %v4906 = vadd.f32 %v4231, %v4602
    %v4907 = vadd.f32 %v4237, %v4608
    %v4908 = vadd.f32 %v4243, %v4614
    %v4909 = vadd.f32 %v4249, %v4620
    %v4910 = vadd.f32 %v4255, %v4626
    %v4911 = vadd.f32 %v4261, %v4632
    %v4912 = vadd.f32 %v4267, %v4638
    %v4913 = vxor.u32 %v4897, 2147483648
    %v4914 = vxor.u32 %v4898, 2147483648
    %v4915 = vxor.u32 %v4899, 2147483648
    %v4916 = vxor.u32 %v4900, 2147483648
    %v4917 = vxor.u32 %v4901, 2147483648
    %v4918 = vxor.u32 %v4902, 2147483648
    %v4919 = vxor.u32 %v4903, 2147483648
    %v4920 = vxor.u32 %v4904, 2147483648
    %v4921 = vxor.u32 %v4905, 2147483648
    %v4922 = vxor.u32 %v4906, 2147483648
    %v4923 = vxor.u32 %v4907, 2147483648
    %v4924 = vxor.u32 %v4908, 2147483648
    %v4925 = vxor.u32 %v4909, 2147483648
    %v4926 = vxor.u32 %v4910, 2147483648
    %v4927 = vxor.u32 %v4911, 2147483648
    %v4928 = vxor.u32 %v4912, 2147483648
    %v4929 = vmul.f32 %v4913, 1.442695
    %v4930 = vpow.pop %v4929
    %v4931 = vmul.f32 %v4914, 1.442695
    %v4932 = vpow.pop %v4931
    %v4933 = vmul.f32 %v4915, 1.442695
    %v4934 = vpow.pop %v4933
    %v4935 = vmul.f32 %v4916, 1.442695
    %v4936 = vpow.pop %v4935
    %v4937 = vmul.f32 %v4917, 1.442695
    %v4938 = vpow.pop %v4937
    %v4939 = vmul.f32 %v4918, 1.442695
    %v4940 = vpow.pop %v4939
    %v4941 = vmul.f32 %v4919, 1.442695
    %v4942 = vpow.pop %v4941
    %v4943 = vmul.f32 %v4920, 1.442695
    %v4944 = vpow.pop %v4943
    %v4945 = vmul.f32 %v4921, 1.442695
    %v4946 = vpow.pop %v4945
    %v4947 = vmul.f32 %v4922, 1.442695
    %v4948 = vpow.pop %v4947
    %v4949 = vmul.f32 %v4923, 1.442695
    %v4950 = vpow.pop %v4949
    %v4951 = vmul.f32 %v4924, 1.442695
    %v4952 = vpow.pop %v4951
    %v4953 = vmul.f32 %v4925, 1.442695
    %v4954 = vpow.pop %v4953
    %v4955 = vmul.f32 %v4926, 1.442695
    %v4956 = vpow.pop %v4955
    %v4957 = vmul.f32 %v4927, 1.442695
    %v4958 = vpow.pop %v4957
    %v4959 = vmul.f32 %v4928, 1.442695
    %v4960 = vpow.pop %v4959
    %v4961 = vadd.f32 %v4930, 1.0
    %v4962 = vadd.f32 %v4932, 1.0
    %v4963 = vadd.f32 %v4934, 1.0
    %v4964 = vadd.f32 %v4936, 1.0
    %v4965 = vadd.f32 %v4938, 1.0
    %v4966 = vadd.f32 %v4940, 1.0
    %v4967 = vadd.f32 %v4942, 1.0
    %v4968 = vadd.f32 %v4944, 1.0
    %v4969 = vadd.f32 %v4946, 1.0
    %v4970 = vadd.f32 %v4948, 1.0
    %v4971 = vadd.f32 %v4950, 1.0
    %v4972 = vadd.f32 %v4952, 1.0
    %v4973 = vadd.f32 %v4954, 1.0
    %v4974 = vadd.f32 %v4956, 1.0
    %v4975 = vadd.f32 %v4958, 1.0
    %v4976 = vadd.f32 %v4960, 1.0
    %v4977 = vrcp.pop %v4961
    %v4978 = vmul.f32 1.0, %v4977
    %v4979 = vrcp.pop %v4962
    %v4980 = vmul.f32 1.0, %v4979
    %v4981 = vrcp.pop %v4963
    %v4982 = vmul.f32 1.0, %v4981
    %v4983 = vrcp.pop %v4964
    %v4984 = vmul.f32 1.0, %v4983
    %v4985 = vrcp.pop %v4965
    %v4986 = vmul.f32 1.0, %v4985
    %v4987 = vrcp.pop %v4966
    %v4988 = vmul.f32 1.0, %v4987
    %v4989 = vrcp.pop %v4967
    %v4990 = vmul.f32 1.0, %v4989
    %v4991 = vrcp.pop %v4968
    %v4992 = vmul.f32 1.0, %v4991
    %v4993 = vrcp.pop %v4969
    %v4994 = vmul.f32 1.0, %v4993
    %v4995 = vrcp.pop %v4970
    %v4996 = vmul.f32 1.0, %v4995
    %v4997 = vrcp.pop %v4971
    %v4998 = vmul.f32 1.0, %v4997
    %v4999 = vrcp.pop %v4972
    %v5000 = vmul.f32 1.0, %v4999
    %v5001 = vrcp.pop %v4973
    %v5002 = vmul.f32 1.0, %v5001
    %v5003 = vrcp.pop %v4974
    %v5004 = vmul.f32 1.0, %v5003
    %v5005 = vrcp.pop %v4975
    %v5006 = vmul.f32 1.0, %v5005
    %v5007 = vrcp.pop %v4976
    %v5008 = vmul.f32 1.0, %v5007
    %v5009 = vmul.f32 %v4866, %v4707
    %v5010 = vmul.f32 %v4868, %v4712
    %v5011 = vmul.f32 %v4870, %v4717
    %v5012 = vmul.f32 %v4872, %v4722
    %v5013 = vmul.f32 %v4874, %v4727
    %v5014 = vmul.f32 %v4876, %v4732
    %v5015 = vmul.f32 %v4878, %v4737
    %v5016 = vmul.f32 %v4880, %v4742
    %v5017 = vmul.f32 %v4882, %v4747
    %v5018 = vmul.f32 %v4884, %v4752
    %v5019 = vmul.f32 %v4886, %v4757
    %v5020 = vmul.f32 %v4888, %v4762
    %v5021 = vmul.f32 %v4890, %v4767
    %v5022 = vmul.f32 %v4892, %v4772
    %v5023 = vmul.f32 %v4894, %v4777
    %v5024 = vmul.f32 %v4896, %v4782
    %v5025 = vadd.f32 %v4336, %v5009
    %v5026 = vadd.f32 %v4341, %v5010
    %v5027 = vadd.f32 %v4346, %v5011
    %v5028 = vadd.f32 %v4351, %v5012
    %v5029 = vadd.f32 %v4356, %v5013
    %v5030 = vadd.f32 %v4361, %v5014
    %v5031 = vadd.f32 %v4366, %v5015
    %v5032 = vadd.f32 %v4371, %v5016
    %v5033 = vadd.f32 %v4376, %v5017
    %v5034 = vadd.f32 %v4381, %v5018
    %v5035 = vadd.f32 %v4386, %v5019
    %v5036 = vadd.f32 %v4391, %v5020
    %v5037 = vadd.f32 %v4396, %v5021
    %v5038 = vadd.f32 %v4401, %v5022
    %v5039 = vadd.f32 %v4406, %v5023
    %v5040 = vadd.f32 %v4411, %v5024
    %v5041 = vtanh.pop %v5025
    %v5042 = vtanh.pop %v5026
    %v5043 = vtanh.pop %v5027
    %v5044 = vtanh.pop %v5028
    %v5045 = vtanh.pop %v5029
    %v5046 = vtanh.pop %v5030
    %v5047 = vtanh.pop %v5031
    %v5048 = vtanh.pop %v5032
    %v5049 = vtanh.pop %v5033
    %v5050 = vtanh.pop %v5034
    %v5051 = vtanh.pop %v5035
    %v5052 = vtanh.pop %v5036
    %v5053 = vtanh.pop %v5037
    %v5054 = vtanh.pop %v5038
    %v5055 = vtanh.pop %v5039
    %v5056 = vtanh.pop %v5040
    %v5057 = vsub.f32 1.0, %v4978
    %v5058 = vsub.f32 1.0, %v4980
    %v5059 = vsub.f32 1.0, %v4982
    %v5060 = vsub.f32 1.0, %v4984
    %v5061 = vsub.f32 1.0, %v4986
    %v5062 = vsub.f32 1.0, %v4988
    %v5063 = vsub.f32 1.0, %v4990
    %v5064 = vsub.f32 1.0, %v4992
    %v5065 = vsub.f32 1.0, %v4994
    %v5066 = vsub.f32 1.0, %v4996
    %v5067 = vsub.f32 1.0, %v4998
    %v5068 = vsub.f32 1.0, %v5000
    %v5069 = vsub.f32 1.0, %v5002
    %v5070 = vsub.f32 1.0, %v5004
    %v5071 = vsub.f32 1.0, %v5006
    %v5072 = vsub.f32 1.0, %v5008
    %v5073 = vmul.f32 %v5057, %v5041
    %v5074 = vmul.f32 %v5058, %v5042
    %v5075 = vmul.f32 %v5059, %v5043
    %v5076 = vmul.f32 %v5060, %v5044
    %v5077 = vmul.f32 %v5061, %v5045
    %v5078 = vmul.f32 %v5062, %v5046
    %v5079 = vmul.f32 %v5063, %v5047
    %v5080 = vmul.f32 %v5064, %v5048
    %v5081 = vmul.f32 %v5065, %v5049
    %v5082 = vmul.f32 %v5066, %v5050
    %v5083 = vmul.f32 %v5067, %v5051
    %v5084 = vmul.f32 %v5068, %v5052
    %v5085 = vmul.f32 %v5069, %v5053
    %v5086 = vmul.f32 %v5070, %v5054
    %v5087 = vmul.f32 %v5071, %v5055
    %v5088 = vmul.f32 %v5072, %v5056
    %v5089 = vmul.f32 %v4978, %v2822
    %v5090 = vmul.f32 %v4980, %v2823
    %v5091 = vmul.f32 %v4982, %v2824
    %v5092 = vmul.f32 %v4984, %v2825
    %v5093 = vmul.f32 %v4986, %v2826
    %v5094 = vmul.f32 %v4988, %v2827
    %v5095 = vmul.f32 %v4990, %v2828
    %v5096 = vmul.f32 %v4992, %v2829
    %v5097 = vmul.f32 %v4994, %v2830
    %v5098 = vmul.f32 %v4996, %v2831
    %v5099 = vmul.f32 %v4998, %v2832
    %v5100 = vmul.f32 %v5000, %v2833
    %v5101 = vmul.f32 %v5002, %v2834
    %v5102 = vmul.f32 %v5004, %v2835
    %v5103 = vmul.f32 %v5006, %v2836
    %v5104 = vmul.f32 %v5008, %v2837
    %v5105 = vadd.f32 %v5073, %v5089
    %v5106 = vadd.f32 %v5074, %v5090
    %v5107 = vadd.f32 %v5075, %v5091
    %v5108 = vadd.f32 %v5076, %v5092
    %v5109 = vadd.f32 %v5077, %v5093
    %v5110 = vadd.f32 %v5078, %v5094
    %v5111 = vadd.f32 %v5079, %v5095
    %v5112 = vadd.f32 %v5080, %v5096
    %v5113 = vadd.f32 %v5081, %v5097
    %v5114 = vadd.f32 %v5082, %v5098
    %v5115 = vadd.f32 %v5083, %v5099
    %v5116 = vadd.f32 %v5084, %v5100
    %v5117 = vadd.f32 %v5085, %v5101
    %v5118 = vadd.f32 %v5086, %v5102
    %v5119 = vadd.f32 %v5087, %v5103
    %v5120 = vadd.f32 %v5088, %v5104
    %5121 = vst [vmem:[#allocation2] sm:$0xff] %v5105
    %5122 = vst [vmem:[#allocation2 + $0x8] sm:$0xff] %v5106
    %5123 = vst [vmem:[#allocation2 + $0x10] sm:$0xff] %v5107
    %5124 = vst [vmem:[#allocation2 + $0x18] sm:$0xff] %v5108
    %5125 = vst [vmem:[#allocation2 + $0x20] sm:$0xff] %v5109
    %5126 = vst [vmem:[#allocation2 + $0x28] sm:$0xff] %v5110
    %5127 = vst [vmem:[#allocation2 + $0x30] sm:$0xff] %v5111
    %5128 = vst [vmem:[#allocation2 + $0x38] sm:$0xff] %v5112
    %5129 = vst [vmem:[#allocation2 + $0x40] sm:$0xff] %v5113
    %5130 = vst [vmem:[#allocation2 + $0x48] sm:$0xff] %v5114
    %5131 = vst [vmem:[#allocation2 + $0x50] sm:$0xff] %v5115
    %5132 = vst [vmem:[#allocation2 + $0x58] sm:$0xff] %v5116
    %5133 = vst [vmem:[#allocation2 + $0x60] sm:$0xff] %v5117
    %5134 = vst [vmem:[#allocation2 + $0x68] sm:$0xff] %v5118
    %5135 = vst [vmem:[#allocation2 + $0x70] sm:$0xff] %v5119
    %5136 = vst [vmem:[#allocation2 + $0x78] sm:$0xff] %v5120
    %v5137 = vld [vmem:[#allocation2] sm:$0xff]
    %v5138 = vld [vmem:[#allocation2 + $0x8] sm:$0xff]
    %v5139 = vld [vmem:[#allocation2 + $0x10] sm:$0xff]
    %v5140 = vld [vmem:[#allocation2 + $0x18] sm:$0xff]
    %v5141 = vld [vmem:[#allocation2 + $0x20] sm:$0xff]
    %v5142 = vld [vmem:[#allocation2 + $0x28] sm:$0xff]
    %v5143 = vld [vmem:[#allocation2 + $0x30] sm:$0xff]
    %v5144 = vld [vmem:[#allocation2 + $0x38] sm:$0xff]
    %v5145 = vld [vmem:[#allocation2 + $0x40] sm:$0xff]
    %v5146 = vld [vmem:[#allocation2 + $0x48] sm:$0xff]
    %v5147 = vld [vmem:[#allocation2 + $0x50] sm:$0xff]
    %v5148 = vld [vmem:[#allocation2 + $0x58] sm:$0xff]
    %v5149 = vld [vmem:[#allocation2 + $0x60] sm:$0xff]
    %v5150 = vld [vmem:[#allocation2 + $0x68] sm:$0xff]
    %v5151 = vld [vmem:[#allocation2 + $0x70] sm:$0xff]
    %v5152 = vld [vmem:[#allocation2 + $0x78] sm:$0xff]
    %v5153 = vld [vmem:[%s0] sm:$0xff]
    %v5154 = vld [vmem:[%s0 + $0x8] sm:$0xff]
    %v5155 = vld [vmem:[%s0 + $0x10] sm:$0xff]
    %v5156 = vld [vmem:[%s0 + $0x18] sm:$0xff]
    %v5157 = vld [vmem:[%s0 + $0x20] sm:$0xff]
    %v5158 = vld [vmem:[%s0 + $0x28] sm:$0xff]
    %v5159 = vld [vmem:[%s0 + $0x30] sm:$0xff]
    %v5160 = vld [vmem:[%s0 + $0x38] sm:$0xff]
    %v5161 = vld [vmem:[%s0 + $0x40] sm:$0xff]
    %v5162 = vld [vmem:[%s0 + $0x48] sm:$0xff]
    %v5163 = vld [vmem:[%s0 + $0x50] sm:$0xff]
    %v5164 = vld [vmem:[%s0 + $0x58] sm:$0xff]
    %v5165 = vld [vmem:[%s0 + $0x60] sm:$0xff]
    %v5166 = vld [vmem:[%s0 + $0x68] sm:$0xff]
    %v5167 = vld [vmem:[%s0 + $0x70] sm:$0xff]
    %v5168 = vld [vmem:[%s0 + $0x78] sm:$0xff]
    %5169 = vmatprep.subr.mxu0 0.0
    %5170 = vmatpush1.msra.mxu0 %v5152
    %5171 = vmatprep.subr.mxu0 0.0
    %5172 = vmatpush1.msra.mxu0 %v5151
    %5173 = vmatprep.subr.mxu0 0.0
    %5174 = vmatpush1.msra.mxu0 %v5150
    %5175 = vmatprep.subr.mxu0 0.0
    %5176 = vmatpush1.msra.mxu0 %v5149
    %5177 = vmatprep.subr.mxu0 0.0
    %5178 = vmatpush1.msra.mxu0 %v5148
    %5179 = vmatprep.subr.mxu0 0.0
    %5180 = vmatpush1.msra.mxu0 %v5147
    %5181 = vmatprep.subr.mxu0 0.0
    %5182 = vmatpush1.msra.mxu0 %v5146
    %5183 = vmatprep.subr.mxu0 0.0
    %5184 = vmatpush1.msra.mxu0 %v5145
    %5185 = vmatprep.subr.mxu0 0.0
    %5186 = vmatpush1.msra.mxu0 %v5144
    %5187 = vmatprep.subr.mxu0 0.0
    %5188 = vmatpush1.msra.mxu0 %v5143
    %5189 = vmatprep.subr.mxu0 0.0
    %5190 = vmatpush1.msra.mxu0 %v5142
    %5191 = vmatprep.subr.mxu0 0.0
    %5192 = vmatpush1.msra.mxu0 %v5141
    %5193 = vmatprep.subr.mxu0 0.0
    %5194 = vmatpush1.msra.mxu0 %v5140
    %5195 = vmatprep.subr.mxu0 0.0
    %5196 = vmatpush1.msra.mxu0 %v5139
    %5197 = vmatprep.subr.mxu0 0.0
    %5198 = vmatpush1.msra.mxu0 %v5138
    %5199 = vmatprep.subr.mxu0 0.0
    %5200 = vmatpush1.msra.mxu0 %v5137
    %5201 = vmatprep.subr.mxu0 0.0
    %5202 = vmatpush2.msra.mxu0 0.0
    %5203 = vmatprep.subr.mxu0 0.0
    %5204 = vmatpush2.msra.mxu0 0.0
    %5205 = vmatprep.subr.mxu0 0.0
    %5206 = vmatpush2.msra.mxu0 0.0
    %5207 = vmatprep.subr.mxu0 0.0
    %5208 = vmatpush2.msra.mxu0 0.0
    %5209 = vmatprep.subr.mxu0 0.0
    %5210 = vmatpush2.msra.mxu0 0.0
    %5211 = vmatprep.subr.mxu0 0.0
    %5212 = vmatpush2.msra.mxu0 0.0
    %5213 = vmatprep.subr.mxu0 0.0
    %5214 = vmatpush2.msra.mxu0 0.0
    %5215 = vmatprep.subr.mxu0 0.0
    %5216 = vmatpush2.msra.mxu0 0.0
    %5217 = vmatprep.subr.mxu0 0.0
    %5218 = vmatpush2.msra.mxu0 0.0
    %5219 = vmatprep.subr.mxu0 0.0
    %5220 = vmatpush2.msra.mxu0 0.0
    %5221 = vmatprep.subr.mxu0 0.0
    %5222 = vmatpush2.msra.mxu0 0.0
    %5223 = vmatprep.subr.mxu0 0.0
    %5224 = vmatpush2.msra.mxu0 0.0
    %5225 = vmatprep.subr.mxu0 0.0
    %5226 = vmatpush2.msra.mxu0 0.0
    %5227 = vmatprep.subr.mxu0 0.0
    %5228 = vmatpush2.msra.mxu0 0.0
    %5229 = vmatprep.subr.mxu0 0.0
    %5230 = vmatpush2.msra.mxu0 0.0
    %5231 = vmatprep.subr.mxu0 0.0
    %5232 = vmatpush2.msra.mxu0 0.0
    %5233 = vmatprep.mubr.f32.mxu0 0.0
    %5234 = vmatmul.mubr.f32.gmra.mxu0 %v5153
    %v5235 = vpop.f32.mrf.mxu0
    %v5236 = vadd.f32 0.0, %v5235
    %v5237 = vpop.f32.mrf.mxu0
    %5238 = vmatprep.mubr.f32.mxu0 0.0
    %5239 = vmatmul.mubr.f32.gmra.mxu0 %v5154
    %v5240 = vpop.f32.mrf.mxu0
    %v5241 = vadd.f32 0.0, %v5240
    %v5242 = vpop.f32.mrf.mxu0
    %5243 = vmatprep.mubr.f32.mxu0 0.0
    %5244 = vmatmul.mubr.f32.gmra.mxu0 %v5155
    %v5245 = vpop.f32.mrf.mxu0
    %v5246 = vadd.f32 0.0, %v5245
    %v5247 = vpop.f32.mrf.mxu0
    %5248 = vmatprep.mubr.f32.mxu0 0.0
    %5249 = vmatmul.mubr.f32.gmra.mxu0 %v5156
    %v5250 = vpop.f32.mrf.mxu0
    %v5251 = vadd.f32 0.0, %v5250
    %v5252 = vpop.f32.mrf.mxu0
    %5253 = vmatprep.mubr.f32.mxu0 0.0
    %5254 = vmatmul.mubr.f32.gmra.mxu0 %v5157
    %v5255 = vpop.f32.mrf.mxu0
    %v5256 = vadd.f32 0.0, %v5255
    %v5257 = vpop.f32.mrf.mxu0
    %5258 = vmatprep.mubr.f32.mxu0 0.0
    %5259 = vmatmul.mubr.f32.gmra.mxu0 %v5158
    %v5260 = vpop.f32.mrf.mxu0
    %v5261 = vadd.f32 0.0, %v5260
    %v5262 = vpop.f32.mrf.mxu0
    %5263 = vmatprep.mubr.f32.mxu0 0.0
    %5264 = vmatmul.mubr.f32.gmra.mxu0 %v5159
    %v5265 = vpop.f32.mrf.mxu0
    %v5266 = vadd.f32 0.0, %v5265
    %v5267 = vpop.f32.mrf.mxu0
    %5268 = vmatprep.mubr.f32.mxu0 0.0
    %5269 = vmatmul.mubr.f32.gmra.mxu0 %v5160
    %v5270 = vpop.f32.mrf.mxu0
    %v5271 = vadd.f32 0.0, %v5270
    %v5272 = vpop.f32.mrf.mxu0
    %5273 = vmatprep.mubr.f32.mxu0 0.0
    %5274 = vmatmul.mubr.f32.gmra.mxu0 %v5161
    %v5275 = vpop.f32.mrf.mxu0
    %v5276 = vadd.f32 0.0, %v5275
    %v5277 = vpop.f32.mrf.mxu0
    %5278 = vmatprep.mubr.f32.mxu0 0.0
    %5279 = vmatmul.mubr.f32.gmra.mxu0 %v5162
    %v5280 = vpop.f32.mrf.mxu0
    %v5281 = vadd.f32 0.0, %v5280
    %v5282 = vpop.f32.mrf.mxu0
    %5283 = vmatprep.mubr.f32.mxu0 0.0
    %5284 = vmatmul.mubr.f32.gmra.mxu0 %v5163
    %v5285 = vpop.f32.mrf.mxu0
    %v5286 = vadd.f32 0.0, %v5285
    %v5287 = vpop.f32.mrf.mxu0
    %5288 = vmatprep.mubr.f32.mxu0 0.0
    %5289 = vmatmul.mubr.f32.gmra.mxu0 %v5164
    %v5290 = vpop.f32.mrf.mxu0
    %v5291 = vadd.f32 0.0, %v5290
    %v5292 = vpop.f32.mrf.mxu0
    %5293 = vmatprep.mubr.f32.mxu0 0.0
    %5294 = vmatmul.mubr.f32.gmra.mxu0 %v5165
    %v5295 = vpop.f32.mrf.mxu0
    %v5296 = vadd.f32 0.0, %v5295
    %v5297 = vpop.f32.mrf.mxu0
    %5298 = vmatprep.mubr.f32.mxu0 0.0
    %5299 = vmatmul.mubr.f32.gmra.mxu0 %v5166
    %v5300 = vpop.f32.mrf.mxu0
    %v5301 = vadd.f32 0.0, %v5300
    %v5302 = vpop.f32.mrf.mxu0
    %5303 = vmatprep.mubr.f32.mxu0 0.0
    %5304 = vmatmul.mubr.f32.gmra.mxu0 %v5167
    %v5305 = vpop.f32.mrf.mxu0
    %v5306 = vadd.f32 0.0, %v5305
    %v5307 = vpop.f32.mrf.mxu0
    %5308 = vmatprep.mubr.f32.mxu0 0.0
    %5309 = vmatmul.mubr.f32.gmra.mxu0 %v5168
    %v5310 = vpop.f32.mrf.mxu0
    %v5311 = vadd.f32 0.0, %v5310
    %v5312 = vpop.f32.mrf.mxu0
    %5313 = vdwg.mxu0
    %v5314 = vld [vmem:[#allocation4] sm:$0xff]
    %v5315 = vld [vmem:[#allocation4 + $0x8] sm:$0xff]
    %v5316 = vld [vmem:[#allocation4 + $0x10] sm:$0xff]
    %v5317 = vld [vmem:[#allocation4 + $0x18] sm:$0xff]
    %v5318 = vld [vmem:[#allocation4 + $0x20] sm:$0xff]
    %v5319 = vld [vmem:[#allocation4 + $0x28] sm:$0xff]
    %v5320 = vld [vmem:[#allocation4 + $0x30] sm:$0xff]
    %v5321 = vld [vmem:[#allocation4 + $0x38] sm:$0xff]
    %v5322 = vld [vmem:[#allocation4 + $0x40] sm:$0xff]
    %v5323 = vld [vmem:[#allocation4 + $0x48] sm:$0xff]
    %v5324 = vld [vmem:[#allocation4 + $0x50] sm:$0xff]
    %v5325 = vld [vmem:[#allocation4 + $0x58] sm:$0xff]
    %v5326 = vld [vmem:[#allocation4 + $0x60] sm:$0xff]
    %v5327 = vld [vmem:[#allocation4 + $0x68] sm:$0xff]
    %v5328 = vld [vmem:[#allocation4 + $0x70] sm:$0xff]
    %v5329 = vld [vmem:[#allocation4 + $0x78] sm:$0xff]
    %5330 = vmatprep.subr.mxu0 0.0
    %5331 = vmatpush1.msra.mxu0 %v5152
    %5332 = vmatprep.subr.mxu0 0.0
    %5333 = vmatpush1.msra.mxu0 %v5151
    %5334 = vmatprep.subr.mxu0 0.0
    %5335 = vmatpush1.msra.mxu0 %v5150
    %5336 = vmatprep.subr.mxu0 0.0
    %5337 = vmatpush1.msra.mxu0 %v5149
    %5338 = vmatprep.subr.mxu0 0.0
    %5339 = vmatpush1.msra.mxu0 %v5148
    %5340 = vmatprep.subr.mxu0 0.0
    %5341 = vmatpush1.msra.mxu0 %v5147
    %5342 = vmatprep.subr.mxu0 0.0
    %5343 = vmatpush1.msra.mxu0 %v5146
    %5344 = vmatprep.subr.mxu0 0.0
    %5345 = vmatpush1.msra.mxu0 %v5145
    %5346 = vmatprep.subr.mxu0 0.0
    %5347 = vmatpush1.msra.mxu0 %v5144
    %5348 = vmatprep.subr.mxu0 0.0
    %5349 = vmatpush1.msra.mxu0 %v5143
    %5350 = vmatprep.subr.mxu0 0.0
    %5351 = vmatpush1.msra.mxu0 %v5142
    %5352 = vmatprep.subr.mxu0 0.0
    %5353 = vmatpush1.msra.mxu0 %v5141
    %5354 = vmatprep.subr.mxu0 0.0
    %5355 = vmatpush1.msra.mxu0 %v5140
    %5356 = vmatprep.subr.mxu0 0.0
    %5357 = vmatpush1.msra.mxu0 %v5139
    %5358 = vmatprep.subr.mxu0 0.0
    %5359 = vmatpush1.msra.mxu0 %v5138
    %5360 = vmatprep.subr.mxu0 0.0
    %5361 = vmatpush1.msra.mxu0 %v5137
    %5362 = vmatprep.subr.mxu0 0.0
    %5363 = vmatpush2.msra.mxu0 0.0
    %5364 = vmatprep.subr.mxu0 0.0
    %5365 = vmatpush2.msra.mxu0 0.0
    %5366 = vmatprep.subr.mxu0 0.0
    %5367 = vmatpush2.msra.mxu0 0.0
    %5368 = vmatprep.subr.mxu0 0.0
    %5369 = vmatpush2.msra.mxu0 0.0
    %5370 = vmatprep.subr.mxu0 0.0
    %5371 = vmatpush2.msra.mxu0 0.0
    %5372 = vmatprep.subr.mxu0 0.0
    %5373 = vmatpush2.msra.mxu0 0.0
    %5374 = vmatprep.subr.mxu0 0.0
    %5375 = vmatpush2.msra.mxu0 0.0
    %5376 = vmatprep.subr.mxu0 0.0
    %5377 = vmatpush2.msra.mxu0 0.0
    %5378 = vmatprep.subr.mxu0 0.0
    %5379 = vmatpush2.msra.mxu0 0.0
    %5380 = vmatprep.subr.mxu0 0.0
    %5381 = vmatpush2.msra.mxu0 0.0
    %5382 = vmatprep.subr.mxu0 0.0
    %5383 = vmatpush2.msra.mxu0 0.0
    %5384 = vmatprep.subr.mxu0 0.0
    %5385 = vmatpush2.msra.mxu0 0.0
    %5386 = vmatprep.subr.mxu0 0.0
    %5387 = vmatpush2.msra.mxu0 0.0
    %5388 = vmatprep.subr.mxu0 0.0
    %5389 = vmatpush2.msra.mxu0 0.0
    %5390 = vmatprep.subr.mxu0 0.0
    %5391 = vmatpush2.msra.mxu0 0.0
    %5392 = vmatprep.subr.mxu0 0.0
    %5393 = vmatpush2.msra.mxu0 0.0
    %5394 = vmatprep.mubr.f32.mxu0 0.0
    %5395 = vmatmul.mubr.f32.gmra.mxu0 %v5314
    %v5396 = vpop.f32.mrf.mxu0
    %v5397 = vadd.f32 0.0, %v5396
    %v5398 = vpop.f32.mrf.mxu0
    %5399 = vmatprep.mubr.f32.mxu0 0.0
    %5400 = vmatmul.mubr.f32.gmra.mxu0 %v5315
    %v5401 = vpop.f32.mrf.mxu0
    %v5402 = vadd.f32 0.0, %v5401
    %v5403 = vpop.f32.mrf.mxu0
    %5404 = vmatprep.mubr.f32.mxu0 0.0
    %5405 = vmatmul.mubr.f32.gmra.mxu0 %v5316
    %v5406 = vpop.f32.mrf.mxu0
    %v5407 = vadd.f32 0.0, %v5406
    %v5408 = vpop.f32.mrf.mxu0
    %5409 = vmatprep.mubr.f32.mxu0 0.0
    %5410 = vmatmul.mubr.f32.gmra.mxu0 %v5317
    %v5411 = vpop.f32.mrf.mxu0
    %v5412 = vadd.f32 0.0, %v5411
    %v5413 = vpop.f32.mrf.mxu0
    %5414 = vmatprep.mubr.f32.mxu0 0.0
    %5415 = vmatmul.mubr.f32.gmra.mxu0 %v5318
    %v5416 = vpop.f32.mrf.mxu0
    %v5417 = vadd.f32 0.0, %v5416
    %v5418 = vpop.f32.mrf.mxu0
    %5419 = vmatprep.mubr.f32.mxu0 0.0
    %5420 = vmatmul.mubr.f32.gmra.mxu0 %v5319
    %v5421 = vpop.f32.mrf.mxu0
    %v5422 = vadd.f32 0.0, %v5421
    %v5423 = vpop.f32.mrf.mxu0
    %5424 = vmatprep.mubr.f32.mxu0 0.0
    %5425 = vmatmul.mubr.f32.gmra.mxu0 %v5320
    %v5426 = vpop.f32.mrf.mxu0
    %v5427 = vadd.f32 0.0, %v5426
    %v5428 = vpop.f32.mrf.mxu0
    %5429 = vmatprep.mubr.f32.mxu0 0.0
    %5430 = vmatmul.mubr.f32.gmra.mxu0 %v5321
    %v5431 = vpop.f32.mrf.mxu0
    %v5432 = vadd.f32 0.0, %v5431
    %v5433 = vpop.f32.mrf.mxu0
    %5434 = vmatprep.mubr.f32.mxu0 0.0
    %5435 = vmatmul.mubr.f32.gmra.mxu0 %v5322
    %v5436 = vpop.f32.mrf.mxu0
    %v5437 = vadd.f32 0.0, %v5436
    %v5438 = vpop.f32.mrf.mxu0
    %5439 = vmatprep.mubr.f32.mxu0 0.0
    %5440 = vmatmul.mubr.f32.gmra.mxu0 %v5323
    %v5441 = vpop.f32.mrf.mxu0
    %v5442 = vadd.f32 0.0, %v5441
    %v5443 = vpop.f32.mrf.mxu0
    %5444 = vmatprep.mubr.f32.mxu0 0.0
    %5445 = vmatmul.mubr.f32.gmra.mxu0 %v5324
    %v5446 = vpop.f32.mrf.mxu0
    %v5447 = vadd.f32 0.0, %v5446
    %v5448 = vpop.f32.mrf.mxu0
    %5449 = vmatprep.mubr.f32.mxu0 0.0
    %5450 = vmatmul.mubr.f32.gmra.mxu0 %v5325
    %v5451 = vpop.f32.mrf.mxu0
    %v5452 = vadd.f32 0.0, %v5451
    %v5453 = vpop.f32.mrf.mxu0
    %5454 = vmatprep.mubr.f32.mxu0 0.0
    %5455 = vmatmul.mubr.f32.gmra.mxu0 %v5326
    %v5456 = vpop.f32.mrf.mxu0
    %v5457 = vadd.f32 0.0, %v5456
    %v5458 = vpop.f32.mrf.mxu0
    %5459 = vmatprep.mubr.f32.mxu0 0.0
    %5460 = vmatmul.mubr.f32.gmra.mxu0 %v5327
    %v5461 = vpop.f32.mrf.mxu0
    %v5462 = vadd.f32 0.0, %v5461
    %v5463 = vpop.f32.mrf.mxu0
    %5464 = vmatprep.mubr.f32.mxu0 0.0
    %5465 = vmatmul.mubr.f32.gmra.mxu0 %v5328
    %v5466 = vpop.f32.mrf.mxu0
    %v5467 = vadd.f32 0.0, %v5466
    %v5468 = vpop.f32.mrf.mxu0
    %5469 = vmatprep.mubr.f32.mxu0 0.0
    %5470 = vmatmul.mubr.f32.gmra.mxu0 %v5329
    %v5471 = vpop.f32.mrf.mxu0
    %v5472 = vadd.f32 0.0, %v5471
    %v5473 = vpop.f32.mrf.mxu0
    %5474 = vdwg.mxu0
    %v5475 = vld [vmem:[#allocation12] sm:$0xff]
    %v5476 = vld [vmem:[#allocation12 + $0x8] sm:$0xff]
    %v5477 = vld [vmem:[#allocation12 + $0x10] sm:$0xff]
    %v5478 = vld [vmem:[#allocation12 + $0x18] sm:$0xff]
    %v5479 = vld [vmem:[#allocation12 + $0x20] sm:$0xff]
    %v5480 = vld [vmem:[#allocation12 + $0x28] sm:$0xff]
    %v5481 = vld [vmem:[#allocation12 + $0x30] sm:$0xff]
    %v5482 = vld [vmem:[#allocation12 + $0x38] sm:$0xff]
    %v5483 = vld [vmem:[#allocation12 + $0x40] sm:$0xff]
    %v5484 = vld [vmem:[#allocation12 + $0x48] sm:$0xff]
    %v5485 = vld [vmem:[#allocation12 + $0x50] sm:$0xff]
    %v5486 = vld [vmem:[#allocation12 + $0x58] sm:$0xff]
    %v5487 = vld [vmem:[#allocation12 + $0x60] sm:$0xff]
    %v5488 = vld [vmem:[#allocation12 + $0x68] sm:$0xff]
    %v5489 = vld [vmem:[#allocation12 + $0x70] sm:$0xff]
    %v5490 = vld [vmem:[#allocation12 + $0x78] sm:$0xff]
    %v5491 = vld [vmem:[#allocation13] sm:$0xff]
    %v5492 = vld [vmem:[#allocation13 + $0x8] sm:$0xff]
    %v5493 = vld [vmem:[#allocation13 + $0x10] sm:$0xff]
    %v5494 = vld [vmem:[#allocation13 + $0x18] sm:$0xff]
    %v5495 = vld [vmem:[#allocation13 + $0x20] sm:$0xff]
    %v5496 = vld [vmem:[#allocation13 + $0x28] sm:$0xff]
    %v5497 = vld [vmem:[#allocation13 + $0x30] sm:$0xff]
    %v5498 = vld [vmem:[#allocation13 + $0x38] sm:$0xff]
    %v5499 = vld [vmem:[#allocation13 + $0x40] sm:$0xff]
    %v5500 = vld [vmem:[#allocation13 + $0x48] sm:$0xff]
    %v5501 = vld [vmem:[#allocation13 + $0x50] sm:$0xff]
    %v5502 = vld [vmem:[#allocation13 + $0x58] sm:$0xff]
    %v5503 = vld [vmem:[#allocation13 + $0x60] sm:$0xff]
    %v5504 = vld [vmem:[#allocation13 + $0x68] sm:$0xff]
    %v5505 = vld [vmem:[#allocation13 + $0x70] sm:$0xff]
    %v5506 = vld [vmem:[#allocation13 + $0x78] sm:$0xff]
    %5507 = vmatprep.subr.mxu0 0.0
    %5508 = vmatpush1.msra.mxu0 %v5506
    %5509 = vmatprep.subr.mxu0 0.0
    %5510 = vmatpush1.msra.mxu0 %v5505
    %5511 = vmatprep.subr.mxu0 0.0
    %5512 = vmatpush1.msra.mxu0 %v5504
    %5513 = vmatprep.subr.mxu0 0.0
    %5514 = vmatpush1.msra.mxu0 %v5503
    %5515 = vmatprep.subr.mxu0 0.0
    %5516 = vmatpush1.msra.mxu0 %v5502
    %5517 = vmatprep.subr.mxu0 0.0
    %5518 = vmatpush1.msra.mxu0 %v5501
    %5519 = vmatprep.subr.mxu0 0.0
    %5520 = vmatpush1.msra.mxu0 %v5500
    %5521 = vmatprep.subr.mxu0 0.0
    %5522 = vmatpush1.msra.mxu0 %v5499
    %5523 = vmatprep.subr.mxu0 0.0
    %5524 = vmatpush1.msra.mxu0 %v5498
    %5525 = vmatprep.subr.mxu0 0.0
    %5526 = vmatpush1.msra.mxu0 %v5497
    %5527 = vmatprep.subr.mxu0 0.0
    %5528 = vmatpush1.msra.mxu0 %v5496
    %5529 = vmatprep.subr.mxu0 0.0
    %5530 = vmatpush1.msra.mxu0 %v5495
    %5531 = vmatprep.subr.mxu0 0.0
    %5532 = vmatpush1.msra.mxu0 %v5494
    %5533 = vmatprep.subr.mxu0 0.0
    %5534 = vmatpush1.msra.mxu0 %v5493
    %5535 = vmatprep.subr.mxu0 0.0
    %5536 = vmatpush1.msra.mxu0 %v5492
    %5537 = vmatprep.subr.mxu0 0.0
    %5538 = vmatpush1.msra.mxu0 %v5491
    %5539 = vmatprep.subr.mxu0 0.0
    %5540 = vmatpush2.msra.mxu0 0.0
    %5541 = vmatprep.subr.mxu0 0.0
    %5542 = vmatpush2.msra.mxu0 0.0
    %5543 = vmatprep.subr.mxu0 0.0
    %5544 = vmatpush2.msra.mxu0 0.0
    %5545 = vmatprep.subr.mxu0 0.0
    %5546 = vmatpush2.msra.mxu0 0.0
    %5547 = vmatprep.subr.mxu0 0.0
    %5548 = vmatpush2.msra.mxu0 0.0
    %5549 = vmatprep.subr.mxu0 0.0
    %5550 = vmatpush2.msra.mxu0 0.0
    %5551 = vmatprep.subr.mxu0 0.0
    %5552 = vmatpush2.msra.mxu0 0.0
    %5553 = vmatprep.subr.mxu0 0.0
    %5554 = vmatpush2.msra.mxu0 0.0
    %5555 = vmatprep.subr.mxu0 0.0
    %5556 = vmatpush2.msra.mxu0 0.0
    %5557 = vmatprep.subr.mxu0 0.0
    %5558 = vmatpush2.msra.mxu0 0.0
    %5559 = vmatprep.subr.mxu0 0.0
    %5560 = vmatpush2.msra.mxu0 0.0
    %5561 = vmatprep.subr.mxu0 0.0
    %5562 = vmatpush2.msra.mxu0 0.0
    %5563 = vmatprep.subr.mxu0 0.0
    %5564 = vmatpush2.msra.mxu0 0.0
    %5565 = vmatprep.subr.mxu0 0.0
    %5566 = vmatpush2.msra.mxu0 0.0
    %5567 = vmatprep.subr.mxu0 0.0
    %5568 = vmatpush2.msra.mxu0 0.0
    %5569 = vmatprep.subr.mxu0 0.0
    %5570 = vmatpush2.msra.mxu0 0.0
    %5571 = vmatprep.mubr.f32.mxu0 0.0
    %5572 = vmatmul.mubr.f32.gmra.mxu0 %v5397
    %v5573 = vpop.f32.mrf.mxu0
    %v5574 = vadd.f32 0.0, %v5573
    %v5575 = vpop.f32.mrf.mxu0
    %5576 = vmatprep.mubr.f32.mxu0 0.0
    %5577 = vmatmul.mubr.f32.gmra.mxu0 %v5402
    %v5578 = vpop.f32.mrf.mxu0
    %v5579 = vadd.f32 0.0, %v5578
    %v5580 = vpop.f32.mrf.mxu0
    %5581 = vmatprep.mubr.f32.mxu0 0.0
    %5582 = vmatmul.mubr.f32.gmra.mxu0 %v5407
    %v5583 = vpop.f32.mrf.mxu0
    %v5584 = vadd.f32 0.0, %v5583
    %v5585 = vpop.f32.mrf.mxu0
    %5586 = vmatprep.mubr.f32.mxu0 0.0
    %5587 = vmatmul.mubr.f32.gmra.mxu0 %v5412
    %v5588 = vpop.f32.mrf.mxu0
    %v5589 = vadd.f32 0.0, %v5588
    %v5590 = vpop.f32.mrf.mxu0
    %5591 = vmatprep.mubr.f32.mxu0 0.0
    %5592 = vmatmul.mubr.f32.gmra.mxu0 %v5417
    %v5593 = vpop.f32.mrf.mxu0
    %v5594 = vadd.f32 0.0, %v5593
    %v5595 = vpop.f32.mrf.mxu0
    %5596 = vmatprep.mubr.f32.mxu0 0.0
    %5597 = vmatmul.mubr.f32.gmra.mxu0 %v5422
    %v5598 = vpop.f32.mrf.mxu0
    %v5599 = vadd.f32 0.0, %v5598
    %v5600 = vpop.f32.mrf.mxu0
    %5601 = vmatprep.mubr.f32.mxu0 0.0
    %5602 = vmatmul.mubr.f32.gmra.mxu0 %v5427
    %v5603 = vpop.f32.mrf.mxu0
    %v5604 = vadd.f32 0.0, %v5603
    %v5605 = vpop.f32.mrf.mxu0
    %5606 = vmatprep.mubr.f32.mxu0 0.0
    %5607 = vmatmul.mubr.f32.gmra.mxu0 %v5432
    %v5608 = vpop.f32.mrf.mxu0
    %v5609 = vadd.f32 0.0, %v5608
    %v5610 = vpop.f32.mrf.mxu0
    %5611 = vmatprep.mubr.f32.mxu0 0.0
    %5612 = vmatmul.mubr.f32.gmra.mxu0 %v5437
    %v5613 = vpop.f32.mrf.mxu0
    %v5614 = vadd.f32 0.0, %v5613
    %v5615 = vpop.f32.mrf.mxu0
    %5616 = vmatprep.mubr.f32.mxu0 0.0
    %5617 = vmatmul.mubr.f32.gmra.mxu0 %v5442
    %v5618 = vpop.f32.mrf.mxu0
    %v5619 = vadd.f32 0.0, %v5618
    %v5620 = vpop.f32.mrf.mxu0
    %5621 = vmatprep.mubr.f32.mxu0 0.0
    %5622 = vmatmul.mubr.f32.gmra.mxu0 %v5447
    %v5623 = vpop.f32.mrf.mxu0
    %v5624 = vadd.f32 0.0, %v5623
    %v5625 = vpop.f32.mrf.mxu0
    %5626 = vmatprep.mubr.f32.mxu0 0.0
    %5627 = vmatmul.mubr.f32.gmra.mxu0 %v5452
    %v5628 = vpop.f32.mrf.mxu0
    %v5629 = vadd.f32 0.0, %v5628
    %v5630 = vpop.f32.mrf.mxu0
    %5631 = vmatprep.mubr.f32.mxu0 0.0
    %5632 = vmatmul.mubr.f32.gmra.mxu0 %v5457
    %v5633 = vpop.f32.mrf.mxu0
    %v5634 = vadd.f32 0.0, %v5633
    %v5635 = vpop.f32.mrf.mxu0
    %5636 = vmatprep.mubr.f32.mxu0 0.0
    %5637 = vmatmul.mubr.f32.gmra.mxu0 %v5462
    %v5638 = vpop.f32.mrf.mxu0
    %v5639 = vadd.f32 0.0, %v5638
    %v5640 = vpop.f32.mrf.mxu0
    %5641 = vmatprep.mubr.f32.mxu0 0.0
    %5642 = vmatmul.mubr.f32.gmra.mxu0 %v5467
    %v5643 = vpop.f32.mrf.mxu0
    %v5644 = vadd.f32 0.0, %v5643
    %v5645 = vpop.f32.mrf.mxu0
    %5646 = vmatprep.mubr.f32.mxu0 0.0
    %5647 = vmatmul.mubr.f32.gmra.mxu0 %v5472
    %v5648 = vpop.f32.mrf.mxu0
    %v5649 = vadd.f32 0.0, %v5648
    %v5650 = vpop.f32.mrf.mxu0
    %5651 = vdwg.mxu0
    %5652 = vmatprep.subr.mxu0 0.0
    %5653 = vmatpush1.msra.mxu0 %v5490
    %5654 = vmatprep.subr.mxu0 0.0
    %5655 = vmatpush1.msra.mxu0 %v5489
    %5656 = vmatprep.subr.mxu0 0.0
    %5657 = vmatpush1.msra.mxu0 %v5488
    %5658 = vmatprep.subr.mxu0 0.0
    %5659 = vmatpush1.msra.mxu0 %v5487
    %5660 = vmatprep.subr.mxu0 0.0
    %5661 = vmatpush1.msra.mxu0 %v5486
    %5662 = vmatprep.subr.mxu0 0.0
    %5663 = vmatpush1.msra.mxu0 %v5485
    %5664 = vmatprep.subr.mxu0 0.0
    %5665 = vmatpush1.msra.mxu0 %v5484
    %5666 = vmatprep.subr.mxu0 0.0
    %5667 = vmatpush1.msra.mxu0 %v5483
    %5668 = vmatprep.subr.mxu0 0.0
    %5669 = vmatpush1.msra.mxu0 %v5482
    %5670 = vmatprep.subr.mxu0 0.0
    %5671 = vmatpush1.msra.mxu0 %v5481
    %5672 = vmatprep.subr.mxu0 0.0
    %5673 = vmatpush1.msra.mxu0 %v5480
    %5674 = vmatprep.subr.mxu0 0.0
    %5675 = vmatpush1.msra.mxu0 %v5479
    %5676 = vmatprep.subr.mxu0 0.0
    %5677 = vmatpush1.msra.mxu0 %v5478
    %5678 = vmatprep.subr.mxu0 0.0
    %5679 = vmatpush1.msra.mxu0 %v5477
    %5680 = vmatprep.subr.mxu0 0.0
    %5681 = vmatpush1.msra.mxu0 %v5476
    %5682 = vmatprep.subr.mxu0 0.0
    %5683 = vmatpush1.msra.mxu0 %v5475
    %5684 = vmatprep.subr.mxu0 0.0
    %5685 = vmatpush2.msra.mxu0 0.0
    %5686 = vmatprep.subr.mxu0 0.0
    %5687 = vmatpush2.msra.mxu0 0.0
    %5688 = vmatprep.subr.mxu0 0.0
    %5689 = vmatpush2.msra.mxu0 0.0
    %5690 = vmatprep.subr.mxu0 0.0
    %5691 = vmatpush2.msra.mxu0 0.0
    %5692 = vmatprep.subr.mxu0 0.0
    %5693 = vmatpush2.msra.mxu0 0.0
    %5694 = vmatprep.subr.mxu0 0.0
    %5695 = vmatpush2.msra.mxu0 0.0
    %5696 = vmatprep.subr.mxu0 0.0
    %5697 = vmatpush2.msra.mxu0 0.0
    %5698 = vmatprep.subr.mxu0 0.0
    %5699 = vmatpush2.msra.mxu0 0.0
    %5700 = vmatprep.subr.mxu0 0.0
    %5701 = vmatpush2.msra.mxu0 0.0
    %5702 = vmatprep.subr.mxu0 0.0
    %5703 = vmatpush2.msra.mxu0 0.0
    %5704 = vmatprep.subr.mxu0 0.0
    %5705 = vmatpush2.msra.mxu0 0.0
    %5706 = vmatprep.subr.mxu0 0.0
    %5707 = vmatpush2.msra.mxu0 0.0
    %5708 = vmatprep.subr.mxu0 0.0
    %5709 = vmatpush2.msra.mxu0 0.0
    %5710 = vmatprep.subr.mxu0 0.0
    %5711 = vmatpush2.msra.mxu0 0.0
    %5712 = vmatprep.subr.mxu0 0.0
    %5713 = vmatpush2.msra.mxu0 0.0
    %5714 = vmatprep.subr.mxu0 0.0
    %5715 = vmatpush2.msra.mxu0 0.0
    %5716 = vmatprep.mubr.f32.mxu0 0.0
    %5717 = vmatmul.mubr.f32.gmra.mxu0 %v5236
    %v5718 = vpop.f32.mrf.mxu0
    %v5719 = vadd.f32 %v5574, %v5718
    %v5720 = vpop.f32.mrf.mxu0
    %5721 = vmatprep.mubr.f32.mxu0 0.0
    %5722 = vmatmul.mubr.f32.gmra.mxu0 %v5241
    %v5723 = vpop.f32.mrf.mxu0
    %v5724 = vadd.f32 %v5579, %v5723
    %v5725 = vpop.f32.mrf.mxu0
    %5726 = vmatprep.mubr.f32.mxu0 0.0
    %5727 = vmatmul.mubr.f32.gmra.mxu0 %v5246
    %v5728 = vpop.f32.mrf.mxu0
    %v5729 = vadd.f32 %v5584, %v5728
    %v5730 = vpop.f32.mrf.mxu0
    %5731 = vmatprep.mubr.f32.mxu0 0.0
    %5732 = vmatmul.mubr.f32.gmra.mxu0 %v5251
    %v5733 = vpop.f32.mrf.mxu0
    %v5734 = vadd.f32 %v5589, %v5733
    %v5735 = vpop.f32.mrf.mxu0
    %5736 = vmatprep.mubr.f32.mxu0 0.0
    %5737 = vmatmul.mubr.f32.gmra.mxu0 %v5256
    %v5738 = vpop.f32.mrf.mxu0
    %v5739 = vadd.f32 %v5594, %v5738
    %v5740 = vpop.f32.mrf.mxu0
    %5741 = vmatprep.mubr.f32.mxu0 0.0
    %5742 = vmatmul.mubr.f32.gmra.mxu0 %v5261
    %v5743 = vpop.f32.mrf.mxu0
    %v5744 = vadd.f32 %v5599, %v5743
    %v5745 = vpop.f32.mrf.mxu0
    %5746 = vmatprep.mubr.f32.mxu0 0.0
    %5747 = vmatmul.mubr.f32.gmra.mxu0 %v5266
    %v5748 = vpop.f32.mrf.mxu0
    %v5749 = vadd.f32 %v5604, %v5748
    %v5750 = vpop.f32.mrf.mxu0
    %5751 = vmatprep.mubr.f32.mxu0 0.0
    %5752 = vmatmul.mubr.f32.gmra.mxu0 %v5271
    %v5753 = vpop.f32.mrf.mxu0
    %v5754 = vadd.f32 %v5609, %v5753
    %v5755 = vpop.f32.mrf.mxu0
    %5756 = vmatprep.mubr.f32.mxu0 0.0
    %5757 = vmatmul.mubr.f32.gmra.mxu0 %v5276
    %v5758 = vpop.f32.mrf.mxu0
    %v5759 = vadd.f32 %v5614, %v5758
    %v5760 = vpop.f32.mrf.mxu0
    %5761 = vmatprep.mubr.f32.mxu0 0.0
    %5762 = vmatmul.mubr.f32.gmra.mxu0 %v5281
    %v5763 = vpop.f32.mrf.mxu0
    %v5764 = vadd.f32 %v5619, %v5763
    %v5765 = vpop.f32.mrf.mxu0
    %5766 = vmatprep.mubr.f32.mxu0 0.0
    %5767 = vmatmul.mubr.f32.gmra.mxu0 %v5286
    %v5768 = vpop.f32.mrf.mxu0
    %v5769 = vadd.f32 %v5624, %v5768
    %v5770 = vpop.f32.mrf.mxu0
    %5771 = vmatprep.mubr.f32.mxu0 0.0
    %5772 = vmatmul.mubr.f32.gmra.mxu0 %v5291
    %v5773 = vpop.f32.mrf.mxu0
    %v5774 = vadd.f32 %v5629, %v5773
    %v5775 = vpop.f32.mrf.mxu0
    %5776 = vmatprep.mubr.f32.mxu0 0.0
    %5777 = vmatmul.mubr.f32.gmra.mxu0 %v5296
    %v5778 = vpop.f32.mrf.mxu0
    %v5779 = vadd.f32 %v5634, %v5778
    %v5780 = vpop.f32.mrf.mxu0
    %5781 = vmatprep.mubr.f32.mxu0 0.0
    %5782 = vmatmul.mubr.f32.gmra.mxu0 %v5301
    %v5783 = vpop.f32.mrf.mxu0
    %v5784 = vadd.f32 %v5639, %v5783
    %v5785 = vpop.f32.mrf.mxu0
    %5786 = vmatprep.mubr.f32.mxu0 0.0
    %5787 = vmatmul.mubr.f32.gmra.mxu0 %v5306
    %v5788 = vpop.f32.mrf.mxu0
    %v5789 = vadd.f32 %v5644, %v5788
    %v5790 = vpop.f32.mrf.mxu0
    %5791 = vmatprep.mubr.f32.mxu0 0.0
    %5792 = vmatmul.mubr.f32.gmra.mxu0 %v5311
    %v5793 = vpop.f32.mrf.mxu0
    %v5794 = vadd.f32 %v5649, %v5793
    %v5795 = vpop.f32.mrf.mxu0
    %5796 = vdwg.mxu0
    %v5797 = vld [vmem:[#allocation3] sm:$0xff]
    %v5798 = vld [vmem:[#allocation3 + $0x8] sm:$0xff]
    %v5799 = vld [vmem:[#allocation3 + $0x10] sm:$0xff]
    %v5800 = vld [vmem:[#allocation3 + $0x18] sm:$0xff]
    %v5801 = vld [vmem:[#allocation3 + $0x20] sm:$0xff]
    %v5802 = vld [vmem:[#allocation3 + $0x28] sm:$0xff]
    %v5803 = vld [vmem:[#allocation3 + $0x30] sm:$0xff]
    %v5804 = vld [vmem:[#allocation3 + $0x38] sm:$0xff]
    %v5805 = vld [vmem:[#allocation3 + $0x40] sm:$0xff]
    %v5806 = vld [vmem:[#allocation3 + $0x48] sm:$0xff]
    %v5807 = vld [vmem:[#allocation3 + $0x50] sm:$0xff]
    %v5808 = vld [vmem:[#allocation3 + $0x58] sm:$0xff]
    %v5809 = vld [vmem:[#allocation3 + $0x60] sm:$0xff]
    %v5810 = vld [vmem:[#allocation3 + $0x68] sm:$0xff]
    %v5811 = vld [vmem:[#allocation3 + $0x70] sm:$0xff]
    %v5812 = vld [vmem:[#allocation3 + $0x78] sm:$0xff]
    %v5813 = vadd.f32 %v5719, %v5797
    %v5814 = vadd.f32 %v5724, %v5798
    %v5815 = vadd.f32 %v5729, %v5799
    %v5816 = vadd.f32 %v5734, %v5800
    %v5817 = vadd.f32 %v5739, %v5801
    %v5818 = vadd.f32 %v5744, %v5802
    %v5819 = vadd.f32 %v5749, %v5803
    %v5820 = vadd.f32 %v5754, %v5804
    %v5821 = vadd.f32 %v5759, %v5805
    %v5822 = vadd.f32 %v5764, %v5806
    %v5823 = vadd.f32 %v5769, %v5807
    %v5824 = vadd.f32 %v5774, %v5808
    %v5825 = vadd.f32 %v5779, %v5809
    %v5826 = vadd.f32 %v5784, %v5810
    %v5827 = vadd.f32 %v5789, %v5811
    %v5828 = vadd.f32 %v5794, %v5812
    %v5829 = vmax.f32 %v5813, 0.0
    %v5830 = vmax.f32 %v5814, 0.0
    %v5831 = vmax.f32 %v5815, 0.0
    %v5832 = vmax.f32 %v5816, 0.0
    %v5833 = vmax.f32 %v5817, 0.0
    %v5834 = vmax.f32 %v5818, 0.0
    %v5835 = vmax.f32 %v5819, 0.0
    %v5836 = vmax.f32 %v5820, 0.0
    %v5837 = vmax.f32 %v5821, 0.0
    %v5838 = vmax.f32 %v5822, 0.0
    %v5839 = vmax.f32 %v5823, 0.0
    %v5840 = vmax.f32 %v5824, 0.0
    %v5841 = vmax.f32 %v5825, 0.0
    %v5842 = vmax.f32 %v5826, 0.0
    %v5843 = vmax.f32 %v5827, 0.0
    %v5844 = vmax.f32 %v5828, 0.0
    %v5845 = vld [vmem:[#allocation15] sm:$0xff]
    %v5846 = vld [vmem:[#allocation15 + $0x8] sm:$0xff]
    %v5847 = vld [vmem:[#allocation15 + $0x10] sm:$0xff]
    %v5848 = vld [vmem:[#allocation15 + $0x18] sm:$0xff]
    %v5849 = vld [vmem:[#allocation15 + $0x20] sm:$0xff]
    %v5850 = vld [vmem:[#allocation15 + $0x28] sm:$0xff]
    %v5851 = vld [vmem:[#allocation15 + $0x30] sm:$0xff]
    %v5852 = vld [vmem:[#allocation15 + $0x38] sm:$0xff]
    %v5853 = vld [vmem:[#allocation15 + $0x40] sm:$0xff]
    %v5854 = vld [vmem:[#allocation15 + $0x48] sm:$0xff]
    %v5855 = vld [vmem:[#allocation15 + $0x50] sm:$0xff]
    %v5856 = vld [vmem:[#allocation15 + $0x58] sm:$0xff]
    %v5857 = vld [vmem:[#allocation15 + $0x60] sm:$0xff]
    %v5858 = vld [vmem:[#allocation15 + $0x68] sm:$0xff]
    %v5859 = vld [vmem:[#allocation15 + $0x70] sm:$0xff]
    %v5860 = vld [vmem:[#allocation15 + $0x78] sm:$0xff]
    %v5861 = vld [vmem:[%s12] sm:$0x1]
    %v5863 = vlaneseq
    %v5864 = vshrl.u32 %v5863, 7
    %v5865 = vsub.s32 0, %v5864
    %v5866 = vrot.slane %v5861, %v5865
    %5868 = vmatprep.subr.mxu0 0.0
    %5869 = vmatpush1.msra.mxu0 %v5860
    %5870 = vmatprep.subr.mxu0 0.0
    %5871 = vmatpush1.msra.mxu0 %v5859
    %5872 = vmatprep.subr.mxu0 0.0
    %5873 = vmatpush1.msra.mxu0 %v5858
    %5874 = vmatprep.subr.mxu0 0.0
    %5875 = vmatpush1.msra.mxu0 %v5857
    %5876 = vmatprep.subr.mxu0 0.0
    %5877 = vmatpush1.msra.mxu0 %v5856
    %5878 = vmatprep.subr.mxu0 0.0
    %5879 = vmatpush1.msra.mxu0 %v5855
    %5880 = vmatprep.subr.mxu0 0.0
    %5881 = vmatpush1.msra.mxu0 %v5854
    %5882 = vmatprep.subr.mxu0 0.0
    %5883 = vmatpush1.msra.mxu0 %v5853
    %5884 = vmatprep.subr.mxu0 0.0
    %5885 = vmatpush1.msra.mxu0 %v5852
    %5886 = vmatprep.subr.mxu0 0.0
    %5887 = vmatpush1.msra.mxu0 %v5851
    %5888 = vmatprep.subr.mxu0 0.0
    %5889 = vmatpush1.msra.mxu0 %v5850
    %5890 = vmatprep.subr.mxu0 0.0
    %5891 = vmatpush1.msra.mxu0 %v5849
    %5892 = vmatprep.subr.mxu0 0.0
    %5893 = vmatpush1.msra.mxu0 %v5848
    %5894 = vmatprep.subr.mxu0 0.0
    %5895 = vmatpush1.msra.mxu0 %v5847
    %5896 = vmatprep.subr.mxu0 0.0
    %5897 = vmatpush1.msra.mxu0 %v5846
    %5898 = vmatprep.subr.mxu0 0.0
    %5899 = vmatpush1.msra.mxu0 %v5845
    %5900 = vmatprep.subr.mxu0 0.0
    %5901 = vmatpush2.msra.mxu0 0.0
    %5902 = vmatprep.subr.mxu0 0.0
    %5903 = vmatpush2.msra.mxu0 0.0
    %5904 = vmatprep.subr.mxu0 0.0
    %5905 = vmatpush2.msra.mxu0 0.0
    %5906 = vmatprep.subr.mxu0 0.0
    %5907 = vmatpush2.msra.mxu0 0.0
    %5908 = vmatprep.subr.mxu0 0.0
    %5909 = vmatpush2.msra.mxu0 0.0
    %5910 = vmatprep.subr.mxu0 0.0
    %5911 = vmatpush2.msra.mxu0 0.0
    %5912 = vmatprep.subr.mxu0 0.0
    %5913 = vmatpush2.msra.mxu0 0.0
    %5914 = vmatprep.subr.mxu0 0.0
    %5915 = vmatpush2.msra.mxu0 0.0
    %5916 = vmatprep.subr.mxu0 0.0
    %5917 = vmatpush2.msra.mxu0 0.0
    %5918 = vmatprep.subr.mxu0 0.0
    %5919 = vmatpush2.msra.mxu0 0.0
    %5920 = vmatprep.subr.mxu0 0.0
    %5921 = vmatpush2.msra.mxu0 0.0
    %5922 = vmatprep.subr.mxu0 0.0
    %5923 = vmatpush2.msra.mxu0 0.0
    %5924 = vmatprep.subr.mxu0 0.0
    %5925 = vmatpush2.msra.mxu0 0.0
    %5926 = vmatprep.subr.mxu0 0.0
    %5927 = vmatpush2.msra.mxu0 0.0
    %5928 = vmatprep.subr.mxu0 0.0
    %5929 = vmatpush2.msra.mxu0 0.0
    %5930 = vmatprep.subr.mxu0 0.0
    %5931 = vmatpush2.msra.mxu0 0.0
    %5932 = vmatprep.mubr.f32.mxu0 0.0
    %5933 = vmatmul.mubr.f32.gmra.mxu0 %v5829
    %v5934 = vpop.f32.mrf.mxu0
    %v5935 = vadd.f32 %v5866, %v5934
    %v5936 = vpop.f32.mrf.mxu0
    %5937 = vmatprep.mubr.f32.mxu0 0.0
    %5938 = vmatmul.mubr.f32.gmra.mxu0 %v5830
    %v5939 = vpop.f32.mrf.mxu0
    %v5940 = vadd.f32 %v5866, %v5939
    %v5941 = vpop.f32.mrf.mxu0
    %5942 = vmatprep.mubr.f32.mxu0 0.0
    %5943 = vmatmul.mubr.f32.gmra.mxu0 %v5831
    %v5944 = vpop.f32.mrf.mxu0
    %v5945 = vadd.f32 %v5866, %v5944
    %v5946 = vpop.f32.mrf.mxu0
    %5947 = vmatprep.mubr.f32.mxu0 0.0
    %5948 = vmatmul.mubr.f32.gmra.mxu0 %v5832
    %v5949 = vpop.f32.mrf.mxu0
    %v5950 = vadd.f32 %v5866, %v5949
    %v5951 = vpop.f32.mrf.mxu0
    %5952 = vmatprep.mubr.f32.mxu0 0.0
    %5953 = vmatmul.mubr.f32.gmra.mxu0 %v5833
    %v5954 = vpop.f32.mrf.mxu0
    %v5955 = vadd.f32 %v5866, %v5954
    %v5956 = vpop.f32.mrf.mxu0
    %5957 = vmatprep.mubr.f32.mxu0 0.0
    %5958 = vmatmul.mubr.f32.gmra.mxu0 %v5834
    %v5959 = vpop.f32.mrf.mxu0
    %v5960 = vadd.f32 %v5866, %v5959
    %v5961 = vpop.f32.mrf.mxu0
    %5962 = vmatprep.mubr.f32.mxu0 0.0
    %5963 = vmatmul.mubr.f32.gmra.mxu0 %v5835
    %v5964 = vpop.f32.mrf.mxu0
    %v5965 = vadd.f32 %v5866, %v5964
    %v5966 = vpop.f32.mrf.mxu0
    %5967 = vmatprep.mubr.f32.mxu0 0.0
    %5968 = vmatmul.mubr.f32.gmra.mxu0 %v5836
    %v5969 = vpop.f32.mrf.mxu0
    %v5970 = vadd.f32 %v5866, %v5969
    %v5971 = vpop.f32.mrf.mxu0
    %5972 = vmatprep.mubr.f32.mxu0 0.0
    %5973 = vmatmul.mubr.f32.gmra.mxu0 %v5837
    %v5974 = vpop.f32.mrf.mxu0
    %v5975 = vadd.f32 %v5866, %v5974
    %v5976 = vpop.f32.mrf.mxu0
    %5977 = vmatprep.mubr.f32.mxu0 0.0
    %5978 = vmatmul.mubr.f32.gmra.mxu0 %v5838
    %v5979 = vpop.f32.mrf.mxu0
    %v5980 = vadd.f32 %v5866, %v5979
    %v5981 = vpop.f32.mrf.mxu0
    %5982 = vmatprep.mubr.f32.mxu0 0.0
    %5983 = vmatmul.mubr.f32.gmra.mxu0 %v5839
    %v5984 = vpop.f32.mrf.mxu0
    %v5985 = vadd.f32 %v5866, %v5984
    %v5986 = vpop.f32.mrf.mxu0
    %5987 = vmatprep.mubr.f32.mxu0 0.0
    %5988 = vmatmul.mubr.f32.gmra.mxu0 %v5840
    %v5989 = vpop.f32.mrf.mxu0
    %v5990 = vadd.f32 %v5866, %v5989
    %v5991 = vpop.f32.mrf.mxu0
    %5992 = vmatprep.mubr.f32.mxu0 0.0
    %5993 = vmatmul.mubr.f32.gmra.mxu0 %v5841
    %v5994 = vpop.f32.mrf.mxu0
    %v5995 = vadd.f32 %v5866, %v5994
    %v5996 = vpop.f32.mrf.mxu0
    %5997 = vmatprep.mubr.f32.mxu0 0.0
    %5998 = vmatmul.mubr.f32.gmra.mxu0 %v5842
    %v5999 = vpop.f32.mrf.mxu0
    %v6000 = vadd.f32 %v5866, %v5999
    %v6001 = vpop.f32.mrf.mxu0
    %6002 = vmatprep.mubr.f32.mxu0 0.0
    %6003 = vmatmul.mubr.f32.gmra.mxu0 %v5843
    %v6004 = vpop.f32.mrf.mxu0
    %v6005 = vadd.f32 %v5866, %v6004
    %v6006 = vpop.f32.mrf.mxu0
    %6007 = vmatprep.mubr.f32.mxu0 0.0
    %6008 = vmatmul.mubr.f32.gmra.mxu0 %v5844
    %v6009 = vpop.f32.mrf.mxu0
    %v6010 = vadd.f32 %v5866, %v6009
    %v6011 = vpop.f32.mrf.mxu0
    %6012 = vdwg.mxu0
    %v6013 = vmax.f32 %v5935, 0.0
    %v6014 = vmax.f32 %v5940, 0.0
    %v6015 = vmax.f32 %v5945, 0.0
    %v6016 = vmax.f32 %v5950, 0.0
    %v6017 = vmax.f32 %v5955, 0.0
    %v6018 = vmax.f32 %v5960, 0.0
    %v6019 = vmax.f32 %v5965, 0.0
    %v6020 = vmax.f32 %v5970, 0.0
    %v6021 = vmax.f32 %v5975, 0.0
    %v6022 = vmax.f32 %v5980, 0.0
    %v6023 = vmax.f32 %v5985, 0.0
    %v6024 = vmax.f32 %v5990, 0.0
    %v6025 = vmax.f32 %v5995, 0.0
    %v6026 = vmax.f32 %v6000, 0.0
    %v6027 = vmax.f32 %v6005, 0.0
    %v6028 = vmax.f32 %v6010, 0.0
    %v6029 = vld [vmem:[#allocation16] sm:$0xff]
    %v6030 = vld [vmem:[#allocation16 + $0x8] sm:$0xff]
    %v6031 = vld [vmem:[#allocation16 + $0x10] sm:$0xff]
    %v6032 = vld [vmem:[#allocation16 + $0x18] sm:$0xff]
    %v6033 = vld [vmem:[#allocation16 + $0x20] sm:$0xff]
    %v6034 = vld [vmem:[#allocation16 + $0x28] sm:$0xff]
    %v6035 = vld [vmem:[#allocation16 + $0x30] sm:$0xff]
    %v6036 = vld [vmem:[#allocation16 + $0x38] sm:$0xff]
    %v6037 = vld [vmem:[#allocation16 + $0x40] sm:$0xff]
    %v6038 = vld [vmem:[#allocation16 + $0x48] sm:$0xff]
    %v6039 = vld [vmem:[#allocation16 + $0x50] sm:$0xff]
    %v6040 = vld [vmem:[#allocation16 + $0x58] sm:$0xff]
    %v6041 = vld [vmem:[#allocation16 + $0x60] sm:$0xff]
    %v6042 = vld [vmem:[#allocation16 + $0x68] sm:$0xff]
    %v6043 = vld [vmem:[#allocation16 + $0x70] sm:$0xff]
    %v6044 = vld [vmem:[#allocation16 + $0x78] sm:$0xff]
    %v6045 = vld [vmem:[%s14] sm:$0x1]
    %v6047 = vlaneseq
    %v6048 = vshrl.u32 %v6047, 7
    %v6049 = vsub.s32 0, %v6048
    %v6050 = vrot.slane %v6045, %v6049
    %6052 = vmatprep.subr.mxu0 0.0
    %6053 = vmatpush1.msra.mxu0 %v6044
    %6054 = vmatprep.subr.mxu0 0.0
    %6055 = vmatpush1.msra.mxu0 %v6043
    %6056 = vmatprep.subr.mxu0 0.0
    %6057 = vmatpush1.msra.mxu0 %v6042
    %6058 = vmatprep.subr.mxu0 0.0
    %6059 = vmatpush1.msra.mxu0 %v6041
    %6060 = vmatprep.subr.mxu0 0.0
    %6061 = vmatpush1.msra.mxu0 %v6040
    %6062 = vmatprep.subr.mxu0 0.0
    %6063 = vmatpush1.msra.mxu0 %v6039
    %6064 = vmatprep.subr.mxu0 0.0
    %6065 = vmatpush1.msra.mxu0 %v6038
    %6066 = vmatprep.subr.mxu0 0.0
    %6067 = vmatpush1.msra.mxu0 %v6037
    %6068 = vmatprep.subr.mxu0 0.0
    %6069 = vmatpush1.msra.mxu0 %v6036
    %6070 = vmatprep.subr.mxu0 0.0
    %6071 = vmatpush1.msra.mxu0 %v6035
    %6072 = vmatprep.subr.mxu0 0.0
    %6073 = vmatpush1.msra.mxu0 %v6034
    %6074 = vmatprep.subr.mxu0 0.0
    %6075 = vmatpush1.msra.mxu0 %v6033
    %6076 = vmatprep.subr.mxu0 0.0
    %6077 = vmatpush1.msra.mxu0 %v6032
    %6078 = vmatprep.subr.mxu0 0.0
    %6079 = vmatpush1.msra.mxu0 %v6031
    %6080 = vmatprep.subr.mxu0 0.0
    %6081 = vmatpush1.msra.mxu0 %v6030
    %6082 = vmatprep.subr.mxu0 0.0
    %6083 = vmatpush1.msra.mxu0 %v6029
    %6084 = vmatprep.subr.mxu0 0.0
    %6085 = vmatpush2.msra.mxu0 0.0
    %6086 = vmatprep.subr.mxu0 0.0
    %6087 = vmatpush2.msra.mxu0 0.0
    %6088 = vmatprep.subr.mxu0 0.0
    %6089 = vmatpush2.msra.mxu0 0.0
    %6090 = vmatprep.subr.mxu0 0.0
    %6091 = vmatpush2.msra.mxu0 0.0
    %6092 = vmatprep.subr.mxu0 0.0
    %6093 = vmatpush2.msra.mxu0 0.0
    %6094 = vmatprep.subr.mxu0 0.0
    %6095 = vmatpush2.msra.mxu0 0.0
    %6096 = vmatprep.subr.mxu0 0.0
    %6097 = vmatpush2.msra.mxu0 0.0
    %6098 = vmatprep.subr.mxu0 0.0
    %6099 = vmatpush2.msra.mxu0 0.0
    %6100 = vmatprep.subr.mxu0 0.0
    %6101 = vmatpush2.msra.mxu0 0.0
    %6102 = vmatprep.subr.mxu0 0.0
    %6103 = vmatpush2.msra.mxu0 0.0
    %6104 = vmatprep.subr.mxu0 0.0
    %6105 = vmatpush2.msra.mxu0 0.0
    %6106 = vmatprep.subr.mxu0 0.0
    %6107 = vmatpush2.msra.mxu0 0.0
    %6108 = vmatprep.subr.mxu0 0.0
    %6109 = vmatpush2.msra.mxu0 0.0
    %6110 = vmatprep.subr.mxu0 0.0
    %6111 = vmatpush2.msra.mxu0 0.0
    %6112 = vmatprep.subr.mxu0 0.0
    %6113 = vmatpush2.msra.mxu0 0.0
    %6114 = vmatprep.subr.mxu0 0.0
    %6115 = vmatpush2.msra.mxu0 0.0
    %6116 = vmatprep.mubr.f32.mxu0 0.0
    %6117 = vmatmul.mubr.f32.gmra.mxu0 %v6013
    %v6118 = vpop.f32.mrf.mxu0
    %v6119 = vadd.f32 %v6050, %v6118
    %v6120 = vpop.f32.mrf.mxu0
    %6121 = vmatprep.mubr.f32.mxu0 0.0
    %6122 = vmatmul.mubr.f32.gmra.mxu0 %v6014
    %v6123 = vpop.f32.mrf.mxu0
    %v6124 = vadd.f32 %v6050, %v6123
    %v6125 = vpop.f32.mrf.mxu0
    %6126 = vmatprep.mubr.f32.mxu0 0.0
    %6127 = vmatmul.mubr.f32.gmra.mxu0 %v6015
    %v6128 = vpop.f32.mrf.mxu0
    %v6129 = vadd.f32 %v6050, %v6128
    %v6130 = vpop.f32.mrf.mxu0
    %6131 = vmatprep.mubr.f32.mxu0 0.0
    %6132 = vmatmul.mubr.f32.gmra.mxu0 %v6016
    %v6133 = vpop.f32.mrf.mxu0
    %v6134 = vadd.f32 %v6050, %v6133
    %v6135 = vpop.f32.mrf.mxu0
    %6136 = vmatprep.mubr.f32.mxu0 0.0
    %6137 = vmatmul.mubr.f32.gmra.mxu0 %v6017
    %v6138 = vpop.f32.mrf.mxu0
    %v6139 = vadd.f32 %v6050, %v6138
    %v6140 = vpop.f32.mrf.mxu0
    %6141 = vmatprep.mubr.f32.mxu0 0.0
    %6142 = vmatmul.mubr.f32.gmra.mxu0 %v6018
    %v6143 = vpop.f32.mrf.mxu0
    %v6144 = vadd.f32 %v6050, %v6143
    %v6145 = vpop.f32.mrf.mxu0
    %6146 = vmatprep.mubr.f32.mxu0 0.0
    %6147 = vmatmul.mubr.f32.gmra.mxu0 %v6019
    %v6148 = vpop.f32.mrf.mxu0
    %v6149 = vadd.f32 %v6050, %v6148
    %v6150 = vpop.f32.mrf.mxu0
    %6151 = vmatprep.mubr.f32.mxu0 0.0
    %6152 = vmatmul.mubr.f32.gmra.mxu0 %v6020
    %v6153 = vpop.f32.mrf.mxu0
    %v6154 = vadd.f32 %v6050, %v6153
    %v6155 = vpop.f32.mrf.mxu0
    %6156 = vmatprep.mubr.f32.mxu0 0.0
    %6157 = vmatmul.mubr.f32.gmra.mxu0 %v6021
    %v6158 = vpop.f32.mrf.mxu0
    %v6159 = vadd.f32 %v6050, %v6158
    %v6160 = vpop.f32.mrf.mxu0
    %6161 = vmatprep.mubr.f32.mxu0 0.0
    %6162 = vmatmul.mubr.f32.gmra.mxu0 %v6022
    %v6163 = vpop.f32.mrf.mxu0
    %v6164 = vadd.f32 %v6050, %v6163
    %v6165 = vpop.f32.mrf.mxu0
    %6166 = vmatprep.mubr.f32.mxu0 0.0
    %6167 = vmatmul.mubr.f32.gmra.mxu0 %v6023
    %v6168 = vpop.f32.mrf.mxu0
    %v6169 = vadd.f32 %v6050, %v6168
    %v6170 = vpop.f32.mrf.mxu0
    %6171 = vmatprep.mubr.f32.mxu0 0.0
    %6172 = vmatmul.mubr.f32.gmra.mxu0 %v6024
    %v6173 = vpop.f32.mrf.mxu0
    %v6174 = vadd.f32 %v6050, %v6173
    %v6175 = vpop.f32.mrf.mxu0
    %6176 = vmatprep.mubr.f32.mxu0 0.0
    %6177 = vmatmul.mubr.f32.gmra.mxu0 %v6025
    %v6178 = vpop.f32.mrf.mxu0
    %v6179 = vadd.f32 %v6050, %v6178
    %v6180 = vpop.f32.mrf.mxu0
    %6181 = vmatprep.mubr.f32.mxu0 0.0
    %6182 = vmatmul.mubr.f32.gmra.mxu0 %v6026
    %v6183 = vpop.f32.mrf.mxu0
    %v6184 = vadd.f32 %v6050, %v6183
    %v6185 = vpop.f32.mrf.mxu0
    %6186 = vmatprep.mubr.f32.mxu0 0.0
    %6187 = vmatmul.mubr.f32.gmra.mxu0 %v6027
    %v6188 = vpop.f32.mrf.mxu0
    %v6189 = vadd.f32 %v6050, %v6188
    %v6190 = vpop.f32.mrf.mxu0
    %6191 = vmatprep.mubr.f32.mxu0 0.0
    %6192 = vmatmul.mubr.f32.gmra.mxu0 %v6028
    %v6193 = vpop.f32.mrf.mxu0
    %v6194 = vadd.f32 %v6050, %v6193
    %v6195 = vpop.f32.mrf.mxu0
    %6196 = vdwg.mxu0
    %v6197 = vld [vmem:[#allocation7] sm:$0xff]
    %v6198 = vld [vmem:[#allocation7 + $0x8] sm:$0xff]
    %v6199 = vld [vmem:[#allocation7 + $0x10] sm:$0xff]
    %v6200 = vld [vmem:[#allocation7 + $0x18] sm:$0xff]
    %v6201 = vld [vmem:[#allocation7 + $0x20] sm:$0xff]
    %v6202 = vld [vmem:[#allocation7 + $0x28] sm:$0xff]
    %v6203 = vld [vmem:[#allocation7 + $0x30] sm:$0xff]
    %v6204 = vld [vmem:[#allocation7 + $0x38] sm:$0xff]
    %v6205 = vld [vmem:[#allocation7 + $0x40] sm:$0xff]
    %v6206 = vld [vmem:[#allocation7 + $0x48] sm:$0xff]
    %v6207 = vld [vmem:[#allocation7 + $0x50] sm:$0xff]
    %v6208 = vld [vmem:[#allocation7 + $0x58] sm:$0xff]
    %v6209 = vld [vmem:[#allocation7 + $0x60] sm:$0xff]
    %v6210 = vld [vmem:[#allocation7 + $0x68] sm:$0xff]
    %v6211 = vld [vmem:[#allocation7 + $0x70] sm:$0xff]
    %v6212 = vld [vmem:[#allocation7 + $0x78] sm:$0xff]
    %6213 = vmatprep.subr.mxu0 0.0
    %6214 = vmatpush1.msra.mxu0 %v6194
    %6215 = vmatprep.subr.mxu0 0.0
    %6216 = vmatpush1.msra.mxu0 %v6189
    %6217 = vmatprep.subr.mxu0 0.0
    %6218 = vmatpush1.msra.mxu0 %v6184
    %6219 = vmatprep.subr.mxu0 0.0
    %6220 = vmatpush1.msra.mxu0 %v6179
    %6221 = vmatprep.subr.mxu0 0.0
    %6222 = vmatpush1.msra.mxu0 %v6174
    %6223 = vmatprep.subr.mxu0 0.0
    %6224 = vmatpush1.msra.mxu0 %v6169
    %6225 = vmatprep.subr.mxu0 0.0
    %6226 = vmatpush1.msra.mxu0 %v6164
    %6227 = vmatprep.subr.mxu0 0.0
    %6228 = vmatpush1.msra.mxu0 %v6159
    %6229 = vmatprep.subr.mxu0 0.0
    %6230 = vmatpush1.msra.mxu0 %v6154
    %6231 = vmatprep.subr.mxu0 0.0
    %6232 = vmatpush1.msra.mxu0 %v6149
    %6233 = vmatprep.subr.mxu0 0.0
    %6234 = vmatpush1.msra.mxu0 %v6144
    %6235 = vmatprep.subr.mxu0 0.0
    %6236 = vmatpush1.msra.mxu0 %v6139
    %6237 = vmatprep.subr.mxu0 0.0
    %6238 = vmatpush1.msra.mxu0 %v6134
    %6239 = vmatprep.subr.mxu0 0.0
    %6240 = vmatpush1.msra.mxu0 %v6129
    %6241 = vmatprep.subr.mxu0 0.0
    %6242 = vmatpush1.msra.mxu0 %v6124
    %6243 = vmatprep.subr.mxu0 0.0
    %6244 = vmatpush1.msra.mxu0 %v6119
    %6245 = vmatprep.subr.mxu0 0.0
    %6246 = vmatpush2.msra.mxu0 0.0
    %6247 = vmatprep.subr.mxu0 0.0
    %6248 = vmatpush2.msra.mxu0 0.0
    %6249 = vmatprep.subr.mxu0 0.0
    %6250 = vmatpush2.msra.mxu0 0.0
    %6251 = vmatprep.subr.mxu0 0.0
    %6252 = vmatpush2.msra.mxu0 0.0
    %6253 = vmatprep.subr.mxu0 0.0
    %6254 = vmatpush2.msra.mxu0 0.0
    %6255 = vmatprep.subr.mxu0 0.0
    %6256 = vmatpush2.msra.mxu0 0.0
    %6257 = vmatprep.subr.mxu0 0.0
    %6258 = vmatpush2.msra.mxu0 0.0
    %6259 = vmatprep.subr.mxu0 0.0
    %6260 = vmatpush2.msra.mxu0 0.0
    %6261 = vmatprep.subr.mxu0 0.0
    %6262 = vmatpush2.msra.mxu0 0.0
    %6263 = vmatprep.subr.mxu0 0.0
    %6264 = vmatpush2.msra.mxu0 0.0
    %6265 = vmatprep.subr.mxu0 0.0
    %6266 = vmatpush2.msra.mxu0 0.0
    %6267 = vmatprep.subr.mxu0 0.0
    %6268 = vmatpush2.msra.mxu0 0.0
    %6269 = vmatprep.subr.mxu0 0.0
    %6270 = vmatpush2.msra.mxu0 0.0
    %6271 = vmatprep.subr.mxu0 0.0
    %6272 = vmatpush2.msra.mxu0 0.0
    %6273 = vmatprep.subr.mxu0 0.0
    %6274 = vmatpush2.msra.mxu0 0.0
    %6275 = vmatprep.subr.mxu0 0.0
    %6276 = vmatpush2.msra.mxu0 0.0
    %6277 = vmatprep.mubr.f32.mxu0 0.0
    %6278 = vmatmul.mubr.f32.gmra.mxu0 %v6197
    %v6279 = vpop.f32.mrf.mxu0
    %v6280 = vadd.f32 0.0, %v6279
    %v6281 = vpop.f32.mrf.mxu0
    %6282 = vmatprep.mubr.f32.mxu0 0.0
    %6283 = vmatmul.mubr.f32.gmra.mxu0 %v6198
    %v6284 = vpop.f32.mrf.mxu0
    %v6285 = vadd.f32 0.0, %v6284
    %v6286 = vpop.f32.mrf.mxu0
    %6287 = vmatprep.mubr.f32.mxu0 0.0
    %6288 = vmatmul.mubr.f32.gmra.mxu0 %v6199
    %v6289 = vpop.f32.mrf.mxu0
    %v6290 = vadd.f32 0.0, %v6289
    %v6291 = vpop.f32.mrf.mxu0
    %6292 = vmatprep.mubr.f32.mxu0 0.0
    %6293 = vmatmul.mubr.f32.gmra.mxu0 %v6200
    %v6294 = vpop.f32.mrf.mxu0
    %v6295 = vadd.f32 0.0, %v6294
    %v6296 = vpop.f32.mrf.mxu0
    %6297 = vmatprep.mubr.f32.mxu0 0.0
    %6298 = vmatmul.mubr.f32.gmra.mxu0 %v6201
    %v6299 = vpop.f32.mrf.mxu0
    %v6300 = vadd.f32 0.0, %v6299
    %v6301 = vpop.f32.mrf.mxu0
    %6302 = vmatprep.mubr.f32.mxu0 0.0
    %6303 = vmatmul.mubr.f32.gmra.mxu0 %v6202
    %v6304 = vpop.f32.mrf.mxu0
    %v6305 = vadd.f32 0.0, %v6304
    %v6306 = vpop.f32.mrf.mxu0
    %6307 = vmatprep.mubr.f32.mxu0 0.0
    %6308 = vmatmul.mubr.f32.gmra.mxu0 %v6203
    %v6309 = vpop.f32.mrf.mxu0
    %v6310 = vadd.f32 0.0, %v6309
    %v6311 = vpop.f32.mrf.mxu0
    %6312 = vmatprep.mubr.f32.mxu0 0.0
    %6313 = vmatmul.mubr.f32.gmra.mxu0 %v6204
    %v6314 = vpop.f32.mrf.mxu0
    %v6315 = vadd.f32 0.0, %v6314
    %v6316 = vpop.f32.mrf.mxu0
    %6317 = vmatprep.mubr.f32.mxu0 0.0
    %6318 = vmatmul.mubr.f32.gmra.mxu0 %v6205
    %v6319 = vpop.f32.mrf.mxu0
    %v6320 = vadd.f32 0.0, %v6319
    %v6321 = vpop.f32.mrf.mxu0
    %6322 = vmatprep.mubr.f32.mxu0 0.0
    %6323 = vmatmul.mubr.f32.gmra.mxu0 %v6206
    %v6324 = vpop.f32.mrf.mxu0
    %v6325 = vadd.f32 0.0, %v6324
    %v6326 = vpop.f32.mrf.mxu0
    %6327 = vmatprep.mubr.f32.mxu0 0.0
    %6328 = vmatmul.mubr.f32.gmra.mxu0 %v6207
    %v6329 = vpop.f32.mrf.mxu0
    %v6330 = vadd.f32 0.0, %v6329
    %v6331 = vpop.f32.mrf.mxu0
    %6332 = vmatprep.mubr.f32.mxu0 0.0
    %6333 = vmatmul.mubr.f32.gmra.mxu0 %v6208
    %v6334 = vpop.f32.mrf.mxu0
    %v6335 = vadd.f32 0.0, %v6334
    %v6336 = vpop.f32.mrf.mxu0
    %6337 = vmatprep.mubr.f32.mxu0 0.0
    %6338 = vmatmul.mubr.f32.gmra.mxu0 %v6209
    %v6339 = vpop.f32.mrf.mxu0
    %v6340 = vadd.f32 0.0, %v6339
    %v6341 = vpop.f32.mrf.mxu0
    %6342 = vmatprep.mubr.f32.mxu0 0.0
    %6343 = vmatmul.mubr.f32.gmra.mxu0 %v6210
    %v6344 = vpop.f32.mrf.mxu0
    %v6345 = vadd.f32 0.0, %v6344
    %v6346 = vpop.f32.mrf.mxu0
    %6347 = vmatprep.mubr.f32.mxu0 0.0
    %6348 = vmatmul.mubr.f32.gmra.mxu0 %v6211
    %v6349 = vpop.f32.mrf.mxu0
    %v6350 = vadd.f32 0.0, %v6349
    %v6351 = vpop.f32.mrf.mxu0
    %6352 = vmatprep.mubr.f32.mxu0 0.0
    %6353 = vmatmul.mubr.f32.gmra.mxu0 %v6212
    %v6354 = vpop.f32.mrf.mxu0
    %v6355 = vadd.f32 0.0, %v6354
    %v6356 = vpop.f32.mrf.mxu0
    %6357 = vdwg.mxu0
    %v6358 = vld [vmem:[#allocation18] sm:$0xff]
    %v6359 = vld [vmem:[#allocation18 + $0x8] sm:$0xff]
    %v6360 = vld [vmem:[#allocation18 + $0x10] sm:$0xff]
    %v6361 = vld [vmem:[#allocation18 + $0x18] sm:$0xff]
    %v6362 = vld [vmem:[#allocation18 + $0x20] sm:$0xff]
    %v6363 = vld [vmem:[#allocation18 + $0x28] sm:$0xff]
    %v6364 = vld [vmem:[#allocation18 + $0x30] sm:$0xff]
    %v6365 = vld [vmem:[#allocation18 + $0x38] sm:$0xff]
    %v6366 = vld [vmem:[#allocation18 + $0x40] sm:$0xff]
    %v6367 = vld [vmem:[#allocation18 + $0x48] sm:$0xff]
    %v6368 = vld [vmem:[#allocation18 + $0x50] sm:$0xff]
    %v6369 = vld [vmem:[#allocation18 + $0x58] sm:$0xff]
    %v6370 = vld [vmem:[#allocation18 + $0x60] sm:$0xff]
    %v6371 = vld [vmem:[#allocation18 + $0x68] sm:$0xff]
    %v6372 = vld [vmem:[#allocation18 + $0x70] sm:$0xff]
    %v6373 = vld [vmem:[#allocation18 + $0x78] sm:$0xff]
    %v6374 = vld [vmem:[#allocation18 + $0x80] sm:$0xff]
    %v6375 = vld [vmem:[#allocation18 + $0x88] sm:$0xff]
    %v6376 = vld [vmem:[#allocation18 + $0x90] sm:$0xff]
    %v6377 = vld [vmem:[#allocation18 + $0x98] sm:$0xff]
    %v6378 = vld [vmem:[#allocation18 + $0xa0] sm:$0xff]
    %v6379 = vld [vmem:[#allocation18 + $0xa8] sm:$0xff]
    %v6380 = vld [vmem:[#allocation18 + $0xb0] sm:$0xff]
    %v6381 = vld [vmem:[#allocation18 + $0xb8] sm:$0xff]
    %v6382 = vld [vmem:[#allocation18 + $0xc0] sm:$0xff]
    %v6383 = vld [vmem:[#allocation18 + $0xc8] sm:$0xff]
    %v6384 = vld [vmem:[#allocation18 + $0xd0] sm:$0xff]
    %v6385 = vld [vmem:[#allocation18 + $0xd8] sm:$0xff]
    %v6386 = vld [vmem:[#allocation18 + $0xe0] sm:$0xff]
    %v6387 = vld [vmem:[#allocation18 + $0xe8] sm:$0xff]
    %v6388 = vld [vmem:[#allocation18 + $0xf0] sm:$0xff]
    %v6389 = vld [vmem:[#allocation18 + $0xf8] sm:$0xff]
    %v6390 = vld [vmem:[#allocation18 + $0x100] sm:$0xff]
    %v6391 = vld [vmem:[#allocation18 + $0x108] sm:$0xff]
    %v6392 = vld [vmem:[#allocation18 + $0x110] sm:$0xff]
    %v6393 = vld [vmem:[#allocation18 + $0x118] sm:$0xff]
    %v6394 = vld [vmem:[#allocation18 + $0x120] sm:$0xff]
    %v6395 = vld [vmem:[#allocation18 + $0x128] sm:$0xff]
    %v6396 = vld [vmem:[#allocation18 + $0x130] sm:$0xff]
    %v6397 = vld [vmem:[#allocation18 + $0x138] sm:$0xff]
    %v6398 = vld [vmem:[#allocation18 + $0x140] sm:$0xff]
    %v6399 = vld [vmem:[#allocation18 + $0x148] sm:$0xff]
    %v6400 = vld [vmem:[#allocation18 + $0x150] sm:$0xff]
    %v6401 = vld [vmem:[#allocation18 + $0x158] sm:$0xff]
    %v6402 = vld [vmem:[#allocation18 + $0x160] sm:$0xff]
    %v6403 = vld [vmem:[#allocation18 + $0x168] sm:$0xff]
    %v6404 = vld [vmem:[#allocation18 + $0x170] sm:$0xff]
    %v6405 = vld [vmem:[#allocation18 + $0x178] sm:$0xff]
    %v6406 = vld [vmem:[%s17] sm:$0x7]
    %v6408 = vlaneseq
    %v6409 = vshrl.u32 %v6408, 7
    %v6410 = vsub.s32 0, %v6409
    %v6411 = vrot.slane %v6406, %v6410
    %v6412 = vlaneseq
    %v6413 = vshrl.u32 %v6412, 7
    %v6414 = vsub.s32 1, %v6413
    %v6415 = vrot.slane %v6406, %v6414
    %v6416 = vlaneseq
    %v6417 = vshrl.u32 %v6416, 7
    %v6418 = vsub.s32 2, %v6417
    %v6419 = vrot.slane %v6406, %v6418
    %6423 = vmatprep.subr.mxu0 %v6404
    %6424 = vmatpush1.msra.mxu0 %v6403
    %6425 = vmatprep.subr.mxu0 %v6401
    %6426 = vmatpush1.msra.mxu0 %v6400
    %6427 = vmatprep.subr.mxu0 %v6398
    %6428 = vmatpush1.msra.mxu0 %v6397
    %6429 = vmatprep.subr.mxu0 %v6395
    %6430 = vmatpush1.msra.mxu0 %v6394
    %6431 = vmatprep.subr.mxu0 %v6392
    %6432 = vmatpush1.msra.mxu0 %v6391
    %6433 = vmatprep.subr.mxu0 %v6389
    %6434 = vmatpush1.msra.mxu0 %v6388
    %6435 = vmatprep.subr.mxu0 %v6386
    %6436 = vmatpush1.msra.mxu0 %v6385
    %6437 = vmatprep.subr.mxu0 %v6383
    %6438 = vmatpush1.msra.mxu0 %v6382
    %6439 = vmatprep.subr.mxu0 %v6380
    %6440 = vmatpush1.msra.mxu0 %v6379
    %6441 = vmatprep.subr.mxu0 %v6377
    %6442 = vmatpush1.msra.mxu0 %v6376
    %6443 = vmatprep.subr.mxu0 %v6374
    %6444 = vmatpush1.msra.mxu0 %v6373
    %6445 = vmatprep.subr.mxu0 %v6371
    %6446 = vmatpush1.msra.mxu0 %v6370
    %6447 = vmatprep.subr.mxu0 %v6368
    %6448 = vmatpush1.msra.mxu0 %v6367
    %6449 = vmatprep.subr.mxu0 %v6365
    %6450 = vmatpush1.msra.mxu0 %v6364
    %6451 = vmatprep.subr.mxu0 %v6362
    %6452 = vmatpush1.msra.mxu0 %v6361
    %6453 = vmatprep.subr.mxu0 %v6359
    %6454 = vmatpush1.msra.mxu0 %v6358
    %6455 = vmatprep.subr.mxu0 0.0
    %6456 = vmatpush2.msra.mxu0 0.0
    %6457 = vmatprep.subr.mxu0 0.0
    %6458 = vmatpush2.msra.mxu0 0.0
    %6459 = vmatprep.subr.mxu0 0.0
    %6460 = vmatpush2.msra.mxu0 0.0
    %6461 = vmatprep.subr.mxu0 0.0
    %6462 = vmatpush2.msra.mxu0 0.0
    %6463 = vmatprep.subr.mxu0 0.0
    %6464 = vmatpush2.msra.mxu0 0.0
    %6465 = vmatprep.subr.mxu0 0.0
    %6466 = vmatpush2.msra.mxu0 0.0
    %6467 = vmatprep.subr.mxu0 0.0
    %6468 = vmatpush2.msra.mxu0 0.0
    %6469 = vmatprep.subr.mxu0 0.0
    %6470 = vmatpush2.msra.mxu0 0.0
    %6471 = vmatprep.subr.mxu0 0.0
    %6472 = vmatpush2.msra.mxu0 0.0
    %6473 = vmatprep.subr.mxu0 0.0
    %6474 = vmatpush2.msra.mxu0 0.0
    %6475 = vmatprep.subr.mxu0 0.0
    %6476 = vmatpush2.msra.mxu0 0.0
    %6477 = vmatprep.subr.mxu0 0.0
    %6478 = vmatpush2.msra.mxu0 0.0
    %6479 = vmatprep.subr.mxu0 0.0
    %6480 = vmatpush2.msra.mxu0 0.0
    %6481 = vmatprep.subr.mxu0 0.0
    %6482 = vmatpush2.msra.mxu0 0.0
    %6483 = vmatprep.subr.mxu0 0.0
    %6484 = vmatpush2.msra.mxu0 0.0
    %6485 = vmatprep.subr.mxu0 0.0
    %6486 = vmatpush2.msra.mxu0 0.0
    %6487 = vmatprep.mubr.f32.mxu0 0.0
    %6488 = vmatmul.mubr.f32.gmra.mxu0 %v6280
    %v6489 = vpop.f32.mrf.mxu0
    %v6490 = vadd.f32 %v6411, %v6489
    %v6491 = vpop.f32.mrf.mxu0
    %v6492 = vadd.f32 %v6415, %v6491
    %6493 = vmatprep.mubr.f32.mxu0 0.0
    %6494 = vmatmul.mubr.f32.gmra.mxu0 %v6285
    %v6495 = vpop.f32.mrf.mxu0
    %v6496 = vadd.f32 %v6411, %v6495
    %v6497 = vpop.f32.mrf.mxu0
    %v6498 = vadd.f32 %v6415, %v6497
    %6499 = vmatprep.mubr.f32.mxu0 0.0
    %6500 = vmatmul.mubr.f32.gmra.mxu0 %v6290
    %v6501 = vpop.f32.mrf.mxu0
    %v6502 = vadd.f32 %v6411, %v6501
    %v6503 = vpop.f32.mrf.mxu0
    %v6504 = vadd.f32 %v6415, %v6503
    %6505 = vmatprep.mubr.f32.mxu0 0.0
    %6506 = vmatmul.mubr.f32.gmra.mxu0 %v6295
    %v6507 = vpop.f32.mrf.mxu0
    %v6508 = vadd.f32 %v6411, %v6507
    %v6509 = vpop.f32.mrf.mxu0
    %v6510 = vadd.f32 %v6415, %v6509
    %6511 = vmatprep.mubr.f32.mxu0 0.0
    %6512 = vmatmul.mubr.f32.gmra.mxu0 %v6300
    %v6513 = vpop.f32.mrf.mxu0
    %v6514 = vadd.f32 %v6411, %v6513
    %v6515 = vpop.f32.mrf.mxu0
    %v6516 = vadd.f32 %v6415, %v6515
    %6517 = vmatprep.mubr.f32.mxu0 0.0
    %6518 = vmatmul.mubr.f32.gmra.mxu0 %v6305
    %v6519 = vpop.f32.mrf.mxu0
    %v6520 = vadd.f32 %v6411, %v6519
    %v6521 = vpop.f32.mrf.mxu0
    %v6522 = vadd.f32 %v6415, %v6521
    %6523 = vmatprep.mubr.f32.mxu0 0.0
    %6524 = vmatmul.mubr.f32.gmra.mxu0 %v6310
    %v6525 = vpop.f32.mrf.mxu0
    %v6526 = vadd.f32 %v6411, %v6525
    %v6527 = vpop.f32.mrf.mxu0
    %v6528 = vadd.f32 %v6415, %v6527
    %6529 = vmatprep.mubr.f32.mxu0 0.0
    %6530 = vmatmul.mubr.f32.gmra.mxu0 %v6315
    %v6531 = vpop.f32.mrf.mxu0
    %v6532 = vadd.f32 %v6411, %v6531
    %v6533 = vpop.f32.mrf.mxu0
    %v6534 = vadd.f32 %v6415, %v6533
    %6535 = vmatprep.mubr.f32.mxu0 0.0
    %6536 = vmatmul.mubr.f32.gmra.mxu0 %v6320
    %v6537 = vpop.f32.mrf.mxu0
    %v6538 = vadd.f32 %v6411, %v6537
    %v6539 = vpop.f32.mrf.mxu0
    %v6540 = vadd.f32 %v6415, %v6539
    %6541 = vmatprep.mubr.f32.mxu0 0.0
    %6542 = vmatmul.mubr.f32.gmra.mxu0 %v6325
    %v6543 = vpop.f32.mrf.mxu0
    %v6544 = vadd.f32 %v6411, %v6543
    %v6545 = vpop.f32.mrf.mxu0
    %v6546 = vadd.f32 %v6415, %v6545
    %6547 = vmatprep.mubr.f32.mxu0 0.0
    %6548 = vmatmul.mubr.f32.gmra.mxu0 %v6330
    %v6549 = vpop.f32.mrf.mxu0
    %v6550 = vadd.f32 %v6411, %v6549
    %v6551 = vpop.f32.mrf.mxu0
    %v6552 = vadd.f32 %v6415, %v6551
    %6553 = vmatprep.mubr.f32.mxu0 0.0
    %6554 = vmatmul.mubr.f32.gmra.mxu0 %v6335
    %v6555 = vpop.f32.mrf.mxu0
    %v6556 = vadd.f32 %v6411, %v6555
    %v6557 = vpop.f32.mrf.mxu0
    %v6558 = vadd.f32 %v6415, %v6557
    %6559 = vmatprep.mubr.f32.mxu0 0.0
    %6560 = vmatmul.mubr.f32.gmra.mxu0 %v6340
    %v6561 = vpop.f32.mrf.mxu0
    %v6562 = vadd.f32 %v6411, %v6561
    %v6563 = vpop.f32.mrf.mxu0
    %v6564 = vadd.f32 %v6415, %v6563
    %6565 = vmatprep.mubr.f32.mxu0 0.0
    %6566 = vmatmul.mubr.f32.gmra.mxu0 %v6345
    %v6567 = vpop.f32.mrf.mxu0
    %v6568 = vadd.f32 %v6411, %v6567
    %v6569 = vpop.f32.mrf.mxu0
    %v6570 = vadd.f32 %v6415, %v6569
    %6571 = vmatprep.mubr.f32.mxu0 0.0
    %6572 = vmatmul.mubr.f32.gmra.mxu0 %v6350
    %v6573 = vpop.f32.mrf.mxu0
    %v6574 = vadd.f32 %v6411, %v6573
    %v6575 = vpop.f32.mrf.mxu0
    %v6576 = vadd.f32 %v6415, %v6575
    %6577 = vmatprep.mubr.f32.mxu0 0.0
    %6578 = vmatmul.mubr.f32.gmra.mxu0 %v6355
    %v6579 = vpop.f32.mrf.mxu0
    %v6580 = vadd.f32 %v6411, %v6579
    %v6581 = vpop.f32.mrf.mxu0
    %v6582 = vadd.f32 %v6415, %v6581
    %6583 = vdwg.mxu0
    %6584 = vmatprep.subr.mxu0 0.0
    %6585 = vmatpush1.msra.mxu0 %v6405
    %6586 = vmatprep.subr.mxu0 0.0
    %6587 = vmatpush1.msra.mxu0 %v6402
    %6588 = vmatprep.subr.mxu0 0.0
    %6589 = vmatpush1.msra.mxu0 %v6399
    %6590 = vmatprep.subr.mxu0 0.0
    %6591 = vmatpush1.msra.mxu0 %v6396
    %6592 = vmatprep.subr.mxu0 0.0
    %6593 = vmatpush1.msra.mxu0 %v6393
    %6594 = vmatprep.subr.mxu0 0.0
    %6595 = vmatpush1.msra.mxu0 %v6390
    %6596 = vmatprep.subr.mxu0 0.0
    %6597 = vmatpush1.msra.mxu0 %v6387
    %6598 = vmatprep.subr.mxu0 0.0
    %6599 = vmatpush1.msra.mxu0 %v6384
    %6600 = vmatprep.subr.mxu0 0.0
    %6601 = vmatpush1.msra.mxu0 %v6381
    %6602 = vmatprep.subr.mxu0 0.0
    %6603 = vmatpush1.msra.mxu0 %v6378
    %6604 = vmatprep.subr.mxu0 0.0
    %6605 = vmatpush1.msra.mxu0 %v6375
    %6606 = vmatprep.subr.mxu0 0.0
    %6607 = vmatpush1.msra.mxu0 %v6372
    %6608 = vmatprep.subr.mxu0 0.0
    %6609 = vmatpush1.msra.mxu0 %v6369
    %6610 = vmatprep.subr.mxu0 0.0
    %6611 = vmatpush1.msra.mxu0 %v6366
    %6612 = vmatprep.subr.mxu0 0.0
    %6613 = vmatpush1.msra.mxu0 %v6363
    %6614 = vmatprep.subr.mxu0 0.0
    %6615 = vmatpush1.msra.mxu0 %v6360
    %6616 = vmatprep.subr.mxu0 0.0
    %6617 = vmatpush2.msra.mxu0 0.0
    %6618 = vmatprep.subr.mxu0 0.0
    %6619 = vmatpush2.msra.mxu0 0.0
    %6620 = vmatprep.subr.mxu0 0.0
    %6621 = vmatpush2.msra.mxu0 0.0
    %6622 = vmatprep.subr.mxu0 0.0
    %6623 = vmatpush2.msra.mxu0 0.0
    %6624 = vmatprep.subr.mxu0 0.0
    %6625 = vmatpush2.msra.mxu0 0.0
    %6626 = vmatprep.subr.mxu0 0.0
    %6627 = vmatpush2.msra.mxu0 0.0
    %6628 = vmatprep.subr.mxu0 0.0
    %6629 = vmatpush2.msra.mxu0 0.0
    %6630 = vmatprep.subr.mxu0 0.0
    %6631 = vmatpush2.msra.mxu0 0.0
    %6632 = vmatprep.subr.mxu0 0.0
    %6633 = vmatpush2.msra.mxu0 0.0
    %6634 = vmatprep.subr.mxu0 0.0
    %6635 = vmatpush2.msra.mxu0 0.0
    %6636 = vmatprep.subr.mxu0 0.0
    %6637 = vmatpush2.msra.mxu0 0.0
    %6638 = vmatprep.subr.mxu0 0.0
    %6639 = vmatpush2.msra.mxu0 0.0
    %6640 = vmatprep.subr.mxu0 0.0
    %6641 = vmatpush2.msra.mxu0 0.0
    %6642 = vmatprep.subr.mxu0 0.0
    %6643 = vmatpush2.msra.mxu0 0.0
    %6644 = vmatprep.subr.mxu0 0.0
    %6645 = vmatpush2.msra.mxu0 0.0
    %6646 = vmatprep.subr.mxu0 0.0
    %6647 = vmatpush2.msra.mxu0 0.0
    %6648 = vmatprep.mubr.f32.mxu0 0.0
    %6649 = vmatmul.mubr.f32.gmra.mxu0 %v6280
    %v6650 = vpop.f32.mrf.mxu0
    %v6651 = vadd.f32 %v6419, %v6650
    %v6652 = vpop.f32.mrf.mxu0
    %6653 = vmatprep.mubr.f32.mxu0 0.0
    %6654 = vmatmul.mubr.f32.gmra.mxu0 %v6285
    %v6655 = vpop.f32.mrf.mxu0
    %v6656 = vadd.f32 %v6419, %v6655
    %v6657 = vpop.f32.mrf.mxu0
    %6658 = vmatprep.mubr.f32.mxu0 0.0
    %6659 = vmatmul.mubr.f32.gmra.mxu0 %v6290
    %v6660 = vpop.f32.mrf.mxu0
    %v6661 = vadd.f32 %v6419, %v6660
    %v6662 = vpop.f32.mrf.mxu0
    %6663 = vmatprep.mubr.f32.mxu0 0.0
    %6664 = vmatmul.mubr.f32.gmra.mxu0 %v6295
    %v6665 = vpop.f32.mrf.mxu0
    %v6666 = vadd.f32 %v6419, %v6665
    %v6667 = vpop.f32.mrf.mxu0
    %6668 = vmatprep.mubr.f32.mxu0 0.0
    %6669 = vmatmul.mubr.f32.gmra.mxu0 %v6300
    %v6670 = vpop.f32.mrf.mxu0
    %v6671 = vadd.f32 %v6419, %v6670
    %v6672 = vpop.f32.mrf.mxu0
    %6673 = vmatprep.mubr.f32.mxu0 0.0
    %6674 = vmatmul.mubr.f32.gmra.mxu0 %v6305
    %v6675 = vpop.f32.mrf.mxu0
    %v6676 = vadd.f32 %v6419, %v6675
    %v6677 = vpop.f32.mrf.mxu0
    %6678 = vmatprep.mubr.f32.mxu0 0.0
    %6679 = vmatmul.mubr.f32.gmra.mxu0 %v6310
    %v6680 = vpop.f32.mrf.mxu0
    %v6681 = vadd.f32 %v6419, %v6680
    %v6682 = vpop.f32.mrf.mxu0
    %6683 = vmatprep.mubr.f32.mxu0 0.0
    %6684 = vmatmul.mubr.f32.gmra.mxu0 %v6315
    %v6685 = vpop.f32.mrf.mxu0
    %v6686 = vadd.f32 %v6419, %v6685
    %v6687 = vpop.f32.mrf.mxu0
    %6688 = vmatprep.mubr.f32.mxu0 0.0
    %6689 = vmatmul.mubr.f32.gmra.mxu0 %v6320
    %v6690 = vpop.f32.mrf.mxu0
    %v6691 = vadd.f32 %v6419, %v6690
    %v6692 = vpop.f32.mrf.mxu0
    %6693 = vmatprep.mubr.f32.mxu0 0.0
    %6694 = vmatmul.mubr.f32.gmra.mxu0 %v6325
    %v6695 = vpop.f32.mrf.mxu0
    %v6696 = vadd.f32 %v6419, %v6695
    %v6697 = vpop.f32.mrf.mxu0
    %6698 = vmatprep.mubr.f32.mxu0 0.0
    %6699 = vmatmul.mubr.f32.gmra.mxu0 %v6330
    %v6700 = vpop.f32.mrf.mxu0
    %v6701 = vadd.f32 %v6419, %v6700
    %v6702 = vpop.f32.mrf.mxu0
    %6703 = vmatprep.mubr.f32.mxu0 0.0
    %6704 = vmatmul.mubr.f32.gmra.mxu0 %v6335
    %v6705 = vpop.f32.mrf.mxu0
    %v6706 = vadd.f32 %v6419, %v6705
    %v6707 = vpop.f32.mrf.mxu0
    %6708 = vmatprep.mubr.f32.mxu0 0.0
    %6709 = vmatmul.mubr.f32.gmra.mxu0 %v6340
    %v6710 = vpop.f32.mrf.mxu0
    %v6711 = vadd.f32 %v6419, %v6710
    %v6712 = vpop.f32.mrf.mxu0
    %6713 = vmatprep.mubr.f32.mxu0 0.0
    %6714 = vmatmul.mubr.f32.gmra.mxu0 %v6345
    %v6715 = vpop.f32.mrf.mxu0
    %v6716 = vadd.f32 %v6419, %v6715
    %v6717 = vpop.f32.mrf.mxu0
    %6718 = vmatprep.mubr.f32.mxu0 0.0
    %6719 = vmatmul.mubr.f32.gmra.mxu0 %v6350
    %v6720 = vpop.f32.mrf.mxu0
    %v6721 = vadd.f32 %v6419, %v6720
    %v6722 = vpop.f32.mrf.mxu0
    %6723 = vmatprep.mubr.f32.mxu0 0.0
    %6724 = vmatmul.mubr.f32.gmra.mxu0 %v6355
    %v6725 = vpop.f32.mrf.mxu0
    %v6726 = vadd.f32 %v6419, %v6725
    %v6727 = vpop.f32.mrf.mxu0
    %6728 = vdwg.mxu0
    %v6729 = vld [vmem:[#allocation19] sm:$0xff]
    %v6730 = vld [vmem:[#allocation19 + $0x8] sm:$0xff]
    %v6731 = vld [vmem:[#allocation19 + $0x10] sm:$0xff]
    %v6732 = vld [vmem:[#allocation19 + $0x18] sm:$0xff]
    %v6733 = vld [vmem:[#allocation19 + $0x20] sm:$0xff]
    %v6734 = vld [vmem:[#allocation19 + $0x28] sm:$0xff]
    %v6735 = vld [vmem:[#allocation19 + $0x30] sm:$0xff]
    %v6736 = vld [vmem:[#allocation19 + $0x38] sm:$0xff]
    %v6737 = vld [vmem:[#allocation19 + $0x40] sm:$0xff]
    %v6738 = vld [vmem:[#allocation19 + $0x48] sm:$0xff]
    %v6739 = vld [vmem:[#allocation19 + $0x50] sm:$0xff]
    %v6740 = vld [vmem:[#allocation19 + $0x58] sm:$0xff]
    %v6741 = vld [vmem:[#allocation19 + $0x60] sm:$0xff]
    %v6742 = vld [vmem:[#allocation19 + $0x68] sm:$0xff]
    %v6743 = vld [vmem:[#allocation19 + $0x70] sm:$0xff]
    %v6744 = vld [vmem:[#allocation19 + $0x78] sm:$0xff]
    %v6745 = vld [vmem:[#allocation19 + $0x80] sm:$0xff]
    %v6746 = vld [vmem:[#allocation19 + $0x88] sm:$0xff]
    %v6747 = vld [vmem:[#allocation19 + $0x90] sm:$0xff]
    %v6748 = vld [vmem:[#allocation19 + $0x98] sm:$0xff]
    %v6749 = vld [vmem:[#allocation19 + $0xa0] sm:$0xff]
    %v6750 = vld [vmem:[#allocation19 + $0xa8] sm:$0xff]
    %v6751 = vld [vmem:[#allocation19 + $0xb0] sm:$0xff]
    %v6752 = vld [vmem:[#allocation19 + $0xb8] sm:$0xff]
    %v6753 = vld [vmem:[#allocation19 + $0xc0] sm:$0xff]
    %v6754 = vld [vmem:[#allocation19 + $0xc8] sm:$0xff]
    %v6755 = vld [vmem:[#allocation19 + $0xd0] sm:$0xff]
    %v6756 = vld [vmem:[#allocation19 + $0xd8] sm:$0xff]
    %v6757 = vld [vmem:[#allocation19 + $0xe0] sm:$0xff]
    %v6758 = vld [vmem:[#allocation19 + $0xe8] sm:$0xff]
    %v6759 = vld [vmem:[#allocation19 + $0xf0] sm:$0xff]
    %v6760 = vld [vmem:[#allocation19 + $0xf8] sm:$0xff]
    %v6761 = vld [vmem:[#allocation19 + $0x100] sm:$0xff]
    %v6762 = vld [vmem:[#allocation19 + $0x108] sm:$0xff]
    %v6763 = vld [vmem:[#allocation19 + $0x110] sm:$0xff]
    %v6764 = vld [vmem:[#allocation19 + $0x118] sm:$0xff]
    %v6765 = vld [vmem:[#allocation19 + $0x120] sm:$0xff]
    %v6766 = vld [vmem:[#allocation19 + $0x128] sm:$0xff]
    %v6767 = vld [vmem:[#allocation19 + $0x130] sm:$0xff]
    %v6768 = vld [vmem:[#allocation19 + $0x138] sm:$0xff]
    %v6769 = vld [vmem:[#allocation19 + $0x140] sm:$0xff]
    %v6770 = vld [vmem:[#allocation19 + $0x148] sm:$0xff]
    %v6771 = vld [vmem:[#allocation19 + $0x150] sm:$0xff]
    %v6772 = vld [vmem:[#allocation19 + $0x158] sm:$0xff]
    %v6773 = vld [vmem:[#allocation19 + $0x160] sm:$0xff]
    %v6774 = vld [vmem:[#allocation19 + $0x168] sm:$0xff]
    %v6775 = vld [vmem:[#allocation19 + $0x170] sm:$0xff]
    %v6776 = vld [vmem:[#allocation19 + $0x178] sm:$0xff]
    %v6777 = vld [vmem:[%s18] sm:$0x7]
    %v6779 = vlaneseq
    %v6780 = vshrl.u32 %v6779, 7
    %v6781 = vsub.s32 0, %v6780
    %v6782 = vrot.slane %v6777, %v6781
    %v6783 = vlaneseq
    %v6784 = vshrl.u32 %v6783, 7
    %v6785 = vsub.s32 1, %v6784
    %v6786 = vrot.slane %v6777, %v6785
    %v6787 = vlaneseq
    %v6788 = vshrl.u32 %v6787, 7
    %v6789 = vsub.s32 2, %v6788
    %v6790 = vrot.slane %v6777, %v6789
    %6794 = vmatprep.subr.mxu0 %v6775
    %6795 = vmatpush1.msra.mxu0 %v6774
    %6796 = vmatprep.subr.mxu0 %v6772
    %6797 = vmatpush1.msra.mxu0 %v6771
    %6798 = vmatprep.subr.mxu0 %v6769
    %6799 = vmatpush1.msra.mxu0 %v6768
    %6800 = vmatprep.subr.mxu0 %v6766
    %6801 = vmatpush1.msra.mxu0 %v6765
    %6802 = vmatprep.subr.mxu0 %v6763
    %6803 = vmatpush1.msra.mxu0 %v6762
    %6804 = vmatprep.subr.mxu0 %v6760
    %6805 = vmatpush1.msra.mxu0 %v6759
    %6806 = vmatprep.subr.mxu0 %v6757
    %6807 = vmatpush1.msra.mxu0 %v6756
    %6808 = vmatprep.subr.mxu0 %v6754
    %6809 = vmatpush1.msra.mxu0 %v6753
    %6810 = vmatprep.subr.mxu0 %v6751
    %6811 = vmatpush1.msra.mxu0 %v6750
    %6812 = vmatprep.subr.mxu0 %v6748
    %6813 = vmatpush1.msra.mxu0 %v6747
    %6814 = vmatprep.subr.mxu0 %v6745
    %6815 = vmatpush1.msra.mxu0 %v6744
    %6816 = vmatprep.subr.mxu0 %v6742
    %6817 = vmatpush1.msra.mxu0 %v6741
    %6818 = vmatprep.subr.mxu0 %v6739
    %6819 = vmatpush1.msra.mxu0 %v6738
    %6820 = vmatprep.subr.mxu0 %v6736
    %6821 = vmatpush1.msra.mxu0 %v6735
    %6822 = vmatprep.subr.mxu0 %v6733
    %6823 = vmatpush1.msra.mxu0 %v6732
    %6824 = vmatprep.subr.mxu0 %v6730
    %6825 = vmatpush1.msra.mxu0 %v6729
    %6826 = vmatprep.subr.mxu0 0.0
    %6827 = vmatpush2.msra.mxu0 0.0
    %6828 = vmatprep.subr.mxu0 0.0
    %6829 = vmatpush2.msra.mxu0 0.0
    %6830 = vmatprep.subr.mxu0 0.0
    %6831 = vmatpush2.msra.mxu0 0.0
    %6832 = vmatprep.subr.mxu0 0.0
    %6833 = vmatpush2.msra.mxu0 0.0
    %6834 = vmatprep.subr.mxu0 0.0
    %6835 = vmatpush2.msra.mxu0 0.0
    %6836 = vmatprep.subr.mxu0 0.0
    %6837 = vmatpush2.msra.mxu0 0.0
    %6838 = vmatprep.subr.mxu0 0.0
    %6839 = vmatpush2.msra.mxu0 0.0
    %6840 = vmatprep.subr.mxu0 0.0
    %6841 = vmatpush2.msra.mxu0 0.0
    %6842 = vmatprep.subr.mxu0 0.0
    %6843 = vmatpush2.msra.mxu0 0.0
    %6844 = vmatprep.subr.mxu0 0.0
    %6845 = vmatpush2.msra.mxu0 0.0
    %6846 = vmatprep.subr.mxu0 0.0
    %6847 = vmatpush2.msra.mxu0 0.0
    %6848 = vmatprep.subr.mxu0 0.0
    %6849 = vmatpush2.msra.mxu0 0.0
    %6850 = vmatprep.subr.mxu0 0.0
    %6851 = vmatpush2.msra.mxu0 0.0
    %6852 = vmatprep.subr.mxu0 0.0
    %6853 = vmatpush2.msra.mxu0 0.0
    %6854 = vmatprep.subr.mxu0 0.0
    %6855 = vmatpush2.msra.mxu0 0.0
    %6856 = vmatprep.subr.mxu0 0.0
    %6857 = vmatpush2.msra.mxu0 0.0
    %6858 = vmatprep.mubr.f32.mxu0 0.0
    %6859 = vmatmul.mubr.f32.gmra.mxu0 %v5137
    %v6860 = vpop.f32.mrf.mxu0
    %v6861 = vadd.f32 %v6782, %v6860
    %v6862 = vpop.f32.mrf.mxu0
    %v6863 = vadd.f32 %v6786, %v6862
    %6864 = vmatprep.mubr.f32.mxu0 0.0
    %6865 = vmatmul.mubr.f32.gmra.mxu0 %v5138
    %v6866 = vpop.f32.mrf.mxu0
    %v6867 = vadd.f32 %v6782, %v6866
    %v6868 = vpop.f32.mrf.mxu0
    %v6869 = vadd.f32 %v6786, %v6868
    %6870 = vmatprep.mubr.f32.mxu0 0.0
    %6871 = vmatmul.mubr.f32.gmra.mxu0 %v5139
    %v6872 = vpop.f32.mrf.mxu0
    %v6873 = vadd.f32 %v6782, %v6872
    %v6874 = vpop.f32.mrf.mxu0
    %v6875 = vadd.f32 %v6786, %v6874
    %6876 = vmatprep.mubr.f32.mxu0 0.0
    %6877 = vmatmul.mubr.f32.gmra.mxu0 %v5140
    %v6878 = vpop.f32.mrf.mxu0
    %v6879 = vadd.f32 %v6782, %v6878
    %v6880 = vpop.f32.mrf.mxu0
    %v6881 = vadd.f32 %v6786, %v6880
    %6882 = vmatprep.mubr.f32.mxu0 0.0
    %6883 = vmatmul.mubr.f32.gmra.mxu0 %v5141
    %v6884 = vpop.f32.mrf.mxu0
    %v6885 = vadd.f32 %v6782, %v6884
    %v6886 = vpop.f32.mrf.mxu0
    %v6887 = vadd.f32 %v6786, %v6886
    %6888 = vmatprep.mubr.f32.mxu0 0.0
    %6889 = vmatmul.mubr.f32.gmra.mxu0 %v5142
    %v6890 = vpop.f32.mrf.mxu0
    %v6891 = vadd.f32 %v6782, %v6890
    %v6892 = vpop.f32.mrf.mxu0
    %v6893 = vadd.f32 %v6786, %v6892
    %6894 = vmatprep.mubr.f32.mxu0 0.0
    %6895 = vmatmul.mubr.f32.gmra.mxu0 %v5143
    %v6896 = vpop.f32.mrf.mxu0
    %v6897 = vadd.f32 %v6782, %v6896
    %v6898 = vpop.f32.mrf.mxu0
    %v6899 = vadd.f32 %v6786, %v6898
    %6900 = vmatprep.mubr.f32.mxu0 0.0
    %6901 = vmatmul.mubr.f32.gmra.mxu0 %v5144
    %v6902 = vpop.f32.mrf.mxu0
    %v6903 = vadd.f32 %v6782, %v6902
    %v6904 = vpop.f32.mrf.mxu0
    %v6905 = vadd.f32 %v6786, %v6904
    %6906 = vmatprep.mubr.f32.mxu0 0.0
    %6907 = vmatmul.mubr.f32.gmra.mxu0 %v5145
    %v6908 = vpop.f32.mrf.mxu0
    %v6909 = vadd.f32 %v6782, %v6908
    %v6910 = vpop.f32.mrf.mxu0
    %v6911 = vadd.f32 %v6786, %v6910
    %6912 = vmatprep.mubr.f32.mxu0 0.0
    %6913 = vmatmul.mubr.f32.gmra.mxu0 %v5146
    %v6914 = vpop.f32.mrf.mxu0
    %v6915 = vadd.f32 %v6782, %v6914
    %v6916 = vpop.f32.mrf.mxu0
    %v6917 = vadd.f32 %v6786, %v6916
    %6918 = vmatprep.mubr.f32.mxu0 0.0
    %6919 = vmatmul.mubr.f32.gmra.mxu0 %v5147
    %v6920 = vpop.f32.mrf.mxu0
    %v6921 = vadd.f32 %v6782, %v6920
    %v6922 = vpop.f32.mrf.mxu0
    %v6923 = vadd.f32 %v6786, %v6922
    %6924 = vmatprep.mubr.f32.mxu0 0.0
    %6925 = vmatmul.mubr.f32.gmra.mxu0 %v5148
    %v6926 = vpop.f32.mrf.mxu0
    %v6927 = vadd.f32 %v6782, %v6926
    %v6928 = vpop.f32.mrf.mxu0
    %v6929 = vadd.f32 %v6786, %v6928
    %6930 = vmatprep.mubr.f32.mxu0 0.0
    %6931 = vmatmul.mubr.f32.gmra.mxu0 %v5149
    %v6932 = vpop.f32.mrf.mxu0
    %v6933 = vadd.f32 %v6782, %v6932
    %v6934 = vpop.f32.mrf.mxu0
    %v6935 = vadd.f32 %v6786, %v6934
    %6936 = vmatprep.mubr.f32.mxu0 0.0
    %6937 = vmatmul.mubr.f32.gmra.mxu0 %v5150
    %v6938 = vpop.f32.mrf.mxu0
    %v6939 = vadd.f32 %v6782, %v6938
    %v6940 = vpop.f32.mrf.mxu0
    %v6941 = vadd.f32 %v6786, %v6940
    %6942 = vmatprep.mubr.f32.mxu0 0.0
    %6943 = vmatmul.mubr.f32.gmra.mxu0 %v5151
    %v6944 = vpop.f32.mrf.mxu0
    %v6945 = vadd.f32 %v6782, %v6944
    %v6946 = vpop.f32.mrf.mxu0
    %v6947 = vadd.f32 %v6786, %v6946
    %6948 = vmatprep.mubr.f32.mxu0 0.0
    %6949 = vmatmul.mubr.f32.gmra.mxu0 %v5152
    %v6950 = vpop.f32.mrf.mxu0
    %v6951 = vadd.f32 %v6782, %v6950
    %v6952 = vpop.f32.mrf.mxu0
    %v6953 = vadd.f32 %v6786, %v6952
    %6954 = vdwg.mxu0
    %6955 = vmatprep.subr.mxu0 0.0
    %6956 = vmatpush1.msra.mxu0 %v6776
    %6957 = vmatprep.subr.mxu0 0.0
    %6958 = vmatpush1.msra.mxu0 %v6773
    %6959 = vmatprep.subr.mxu0 0.0
    %6960 = vmatpush1.msra.mxu0 %v6770
    %6961 = vmatprep.subr.mxu0 0.0
    %6962 = vmatpush1.msra.mxu0 %v6767
    %6963 = vmatprep.subr.mxu0 0.0
    %6964 = vmatpush1.msra.mxu0 %v6764
    %6965 = vmatprep.subr.mxu0 0.0
    %6966 = vmatpush1.msra.mxu0 %v6761
    %6967 = vmatprep.subr.mxu0 0.0
    %6968 = vmatpush1.msra.mxu0 %v6758
    %6969 = vmatprep.subr.mxu0 0.0
    %6970 = vmatpush1.msra.mxu0 %v6755
    %6971 = vmatprep.subr.mxu0 0.0
    %6972 = vmatpush1.msra.mxu0 %v6752
    %6973 = vmatprep.subr.mxu0 0.0
    %6974 = vmatpush1.msra.mxu0 %v6749
    %6975 = vmatprep.subr.mxu0 0.0
    %6976 = vmatpush1.msra.mxu0 %v6746
    %6977 = vmatprep.subr.mxu0 0.0
    %6978 = vmatpush1.msra.mxu0 %v6743
    %6979 = vmatprep.subr.mxu0 0.0
    %6980 = vmatpush1.msra.mxu0 %v6740
    %6981 = vmatprep.subr.mxu0 0.0
    %6982 = vmatpush1.msra.mxu0 %v6737
    %6983 = vmatprep.subr.mxu0 0.0
    %6984 = vmatpush1.msra.mxu0 %v6734
    %6985 = vmatprep.subr.mxu0 0.0
    %6986 = vmatpush1.msra.mxu0 %v6731
    %6987 = vmatprep.subr.mxu0 0.0
    %6988 = vmatpush2.msra.mxu0 0.0
    %6989 = vmatprep.subr.mxu0 0.0
    %6990 = vmatpush2.msra.mxu0 0.0
    %6991 = vmatprep.subr.mxu0 0.0
    %6992 = vmatpush2.msra.mxu0 0.0
    %6993 = vmatprep.subr.mxu0 0.0
    %6994 = vmatpush2.msra.mxu0 0.0
    %6995 = vmatprep.subr.mxu0 0.0
    %6996 = vmatpush2.msra.mxu0 0.0
    %6997 = vmatprep.subr.mxu0 0.0
    %6998 = vmatpush2.msra.mxu0 0.0
    %6999 = vmatprep.subr.mxu0 0.0
    %7000 = vmatpush2.msra.mxu0 0.0
    %7001 = vmatprep.subr.mxu0 0.0
    %7002 = vmatpush2.msra.mxu0 0.0
    %7003 = vmatprep.subr.mxu0 0.0
    %7004 = vmatpush2.msra.mxu0 0.0
    %7005 = vmatprep.subr.mxu0 0.0
    %7006 = vmatpush2.msra.mxu0 0.0
    %7007 = vmatprep.subr.mxu0 0.0
    %7008 = vmatpush2.msra.mxu0 0.0
    %7009 = vmatprep.subr.mxu0 0.0
    %7010 = vmatpush2.msra.mxu0 0.0
    %7011 = vmatprep.subr.mxu0 0.0
    %7012 = vmatpush2.msra.mxu0 0.0
    %7013 = vmatprep.subr.mxu0 0.0
    %7014 = vmatpush2.msra.mxu0 0.0
    %7015 = vmatprep.subr.mxu0 0.0
    %7016 = vmatpush2.msra.mxu0 0.0
    %7017 = vmatprep.subr.mxu0 0.0
    %7018 = vmatpush2.msra.mxu0 0.0
    %7019 = vmatprep.mubr.f32.mxu0 0.0
    %7020 = vmatmul.mubr.f32.gmra.mxu0 %v5137
    %v7021 = vpop.f32.mrf.mxu0
    %v7022 = vadd.f32 %v6790, %v7021
    %v7023 = vpop.f32.mrf.mxu0
    %7024 = vmatprep.mubr.f32.mxu0 0.0
    %7025 = vmatmul.mubr.f32.gmra.mxu0 %v5138
    %v7026 = vpop.f32.mrf.mxu0
    %v7027 = vadd.f32 %v6790, %v7026
    %v7028 = vpop.f32.mrf.mxu0
    %7029 = vmatprep.mubr.f32.mxu0 0.0
    %7030 = vmatmul.mubr.f32.gmra.mxu0 %v5139
    %v7031 = vpop.f32.mrf.mxu0
    %v7032 = vadd.f32 %v6790, %v7031
    %v7033 = vpop.f32.mrf.mxu0
    %7034 = vmatprep.mubr.f32.mxu0 0.0
    %7035 = vmatmul.mubr.f32.gmra.mxu0 %v5140
    %v7036 = vpop.f32.mrf.mxu0
    %v7037 = vadd.f32 %v6790, %v7036
    %v7038 = vpop.f32.mrf.mxu0
    %7039 = vmatprep.mubr.f32.mxu0 0.0
    %7040 = vmatmul.mubr.f32.gmra.mxu0 %v5141
    %v7041 = vpop.f32.mrf.mxu0
    %v7042 = vadd.f32 %v6790, %v7041
    %v7043 = vpop.f32.mrf.mxu0
    %7044 = vmatprep.mubr.f32.mxu0 0.0
    %7045 = vmatmul.mubr.f32.gmra.mxu0 %v5142
    %v7046 = vpop.f32.mrf.mxu0
    %v7047 = vadd.f32 %v6790, %v7046
    %v7048 = vpop.f32.mrf.mxu0
    %7049 = vmatprep.mubr.f32.mxu0 0.0
    %7050 = vmatmul.mubr.f32.gmra.mxu0 %v5143
    %v7051 = vpop.f32.mrf.mxu0
    %v7052 = vadd.f32 %v6790, %v7051
    %v7053 = vpop.f32.mrf.mxu0
    %7054 = vmatprep.mubr.f32.mxu0 0.0
    %7055 = vmatmul.mubr.f32.gmra.mxu0 %v5144
    %v7056 = vpop.f32.mrf.mxu0
    %v7057 = vadd.f32 %v6790, %v7056
    %v7058 = vpop.f32.mrf.mxu0
    %7059 = vmatprep.mubr.f32.mxu0 0.0
    %7060 = vmatmul.mubr.f32.gmra.mxu0 %v5145
    %v7061 = vpop.f32.mrf.mxu0
    %v7062 = vadd.f32 %v6790, %v7061
    %v7063 = vpop.f32.mrf.mxu0
    %7064 = vmatprep.mubr.f32.mxu0 0.0
    %7065 = vmatmul.mubr.f32.gmra.mxu0 %v5146
    %v7066 = vpop.f32.mrf.mxu0
    %v7067 = vadd.f32 %v6790, %v7066
    %v7068 = vpop.f32.mrf.mxu0
    %7069 = vmatprep.mubr.f32.mxu0 0.0
    %7070 = vmatmul.mubr.f32.gmra.mxu0 %v5147
    %v7071 = vpop.f32.mrf.mxu0
    %v7072 = vadd.f32 %v6790, %v7071
    %v7073 = vpop.f32.mrf.mxu0
    %7074 = vmatprep.mubr.f32.mxu0 0.0
    %7075 = vmatmul.mubr.f32.gmra.mxu0 %v5148
    %v7076 = vpop.f32.mrf.mxu0
    %v7077 = vadd.f32 %v6790, %v7076
    %v7078 = vpop.f32.mrf.mxu0
    %7079 = vmatprep.mubr.f32.mxu0 0.0
    %7080 = vmatmul.mubr.f32.gmra.mxu0 %v5149
    %v7081 = vpop.f32.mrf.mxu0
    %v7082 = vadd.f32 %v6790, %v7081
    %v7083 = vpop.f32.mrf.mxu0
    %7084 = vmatprep.mubr.f32.mxu0 0.0
    %7085 = vmatmul.mubr.f32.gmra.mxu0 %v5150
    %v7086 = vpop.f32.mrf.mxu0
    %v7087 = vadd.f32 %v6790, %v7086
    %v7088 = vpop.f32.mrf.mxu0
    %7089 = vmatprep.mubr.f32.mxu0 0.0
    %7090 = vmatmul.mubr.f32.gmra.mxu0 %v5151
    %v7091 = vpop.f32.mrf.mxu0
    %v7092 = vadd.f32 %v6790, %v7091
    %v7093 = vpop.f32.mrf.mxu0
    %7094 = vmatprep.mubr.f32.mxu0 0.0
    %7095 = vmatmul.mubr.f32.gmra.mxu0 %v5152
    %v7096 = vpop.f32.mrf.mxu0
    %v7097 = vadd.f32 %v6790, %v7096
    %v7098 = vpop.f32.mrf.mxu0
    %7099 = vdwg.mxu0
    %v7100 = vadd.f32 %v6490, %v6861
    %v7101 = vadd.f32 %v6496, %v6867
    %v7102 = vadd.f32 %v6502, %v6873
    %v7103 = vadd.f32 %v6508, %v6879
    %v7104 = vadd.f32 %v6514, %v6885
    %v7105 = vadd.f32 %v6520, %v6891
    %v7106 = vadd.f32 %v6526, %v6897
    %v7107 = vadd.f32 %v6532, %v6903
    %v7108 = vadd.f32 %v6538, %v6909
    %v7109 = vadd.f32 %v6544, %v6915
    %v7110 = vadd.f32 %v6550, %v6921
    %v7111 = vadd.f32 %v6556, %v6927
    %v7112 = vadd.f32 %v6562, %v6933
    %v7113 = vadd.f32 %v6568, %v6939
    %v7114 = vadd.f32 %v6574, %v6945
    %v7115 = vadd.f32 %v6580, %v6951
    %v7116 = vxor.u32 %v7100, 2147483648
    %v7117 = vxor.u32 %v7101, 2147483648
    %v7118 = vxor.u32 %v7102, 2147483648
    %v7119 = vxor.u32 %v7103, 2147483648
    %v7120 = vxor.u32 %v7104, 2147483648
    %v7121 = vxor.u32 %v7105, 2147483648
    %v7122 = vxor.u32 %v7106, 2147483648
    %v7123 = vxor.u32 %v7107, 2147483648
    %v7124 = vxor.u32 %v7108, 2147483648
    %v7125 = vxor.u32 %v7109, 2147483648
    %v7126 = vxor.u32 %v7110, 2147483648
    %v7127 = vxor.u32 %v7111, 2147483648
    %v7128 = vxor.u32 %v7112, 2147483648
    %v7129 = vxor.u32 %v7113, 2147483648
    %v7130 = vxor.u32 %v7114, 2147483648
    %v7131 = vxor.u32 %v7115, 2147483648
    %v7132 = vmul.f32 %v7116, 1.442695
    %v7133 = vpow.pop %v7132
    %v7134 = vmul.f32 %v7117, 1.442695
    %v7135 = vpow.pop %v7134
    %v7136 = vmul.f32 %v7118, 1.442695
    %v7137 = vpow.pop %v7136
    %v7138 = vmul.f32 %v7119, 1.442695
    %v7139 = vpow.pop %v7138
    %v7140 = vmul.f32 %v7120, 1.442695
    %v7141 = vpow.pop %v7140
    %v7142 = vmul.f32 %v7121, 1.442695
    %v7143 = vpow.pop %v7142
    %v7144 = vmul.f32 %v7122, 1.442695
    %v7145 = vpow.pop %v7144
    %v7146 = vmul.f32 %v7123, 1.442695
    %v7147 = vpow.pop %v7146
    %v7148 = vmul.f32 %v7124, 1.442695
    %v7149 = vpow.pop %v7148
    %v7150 = vmul.f32 %v7125, 1.442695
    %v7151 = vpow.pop %v7150
    %v7152 = vmul.f32 %v7126, 1.442695
    %v7153 = vpow.pop %v7152
    %v7154 = vmul.f32 %v7127, 1.442695
    %v7155 = vpow.pop %v7154
    %v7156 = vmul.f32 %v7128, 1.442695
    %v7157 = vpow.pop %v7156
    %v7158 = vmul.f32 %v7129, 1.442695
    %v7159 = vpow.pop %v7158
    %v7160 = vmul.f32 %v7130, 1.442695
    %v7161 = vpow.pop %v7160
    %v7162 = vmul.f32 %v7131, 1.442695
    %v7163 = vpow.pop %v7162
    %v7164 = vadd.f32 %v7133, 1.0
    %v7165 = vadd.f32 %v7135, 1.0
    %v7166 = vadd.f32 %v7137, 1.0
    %v7167 = vadd.f32 %v7139, 1.0
    %v7168 = vadd.f32 %v7141, 1.0
    %v7169 = vadd.f32 %v7143, 1.0
    %v7170 = vadd.f32 %v7145, 1.0
    %v7171 = vadd.f32 %v7147, 1.0
    %v7172 = vadd.f32 %v7149, 1.0
    %v7173 = vadd.f32 %v7151, 1.0
    %v7174 = vadd.f32 %v7153, 1.0
    %v7175 = vadd.f32 %v7155, 1.0
    %v7176 = vadd.f32 %v7157, 1.0
    %v7177 = vadd.f32 %v7159, 1.0
    %v7178 = vadd.f32 %v7161, 1.0
    %v7179 = vadd.f32 %v7163, 1.0
    %v7180 = vrcp.pop %v7164
    %v7181 = vmul.f32 1.0, %v7180
    %v7182 = vrcp.pop %v7165
    %v7183 = vmul.f32 1.0, %v7182
    %v7184 = vrcp.pop %v7166
    %v7185 = vmul.f32 1.0, %v7184
    %v7186 = vrcp.pop %v7167
    %v7187 = vmul.f32 1.0, %v7186
    %v7188 = vrcp.pop %v7168
    %v7189 = vmul.f32 1.0, %v7188
    %v7190 = vrcp.pop %v7169
    %v7191 = vmul.f32 1.0, %v7190
    %v7192 = vrcp.pop %v7170
    %v7193 = vmul.f32 1.0, %v7192
    %v7194 = vrcp.pop %v7171
    %v7195 = vmul.f32 1.0, %v7194
    %v7196 = vrcp.pop %v7172
    %v7197 = vmul.f32 1.0, %v7196
    %v7198 = vrcp.pop %v7173
    %v7199 = vmul.f32 1.0, %v7198
    %v7200 = vrcp.pop %v7174
    %v7201 = vmul.f32 1.0, %v7200
    %v7202 = vrcp.pop %v7175
    %v7203 = vmul.f32 1.0, %v7202
    %v7204 = vrcp.pop %v7176
    %v7205 = vmul.f32 1.0, %v7204
    %v7206 = vrcp.pop %v7177
    %v7207 = vmul.f32 1.0, %v7206
    %v7208 = vrcp.pop %v7178
    %v7209 = vmul.f32 1.0, %v7208
    %v7210 = vrcp.pop %v7179
    %v7211 = vmul.f32 1.0, %v7210
    %v7212 = vadd.f32 %v6492, %v6863
    %v7213 = vadd.f32 %v6498, %v6869
    %v7214 = vadd.f32 %v6504, %v6875
    %v7215 = vadd.f32 %v6510, %v6881
    %v7216 = vadd.f32 %v6516, %v6887
    %v7217 = vadd.f32 %v6522, %v6893
    %v7218 = vadd.f32 %v6528, %v6899
    %v7219 = vadd.f32 %v6534, %v6905
    %v7220 = vadd.f32 %v6540, %v6911
    %v7221 = vadd.f32 %v6546, %v6917
    %v7222 = vadd.f32 %v6552, %v6923
    %v7223 = vadd.f32 %v6558, %v6929
    %v7224 = vadd.f32 %v6564, %v6935
    %v7225 = vadd.f32 %v6570, %v6941
    %v7226 = vadd.f32 %v6576, %v6947
    %v7227 = vadd.f32 %v6582, %v6953
    %v7228 = vxor.u32 %v7212, 2147483648
    %v7229 = vxor.u32 %v7213, 2147483648
    %v7230 = vxor.u32 %v7214, 2147483648
    %v7231 = vxor.u32 %v7215, 2147483648
    %v7232 = vxor.u32 %v7216, 2147483648
    %v7233 = vxor.u32 %v7217, 2147483648
    %v7234 = vxor.u32 %v7218, 2147483648
    %v7235 = vxor.u32 %v7219, 2147483648
    %v7236 = vxor.u32 %v7220, 2147483648
    %v7237 = vxor.u32 %v7221, 2147483648
    %v7238 = vxor.u32 %v7222, 2147483648
    %v7239 = vxor.u32 %v7223, 2147483648
    %v7240 = vxor.u32 %v7224, 2147483648
    %v7241 = vxor.u32 %v7225, 2147483648
    %v7242 = vxor.u32 %v7226, 2147483648
    %v7243 = vxor.u32 %v7227, 2147483648
    %v7244 = vmul.f32 %v7228, 1.442695
    %v7245 = vpow.pop %v7244
    %v7246 = vmul.f32 %v7229, 1.442695
    %v7247 = vpow.pop %v7246
    %v7248 = vmul.f32 %v7230, 1.442695
    %v7249 = vpow.pop %v7248
    %v7250 = vmul.f32 %v7231, 1.442695
    %v7251 = vpow.pop %v7250
    %v7252 = vmul.f32 %v7232, 1.442695
    %v7253 = vpow.pop %v7252
    %v7254 = vmul.f32 %v7233, 1.442695
    %v7255 = vpow.pop %v7254
    %v7256 = vmul.f32 %v7234, 1.442695
    %v7257 = vpow.pop %v7256
    %v7258 = vmul.f32 %v7235, 1.442695
    %v7259 = vpow.pop %v7258
    %v7260 = vmul.f32 %v7236, 1.442695
    %v7261 = vpow.pop %v7260
    %v7262 = vmul.f32 %v7237, 1.442695
    %v7263 = vpow.pop %v7262
    %v7264 = vmul.f32 %v7238, 1.442695
    %v7265 = vpow.pop %v7264
    %v7266 = vmul.f32 %v7239, 1.442695
    %v7267 = vpow.pop %v7266
    %v7268 = vmul.f32 %v7240, 1.442695
    %v7269 = vpow.pop %v7268
    %v7270 = vmul.f32 %v7241, 1.442695
    %v7271 = vpow.pop %v7270
    %v7272 = vmul.f32 %v7242, 1.442695
    %v7273 = vpow.pop %v7272
    %v7274 = vmul.f32 %v7243, 1.442695
    %v7275 = vpow.pop %v7274
    %v7276 = vadd.f32 %v7245, 1.0
    %v7277 = vadd.f32 %v7247, 1.0
    %v7278 = vadd.f32 %v7249, 1.0
    %v7279 = vadd.f32 %v7251, 1.0
    %v7280 = vadd.f32 %v7253, 1.0
    %v7281 = vadd.f32 %v7255, 1.0
    %v7282 = vadd.f32 %v7257, 1.0
    %v7283 = vadd.f32 %v7259, 1.0
    %v7284 = vadd.f32 %v7261, 1.0
    %v7285 = vadd.f32 %v7263, 1.0
    %v7286 = vadd.f32 %v7265, 1.0
    %v7287 = vadd.f32 %v7267, 1.0
    %v7288 = vadd.f32 %v7269, 1.0
    %v7289 = vadd.f32 %v7271, 1.0
    %v7290 = vadd.f32 %v7273, 1.0
    %v7291 = vadd.f32 %v7275, 1.0
    %v7292 = vrcp.pop %v7276
    %v7293 = vmul.f32 1.0, %v7292
    %v7294 = vrcp.pop %v7277
    %v7295 = vmul.f32 1.0, %v7294
    %v7296 = vrcp.pop %v7278
    %v7297 = vmul.f32 1.0, %v7296
    %v7298 = vrcp.pop %v7279
    %v7299 = vmul.f32 1.0, %v7298
    %v7300 = vrcp.pop %v7280
    %v7301 = vmul.f32 1.0, %v7300
    %v7302 = vrcp.pop %v7281
    %v7303 = vmul.f32 1.0, %v7302
    %v7304 = vrcp.pop %v7282
    %v7305 = vmul.f32 1.0, %v7304
    %v7306 = vrcp.pop %v7283
    %v7307 = vmul.f32 1.0, %v7306
    %v7308 = vrcp.pop %v7284
    %v7309 = vmul.f32 1.0, %v7308
    %v7310 = vrcp.pop %v7285
    %v7311 = vmul.f32 1.0, %v7310
    %v7312 = vrcp.pop %v7286
    %v7313 = vmul.f32 1.0, %v7312
    %v7314 = vrcp.pop %v7287
    %v7315 = vmul.f32 1.0, %v7314
    %v7316 = vrcp.pop %v7288
    %v7317 = vmul.f32 1.0, %v7316
    %v7318 = vrcp.pop %v7289
    %v7319 = vmul.f32 1.0, %v7318
    %v7320 = vrcp.pop %v7290
    %v7321 = vmul.f32 1.0, %v7320
    %v7322 = vrcp.pop %v7291
    %v7323 = vmul.f32 1.0, %v7322
    %v7324 = vmul.f32 %v7181, %v7022
    %v7325 = vmul.f32 %v7183, %v7027
    %v7326 = vmul.f32 %v7185, %v7032
    %v7327 = vmul.f32 %v7187, %v7037
    %v7328 = vmul.f32 %v7189, %v7042
    %v7329 = vmul.f32 %v7191, %v7047
    %v7330 = vmul.f32 %v7193, %v7052
    %v7331 = vmul.f32 %v7195, %v7057
    %v7332 = vmul.f32 %v7197, %v7062
    %v7333 = vmul.f32 %v7199, %v7067
    %v7334 = vmul.f32 %v7201, %v7072
    %v7335 = vmul.f32 %v7203, %v7077
    %v7336 = vmul.f32 %v7205, %v7082
    %v7337 = vmul.f32 %v7207, %v7087
    %v7338 = vmul.f32 %v7209, %v7092
    %v7339 = vmul.f32 %v7211, %v7097
    %v7340 = vadd.f32 %v6651, %v7324
    %v7341 = vadd.f32 %v6656, %v7325
    %v7342 = vadd.f32 %v6661, %v7326
    %v7343 = vadd.f32 %v6666, %v7327
    %v7344 = vadd.f32 %v6671, %v7328
    %v7345 = vadd.f32 %v6676, %v7329
    %v7346 = vadd.f32 %v6681, %v7330
    %v7347 = vadd.f32 %v6686, %v7331
    %v7348 = vadd.f32 %v6691, %v7332
    %v7349 = vadd.f32 %v6696, %v7333
    %v7350 = vadd.f32 %v6701, %v7334
    %v7351 = vadd.f32 %v6706, %v7335
    %v7352 = vadd.f32 %v6711, %v7336
    %v7353 = vadd.f32 %v6716, %v7337
    %v7354 = vadd.f32 %v6721, %v7338
    %v7355 = vadd.f32 %v6726, %v7339
    %v7356 = vtanh.pop %v7340
    %v7357 = vtanh.pop %v7341
    %v7358 = vtanh.pop %v7342
    %v7359 = vtanh.pop %v7343
    %v7360 = vtanh.pop %v7344
    %v7361 = vtanh.pop %v7345
    %v7362 = vtanh.pop %v7346
    %v7363 = vtanh.pop %v7347
    %v7364 = vtanh.pop %v7348
    %v7365 = vtanh.pop %v7349
    %v7366 = vtanh.pop %v7350
    %v7367 = vtanh.pop %v7351
    %v7368 = vtanh.pop %v7352
    %v7369 = vtanh.pop %v7353
    %v7370 = vtanh.pop %v7354
    %v7371 = vtanh.pop %v7355
    %v7372 = vsub.f32 1.0, %v7293
    %v7373 = vsub.f32 1.0, %v7295
    %v7374 = vsub.f32 1.0, %v7297
    %v7375 = vsub.f32 1.0, %v7299
    %v7376 = vsub.f32 1.0, %v7301
    %v7377 = vsub.f32 1.0, %v7303
    %v7378 = vsub.f32 1.0, %v7305
    %v7379 = vsub.f32 1.0, %v7307
    %v7380 = vsub.f32 1.0, %v7309
    %v7381 = vsub.f32 1.0, %v7311
    %v7382 = vsub.f32 1.0, %v7313
    %v7383 = vsub.f32 1.0, %v7315
    %v7384 = vsub.f32 1.0, %v7317
    %v7385 = vsub.f32 1.0, %v7319
    %v7386 = vsub.f32 1.0, %v7321
    %v7387 = vsub.f32 1.0, %v7323
    %v7388 = vmul.f32 %v7372, %v7356
    %v7389 = vmul.f32 %v7373, %v7357
    %v7390 = vmul.f32 %v7374, %v7358
    %v7391 = vmul.f32 %v7375, %v7359
    %v7392 = vmul.f32 %v7376, %v7360
    %v7393 = vmul.f32 %v7377, %v7361
    %v7394 = vmul.f32 %v7378, %v7362
    %v7395 = vmul.f32 %v7379, %v7363
    %v7396 = vmul.f32 %v7380, %v7364
    %v7397 = vmul.f32 %v7381, %v7365
    %v7398 = vmul.f32 %v7382, %v7366
    %v7399 = vmul.f32 %v7383, %v7367
    %v7400 = vmul.f32 %v7384, %v7368
    %v7401 = vmul.f32 %v7385, %v7369
    %v7402 = vmul.f32 %v7386, %v7370
    %v7403 = vmul.f32 %v7387, %v7371
    %v7404 = vmul.f32 %v7293, %v5137
    %v7405 = vmul.f32 %v7295, %v5138
    %v7406 = vmul.f32 %v7297, %v5139
    %v7407 = vmul.f32 %v7299, %v5140
    %v7408 = vmul.f32 %v7301, %v5141
    %v7409 = vmul.f32 %v7303, %v5142
    %v7410 = vmul.f32 %v7305, %v5143
    %v7411 = vmul.f32 %v7307, %v5144
    %v7412 = vmul.f32 %v7309, %v5145
    %v7413 = vmul.f32 %v7311, %v5146
    %v7414 = vmul.f32 %v7313, %v5147
    %v7415 = vmul.f32 %v7315, %v5148
    %v7416 = vmul.f32 %v7317, %v5149
    %v7417 = vmul.f32 %v7319, %v5150
    %v7418 = vmul.f32 %v7321, %v5151
    %v7419 = vmul.f32 %v7323, %v5152
    %v7420 = vadd.f32 %v7388, %v7404
    %v7421 = vadd.f32 %v7389, %v7405
    %v7422 = vadd.f32 %v7390, %v7406
    %v7423 = vadd.f32 %v7391, %v7407
    %v7424 = vadd.f32 %v7392, %v7408
    %v7425 = vadd.f32 %v7393, %v7409
    %v7426 = vadd.f32 %v7394, %v7410
    %v7427 = vadd.f32 %v7395, %v7411
    %v7428 = vadd.f32 %v7396, %v7412
    %v7429 = vadd.f32 %v7397, %v7413
    %v7430 = vadd.f32 %v7398, %v7414
    %v7431 = vadd.f32 %v7399, %v7415
    %v7432 = vadd.f32 %v7400, %v7416
    %v7433 = vadd.f32 %v7401, %v7417
    %v7434 = vadd.f32 %v7402, %v7418
    %v7435 = vadd.f32 %v7403, %v7419
    %7436 = vst [vmem:[#allocation2] sm:$0xff] %v7420
    %7437 = vst [vmem:[#allocation2 + $0x8] sm:$0xff] %v7421
    %7438 = vst [vmem:[#allocation2 + $0x10] sm:$0xff] %v7422
    %7439 = vst [vmem:[#allocation2 + $0x18] sm:$0xff] %v7423
    %7440 = vst [vmem:[#allocation2 + $0x20] sm:$0xff] %v7424
    %7441 = vst [vmem:[#allocation2 + $0x28] sm:$0xff] %v7425
    %7442 = vst [vmem:[#allocation2 + $0x30] sm:$0xff] %v7426
    %7443 = vst [vmem:[#allocation2 + $0x38] sm:$0xff] %v7427
    %7444 = vst [vmem:[#allocation2 + $0x40] sm:$0xff] %v7428
    %7445 = vst [vmem:[#allocation2 + $0x48] sm:$0xff] %v7429
    %7446 = vst [vmem:[#allocation2 + $0x50] sm:$0xff] %v7430
    %7447 = vst [vmem:[#allocation2 + $0x58] sm:$0xff] %v7431
    %7448 = vst [vmem:[#allocation2 + $0x60] sm:$0xff] %v7432
    %7449 = vst [vmem:[#allocation2 + $0x68] sm:$0xff] %v7433
    %7450 = vst [vmem:[#allocation2 + $0x70] sm:$0xff] %v7434
    %7451 = vst [vmem:[#allocation2 + $0x78] sm:$0xff] %v7435
    %v7452 = vld [vmem:[#allocation2] sm:$0xff]
    %v7453 = vld [vmem:[#allocation2 + $0x8] sm:$0xff]
    %v7454 = vld [vmem:[#allocation2 + $0x10] sm:$0xff]
    %v7455 = vld [vmem:[#allocation2 + $0x18] sm:$0xff]
    %v7456 = vld [vmem:[#allocation2 + $0x20] sm:$0xff]
    %v7457 = vld [vmem:[#allocation2 + $0x28] sm:$0xff]
    %v7458 = vld [vmem:[#allocation2 + $0x30] sm:$0xff]
    %v7459 = vld [vmem:[#allocation2 + $0x38] sm:$0xff]
    %v7460 = vld [vmem:[#allocation2 + $0x40] sm:$0xff]
    %v7461 = vld [vmem:[#allocation2 + $0x48] sm:$0xff]
    %v7462 = vld [vmem:[#allocation2 + $0x50] sm:$0xff]
    %v7463 = vld [vmem:[#allocation2 + $0x58] sm:$0xff]
    %v7464 = vld [vmem:[#allocation2 + $0x60] sm:$0xff]
    %v7465 = vld [vmem:[#allocation2 + $0x68] sm:$0xff]
    %v7466 = vld [vmem:[#allocation2 + $0x70] sm:$0xff]
    %v7467 = vld [vmem:[#allocation2 + $0x78] sm:$0xff]
    %v7468 = vld [vmem:[#allocation9] sm:$0xff]
    %7469 = vmatprep.subr.mxu0 0.0
    %7470 = vmatpush1.msra.mxu0 %v7467
    %7471 = vmatprep.subr.mxu0 0.0
    %7472 = vmatpush1.msra.mxu0 %v7466
    %7473 = vmatprep.subr.mxu0 0.0
    %7474 = vmatpush1.msra.mxu0 %v7465
    %7475 = vmatprep.subr.mxu0 0.0
    %7476 = vmatpush1.msra.mxu0 %v7464
    %7477 = vmatprep.subr.mxu0 0.0
    %7478 = vmatpush1.msra.mxu0 %v7463
    %7479 = vmatprep.subr.mxu0 0.0
    %7480 = vmatpush1.msra.mxu0 %v7462
    %7481 = vmatprep.subr.mxu0 0.0
    %7482 = vmatpush1.msra.mxu0 %v7461
    %7483 = vmatprep.subr.mxu0 0.0
    %7484 = vmatpush1.msra.mxu0 %v7460
    %7485 = vmatprep.subr.mxu0 0.0
    %7486 = vmatpush1.msra.mxu0 %v7459
    %7487 = vmatprep.subr.mxu0 0.0
    %7488 = vmatpush1.msra.mxu0 %v7458
    %7489 = vmatprep.subr.mxu0 0.0
    %7490 = vmatpush1.msra.mxu0 %v7457
    %7491 = vmatprep.subr.mxu0 0.0
    %7492 = vmatpush1.msra.mxu0 %v7456
    %7493 = vmatprep.subr.mxu0 0.0
    %7494 = vmatpush1.msra.mxu0 %v7455
    %7495 = vmatprep.subr.mxu0 0.0
    %7496 = vmatpush1.msra.mxu0 %v7454
    %7497 = vmatprep.subr.mxu0 0.0
    %7498 = vmatpush1.msra.mxu0 %v7453
    %7499 = vmatprep.subr.mxu0 0.0
    %7500 = vmatpush1.msra.mxu0 %v7452
    %7501 = vmatprep.subr.mxu0 0.0
    %7502 = vmatpush2.msra.mxu0 0.0
    %7503 = vmatprep.subr.mxu0 0.0
    %7504 = vmatpush2.msra.mxu0 0.0
    %7505 = vmatprep.subr.mxu0 0.0
    %7506 = vmatpush2.msra.mxu0 0.0
    %7507 = vmatprep.subr.mxu0 0.0
    %7508 = vmatpush2.msra.mxu0 0.0
    %7509 = vmatprep.subr.mxu0 0.0
    %7510 = vmatpush2.msra.mxu0 0.0
    %7511 = vmatprep.subr.mxu0 0.0
    %7512 = vmatpush2.msra.mxu0 0.0
    %7513 = vmatprep.subr.mxu0 0.0
    %7514 = vmatpush2.msra.mxu0 0.0
    %7515 = vmatprep.subr.mxu0 0.0
    %7516 = vmatpush2.msra.mxu0 0.0
    %7517 = vmatprep.subr.mxu0 0.0
    %7518 = vmatpush2.msra.mxu0 0.0
    %7519 = vmatprep.subr.mxu0 0.0
    %7520 = vmatpush2.msra.mxu0 0.0
    %7521 = vmatprep.subr.mxu0 0.0
    %7522 = vmatpush2.msra.mxu0 0.0
    %7523 = vmatprep.subr.mxu0 0.0
    %7524 = vmatpush2.msra.mxu0 0.0
    %7525 = vmatprep.subr.mxu0 0.0
    %7526 = vmatpush2.msra.mxu0 0.0
    %7527 = vmatprep.subr.mxu0 0.0
    %7528 = vmatpush2.msra.mxu0 0.0
    %7529 = vmatprep.subr.mxu0 0.0
    %7530 = vmatpush2.msra.mxu0 0.0
    %7531 = vmatprep.subr.mxu0 0.0
    %7532 = vmatpush2.msra.mxu0 0.0
    %7533 = vmatprep.mubr.f32.mxu0 0.0
    %7534 = vmatmul.mubr.f32.gmra.mxu0 %v7468
    %v7535 = vpop.f32.mrf.mxu0
    %v7536 = vadd.f32 0.0, %v7535
    %v7537 = vpop.f32.mrf.mxu0
    %7538 = vdwg.mxu0
    %v7539 = vld [vmem:[#allocation21] sm:$0xff]
    %v7540 = vld [vmem:[#allocation21 + $0x8] sm:$0xff]
    %v7541 = vld [vmem:[#allocation21 + $0x10] sm:$0xff]
    %v7542 = vld [vmem:[#allocation21 + $0x18] sm:$0xff]
    %v7543 = vld [vmem:[#allocation21 + $0x20] sm:$0xff]
    %v7544 = vld [vmem:[#allocation21 + $0x28] sm:$0xff]
    %v7545 = vld [vmem:[#allocation21 + $0x30] sm:$0xff]
    %v7546 = vld [vmem:[#allocation21 + $0x38] sm:$0xff]
    %v7547 = vld [vmem:[#allocation21 + $0x40] sm:$0xff]
    %v7548 = vld [vmem:[#allocation21 + $0x48] sm:$0xff]
    %v7549 = vld [vmem:[#allocation21 + $0x50] sm:$0xff]
    %v7550 = vld [vmem:[#allocation21 + $0x58] sm:$0xff]
    %v7551 = vld [vmem:[#allocation21 + $0x60] sm:$0xff]
    %v7552 = vld [vmem:[#allocation21 + $0x68] sm:$0xff]
    %v7553 = vld [vmem:[#allocation21 + $0x70] sm:$0xff]
    %v7554 = vld [vmem:[#allocation21 + $0x78] sm:$0xff]
    %v7555 = vld [vmem:[%s5] sm:$0xff]
    %v7556 = vld [vmem:[%s20] sm:$0x1]
    %7558 = vset.pattern.permute.xlu0 0
    %7559 = vperm.xlu0 %7558, %v7555
    %v7560 = vpop.permute.xlu0 %7559
    %v7563 = vlaneseq
    %v7564 = vshrl.u32 %v7563, 7
    %v7565 = vsub.s32 0, %v7564
    %v7566 = vrot.slane %v7556, %v7565
    %v7568 = vmul.f32 %v7560, %v7566
    %7569 = vmatprep.subr.mxu0 0.0
    %7570 = vmatpush1.msra.mxu0 %v7554
    %7571 = vmatprep.subr.mxu0 0.0
    %7572 = vmatpush1.msra.mxu0 %v7553
    %7573 = vmatprep.subr.mxu0 0.0
    %7574 = vmatpush1.msra.mxu0 %v7552
    %7575 = vmatprep.subr.mxu0 0.0
    %7576 = vmatpush1.msra.mxu0 %v7551
    %7577 = vmatprep.subr.mxu0 0.0
    %7578 = vmatpush1.msra.mxu0 %v7550
    %7579 = vmatprep.subr.mxu0 0.0
    %7580 = vmatpush1.msra.mxu0 %v7549
    %7581 = vmatprep.subr.mxu0 0.0
    %7582 = vmatpush1.msra.mxu0 %v7548
    %7583 = vmatprep.subr.mxu0 0.0
    %7584 = vmatpush1.msra.mxu0 %v7547
    %7585 = vmatprep.subr.mxu0 0.0
    %7586 = vmatpush1.msra.mxu0 %v7546
    %7587 = vmatprep.subr.mxu0 0.0
    %7588 = vmatpush1.msra.mxu0 %v7545
    %7589 = vmatprep.subr.mxu0 0.0
    %7590 = vmatpush1.msra.mxu0 %v7544
    %7591 = vmatprep.subr.mxu0 0.0
    %7592 = vmatpush1.msra.mxu0 %v7543
    %7593 = vmatprep.subr.mxu0 0.0
    %7594 = vmatpush1.msra.mxu0 %v7542
    %7595 = vmatprep.subr.mxu0 0.0
    %7596 = vmatpush1.msra.mxu0 %v7541
    %7597 = vmatprep.subr.mxu0 0.0
    %7598 = vmatpush1.msra.mxu0 %v7540
    %7599 = vmatprep.subr.mxu0 0.0
    %7600 = vmatpush1.msra.mxu0 %v7539
    %7601 = vmatprep.subr.mxu0 0.0
    %7602 = vmatpush2.msra.mxu0 0.0
    %7603 = vmatprep.subr.mxu0 0.0
    %7604 = vmatpush2.msra.mxu0 0.0
    %7605 = vmatprep.subr.mxu0 0.0
    %7606 = vmatpush2.msra.mxu0 0.0
    %7607 = vmatprep.subr.mxu0 0.0
    %7608 = vmatpush2.msra.mxu0 0.0
    %7609 = vmatprep.subr.mxu0 0.0
    %7610 = vmatpush2.msra.mxu0 0.0
    %7611 = vmatprep.subr.mxu0 0.0
    %7612 = vmatpush2.msra.mxu0 0.0
    %7613 = vmatprep.subr.mxu0 0.0
    %7614 = vmatpush2.msra.mxu0 0.0
    %7615 = vmatprep.subr.mxu0 0.0
    %7616 = vmatpush2.msra.mxu0 0.0
    %7617 = vmatprep.subr.mxu0 0.0
    %7618 = vmatpush2.msra.mxu0 0.0
    %7619 = vmatprep.subr.mxu0 0.0
    %7620 = vmatpush2.msra.mxu0 0.0
    %7621 = vmatprep.subr.mxu0 0.0
    %7622 = vmatpush2.msra.mxu0 0.0
    %7623 = vmatprep.subr.mxu0 0.0
    %7624 = vmatpush2.msra.mxu0 0.0
    %7625 = vmatprep.subr.mxu0 0.0
    %7626 = vmatpush2.msra.mxu0 0.0
    %7627 = vmatprep.subr.mxu0 0.0
    %7628 = vmatpush2.msra.mxu0 0.0
    %7629 = vmatprep.subr.mxu0 0.0
    %7630 = vmatpush2.msra.mxu0 0.0
    %7631 = vmatprep.subr.mxu0 0.0
    %7632 = vmatpush2.msra.mxu0 0.0
    %7633 = vmatprep.mubr.f32.mxu0 0.0
    %7634 = vmatmul.mubr.f32.gmra.mxu0 %v7536
    %v7635 = vpop.f32.mrf.mxu0
    %v7636 = vadd.f32 %v7568, %v7635
    %v7637 = vpop.f32.mrf.mxu0
    %7638 = vdwg.mxu0
    %v7639 = vld [vmem:[%s21] sm:$0x1]
    %v7641 = vlaneseq
    %v7642 = vshrl.u32 %v7641, 7
    %v7643 = vsub.s32 0, %v7642
    %v7644 = vrot.slane %v7639, %v7643
    %v7646 = vadd.f32 %v7636, %v7644
    %v7647 = vmax.f32 %v7646, 0.0
    %v7648 = vld [vmem:[#allocation22] sm:$0xff]
    %v7649 = vld [vmem:[#allocation22 + $0x8] sm:$0xff]
    %v7650 = vld [vmem:[#allocation22 + $0x10] sm:$0xff]
    %v7651 = vld [vmem:[#allocation22 + $0x18] sm:$0xff]
    %v7652 = vld [vmem:[#allocation22 + $0x20] sm:$0xff]
    %v7653 = vld [vmem:[#allocation22 + $0x28] sm:$0xff]
    %v7654 = vld [vmem:[#allocation22 + $0x30] sm:$0xff]
    %v7655 = vld [vmem:[#allocation22 + $0x38] sm:$0xff]
    %v7656 = vld [vmem:[#allocation22 + $0x40] sm:$0xff]
    %v7657 = vld [vmem:[#allocation22 + $0x48] sm:$0xff]
    %v7658 = vld [vmem:[#allocation22 + $0x50] sm:$0xff]
    %v7659 = vld [vmem:[#allocation22 + $0x58] sm:$0xff]
    %v7660 = vld [vmem:[#allocation22 + $0x60] sm:$0xff]
    %v7661 = vld [vmem:[#allocation22 + $0x68] sm:$0xff]
    %v7662 = vld [vmem:[#allocation22 + $0x70] sm:$0xff]
    %v7663 = vld [vmem:[#allocation22 + $0x78] sm:$0xff]
    %v7664 = vld [vmem:[%s23] sm:$0x1]
    %v7666 = vlaneseq
    %v7667 = vshrl.u32 %v7666, 7
    %v7668 = vsub.s32 0, %v7667
    %v7669 = vrot.slane %v7664, %v7668
    %7671 = vmatprep.subr.mxu0 0.0
    %7672 = vmatpush1.msra.mxu0 %v7663
    %7673 = vmatprep.subr.mxu0 0.0
    %7674 = vmatpush1.msra.mxu0 %v7662
    %7675 = vmatprep.subr.mxu0 0.0
    %7676 = vmatpush1.msra.mxu0 %v7661
    %7677 = vmatprep.subr.mxu0 0.0
    %7678 = vmatpush1.msra.mxu0 %v7660
    %7679 = vmatprep.subr.mxu0 0.0
    %7680 = vmatpush1.msra.mxu0 %v7659
    %7681 = vmatprep.subr.mxu0 0.0
    %7682 = vmatpush1.msra.mxu0 %v7658
    %7683 = vmatprep.subr.mxu0 0.0
    %7684 = vmatpush1.msra.mxu0 %v7657
    %7685 = vmatprep.subr.mxu0 0.0
    %7686 = vmatpush1.msra.mxu0 %v7656
    %7687 = vmatprep.subr.mxu0 0.0
    %7688 = vmatpush1.msra.mxu0 %v7655
    %7689 = vmatprep.subr.mxu0 0.0
    %7690 = vmatpush1.msra.mxu0 %v7654
    %7691 = vmatprep.subr.mxu0 0.0
    %7692 = vmatpush1.msra.mxu0 %v7653
    %7693 = vmatprep.subr.mxu0 0.0
    %7694 = vmatpush1.msra.mxu0 %v7652
    %7695 = vmatprep.subr.mxu0 0.0
    %7696 = vmatpush1.msra.mxu0 %v7651
    %7697 = vmatprep.subr.mxu0 0.0
    %7698 = vmatpush1.msra.mxu0 %v7650
    %7699 = vmatprep.subr.mxu0 0.0
    %7700 = vmatpush1.msra.mxu0 %v7649
    %7701 = vmatprep.subr.mxu0 0.0
    %7702 = vmatpush1.msra.mxu0 %v7648
    %7703 = vmatprep.subr.mxu0 0.0
    %7704 = vmatpush2.msra.mxu0 0.0
    %7705 = vmatprep.subr.mxu0 0.0
    %7706 = vmatpush2.msra.mxu0 0.0
    %7707 = vmatprep.subr.mxu0 0.0
    %7708 = vmatpush2.msra.mxu0 0.0
    %7709 = vmatprep.subr.mxu0 0.0
    %7710 = vmatpush2.msra.mxu0 0.0
    %7711 = vmatprep.subr.mxu0 0.0
    %7712 = vmatpush2.msra.mxu0 0.0
    %7713 = vmatprep.subr.mxu0 0.0
    %7714 = vmatpush2.msra.mxu0 0.0
    %7715 = vmatprep.subr.mxu0 0.0
    %7716 = vmatpush2.msra.mxu0 0.0
    %7717 = vmatprep.subr.mxu0 0.0
    %7718 = vmatpush2.msra.mxu0 0.0
    %7719 = vmatprep.subr.mxu0 0.0
    %7720 = vmatpush2.msra.mxu0 0.0
    %7721 = vmatprep.subr.mxu0 0.0
    %7722 = vmatpush2.msra.mxu0 0.0
    %7723 = vmatprep.subr.mxu0 0.0
    %7724 = vmatpush2.msra.mxu0 0.0
    %7725 = vmatprep.subr.mxu0 0.0
    %7726 = vmatpush2.msra.mxu0 0.0
    %7727 = vmatprep.subr.mxu0 0.0
    %7728 = vmatpush2.msra.mxu0 0.0
    %7729 = vmatprep.subr.mxu0 0.0
    %7730 = vmatpush2.msra.mxu0 0.0
    %7731 = vmatprep.subr.mxu0 0.0
    %7732 = vmatpush2.msra.mxu0 0.0
    %7733 = vmatprep.subr.mxu0 0.0
    %7734 = vmatpush2.msra.mxu0 0.0
    %7735 = vmatprep.mubr.f32.mxu0 0.0
    %7736 = vmatmul.mubr.f32.gmra.mxu0 %v7647
    %v7737 = vpop.f32.mrf.mxu0
    %v7738 = vadd.f32 %v7669, %v7737
    %v7739 = vpop.f32.mrf.mxu0
    %7740 = vdwg.mxu0
    %v7741 = vmax.f32 %v7738, 0.0
    %v7742 = vld [vmem:[#allocation24] sm:$0xff]
    %v7743 = vld [vmem:[#allocation24 + $0x8] sm:$0xff]
    %v7744 = vld [vmem:[#allocation24 + $0x10] sm:$0xff]
    %v7745 = vld [vmem:[#allocation24 + $0x18] sm:$0xff]
    %v7746 = vld [vmem:[#allocation24 + $0x20] sm:$0xff]
    %v7747 = vld [vmem:[#allocation24 + $0x28] sm:$0xff]
    %v7748 = vld [vmem:[#allocation24 + $0x30] sm:$0xff]
    %v7749 = vld [vmem:[#allocation24 + $0x38] sm:$0xff]
    %v7750 = vld [vmem:[#allocation24 + $0x40] sm:$0xff]
    %v7751 = vld [vmem:[#allocation24 + $0x48] sm:$0xff]
    %v7752 = vld [vmem:[#allocation24 + $0x50] sm:$0xff]
    %v7753 = vld [vmem:[#allocation24 + $0x58] sm:$0xff]
    %v7754 = vld [vmem:[#allocation24 + $0x60] sm:$0xff]
    %v7755 = vld [vmem:[#allocation24 + $0x68] sm:$0xff]
    %v7756 = vld [vmem:[#allocation24 + $0x70] sm:$0xff]
    %v7757 = vld [vmem:[#allocation24 + $0x78] sm:$0xff]
    %v7758 = vld [vmem:[%s25] sm:$0x1]
    %v7760 = vlaneseq
    %v7761 = vshrl.u32 %v7760, 7
    %v7762 = vsub.s32 0, %v7761
    %v7763 = vrot.slane %v7758, %v7762
    %7765 = vmatprep.subr.mxu0 0.0
    %7766 = vmatpush1.msra.mxu0 %v7757
    %7767 = vmatprep.subr.mxu0 0.0
    %7768 = vmatpush1.msra.mxu0 %v7756
    %7769 = vmatprep.subr.mxu0 0.0
    %7770 = vmatpush1.msra.mxu0 %v7755
    %7771 = vmatprep.subr.mxu0 0.0
    %7772 = vmatpush1.msra.mxu0 %v7754
    %7773 = vmatprep.subr.mxu0 0.0
    %7774 = vmatpush1.msra.mxu0 %v7753
    %7775 = vmatprep.subr.mxu0 0.0
    %7776 = vmatpush1.msra.mxu0 %v7752
    %7777 = vmatprep.subr.mxu0 0.0
    %7778 = vmatpush1.msra.mxu0 %v7751
    %7779 = vmatprep.subr.mxu0 0.0
    %7780 = vmatpush1.msra.mxu0 %v7750
    %7781 = vmatprep.subr.mxu0 0.0
    %7782 = vmatpush1.msra.mxu0 %v7749
    %7783 = vmatprep.subr.mxu0 0.0
    %7784 = vmatpush1.msra.mxu0 %v7748
    %7785 = vmatprep.subr.mxu0 0.0
    %7786 = vmatpush1.msra.mxu0 %v7747
    %7787 = vmatprep.subr.mxu0 0.0
    %7788 = vmatpush1.msra.mxu0 %v7746
    %7789 = vmatprep.subr.mxu0 0.0
    %7790 = vmatpush1.msra.mxu0 %v7745
    %7791 = vmatprep.subr.mxu0 0.0
    %7792 = vmatpush1.msra.mxu0 %v7744
    %7793 = vmatprep.subr.mxu0 0.0
    %7794 = vmatpush1.msra.mxu0 %v7743
    %7795 = vmatprep.subr.mxu0 0.0
    %7796 = vmatpush1.msra.mxu0 %v7742
    %7797 = vmatprep.subr.mxu0 0.0
    %7798 = vmatpush2.msra.mxu0 0.0
    %7799 = vmatprep.subr.mxu0 0.0
    %7800 = vmatpush2.msra.mxu0 0.0
    %7801 = vmatprep.subr.mxu0 0.0
    %7802 = vmatpush2.msra.mxu0 0.0
    %7803 = vmatprep.subr.mxu0 0.0
    %7804 = vmatpush2.msra.mxu0 0.0
    %7805 = vmatprep.subr.mxu0 0.0
    %7806 = vmatpush2.msra.mxu0 0.0
    %7807 = vmatprep.subr.mxu0 0.0
    %7808 = vmatpush2.msra.mxu0 0.0
    %7809 = vmatprep.subr.mxu0 0.0
    %7810 = vmatpush2.msra.mxu0 0.0
    %7811 = vmatprep.subr.mxu0 0.0
    %7812 = vmatpush2.msra.mxu0 0.0
    %7813 = vmatprep.subr.mxu0 0.0
    %7814 = vmatpush2.msra.mxu0 0.0
    %7815 = vmatprep.subr.mxu0 0.0
    %7816 = vmatpush2.msra.mxu0 0.0
    %7817 = vmatprep.subr.mxu0 0.0
    %7818 = vmatpush2.msra.mxu0 0.0
    %7819 = vmatprep.subr.mxu0 0.0
    %7820 = vmatpush2.msra.mxu0 0.0
    %7821 = vmatprep.subr.mxu0 0.0
    %7822 = vmatpush2.msra.mxu0 0.0
    %7823 = vmatprep.subr.mxu0 0.0
    %7824 = vmatpush2.msra.mxu0 0.0
    %7825 = vmatprep.subr.mxu0 0.0
    %7826 = vmatpush2.msra.mxu0 0.0
    %7827 = vmatprep.subr.mxu0 0.0
    %7828 = vmatpush2.msra.mxu0 0.0
    %7829 = vmatprep.mubr.f32.mxu0 0.0
    %7830 = vmatmul.mubr.f32.gmra.mxu0 %v7741
    %v7831 = vpop.f32.mrf.mxu0
    %v7832 = vadd.f32 %v7763, %v7831
    %v7833 = vpop.f32.mrf.mxu0
    %7834 = vdwg.mxu0
    %v7835 = vlaneseq
    %v7836 = vand.u32 %v7835, 127
    %vm7837 = vcmp.lt.s32.totalorder %v7836, 2
    %v7838 = vsel %vm7837, %v7832, -1e+30
    %7839 = vmax.xlane.f32.xlu0 %v7838
    %v7840 = vpop.xlane.xlu0 %7839
    %v7841 = vsub.f32 %v7838, %v7840
    %v7842 = vmul.f32 %v7841, 1.442695
    %v7843 = vpow.pop %v7842
    %7844 = vadd.xlane.f32.xlu0 %v7843
    %v7845 = vpop.xlane.xlu0 %7844
    %v7846 = vlog2.pop %v7845
    %v7847 = vmul.f32 %v7846, 0.6931472
    %v7848 = vadd.f32 %v7847, %v7840
    %v7849 = vsub.f32 %v7838, %v7848
    %v7850 = vld [vmem:[#allocation10] sm:$0xff]
    %vm7851 = vcmp.gt.f32.partialorder %v7850, 0.0
    %v7852 = vmax.f32 %v7850, 1e-30
    %v7853 = vlog2.pop %v7852
    %v7854 = vmul.f32 %v7853, 0.6931472
    %v7855 = vmul.f32 %v7850, %v7854
    %v7856 = vsel %vm7851, %v7855, 0.0
    %v7857 = vmul.f32 %v7850, %v7849
    %v7858 = vsub.f32 %v7856, %v7857
    %7859 = vadd.xlane.f32.xlu0 %v7858
    %v7860 = vpop.xlane.xlu0 %7859
    %v7861 = vrot.slane %v7860, 4
    %v7862 = vadd.f32 %v7860, %v7861
    %v7863 = vrot.slane %v7862, 2
    %v7864 = vadd.f32 %v7862, %v7863
    %v7865 = vrot.slane %v7864, 1
    %v7866 = vadd.f32 %v7864, %v7865
    %s7867 = vtos %v7866
    %s7868 = smul.f32 %s7867, 0.125
    %7869 = vst [vmem:[#allocation25] sm:$0xff] %v7849
    %v7870 = vstv %s7868
    %7871 = vst [vmem:[#allocation25 + $0x8] sm:$0xff] %v7870
    // Predicated region
    $region158: #{tpu_custom_call.1} parent=1 // pred_check
      _
    $region159: #{tpu_custom_call.1} parent=1 // pred_check_branch
      %7873 = sbr.rel (0) target = $region161
    $region160: #{tpu_custom_call.1} parent=1 // pred_region
      %s7875 = ssub.s32 256, 256
      %7876 = vsyncadd [#allocation6], %s7875
      %s7877 = sshll.u32 [#allocation25], 4
      %s7878 = int_to_ptr.vmem [resolvable:$true] %s7877
      %7883 = dma.vmem_to_hbm [thread:$0]  %s7878, 256, %s26, [#allocation6], 128, 128, 8
    $region161: #{tpu_custom_call.1} parent=1 // pred_fallthru
      _
    // Predicated region
    $region162: #{tpu_custom_call.1} parent=1 // pred_check
      _
    $region163: #{tpu_custom_call.1} parent=1 // pred_check_branch
      %7885 = sbr.rel (0) target = $region165
    $region164: #{tpu_custom_call.1} parent=1 // pred_region
      %7886 = dma.done [#allocation6], 256
    $region165: #{tpu_custom_call.1} parent=1 // pred_fallthru
      _
    %7887 = vsyncpa [#allocation5], 1
    %7888 = vsyncpa [#allocation8], 1
    %7889 = vsyncpa [#allocation11], 1
    %7890 = vsyncpa [#allocation14], 1
    %7891 = vsyncpa [#allocation17], 1
    %7892 = vsyncpa [#allocation20], 1
    %7893 = vsyncpa [#allocation23], 1
    %7894 = vsyncpa [#allocation6], 1

</llo_original>
